<compile_context>
chip_gen: v6e
topology: v6e:2x2x1
jax: 0.10.0
libtpu: 0.0.40
codegen_flags: <defaults>
</compile_context>

<pallas_src>
import jax
import jax.numpy as jnp
from jax.experimental import pallas as pl
from jax.experimental.pallas import tpu as pltpu

LANE = 128


def _round_up(x, m):
    return ((x + m - 1) // m) * m


def _choose_tb(B, tb):
    """Batch-tile heuristic: multiple of 8, <= 2048, >= 4 grid steps when B allows."""
    tb = int(min(tb, 2048, _round_up(B, 8)))
    tb = max(8, _round_up(tb, 8))
    # >= 4 grid steps (>= 2 per TensorCore on v7x megacore) once the batch is big enough,
    # without shrinking tiles below 256 rows.
    if B >= 4 * 256:
        tb = min(tb, max(256, _round_up(pl.cdiv(B, 4), 8)))
    return tb


def _mlp_kernel(x_ref,
                w1_ref, b1_ref,
                w2_ref, b2_ref,
                w3_ref, b3_ref,
                w4_ref, b4_ref,
                out_ref):
    """One batch-tile of the full MLP forward (weights VMEM-resident)."""

    def hidden(h_bf16, w_ref, b_ref):
        # Linear (+ folded BatchNorm) on the MXU: bf16 operands, f32 accumulate.
        z = jnp.dot(h_bf16, w_ref[...], preferred_element_type=jnp.float32)
        # Bias + ReLU in f32 on the VPU.  (Dropout is identity in eval mode.)
        return jnp.maximum(z + b_ref[...], 0.0)

    # f32 -> bf16 cast done here on the VPU (hides under the MXU); no wrapper copy of x.
    h = hidden(x_ref[...].astype(jnp.bfloat16), w1_ref, b1_ref)
    h = hidden(h.astype(jnp.bfloat16), w2_ref, b2_ref)
    h = hidden(h.astype(jnp.bfloat16), w3_ref, b3_ref)

    # Final Linear(in_dim -> 1): VPU multiply + lane reduction instead of an N=1 MXU matmul.
    z = jnp.sum(h * w4_ref[...], axis=-1, keepdims=True) + b4_ref[0, 0]
    out_ref[...] = z.astype(out_ref.dtype)


def aesthetic_predictor_forward(x, prepped, *, tb=1024):
    """Pallas forward. Returns shape (B,) like `predictor(x).squeeze(-1)`."""
    B, D = x.shape
    d_pad = prepped["d_in_pad"]

    if d_pad != D:
        # Rare path (embedding_dim not lane-aligned): zero-pad features so the zero-padded
        # weight K rows see zeros, never garbage.  Default D=768 skips this copy entirely.
        x = jnp.pad(x, ((0, 0), (0, d_pad - D)))

    tb = _choose_tb(B, tb)
    grid = pl.cdiv(B, tb)  # ragged last block: OOB rows masked on store, sliced off below

    (w1, b1), (w2, b2), (w3, b3) = prepped["hidden"]
    w4, b4 = prepped["final_w"], prepped["final_b"]
    h_pads = [w1.shape[1], w2.shape[1], w3.shape[1]]

    def resident(arr):
        # Full array, same block every grid step -> stays VMEM-resident (no re-DMA).
        # NOTE: pipeline_mode=pl.Buffered(1) would save ~1 MiB of weight double-buffers;
        # kept at the default for compatibility (accounted for in vmem_limit below).
        return pl.BlockSpec(arr.shape, lambda i: (0, 0))

    weight_bytes = sum(int(a.size) * a.dtype.itemsize
                       for a in (w1, b1, w2, b2, w3, b3, w4))
    # Per-row in-kernel temps: bf16 copy of x + f32 activations + bf16 copies for the next
    # matmul (generous).  Scales with tb so large tiles stay honest on v7x's 64 MiB VMEM.
    act_bytes_per_row = 2 * d_pad + sum(6 * h for h in h_pads) + 4 * h_pads[-1]
    vmem_limit = int(2 * weight_bytes                      # weights (default double-buffer)
                     + 2 * tb * d_pad * x.dtype.itemsize   # x tile, double-buffered
                     + 2 * tb * 4                          # out tile, double-buffered
                     + tb * act_bytes_per_row              # activation temps
                     + (8 << 20))                          # compiler scratch headroom
    vmem_limit = min(vmem_limit, 64 << 20)                 # v7x physical VMEM ceiling

    d1, d2, d3 = h_pads
    cost = pl.CostEstimate(
        flops=int(2 * B * (d_pad * d1 + d1 * d2 + d2 * d3 + d3)),
        transcendentals=0,
        bytes_accessed=int(B * d_pad * x.dtype.itemsize + weight_bytes
                           + int(b4.size) * b4.dtype.itemsize + B * 4),
    )

    out = pl.pallas_call(
        _mlp_kernel,
        out_shape=jax.ShapeDtypeStruct((B, 1), jnp.float32),
        grid=(grid,),
        in_specs=[
            pl.BlockSpec((tb, d_pad), lambda i: (i, 0)),   # x: batch-tiled, ragged tail OK
            resident(w1), resident(b1),
            resident(w2), resident(b2),
            resident(w3), resident(b3),
            resident(w4),
            pl.BlockSpec(memory_space=pltpu.MemorySpace.SMEM),   # scalar final bias
        ],
        out_specs=pl.BlockSpec((tb, 1), lambda i: (i, 0)),
        compiler_params=pltpu.CompilerParams(
            dimension_semantics=("parallel",),
            vmem_limit_bytes=vmem_limit,
        ),
        cost_estimate=cost,
    )(x, w1, b1, w2, b2, w3, b3, w4, b4)

    return out[:, 0]  # squeeze(-1)


def make_raw_params(key, embedding_dim, hidden_dims):
    """Deterministic synthetic parameters mirroring the PyTorch module (eval mode)."""
    params = {"hidden": []}
    in_dim = embedding_dim
    for h in hidden_dims:
        key, kw, kb, kg, kbe, km, kv = jax.random.split(key, 7)
        w = jax.random.normal(kw, (h, in_dim), jnp.float32) / jnp.sqrt(in_dim)  # nn.Linear.weight
        b = 0.01 * jax.random.normal(kb, (h,), jnp.float32)                      # nn.Linear.bias
        gamma = 1.0 + 0.1 * jax.random.normal(kg, (h,), jnp.float32)             # BN affine
        beta = 0.1 * jax.random.normal(kbe, (h,), jnp.float32)
        mean = 0.1 * jax.random.normal(km, (h,), jnp.float32)                    # BN running stats
        var = 1.0 + 0.1 * jnp.abs(jax.random.normal(kv, (h,), jnp.float32))
        params["hidden"].append(dict(w=w, b=b, gamma=gamma, beta=beta, mean=mean, var=var))
        in_dim = h
    key, kw, kb = jax.random.split(key, 3)
    params["final_w"] = jax.random.normal(kw, (1, in_dim), jnp.float32) / jnp.sqrt(in_dim)
    params["final_b"] = 0.01 * jax.random.normal(kb, (1,), jnp.float32)
    return params


def prepare_params(raw, embedding_dim, hidden_dims, eps=1e-5):
    """Fold eval-mode BN into the Linear weights, pad feature dims to 128, cast to bf16."""
    d_in_pad = _round_up(embedding_dim, LANE)
    prepped = {"d_in_pad": d_in_pad, "hidden": []}
    in_dim, in_pad = embedding_dim, d_in_pad
    for layer, h in zip(raw["hidden"], hidden_dims):
        out_pad = _round_up(h, LANE)
        scale = layer["gamma"] / jnp.sqrt(layer["var"] + eps)       # (h,)
        shift = layer["beta"] - layer["mean"] * scale
        w_folded = layer["w"].T * scale[None, :]                    # (in, h), BN folded per column
        b_folded = layer["b"] * scale + shift                       # (h,)
        # Keep the zero-padded weight K dimension regardless (padded x columns must hit zeros).
        w_p = jnp.zeros((in_pad, out_pad), jnp.float32).at[:in_dim, :h].set(w_folded)
        b_p = jnp.zeros((1, out_pad), jnp.float32).at[0, :h].set(b_folded)
        prepped["hidden"].append((w_p.astype(jnp.bfloat16), b_p))
        in_dim, in_pad = h, out_pad
    w4 = jnp.zeros((1, in_pad), jnp.float32).at[0, :in_dim].set(raw["final_w"][0])
    prepped["final_w"] = w4                                         # f32 (VPU path)
    prepped["final_b"] = raw["final_b"].reshape(1, 1)               # (1, 1) f32, SMEM scalar
    return prepped


def reference_forward(x, prepped):
    """Pure-JAX reference with the same precision choices as the kernel.
    NOTE: this shares the kernel's bf16 folding; expect ~1e-2 rel. deviation vs the f32
    PyTorch model (acceptable for a score head)."""
    D = x.shape[1]
    d_pad = prepped["d_in_pad"]
    h32 = jnp.pad(x, ((0, 0), (0, d_pad - D))).astype(jnp.float32)
    for (w_bf, b) in prepped["hidden"]:
        z = jnp.dot(h32.astype(jnp.bfloat16), w_bf, preferred_element_type=jnp.float32) + b
        h32 = jnp.maximum(z, 0.0)
    return jnp.sum(h32 * prepped["final_w"], axis=-1) + prepped["final_b"][0, 0]


if __name__ == "__main__":
    # Module defaults: embedding_dim=768, hidden_dims=[512, 256, 128] (lane-aligned -> no
    # wrapper copy of x).  B=1000 with tb=512 exercises grid=2 and a ragged last block
    # (rows 1000..1023 are OOB garbage whose outputs are masked/sliced).
    B = 1000
    embedding_dim = 768
    hidden_dims = [512, 256, 128]

    key = jax.random.PRNGKey(0)
    key, kx = jax.random.split(key)
    x = jax.random.normal(kx, (B, embedding_dim), jnp.float32)

    raw = make_raw_params(key, embedding_dim, hidden_dims)
    prepped = prepare_params(raw, embedding_dim, hidden_dims)

    out = aesthetic_predictor_forward(x, prepped, tb=512)
    out = jax.block_until_ready(out)

    ref = reference_forward(x, prepped)
    assert out.shape == (B,), out.shape
    assert jnp.allclose(out, ref, atol=2e-2, rtol=2e-2), (
        float(jnp.max(jnp.abs(out - ref))))

    print("KERNEL_OK")
</pallas_src>

<mosaic_0001>
module attributes {stable_mosaic.version = 11 : i64} {
  func.func @_mlp_kernel(%arg0: i32, %arg1: memref<512x768xf32, #tpu.memory_space<vmem>>, %arg2: memref<768x512xbf16, #tpu.memory_space<vmem>>, %arg3: memref<1x512xf32, #tpu.memory_space<vmem>>, %arg4: memref<512x256xbf16, #tpu.memory_space<vmem>>, %arg5: memref<1x256xf32, #tpu.memory_space<vmem>>, %arg6: memref<256x128xbf16, #tpu.memory_space<vmem>>, %arg7: memref<1x128xf32, #tpu.memory_space<vmem>>, %arg8: memref<1x128xf32, #tpu.memory_space<vmem>>, %arg9: memref<1x1xf32, #tpu.memory_space<smem>>, %arg10: memref<512x1xf32, #tpu.memory_space<vmem>>) attributes {dimension_semantics = [#tpu.dimension_semantics<parallel>], iteration_bounds = array<i64: 2>, scalar_prefetch = 0 : i64, scratch_operands = 0 : i64, tpu.core_type = #tpu.core_type<tc>, window_params = [{transform_indices = @transform_0, window_bounds = array<i64: 512, 768>}, {pipeline_mode = #tpu.pipeline_mode<synchronous>, transform_indices = @transform_1, window_bounds = array<i64: 768, 512>}, {pipeline_mode = #tpu.pipeline_mode<synchronous>, transform_indices = @transform_2, window_bounds = array<i64: 1, 512>}, {pipeline_mode = #tpu.pipeline_mode<synchronous>, transform_indices = @transform_3, window_bounds = array<i64: 512, 256>}, {pipeline_mode = #tpu.pipeline_mode<synchronous>, transform_indices = @transform_4, window_bounds = array<i64: 1, 256>}, {pipeline_mode = #tpu.pipeline_mode<synchronous>, transform_indices = @transform_5, window_bounds = array<i64: 256, 128>}, {pipeline_mode = #tpu.pipeline_mode<synchronous>, transform_indices = @transform_6, window_bounds = array<i64: 1, 128>}, {pipeline_mode = #tpu.pipeline_mode<synchronous>, transform_indices = @transform_7, window_bounds = array<i64: 1, 128>}, {transform_indices = @transform_8, window_bounds = array<i64: 1, 1>}, {transform_indices = @transform_9, window_bounds = array<i64: 512, 1>}]} {
    %c0 = arith.constant 0 : index
    %c0_0 = arith.constant 0 : index
    %0 = vector.load %arg1[%c0, %c0_0] : memref<512x768xf32, #tpu.memory_space<vmem>>, vector<512x768xf32>
    %1 = arith.truncf %0 : vector<512x768xf32> to vector<512x768xbf16>
    %c0_1 = arith.constant 0 : index
    %c0_2 = arith.constant 0 : index
    %2 = vector.load %arg2[%c0_1, %c0_2] : memref<768x512xbf16, #tpu.memory_space<vmem>>, vector<768x512xbf16>
    %cst = arith.constant dense<0.000000e+00> : vector<512x512xf32>
    %3 = tpu.matmul %1, %2, %cst {dimension_numbers = #tpu.dot_dimension_numbers<[1], [0], [0], [1], [0, 0, 1, 1], [], []>} : vector<512x768xbf16>, vector<768x512xbf16>, vector<512x512xf32> -> vector<512x512xf32>
    %c0_3 = arith.constant 0 : index
    %c0_4 = arith.constant 0 : index
    %4 = vector.load %arg3[%c0_3, %c0_4] : memref<1x512xf32, #tpu.memory_space<vmem>>, vector<1x512xf32>
    %5 = vector.broadcast %4 : vector<1x512xf32> to vector<512x512xf32>
    %6 = arith.addf %3, %5 : vector<512x512xf32>
    %cst_5 = arith.constant 0.000000e+00 : f32
    %7 = vector.broadcast %cst_5 : f32 to vector<512x512xf32>
    %8 = arith.maximumf %6, %7 : vector<512x512xf32>
    %9 = arith.truncf %8 : vector<512x512xf32> to vector<512x512xbf16>
    %c0_6 = arith.constant 0 : index
    %c0_7 = arith.constant 0 : index
    %10 = vector.load %arg4[%c0_6, %c0_7] : memref<512x256xbf16, #tpu.memory_space<vmem>>, vector<512x256xbf16>
    %cst_8 = arith.constant dense<0.000000e+00> : vector<512x256xf32>
    %11 = tpu.matmul %9, %10, %cst_8 {dimension_numbers = #tpu.dot_dimension_numbers<[1], [0], [0], [1], [0, 0, 1, 1], [], []>} : vector<512x512xbf16>, vector<512x256xbf16>, vector<512x256xf32> -> vector<512x256xf32>
    %c0_9 = arith.constant 0 : index
    %c0_10 = arith.constant 0 : index
    %12 = vector.load %arg5[%c0_9, %c0_10] : memref<1x256xf32, #tpu.memory_space<vmem>>, vector<1x256xf32>
    %13 = vector.broadcast %12 : vector<1x256xf32> to vector<512x256xf32>
    %14 = arith.addf %11, %13 : vector<512x256xf32>
    %cst_11 = arith.constant 0.000000e+00 : f32
    %15 = vector.broadcast %cst_11 : f32 to vector<512x256xf32>
    %16 = arith.maximumf %14, %15 : vector<512x256xf32>
    %17 = arith.truncf %16 : vector<512x256xf32> to vector<512x256xbf16>
    %c0_12 = arith.constant 0 : index
    %c0_13 = arith.constant 0 : index
    %18 = vector.load %arg6[%c0_12, %c0_13] : memref<256x128xbf16, #tpu.memory_space<vmem>>, vector<256x128xbf16>
    %cst_14 = arith.constant dense<0.000000e+00> : vector<512x128xf32>
    %19 = tpu.matmul %17, %18, %cst_14 {dimension_numbers = #tpu.dot_dimension_numbers<[1], [0], [0], [1], [0, 0, 1, 1], [], []>} : vector<512x256xbf16>, vector<256x128xbf16>, vector<512x128xf32> -> vector<512x128xf32>
    %c0_15 = arith.constant 0 : index
    %c0_16 = arith.constant 0 : index
    %20 = vector.load %arg7[%c0_15, %c0_16] : memref<1x128xf32, #tpu.memory_space<vmem>>, vector<1x128xf32>
    %21 = vector.broadcast %20 : vector<1x128xf32> to vector<512x128xf32>
    %22 = arith.addf %19, %21 : vector<512x128xf32>
    %cst_17 = arith.constant 0.000000e+00 : f32
    %23 = vector.broadcast %cst_17 : f32 to vector<512x128xf32>
    %24 = arith.maximumf %22, %23 : vector<512x128xf32>
    %c0_18 = arith.constant 0 : index
    %c0_19 = arith.constant 0 : index
    %25 = vector.load %arg8[%c0_18, %c0_19] : memref<1x128xf32, #tpu.memory_space<vmem>>, vector<1x128xf32>
    %26 = vector.broadcast %25 : vector<1x128xf32> to vector<512x128xf32>
    %27 = arith.mulf %24, %26 : vector<512x128xf32>
    %cst_20 = arith.constant dense<0.000000e+00> : vector<512xf32>
    %28 = vector.multi_reduction <add>, %27, %cst_20 [1] : vector<512x128xf32> to vector<512xf32>
    %29 = vector.shape_cast %28 : vector<512xf32> to vector<512x1xf32>
    %c0_21 = arith.constant 0 : index
    %c0_22 = arith.constant 0 : index
    %30 = memref.load %arg9[%c0_21, %c0_22] : memref<1x1xf32, #tpu.memory_space<smem>>
    %31 = vector.broadcast %30 : f32 to vector<512x1xf32>
    %32 = arith.addf %29, %31 : vector<512x1xf32>
    %c0_23 = arith.constant 0 : index
    %c0_24 = arith.constant 0 : index
    %33 = vector.load %arg10[%c0_23, %c0_24] : memref<512x1xf32, #tpu.memory_space<vmem>>, vector<512x1xf32>
    tpu.vector_store %arg10[%c0_23, %c0_24], %32 {strides = array<i32>} : memref<512x1xf32, #tpu.memory_space<vmem>>, vector<512x1xf32>,
    return
  }
  func.func @transform_0(%arg0: i32) -> (i32, i32) {
    %c0_i32 = arith.constant 0 : i32
    %c0_i32_0 = arith.constant 0 : i32
    return %arg0, %c0_i32 : i32, i32
  }
  func.func @transform_1(%arg0: i32) -> (i32, i32) {
    %c0_i32 = arith.constant 0 : i32
    %c0_i32_0 = arith.constant 0 : i32
    %c0_i32_1 = arith.constant 0 : i32
    return %c0_i32, %c0_i32_0 : i32, i32
  }
  func.func @transform_2(%arg0: i32) -> (i32, i32) {
    %c0_i32 = arith.constant 0 : i32
    %c0_i32_0 = arith.constant 0 : i32
    %c0_i32_1 = arith.constant 0 : i32
    return %c0_i32, %c0_i32_0 : i32, i32
  }
  func.func @transform_3(%arg0: i32) -> (i32, i32) {
    %c0_i32 = arith.constant 0 : i32
    %c0_i32_0 = arith.constant 0 : i32
    %c0_i32_1 = arith.constant 0 : i32
    return %c0_i32, %c0_i32_0 : i32, i32
  }
  func.func @transform_4(%arg0: i32) -> (i32, i32) {
    %c0_i32 = arith.constant 0 : i32
    %c0_i32_0 = arith.constant 0 : i32
    %c0_i32_1 = arith.constant 0 : i32
    return %c0_i32, %c0_i32_0 : i32, i32
  }
  func.func @transform_5(%arg0: i32) -> (i32, i32) {
    %c0_i32 = arith.constant 0 : i32
    %c0_i32_0 = arith.constant 0 : i32
    %c0_i32_1 = arith.constant 0 : i32
    return %c0_i32, %c0_i32_0 : i32, i32
  }
  func.func @transform_6(%arg0: i32) -> (i32, i32) {
    %c0_i32 = arith.constant 0 : i32
    %c0_i32_0 = arith.constant 0 : i32
    %c0_i32_1 = arith.constant 0 : i32
    return %c0_i32, %c0_i32_0 : i32, i32
  }
  func.func @transform_7(%arg0: i32) -> (i32, i32) {
    %c0_i32 = arith.constant 0 : i32
    %c0_i32_0 = arith.constant 0 : i32
    %c0_i32_1 = arith.constant 0 : i32
    return %c0_i32, %c0_i32_0 : i32, i32
  }
  func.func @transform_8(%arg0: i32) -> (i32, i32) {
    %c0_i32 = arith.constant 0 : i32
    %c0_i32_0 = arith.constant 0 : i32
    %c0_i32_1 = arith.constant 0 : i32
    return %c0_i32, %c0_i32_0 : i32, i32
  }
  func.func @transform_9(%arg0: i32) -> (i32, i32) {
    %c0_i32 = arith.constant 0 : i32
    %c0_i32_0 = arith.constant 0 : i32
    return %arg0, %c0_i32 : i32, i32
  }
}

</mosaic_0001>

<llo_original>
// kernel: tpu_custom_call.1
$region0: #{tpu_custom_call.1}
  #allocation0 [shape = 'u32[]', space=smem, size = 0x4, offset = 0x4, fixed_abs, tag = 'smem constant byte address 0x4 - core index']
  #allocation1 [shape = 'u32[144,128]{1,0:T(1,128)}', space=vmem, size = 0x12000, scoped, tag = 'internal scratch']
  #allocation2 [shape = 'f32[1,1]{1,0:T(1,128)S(6)}', space=smem, size = 0x200, scoped, tag = 'scoped memory for tpu_custom_call.1']
  %s0 = inlined_call_operand.hbm [shape: f32[1000,768], index: 0, kind: input, shape index: {}]
  %s1 = inlined_call_operand.hbm [shape: bf16[768,512], index: 1, kind: input, shape index: {}]
  %s2 = inlined_call_operand.hbm [shape: f32[1,512], index: 2, kind: input, shape index: {}]
  %s3 = inlined_call_operand.hbm [shape: bf16[512,256], index: 3, kind: input, shape index: {}]
  %s4 = inlined_call_operand.hbm [shape: f32[1,256], index: 4, kind: input, shape index: {}]
  %s5 = inlined_call_operand.hbm [shape: bf16[256,128], index: 5, kind: input, shape index: {}]
  %s6 = inlined_call_operand.hbm [shape: f32[1,128], index: 6, kind: input, shape index: {}]
  %s7 = inlined_call_operand.hbm [shape: f32[1,128], index: 7, kind: input, shape index: {}]
  %s8 = inlined_call_operand.<no memory space> [shape: f32[1,1], index: 8, kind: input, shape index: {}]
  %s9 = inlined_call_operand.vmem [shape: f32[1000,1], index: 9, kind: output, shape index: {}]
  %s10 = sld [smem:[#allocation0]]
  $region149: #{tpu_custom_call.1} parent=0
    _
  %s12 = ssub.s32 1, %s10
  %s13 = scalar_select 0, %s12, %s10
  %14 = sst [smem:[#allocation2]] %s8
  $region1: #{tpu_custom_call.1} parent=0
    #allocation3 [shape = 'u8[3145728]{0}', space=vmem, size = 0x300000, scoped, tag = 'input window, operand 0']
    #allocation4 [shape = 's32[2]{0}', space=sflag, size = 0x8, scoped, tag = 'scoped memory for tpu_custom_call.1']
    #allocation5 [shape = 'u8[786432]{0}', space=vmem, size = 0xc0000, scoped, tag = 'input window, operand 1, single buffered']
    #allocation6 [shape = 's32[1]{0}', space=sflag, size = 0x4, scoped, tag = 'scoped memory for tpu_custom_call.1']
    #allocation7 [shape = 'u8[2048]{0}', space=vmem, size = 0x800, scoped, tag = 'input window, operand 2, single buffered']
    #allocation8 [shape = 'u8[262144]{0}', space=vmem, size = 0x40000, scoped, tag = 'input window, operand 3, single buffered']
    #allocation9 [shape = 's32[1]{0}', space=sflag, size = 0x4, scoped, tag = 'scoped memory for tpu_custom_call.1']
    #allocation10 [shape = 'u8[1024]{0}', space=vmem, size = 0x400, scoped, tag = 'input window, operand 4, single buffered']
    #allocation11 [shape = 'u8[65536]{0}', space=vmem, size = 0x10000, scoped, tag = 'input window, operand 5, single buffered']
    #allocation12 [shape = 's32[1]{0}', space=sflag, size = 0x4, scoped, tag = 'scoped memory for tpu_custom_call.1']
    #allocation13 [shape = 'u8[512]{0}', space=vmem, size = 0x400, scoped, tag = 'input window, operand 6, single buffered']
    #allocation14 [shape = 'u8[512]{0}', space=vmem, size = 0x400, scoped, tag = 'input window, operand 7, single buffered']
    #allocation15 [shape = 's32[1]{0}', space=sflag, size = 0x4, scoped, tag = 'scoped memory for tpu_custom_call.1']
    #allocation16 [shape = 'u8[524288]{0}', space=vmem, size = 0x80000, scoped, tag = 'output window, operand 0']
    %15 = vsyncpa [#allocation4], 0
    %s16 = scalar_lea.sflag [#allocation4], 1
    %17 = vsyncpa %s16, 0
    %18 = vsyncpa [#allocation6], 0
    %19 = vsyncpa [#allocation9], 0
    %20 = vsyncpa [#allocation12], 0
    %21 = vsyncpa [#allocation15], 0
    loop: start=0, step=1, limit=4
    $region2: #{tpu_custom_call.1} parent=1 // loop_pre_header
      _
    $region3: #{tpu_custom_call.1} parent=1 // loop_header
      %s23 = sphi 0, %s27
      %p24 = scmp.ge.s32.totalorder %s23, 4
      %s33 = sphi 0, %s35
      %s36 = sphi 0, %s33
      %s37 = sphi 0, %s36
      %s53 = sphi 0, %s37
      %s57 = sphi 0, %s57
      %s59 = sphi 0, %s57
      %s60 = sphi 0, %s59
      %s74 = sphi 0, %s60
      %s78 = sphi 0, %s78
      %s80 = sphi 0, %s78
      %s81 = sphi 0, %s80
      %s95 = sphi 0, %s81
      %s99 = sphi 0, %s99
      %s101 = sphi 0, %s99
      %s102 = sphi 0, %s101
      %s116 = sphi 0, %s102
      %s120 = sphi 0, %s120
      %s122 = sphi 0, %s120
      %s123 = sphi 0, %s122
      %s137 = sphi 0, %s123
      %s141 = sphi 0, %s141
      %s143 = sphi 0, %s141
      %s144 = sphi 0, %s143
      %s158 = sphi 0, %s144
      %s162 = sphi 0, %s162
      %s164 = sphi 0, %s162
      %s165 = sphi 0, %s164
      %s179 = sphi 0, %s165
      %s183 = sphi 0, %s183
      %s185 = sphi 0, %s183
      %s186 = sphi 0, %s185
      %s200 = sphi 0, %s186
      %s204 = sphi 0, %s204
      %s206 = sphi 0, %s204
      %s207 = sphi 0, %s206
      %s221 = sphi 0, %s207
      %s227 = sphi 0, %s229
      %s230 = sphi 0, %s227
      %s231 = sphi 0, %s230
      %s247 = sphi 0, %s231
    $region4: #{tpu_custom_call.1} parent=1 // loop_header_branch
      %26 = sbr.rel (%p24) target = $region8
    $region5: #{tpu_custom_call.1} parent=1 // loop_body
      %s28 = ssub.s32 %s23, 1
      %s29 = ssub.s32 %s23, 2
      %s30 = sadd.s32 %s23, 1
      %s31 = ssub.s32 %s23, %s30
      %p32 = scmp.eq.s32.totalorder %s31, 0
      %s34 = sadd.s32 %s33, 1
      %s35 = scalar_select %p32, %s33, %s34
      %p38 = pneg %p32
      %p39 = scmp.eq.s32.totalorder %s23, 1
      %p40 = por %p38, %p39
      %p41 = scmp.ne.s32.totalorder %s33, %s36
      %p42 = scmp.eq.s32.totalorder %s23, 0
      %p43 = por %p41, %p42
      %p44 = scmp.ne.s32.totalorder %s33, %s36
      %p45 = scmp.eq.s32.totalorder %s28, 1
      %p46 = por %p44, %p45
      %p47 = scmp.ne.s32.totalorder %s36, %s37
      %p48 = scmp.eq.s32.totalorder %s28, 0
      %p49 = por %p47, %p48
      %p50 = scmp.ne.s32.totalorder %s36, %s37
      %p51 = scmp.eq.s32.totalorder %s29, 1
      %p52 = por %p50, %p51
      %p54 = scmp.ne.s32.totalorder %s37, %s53
      %p55 = scmp.eq.s32.totalorder %s29, 0
      %p56 = por %p54, %p55
      %s58 = sadd.s32 %s57, 1
      %p61 = scmp.eq.s32.totalorder %s23, 1
      %p62 = scmp.ne.s32.totalorder %s57, %s59
      %p63 = scmp.eq.s32.totalorder %s23, 0
      %p64 = por %p62, %p63
      %p65 = scmp.ne.s32.totalorder %s57, %s59
      %p66 = scmp.eq.s32.totalorder %s28, 1
      %p67 = por %p65, %p66
      %p68 = scmp.ne.s32.totalorder %s59, %s60
      %p69 = scmp.eq.s32.totalorder %s28, 0
      %p70 = por %p68, %p69
      %p71 = scmp.ne.s32.totalorder %s59, %s60
      %p72 = scmp.eq.s32.totalorder %s29, 1
      %p73 = por %p71, %p72
      %p75 = scmp.ne.s32.totalorder %s60, %s74
      %p76 = scmp.eq.s32.totalorder %s29, 0
      %p77 = por %p75, %p76
      %s79 = sadd.s32 %s78, 1
      %p82 = scmp.eq.s32.totalorder %s23, 1
      %p83 = scmp.ne.s32.totalorder %s78, %s80
      %p84 = scmp.eq.s32.totalorder %s23, 0
      %p85 = por %p83, %p84
      %p86 = scmp.ne.s32.totalorder %s78, %s80
      %p87 = scmp.eq.s32.totalorder %s28, 1
      %p88 = por %p86, %p87
      %p89 = scmp.ne.s32.totalorder %s80, %s81
      %p90 = scmp.eq.s32.totalorder %s28, 0
      %p91 = por %p89, %p90
      %p92 = scmp.ne.s32.totalorder %s80, %s81
      %p93 = scmp.eq.s32.totalorder %s29, 1
      %p94 = por %p92, %p93
      %p96 = scmp.ne.s32.totalorder %s81, %s95
      %p97 = scmp.eq.s32.totalorder %s29, 0
      %p98 = por %p96, %p97
      %s100 = sadd.s32 %s99, 1
      %p103 = scmp.eq.s32.totalorder %s23, 1
      %p104 = scmp.ne.s32.totalorder %s99, %s101
      %p105 = scmp.eq.s32.totalorder %s23, 0
      %p106 = por %p104, %p105
      %p107 = scmp.ne.s32.totalorder %s99, %s101
      %p108 = scmp.eq.s32.totalorder %s28, 1
      %p109 = por %p107, %p108
      %p110 = scmp.ne.s32.totalorder %s101, %s102
      %p111 = scmp.eq.s32.totalorder %s28, 0
      %p112 = por %p110, %p111
      %p113 = scmp.ne.s32.totalorder %s101, %s102
      %p114 = scmp.eq.s32.totalorder %s29, 1
      %p115 = por %p113, %p114
      %p117 = scmp.ne.s32.totalorder %s102, %s116
      %p118 = scmp.eq.s32.totalorder %s29, 0
      %p119 = por %p117, %p118
      %s121 = sadd.s32 %s120, 1
      %p124 = scmp.eq.s32.totalorder %s23, 1
      %p125 = scmp.ne.s32.totalorder %s120, %s122
      %p126 = scmp.eq.s32.totalorder %s23, 0
      %p127 = por %p125, %p126
      %p128 = scmp.ne.s32.totalorder %s120, %s122
      %p129 = scmp.eq.s32.totalorder %s28, 1
      %p130 = por %p128, %p129
      %p131 = scmp.ne.s32.totalorder %s122, %s123
      %p132 = scmp.eq.s32.totalorder %s28, 0
      %p133 = por %p131, %p132
      %p134 = scmp.ne.s32.totalorder %s122, %s123
      %p135 = scmp.eq.s32.totalorder %s29, 1
      %p136 = por %p134, %p135
      %p138 = scmp.ne.s32.totalorder %s123, %s137
      %p139 = scmp.eq.s32.totalorder %s29, 0
      %p140 = por %p138, %p139
      %s142 = sadd.s32 %s141, 1
      %p145 = scmp.eq.s32.totalorder %s23, 1
      %p146 = scmp.ne.s32.totalorder %s141, %s143
      %p147 = scmp.eq.s32.totalorder %s23, 0
      %p148 = por %p146, %p147
      %p149 = scmp.ne.s32.totalorder %s141, %s143
      %p150 = scmp.eq.s32.totalorder %s28, 1
      %p151 = por %p149, %p150
      %p152 = scmp.ne.s32.totalorder %s143, %s144
      %p153 = scmp.eq.s32.totalorder %s28, 0
      %p154 = por %p152, %p153
      %p155 = scmp.ne.s32.totalorder %s143, %s144
      %p156 = scmp.eq.s32.totalorder %s29, 1
      %p157 = por %p155, %p156
      %p159 = scmp.ne.s32.totalorder %s144, %s158
      %p160 = scmp.eq.s32.totalorder %s29, 0
      %p161 = por %p159, %p160
      %s163 = sadd.s32 %s162, 1
      %p166 = scmp.eq.s32.totalorder %s23, 1
      %p167 = scmp.ne.s32.totalorder %s162, %s164
      %p168 = scmp.eq.s32.totalorder %s23, 0
      %p169 = por %p167, %p168
      %p170 = scmp.ne.s32.totalorder %s162, %s164
      %p171 = scmp.eq.s32.totalorder %s28, 1
      %p172 = por %p170, %p171
      %p173 = scmp.ne.s32.totalorder %s164, %s165
      %p174 = scmp.eq.s32.totalorder %s28, 0
      %p175 = por %p173, %p174
      %p176 = scmp.ne.s32.totalorder %s164, %s165
      %p177 = scmp.eq.s32.totalorder %s29, 1
      %p178 = por %p176, %p177
      %p180 = scmp.ne.s32.totalorder %s165, %s179
      %p181 = scmp.eq.s32.totalorder %s29, 0
      %p182 = por %p180, %p181
      %s184 = sadd.s32 %s183, 1
      %p187 = scmp.eq.s32.totalorder %s23, 1
      %p188 = scmp.ne.s32.totalorder %s183, %s185
      %p189 = scmp.eq.s32.totalorder %s23, 0
      %p190 = por %p188, %p189
      %p191 = scmp.ne.s32.totalorder %s183, %s185
      %p192 = scmp.eq.s32.totalorder %s28, 1
      %p193 = por %p191, %p192
      %p194 = scmp.ne.s32.totalorder %s185, %s186
      %p195 = scmp.eq.s32.totalorder %s28, 0
      %p196 = por %p194, %p195
      %p197 = scmp.ne.s32.totalorder %s185, %s186
      %p198 = scmp.eq.s32.totalorder %s29, 1
      %p199 = por %p197, %p198
      %p201 = scmp.ne.s32.totalorder %s186, %s200
      %p202 = scmp.eq.s32.totalorder %s29, 0
      %p203 = por %p201, %p202
      %s205 = sadd.s32 %s204, 1
      %p208 = scmp.eq.s32.totalorder %s23, 1
      %p209 = scmp.ne.s32.totalorder %s204, %s206
      %p210 = scmp.eq.s32.totalorder %s23, 0
      %p211 = por %p209, %p210
      %p212 = scmp.ne.s32.totalorder %s204, %s206
      %p213 = scmp.eq.s32.totalorder %s28, 1
      %p214 = por %p212, %p213
      %p215 = scmp.ne.s32.totalorder %s206, %s207
      %p216 = scmp.eq.s32.totalorder %s28, 0
      %p217 = por %p215, %p216
      %p218 = scmp.ne.s32.totalorder %s206, %s207
      %p219 = scmp.eq.s32.totalorder %s29, 1
      %p220 = por %p218, %p219
      %p222 = scmp.ne.s32.totalorder %s207, %s221
      %p223 = scmp.eq.s32.totalorder %s29, 0
      %p224 = por %p222, %p223
      %s225 = ssub.s32 %s23, %s30
      %p226 = scmp.eq.s32.totalorder %s225, 0
      %s228 = sadd.s32 %s227, 1
      %s229 = scalar_select %p226, %s227, %s228
      %p232 = pneg %p226
      %p233 = scmp.eq.s32.totalorder %s23, 1
      %p234 = por %p232, %p233
      %p235 = scmp.ne.s32.totalorder %s227, %s230
      %p236 = scmp.eq.s32.totalorder %s23, 0
      %p237 = por %p235, %p236
      %p238 = scmp.ne.s32.totalorder %s227, %s230
      %p239 = scmp.eq.s32.totalorder %s28, 1
      %p240 = por %p238, %p239
      %p241 = scmp.ne.s32.totalorder %s230, %s231
      %p242 = scmp.eq.s32.totalorder %s28, 0
      %p243 = por %p241, %p242
      %p244 = scmp.ne.s32.totalorder %s230, %s231
      %p245 = scmp.eq.s32.totalorder %s29, 1
      %p246 = por %p244, %p245
      %p248 = scmp.ne.s32.totalorder %s231, %s247
      %p249 = scmp.eq.s32.totalorder %s29, 0
      %p250 = por %p248, %p249
      %p251 = scmp.le.s32.totalorder 1, %s23
      %p252 = scmp.lt.s32.totalorder %s23, 3
      %p253 = pnand %p251, %p252
      %p254 = pneg %p253
      // Predicated region
      $region9: #{tpu_custom_call.1} parent=5 // pred_check
        _
      $region10: #{tpu_custom_call.1} parent=5 // pred_check_branch
        %256 = sbr.rel (%p253) target = $region12
      $region11: #{tpu_custom_call.1} parent=5 // pred_region
        %s257 = ssub.s32 %s23, 1
        // Predicated region
        $region13: #{tpu_custom_call.1} parent=11 // pred_check
          %p258 = pneg %p70
        $region14: #{tpu_custom_call.1} parent=11 // pred_check_branch
          %260 = sbr.rel (%p258) target = $region16
        $region15: #{tpu_custom_call.1} parent=11 // pred_region
          %s262 = ssub.s32 24576, 24576
          %263 = vsyncadd [#allocation6], %s262
          %s264 = sshll.u32 [#allocation5], 4
          %s265 = int_to_ptr.vmem [resolvable:$true] %s264
          %270 = dma.hbm_to_vmem [thread:$0]  %s1, 24576, %s265, [#allocation6], 256, 256, 16
        $region16: #{tpu_custom_call.1} parent=11 // pred_fallthru
          _
        // Predicated region
        $region17: #{tpu_custom_call.1} parent=11 // pred_check
          %p271 = pneg %p91
        $region18: #{tpu_custom_call.1} parent=11 // pred_check_branch
          %273 = sbr.rel (%p271) target = $region20
        $region19: #{tpu_custom_call.1} parent=11 // pred_region
          %s275 = ssub.s32 64, 64
          %276 = vsyncadd [#allocation6], %s275
          %s278 = sshll.u32 [#allocation7], 4
          %s279 = int_to_ptr.vmem [resolvable:$true] %s278
          %281 = dma.hbm_to_vmem [thread:$0]  %s2, 64, %s279, [#allocation6]
        $region20: #{tpu_custom_call.1} parent=11 // pred_fallthru
          _
        // Predicated region
        $region21: #{tpu_custom_call.1} parent=11 // pred_check
          %p282 = pneg %p112
        $region22: #{tpu_custom_call.1} parent=11 // pred_check_branch
          %284 = sbr.rel (%p282) target = $region24
        $region23: #{tpu_custom_call.1} parent=11 // pred_region
          %s286 = ssub.s32 8192, 8192
          %287 = vsyncadd [#allocation9], %s286
          %s288 = sshll.u32 [#allocation8], 4
          %s289 = int_to_ptr.vmem [resolvable:$true] %s288
          %294 = dma.hbm_to_vmem [thread:$0]  %s3, 8192, %s289, [#allocation9], 128, 128, 8
        $region24: #{tpu_custom_call.1} parent=11 // pred_fallthru
          _
        // Predicated region
        $region25: #{tpu_custom_call.1} parent=11 // pred_check
          %p295 = pneg %p133
        $region26: #{tpu_custom_call.1} parent=11 // pred_check_branch
          %297 = sbr.rel (%p295) target = $region28
        $region27: #{tpu_custom_call.1} parent=11 // pred_region
          %s299 = ssub.s32 32, 32
          %300 = vsyncadd [#allocation9], %s299
          %s302 = sshll.u32 [#allocation10], 4
          %s303 = int_to_ptr.vmem [resolvable:$true] %s302
          %305 = dma.hbm_to_vmem [thread:$0]  %s4, 32, %s303, [#allocation9]
        $region28: #{tpu_custom_call.1} parent=11 // pred_fallthru
          _
        // Predicated region
        $region29: #{tpu_custom_call.1} parent=11 // pred_check
          %p306 = pneg %p154
        $region30: #{tpu_custom_call.1} parent=11 // pred_check_branch
          %308 = sbr.rel (%p306) target = $region32
        $region31: #{tpu_custom_call.1} parent=11 // pred_region
          %s310 = ssub.s32 2048, 2048
          %311 = vsyncadd [#allocation12], %s310
          %s312 = sshll.u32 [#allocation11], 4
          %s313 = int_to_ptr.vmem [resolvable:$true] %s312
          %318 = dma.hbm_to_vmem [thread:$0]  %s5, 2048, %s313, [#allocation12], 64, 64, 4
        $region32: #{tpu_custom_call.1} parent=11 // pred_fallthru
          _
        // Predicated region
        $region33: #{tpu_custom_call.1} parent=11 // pred_check
          %p319 = pneg %p175
        $region34: #{tpu_custom_call.1} parent=11 // pred_check_branch
          %321 = sbr.rel (%p319) target = $region36
        $region35: #{tpu_custom_call.1} parent=11 // pred_region
          %s323 = ssub.s32 16, 16
          %324 = vsyncadd [#allocation12], %s323
          %s326 = sshll.u32 [#allocation13], 4
          %s327 = int_to_ptr.vmem [resolvable:$true] %s326
          %329 = dma.hbm_to_vmem [thread:$0]  %s6, 16, %s327, [#allocation12]
        $region36: #{tpu_custom_call.1} parent=11 // pred_fallthru
          _
        // Predicated region
        $region37: #{tpu_custom_call.1} parent=11 // pred_check
          %p330 = pneg %p196
        $region38: #{tpu_custom_call.1} parent=11 // pred_check_branch
          %332 = sbr.rel (%p330) target = $region40
        $region39: #{tpu_custom_call.1} parent=11 // pred_region
          %s334 = ssub.s32 16, 16
          %335 = vsyncadd [#allocation15], %s334
          %s337 = sshll.u32 [#allocation14], 4
          %s338 = int_to_ptr.vmem [resolvable:$true] %s337
          %340 = dma.hbm_to_vmem [thread:$0]  %s7, 16, %s338, [#allocation15]
        $region40: #{tpu_custom_call.1} parent=11 // pred_fallthru
          _
        // Predicated region
        $region41: #{tpu_custom_call.1} parent=11 // pred_check
          %p341 = pneg %p217
        $region42: #{tpu_custom_call.1} parent=11 // pred_check_branch
          %343 = sbr.rel (%p341) target = $region44
        $region43: #{tpu_custom_call.1} parent=11 // pred_region
          _
        $region44: #{tpu_custom_call.1} parent=11 // pred_fallthru
          _
      $region12: #{tpu_custom_call.1} parent=5 // pred_fallthru
        _
      %p344 = scmp.lt.s32.totalorder %s23, 2
      // Predicated region
      $region45: #{tpu_custom_call.1} parent=5 // pred_check
        %p345 = pneg %p344
      $region46: #{tpu_custom_call.1} parent=5 // pred_check_branch
        %347 = sbr.rel (%p345) target = $region48
      $region47: #{tpu_custom_call.1} parent=5 // pred_region
        // Predicated region
        $region49: #{tpu_custom_call.1} parent=47 // pred_check
          %p348 = pneg %p43
        $region50: #{tpu_custom_call.1} parent=47 // pred_check_branch
          %350 = sbr.rel (%p348) target = $region52
        $region51: #{tpu_custom_call.1} parent=47 // pred_region
          %s351 = sand.u32 %s33, 1
          %s352 = scalar_lea.sflag [#allocation4], %s351
          %s353 = sand.u32 %s33, 1
          %s354 = smul.addr %s353, 3072
          %s355 = scalar_lea.vmem [#allocation3], %s354
          %s356 = smul.u32 64, %s23
          %s357 = ssub.s32 125, %s356
          %p358 = scmp.lt.s32.totalorder %s357, 64
          %s359 = scalar_select %p358, %s357, 64
          %s360 = smul.u32 128, %s359
          %s361 = smul.u32 %s360, 6
          %s363 = ssub.s32 49152, %s361
          %364 = vsyncadd %s352, %s363
          %p365 = scmp.ne.s32.totalorder 0, %s361
          %s366 = smul.addr %s356, 6
          %s367 = smul.addr %s366, 128
          %s368 = scalar_lea.hbm %s0, %s367
          %s369 = smul.u32 48, %s359
          %s370 = sshll.u32 %s355, 4
          %s371 = int_to_ptr.vmem [resolvable:$true] %s370
          %s372 = sshll.u32 %s369, 4
          %376 = dma.hbm_to_vmem [thread:$0]  (%p365), %s368, %s372, %s371, %s352, 768, 768, 48
        $region52: #{tpu_custom_call.1} parent=47 // pred_fallthru
          _
      $region48: #{tpu_custom_call.1} parent=5 // pred_fallthru
        _
      %p377 = scmp.le.s32.totalorder 1, %s23
      %p378 = scmp.lt.s32.totalorder %s23, 3
      %p379 = pnand %p377, %p378
      %p380 = pneg %p379
      // Predicated region
      $region53: #{tpu_custom_call.1} parent=5 // pred_check
        _
      $region54: #{tpu_custom_call.1} parent=5 // pred_check_branch
        %382 = sbr.rel (%p379) target = $region56
      $region55: #{tpu_custom_call.1} parent=5 // pred_region
        %s383 = ssub.s32 %s23, 1
        %s384 = sand.u32 %s36, 1
        %s385 = scalar_lea.sflag [#allocation4], %s384
        %s386 = sand.u32 %s36, 1
        %s387 = smul.addr %s386, 3072
        %s388 = scalar_lea.vmem [#allocation3], %s387
        // Predicated region
        $region57: #{tpu_custom_call.1} parent=55 // pred_check
          %p389 = pneg %p49
        $region58: #{tpu_custom_call.1} parent=55 // pred_check_branch
          %391 = sbr.rel (%p389) target = $region60
        $region59: #{tpu_custom_call.1} parent=55 // pred_region
          %392 = dma.done %s385, 49152
        $region60: #{tpu_custom_call.1} parent=55 // pred_fallthru
          _
        // Predicated region
        $region61: #{tpu_custom_call.1} parent=55 // pred_check
          %p393 = pneg %p70
        $region62: #{tpu_custom_call.1} parent=55 // pred_check_branch
          %395 = sbr.rel (%p393) target = $region64
        $region63: #{tpu_custom_call.1} parent=55 // pred_region
          %396 = dma.done [#allocation6], 24576
        $region64: #{tpu_custom_call.1} parent=55 // pred_fallthru
          _
        // Predicated region
        $region65: #{tpu_custom_call.1} parent=55 // pred_check
          %p397 = pneg %p91
        $region66: #{tpu_custom_call.1} parent=55 // pred_check_branch
          %399 = sbr.rel (%p397) target = $region68
        $region67: #{tpu_custom_call.1} parent=55 // pred_region
          %400 = dma.done [#allocation6], 64
        $region68: #{tpu_custom_call.1} parent=55 // pred_fallthru
          _
        // Predicated region
        $region69: #{tpu_custom_call.1} parent=55 // pred_check
          %p401 = pneg %p112
        $region70: #{tpu_custom_call.1} parent=55 // pred_check_branch
          %403 = sbr.rel (%p401) target = $region72
        $region71: #{tpu_custom_call.1} parent=55 // pred_region
          %404 = dma.done [#allocation9], 8192
        $region72: #{tpu_custom_call.1} parent=55 // pred_fallthru
          _
        // Predicated region
        $region73: #{tpu_custom_call.1} parent=55 // pred_check
          %p405 = pneg %p133
        $region74: #{tpu_custom_call.1} parent=55 // pred_check_branch
          %407 = sbr.rel (%p405) target = $region76
        $region75: #{tpu_custom_call.1} parent=55 // pred_region
          %408 = dma.done [#allocation9], 32
        $region76: #{tpu_custom_call.1} parent=55 // pred_fallthru
          _
        // Predicated region
        $region77: #{tpu_custom_call.1} parent=55 // pred_check
          %p409 = pneg %p154
        $region78: #{tpu_custom_call.1} parent=55 // pred_check_branch
          %411 = sbr.rel (%p409) target = $region80
        $region79: #{tpu_custom_call.1} parent=55 // pred_region
          %412 = dma.done [#allocation12], 2048
        $region80: #{tpu_custom_call.1} parent=55 // pred_fallthru
          _
        // Predicated region
        $region81: #{tpu_custom_call.1} parent=55 // pred_check
          %p413 = pneg %p175
        $region82: #{tpu_custom_call.1} parent=55 // pred_check_branch
          %415 = sbr.rel (%p413) target = $region84
        $region83: #{tpu_custom_call.1} parent=55 // pred_region
          %416 = dma.done [#allocation12], 16
        $region84: #{tpu_custom_call.1} parent=55 // pred_fallthru
          _
        // Predicated region
        $region85: #{tpu_custom_call.1} parent=55 // pred_check
          %p417 = pneg %p196
        $region86: #{tpu_custom_call.1} parent=55 // pred_check_branch
          %419 = sbr.rel (%p417) target = $region88
        $region87: #{tpu_custom_call.1} parent=55 // pred_region
          %420 = dma.done [#allocation15], 16
        $region88: #{tpu_custom_call.1} parent=55 // pred_fallthru
          _
        %s421 = sand.u32 %s36, 1
        %s422 = scalar_lea.sflag [#allocation4], %s421
        %s423 = sand.u32 %s36, 1
        %s424 = smul.addr %s423, 3072
        %s425 = scalar_lea.vmem [#allocation3], %s424
        %p426 = pneg %p49
        %p427 = pneg %p46
        %p428 = pneg %p70
        %p429 = pneg %p67
        %p430 = pneg %p91
        %p431 = pneg %p88
        %p432 = pneg %p112
        %p433 = pneg %p109
        %p434 = pneg %p133
        %p435 = pneg %p130
        %p436 = pneg %p154
        %p437 = pneg %p151
        %p438 = pneg %p175
        %p439 = pneg %p172
        %p440 = pneg %p196
        %p441 = pneg %p193
        %p442 = pneg %p217
        %p443 = pneg %p214
        %p444 = pneg %p243
        %p445 = pneg %p240
        %s446 = sand.u32 %s230, 1
        %s447 = sand.u32 %s230, 1
        %s448 = smul.addr %s447, 512
        %s449 = scalar_lea.vmem [#allocation16], %s448
        %s450 = smul.u32 64, %s28
        %s451 = ssub.s32 125, %s450
        %p452 = scmp.lt.s32.totalorder %s451, 64
        %s453 = scalar_select %p452, %s451, 64
        %s454 = smul.u32 128, %s453
        %s455 = smul.u32 %s454, 6
        %s456 = smul.u32 64, %s28
        %s457 = ssub.s32 125, %s456
        %p458 = scmp.lt.s32.totalorder %s457, 64
        %s459 = scalar_select %p458, %s457, 64
        %s460 = smul.u32 128, %s459
        %v462 = vld [vmem:[%s388] sm:$0xff]
        %v463 = vld [vmem:[%s388 + $0x8] sm:$0xff]
        %v464 = vld [vmem:[%s388 + $0x10] sm:$0xff]
        %v465 = vld [vmem:[%s388 + $0x18] sm:$0xff]
        %v466 = vld [vmem:[%s388 + $0x20] sm:$0xff]
        %v467 = vld [vmem:[%s388 + $0x28] sm:$0xff]
        %v468 = vld [vmem:[%s388 + $0x30] sm:$0xff]
        %v469 = vld [vmem:[%s388 + $0x38] sm:$0xff]
        %v470 = vld [vmem:[%s388 + $0x40] sm:$0xff]
        %v471 = vld [vmem:[%s388 + $0x48] sm:$0xff]
        %v472 = vld [vmem:[%s388 + $0x50] sm:$0xff]
        %v473 = vld [vmem:[%s388 + $0x58] sm:$0xff]
        %v474 = vld [vmem:[%s388 + $0x60] sm:$0xff]
        %v475 = vld [vmem:[%s388 + $0x68] sm:$0xff]
        %v476 = vld [vmem:[%s388 + $0x70] sm:$0xff]
        %v477 = vld [vmem:[%s388 + $0x78] sm:$0xff]
        %v478 = vld [vmem:[%s388 + $0x80] sm:$0xff]
        %v479 = vld [vmem:[%s388 + $0x88] sm:$0xff]
        %v480 = vld [vmem:[%s388 + $0x90] sm:$0xff]
        %v481 = vld [vmem:[%s388 + $0x98] sm:$0xff]
        %v482 = vld [vmem:[%s388 + $0xa0] sm:$0xff]
        %v483 = vld [vmem:[%s388 + $0xa8] sm:$0xff]
        %v484 = vld [vmem:[%s388 + $0xb0] sm:$0xff]
        %v485 = vld [vmem:[%s388 + $0xb8] sm:$0xff]
        %v486 = vld [vmem:[%s388 + $0xc0] sm:$0xff]
        %v487 = vld [vmem:[%s388 + $0xc8] sm:$0xff]
        %v488 = vld [vmem:[%s388 + $0xd0] sm:$0xff]
        %v489 = vld [vmem:[%s388 + $0xd8] sm:$0xff]
        %v490 = vld [vmem:[%s388 + $0xe0] sm:$0xff]
        %v491 = vld [vmem:[%s388 + $0xe8] sm:$0xff]
        %v492 = vld [vmem:[%s388 + $0xf0] sm:$0xff]
        %v493 = vld [vmem:[%s388 + $0xf8] sm:$0xff]
        %v494 = vld [vmem:[%s388 + $0x100] sm:$0xff]
        %v495 = vld [vmem:[%s388 + $0x108] sm:$0xff]
        %v496 = vld [vmem:[%s388 + $0x110] sm:$0xff]
        %v497 = vld [vmem:[%s388 + $0x118] sm:$0xff]
        %v498 = vld [vmem:[%s388 + $0x120] sm:$0xff]
        %v499 = vld [vmem:[%s388 + $0x128] sm:$0xff]
        %v500 = vld [vmem:[%s388 + $0x130] sm:$0xff]
        %v501 = vld [vmem:[%s388 + $0x138] sm:$0xff]
        %v502 = vld [vmem:[%s388 + $0x140] sm:$0xff]
        %v503 = vld [vmem:[%s388 + $0x148] sm:$0xff]
        %v504 = vld [vmem:[%s388 + $0x150] sm:$0xff]
        %v505 = vld [vmem:[%s388 + $0x158] sm:$0xff]
        %v506 = vld [vmem:[%s388 + $0x160] sm:$0xff]
        %v507 = vld [vmem:[%s388 + $0x168] sm:$0xff]
        %v508 = vld [vmem:[%s388 + $0x170] sm:$0xff]
        %v509 = vld [vmem:[%s388 + $0x178] sm:$0xff]
        %v510 = vld [vmem:[%s388 + $0x180] sm:$0xff]
        %v511 = vld [vmem:[%s388 + $0x188] sm:$0xff]
        %v512 = vld [vmem:[%s388 + $0x190] sm:$0xff]
        %v513 = vld [vmem:[%s388 + $0x198] sm:$0xff]
        %v514 = vld [vmem:[%s388 + $0x1a0] sm:$0xff]
        %v515 = vld [vmem:[%s388 + $0x1a8] sm:$0xff]
        %v516 = vld [vmem:[%s388 + $0x1b0] sm:$0xff]
        %v517 = vld [vmem:[%s388 + $0x1b8] sm:$0xff]
        %v518 = vld [vmem:[%s388 + $0x1c0] sm:$0xff]
        %v519 = vld [vmem:[%s388 + $0x1c8] sm:$0xff]
        %v520 = vld [vmem:[%s388 + $0x1d0] sm:$0xff]
        %v521 = vld [vmem:[%s388 + $0x1d8] sm:$0xff]
        %v522 = vld [vmem:[%s388 + $0x1e0] sm:$0xff]
        %v523 = vld [vmem:[%s388 + $0x1e8] sm:$0xff]
        %v524 = vld [vmem:[%s388 + $0x1f0] sm:$0xff]
        %v525 = vld [vmem:[%s388 + $0x1f8] sm:$0xff]
        %v526 = vld [vmem:[%s388 + $0x200] sm:$0xff]
        %v527 = vld [vmem:[%s388 + $0x208] sm:$0xff]
        %v528 = vld [vmem:[%s388 + $0x210] sm:$0xff]
        %v529 = vld [vmem:[%s388 + $0x218] sm:$0xff]
        %v530 = vld [vmem:[%s388 + $0x220] sm:$0xff]
        %v531 = vld [vmem:[%s388 + $0x228] sm:$0xff]
        %v532 = vld [vmem:[%s388 + $0x230] sm:$0xff]
        %v533 = vld [vmem:[%s388 + $0x238] sm:$0xff]
        %v534 = vld [vmem:[%s388 + $0x240] sm:$0xff]
        %v535 = vld [vmem:[%s388 + $0x248] sm:$0xff]
        %v536 = vld [vmem:[%s388 + $0x250] sm:$0xff]
        %v537 = vld [vmem:[%s388 + $0x258] sm:$0xff]
        %v538 = vld [vmem:[%s388 + $0x260] sm:$0xff]
        %v539 = vld [vmem:[%s388 + $0x268] sm:$0xff]
        %v540 = vld [vmem:[%s388 + $0x270] sm:$0xff]
        %v541 = vld [vmem:[%s388 + $0x278] sm:$0xff]
        %v542 = vld [vmem:[%s388 + $0x280] sm:$0xff]
        %v543 = vld [vmem:[%s388 + $0x288] sm:$0xff]
        %v544 = vld [vmem:[%s388 + $0x290] sm:$0xff]
        %v545 = vld [vmem:[%s388 + $0x298] sm:$0xff]
        %v546 = vld [vmem:[%s388 + $0x2a0] sm:$0xff]
        %v547 = vld [vmem:[%s388 + $0x2a8] sm:$0xff]
        %v548 = vld [vmem:[%s388 + $0x2b0] sm:$0xff]
        %v549 = vld [vmem:[%s388 + $0x2b8] sm:$0xff]
        %v550 = vld [vmem:[%s388 + $0x2c0] sm:$0xff]
        %v551 = vld [vmem:[%s388 + $0x2c8] sm:$0xff]
        %v552 = vld [vmem:[%s388 + $0x2d0] sm:$0xff]
        %v553 = vld [vmem:[%s388 + $0x2d8] sm:$0xff]
        %v554 = vld [vmem:[%s388 + $0x2e0] sm:$0xff]
        %v555 = vld [vmem:[%s388 + $0x2e8] sm:$0xff]
        %v556 = vld [vmem:[%s388 + $0x2f0] sm:$0xff]
        %v557 = vld [vmem:[%s388 + $0x2f8] sm:$0xff]
        %v558 = vld [vmem:[%s388 + $0x300] sm:$0xff]
        %v559 = vld [vmem:[%s388 + $0x308] sm:$0xff]
        %v560 = vld [vmem:[%s388 + $0x310] sm:$0xff]
        %v561 = vld [vmem:[%s388 + $0x318] sm:$0xff]
        %v562 = vld [vmem:[%s388 + $0x320] sm:$0xff]
        %v563 = vld [vmem:[%s388 + $0x328] sm:$0xff]
        %v564 = vld [vmem:[%s388 + $0x330] sm:$0xff]
        %v565 = vld [vmem:[%s388 + $0x338] sm:$0xff]
        %v566 = vld [vmem:[%s388 + $0x340] sm:$0xff]
        %v567 = vld [vmem:[%s388 + $0x348] sm:$0xff]
        %v568 = vld [vmem:[%s388 + $0x350] sm:$0xff]
        %v569 = vld [vmem:[%s388 + $0x358] sm:$0xff]
        %v570 = vld [vmem:[%s388 + $0x360] sm:$0xff]
        %v571 = vld [vmem:[%s388 + $0x368] sm:$0xff]
        %v572 = vld [vmem:[%s388 + $0x370] sm:$0xff]
        %v573 = vld [vmem:[%s388 + $0x378] sm:$0xff]
        %v574 = vld [vmem:[%s388 + $0x380] sm:$0xff]
        %v575 = vld [vmem:[%s388 + $0x388] sm:$0xff]
        %v576 = vld [vmem:[%s388 + $0x390] sm:$0xff]
        %v577 = vld [vmem:[%s388 + $0x398] sm:$0xff]
        %v578 = vld [vmem:[%s388 + $0x3a0] sm:$0xff]
        %v579 = vld [vmem:[%s388 + $0x3a8] sm:$0xff]
        %v580 = vld [vmem:[%s388 + $0x3b0] sm:$0xff]
        %v581 = vld [vmem:[%s388 + $0x3b8] sm:$0xff]
        %v582 = vld [vmem:[%s388 + $0x3c0] sm:$0xff]
        %v583 = vld [vmem:[%s388 + $0x3c8] sm:$0xff]
        %v584 = vld [vmem:[%s388 + $0x3d0] sm:$0xff]
        %v585 = vld [vmem:[%s388 + $0x3d8] sm:$0xff]
        %v586 = vld [vmem:[%s388 + $0x3e0] sm:$0xff]
        %v587 = vld [vmem:[%s388 + $0x3e8] sm:$0xff]
        %v588 = vld [vmem:[%s388 + $0x3f0] sm:$0xff]
        %v589 = vld [vmem:[%s388 + $0x3f8] sm:$0xff]
        %v590 = vld [vmem:[%s388 + $0x400] sm:$0xff]
        %v591 = vld [vmem:[%s388 + $0x408] sm:$0xff]
        %v592 = vld [vmem:[%s388 + $0x410] sm:$0xff]
        %v593 = vld [vmem:[%s388 + $0x418] sm:$0xff]
        %v594 = vld [vmem:[%s388 + $0x420] sm:$0xff]
        %v595 = vld [vmem:[%s388 + $0x428] sm:$0xff]
        %v596 = vld [vmem:[%s388 + $0x430] sm:$0xff]
        %v597 = vld [vmem:[%s388 + $0x438] sm:$0xff]
        %v598 = vld [vmem:[%s388 + $0x440] sm:$0xff]
        %v599 = vld [vmem:[%s388 + $0x448] sm:$0xff]
        %v600 = vld [vmem:[%s388 + $0x450] sm:$0xff]
        %v601 = vld [vmem:[%s388 + $0x458] sm:$0xff]
        %v602 = vld [vmem:[%s388 + $0x460] sm:$0xff]
        %v603 = vld [vmem:[%s388 + $0x468] sm:$0xff]
        %v604 = vld [vmem:[%s388 + $0x470] sm:$0xff]
        %v605 = vld [vmem:[%s388 + $0x478] sm:$0xff]
        %v606 = vld [vmem:[%s388 + $0x480] sm:$0xff]
        %v607 = vld [vmem:[%s388 + $0x488] sm:$0xff]
        %v608 = vld [vmem:[%s388 + $0x490] sm:$0xff]
        %v609 = vld [vmem:[%s388 + $0x498] sm:$0xff]
        %v610 = vld [vmem:[%s388 + $0x4a0] sm:$0xff]
        %v611 = vld [vmem:[%s388 + $0x4a8] sm:$0xff]
        %v612 = vld [vmem:[%s388 + $0x4b0] sm:$0xff]
        %v613 = vld [vmem:[%s388 + $0x4b8] sm:$0xff]
        %v614 = vld [vmem:[%s388 + $0x4c0] sm:$0xff]
        %v615 = vld [vmem:[%s388 + $0x4c8] sm:$0xff]
        %v616 = vld [vmem:[%s388 + $0x4d0] sm:$0xff]
        %v617 = vld [vmem:[%s388 + $0x4d8] sm:$0xff]
        %v618 = vld [vmem:[%s388 + $0x4e0] sm:$0xff]
        %v619 = vld [vmem:[%s388 + $0x4e8] sm:$0xff]
        %v620 = vld [vmem:[%s388 + $0x4f0] sm:$0xff]
        %v621 = vld [vmem:[%s388 + $0x4f8] sm:$0xff]
        %v622 = vld [vmem:[%s388 + $0x500] sm:$0xff]
        %v623 = vld [vmem:[%s388 + $0x508] sm:$0xff]
        %v624 = vld [vmem:[%s388 + $0x510] sm:$0xff]
        %v625 = vld [vmem:[%s388 + $0x518] sm:$0xff]
        %v626 = vld [vmem:[%s388 + $0x520] sm:$0xff]
        %v627 = vld [vmem:[%s388 + $0x528] sm:$0xff]
        %v628 = vld [vmem:[%s388 + $0x530] sm:$0xff]
        %v629 = vld [vmem:[%s388 + $0x538] sm:$0xff]
        %v630 = vld [vmem:[%s388 + $0x540] sm:$0xff]
        %v631 = vld [vmem:[%s388 + $0x548] sm:$0xff]
        %v632 = vld [vmem:[%s388 + $0x550] sm:$0xff]
        %v633 = vld [vmem:[%s388 + $0x558] sm:$0xff]
        %v634 = vld [vmem:[%s388 + $0x560] sm:$0xff]
        %v635 = vld [vmem:[%s388 + $0x568] sm:$0xff]
        %v636 = vld [vmem:[%s388 + $0x570] sm:$0xff]
        %v637 = vld [vmem:[%s388 + $0x578] sm:$0xff]
        %v638 = vld [vmem:[%s388 + $0x580] sm:$0xff]
        %v639 = vld [vmem:[%s388 + $0x588] sm:$0xff]
        %v640 = vld [vmem:[%s388 + $0x590] sm:$0xff]
        %v641 = vld [vmem:[%s388 + $0x598] sm:$0xff]
        %v642 = vld [vmem:[%s388 + $0x5a0] sm:$0xff]
        %v643 = vld [vmem:[%s388 + $0x5a8] sm:$0xff]
        %v644 = vld [vmem:[%s388 + $0x5b0] sm:$0xff]
        %v645 = vld [vmem:[%s388 + $0x5b8] sm:$0xff]
        %v646 = vld [vmem:[%s388 + $0x5c0] sm:$0xff]
        %v647 = vld [vmem:[%s388 + $0x5c8] sm:$0xff]
        %v648 = vld [vmem:[%s388 + $0x5d0] sm:$0xff]
        %v649 = vld [vmem:[%s388 + $0x5d8] sm:$0xff]
        %v650 = vld [vmem:[%s388 + $0x5e0] sm:$0xff]
        %v651 = vld [vmem:[%s388 + $0x5e8] sm:$0xff]
        %v652 = vld [vmem:[%s388 + $0x5f0] sm:$0xff]
        %v653 = vld [vmem:[%s388 + $0x5f8] sm:$0xff]
        %v654 = vld [vmem:[%s388 + $0x600] sm:$0xff]
        %v655 = vld [vmem:[%s388 + $0x608] sm:$0xff]
        %v656 = vld [vmem:[%s388 + $0x610] sm:$0xff]
        %v657 = vld [vmem:[%s388 + $0x618] sm:$0xff]
        %v658 = vld [vmem:[%s388 + $0x620] sm:$0xff]
        %v659 = vld [vmem:[%s388 + $0x628] sm:$0xff]
        %v660 = vld [vmem:[%s388 + $0x630] sm:$0xff]
        %v661 = vld [vmem:[%s388 + $0x638] sm:$0xff]
        %v662 = vld [vmem:[%s388 + $0x640] sm:$0xff]
        %v663 = vld [vmem:[%s388 + $0x648] sm:$0xff]
        %v664 = vld [vmem:[%s388 + $0x650] sm:$0xff]
        %v665 = vld [vmem:[%s388 + $0x658] sm:$0xff]
        %v666 = vld [vmem:[%s388 + $0x660] sm:$0xff]
        %v667 = vld [vmem:[%s388 + $0x668] sm:$0xff]
        %v668 = vld [vmem:[%s388 + $0x670] sm:$0xff]
        %v669 = vld [vmem:[%s388 + $0x678] sm:$0xff]
        %v670 = vld [vmem:[%s388 + $0x680] sm:$0xff]
        %v671 = vld [vmem:[%s388 + $0x688] sm:$0xff]
        %v672 = vld [vmem:[%s388 + $0x690] sm:$0xff]
        %v673 = vld [vmem:[%s388 + $0x698] sm:$0xff]
        %v674 = vld [vmem:[%s388 + $0x6a0] sm:$0xff]
        %v675 = vld [vmem:[%s388 + $0x6a8] sm:$0xff]
        %v676 = vld [vmem:[%s388 + $0x6b0] sm:$0xff]
        %v677 = vld [vmem:[%s388 + $0x6b8] sm:$0xff]
        %v678 = vld [vmem:[%s388 + $0x6c0] sm:$0xff]
        %v679 = vld [vmem:[%s388 + $0x6c8] sm:$0xff]
        %v680 = vld [vmem:[%s388 + $0x6d0] sm:$0xff]
        %v681 = vld [vmem:[%s388 + $0x6d8] sm:$0xff]
        %v682 = vld [vmem:[%s388 + $0x6e0] sm:$0xff]
        %v683 = vld [vmem:[%s388 + $0x6e8] sm:$0xff]
        %v684 = vld [vmem:[%s388 + $0x6f0] sm:$0xff]
        %v685 = vld [vmem:[%s388 + $0x6f8] sm:$0xff]
        %v686 = vld [vmem:[%s388 + $0x700] sm:$0xff]
        %v687 = vld [vmem:[%s388 + $0x708] sm:$0xff]
        %v688 = vld [vmem:[%s388 + $0x710] sm:$0xff]
        %v689 = vld [vmem:[%s388 + $0x718] sm:$0xff]
        %v690 = vld [vmem:[%s388 + $0x720] sm:$0xff]
        %v691 = vld [vmem:[%s388 + $0x728] sm:$0xff]
        %v692 = vld [vmem:[%s388 + $0x730] sm:$0xff]
        %v693 = vld [vmem:[%s388 + $0x738] sm:$0xff]
        %v694 = vld [vmem:[%s388 + $0x740] sm:$0xff]
        %v695 = vld [vmem:[%s388 + $0x748] sm:$0xff]
        %v696 = vld [vmem:[%s388 + $0x750] sm:$0xff]
        %v697 = vld [vmem:[%s388 + $0x758] sm:$0xff]
        %v698 = vld [vmem:[%s388 + $0x760] sm:$0xff]
        %v699 = vld [vmem:[%s388 + $0x768] sm:$0xff]
        %v700 = vld [vmem:[%s388 + $0x770] sm:$0xff]
        %v701 = vld [vmem:[%s388 + $0x778] sm:$0xff]
        %v702 = vld [vmem:[%s388 + $0x780] sm:$0xff]
        %v703 = vld [vmem:[%s388 + $0x788] sm:$0xff]
        %v704 = vld [vmem:[%s388 + $0x790] sm:$0xff]
        %v705 = vld [vmem:[%s388 + $0x798] sm:$0xff]
        %v706 = vld [vmem:[%s388 + $0x7a0] sm:$0xff]
        %v707 = vld [vmem:[%s388 + $0x7a8] sm:$0xff]
        %v708 = vld [vmem:[%s388 + $0x7b0] sm:$0xff]
        %v709 = vld [vmem:[%s388 + $0x7b8] sm:$0xff]
        %v710 = vld [vmem:[%s388 + $0x7c0] sm:$0xff]
        %v711 = vld [vmem:[%s388 + $0x7c8] sm:$0xff]
        %v712 = vld [vmem:[%s388 + $0x7d0] sm:$0xff]
        %v713 = vld [vmem:[%s388 + $0x7d8] sm:$0xff]
        %v714 = vld [vmem:[%s388 + $0x7e0] sm:$0xff]
        %v715 = vld [vmem:[%s388 + $0x7e8] sm:$0xff]
        %v716 = vld [vmem:[%s388 + $0x7f0] sm:$0xff]
        %v717 = vld [vmem:[%s388 + $0x7f8] sm:$0xff]
        %v718 = vld [vmem:[%s388 + $0x800] sm:$0xff]
        %v719 = vld [vmem:[%s388 + $0x808] sm:$0xff]
        %v720 = vld [vmem:[%s388 + $0x810] sm:$0xff]
        %v721 = vld [vmem:[%s388 + $0x818] sm:$0xff]
        %v722 = vld [vmem:[%s388 + $0x820] sm:$0xff]
        %v723 = vld [vmem:[%s388 + $0x828] sm:$0xff]
        %v724 = vld [vmem:[%s388 + $0x830] sm:$0xff]
        %v725 = vld [vmem:[%s388 + $0x838] sm:$0xff]
        %v726 = vld [vmem:[%s388 + $0x840] sm:$0xff]
        %v727 = vld [vmem:[%s388 + $0x848] sm:$0xff]
        %v728 = vld [vmem:[%s388 + $0x850] sm:$0xff]
        %v729 = vld [vmem:[%s388 + $0x858] sm:$0xff]
        %v730 = vld [vmem:[%s388 + $0x860] sm:$0xff]
        %v731 = vld [vmem:[%s388 + $0x868] sm:$0xff]
        %v732 = vld [vmem:[%s388 + $0x870] sm:$0xff]
        %v733 = vld [vmem:[%s388 + $0x878] sm:$0xff]
        %v734 = vld [vmem:[%s388 + $0x880] sm:$0xff]
        %v735 = vld [vmem:[%s388 + $0x888] sm:$0xff]
        %v736 = vld [vmem:[%s388 + $0x890] sm:$0xff]
        %v737 = vld [vmem:[%s388 + $0x898] sm:$0xff]
        %v738 = vld [vmem:[%s388 + $0x8a0] sm:$0xff]
        %v739 = vld [vmem:[%s388 + $0x8a8] sm:$0xff]
        %v740 = vld [vmem:[%s388 + $0x8b0] sm:$0xff]
        %v741 = vld [vmem:[%s388 + $0x8b8] sm:$0xff]
        %v742 = vld [vmem:[%s388 + $0x8c0] sm:$0xff]
        %v743 = vld [vmem:[%s388 + $0x8c8] sm:$0xff]
        %v744 = vld [vmem:[%s388 + $0x8d0] sm:$0xff]
        %v745 = vld [vmem:[%s388 + $0x8d8] sm:$0xff]
        %v746 = vld [vmem:[%s388 + $0x8e0] sm:$0xff]
        %v747 = vld [vmem:[%s388 + $0x8e8] sm:$0xff]
        %v748 = vld [vmem:[%s388 + $0x8f0] sm:$0xff]
        %v749 = vld [vmem:[%s388 + $0x8f8] sm:$0xff]
        %v750 = vld [vmem:[%s388 + $0x900] sm:$0xff]
        %v751 = vld [vmem:[%s388 + $0x908] sm:$0xff]
        %v752 = vld [vmem:[%s388 + $0x910] sm:$0xff]
        %v753 = vld [vmem:[%s388 + $0x918] sm:$0xff]
        %v754 = vld [vmem:[%s388 + $0x920] sm:$0xff]
        %v755 = vld [vmem:[%s388 + $0x928] sm:$0xff]
        %v756 = vld [vmem:[%s388 + $0x930] sm:$0xff]
        %v757 = vld [vmem:[%s388 + $0x938] sm:$0xff]
        %v758 = vld [vmem:[%s388 + $0x940] sm:$0xff]
        %v759 = vld [vmem:[%s388 + $0x948] sm:$0xff]
        %v760 = vld [vmem:[%s388 + $0x950] sm:$0xff]
        %v761 = vld [vmem:[%s388 + $0x958] sm:$0xff]
        %v762 = vld [vmem:[%s388 + $0x960] sm:$0xff]
        %v763 = vld [vmem:[%s388 + $0x968] sm:$0xff]
        %v764 = vld [vmem:[%s388 + $0x970] sm:$0xff]
        %v765 = vld [vmem:[%s388 + $0x978] sm:$0xff]
        %v766 = vld [vmem:[%s388 + $0x980] sm:$0xff]
        %v767 = vld [vmem:[%s388 + $0x988] sm:$0xff]
        %v768 = vld [vmem:[%s388 + $0x990] sm:$0xff]
        %v769 = vld [vmem:[%s388 + $0x998] sm:$0xff]
        %v770 = vld [vmem:[%s388 + $0x9a0] sm:$0xff]
        %v771 = vld [vmem:[%s388 + $0x9a8] sm:$0xff]
        %v772 = vld [vmem:[%s388 + $0x9b0] sm:$0xff]
        %v773 = vld [vmem:[%s388 + $0x9b8] sm:$0xff]
        %v774 = vld [vmem:[%s388 + $0x9c0] sm:$0xff]
        %v775 = vld [vmem:[%s388 + $0x9c8] sm:$0xff]
        %v776 = vld [vmem:[%s388 + $0x9d0] sm:$0xff]
        %v777 = vld [vmem:[%s388 + $0x9d8] sm:$0xff]
        %v778 = vld [vmem:[%s388 + $0x9e0] sm:$0xff]
        %v779 = vld [vmem:[%s388 + $0x9e8] sm:$0xff]
        %v780 = vld [vmem:[%s388 + $0x9f0] sm:$0xff]
        %v781 = vld [vmem:[%s388 + $0x9f8] sm:$0xff]
        %v782 = vld [vmem:[%s388 + $0xa00] sm:$0xff]
        %v783 = vld [vmem:[%s388 + $0xa08] sm:$0xff]
        %v784 = vld [vmem:[%s388 + $0xa10] sm:$0xff]
        %v785 = vld [vmem:[%s388 + $0xa18] sm:$0xff]
        %v786 = vld [vmem:[%s388 + $0xa20] sm:$0xff]
        %v787 = vld [vmem:[%s388 + $0xa28] sm:$0xff]
        %v788 = vld [vmem:[%s388 + $0xa30] sm:$0xff]
        %v789 = vld [vmem:[%s388 + $0xa38] sm:$0xff]
        %v790 = vld [vmem:[%s388 + $0xa40] sm:$0xff]
        %v791 = vld [vmem:[%s388 + $0xa48] sm:$0xff]
        %v792 = vld [vmem:[%s388 + $0xa50] sm:$0xff]
        %v793 = vld [vmem:[%s388 + $0xa58] sm:$0xff]
        %v794 = vld [vmem:[%s388 + $0xa60] sm:$0xff]
        %v795 = vld [vmem:[%s388 + $0xa68] sm:$0xff]
        %v796 = vld [vmem:[%s388 + $0xa70] sm:$0xff]
        %v797 = vld [vmem:[%s388 + $0xa78] sm:$0xff]
        %v798 = vld [vmem:[%s388 + $0xa80] sm:$0xff]
        %v799 = vld [vmem:[%s388 + $0xa88] sm:$0xff]
        %v800 = vld [vmem:[%s388 + $0xa90] sm:$0xff]
        %v801 = vld [vmem:[%s388 + $0xa98] sm:$0xff]
        %v802 = vld [vmem:[%s388 + $0xaa0] sm:$0xff]
        %v803 = vld [vmem:[%s388 + $0xaa8] sm:$0xff]
        %v804 = vld [vmem:[%s388 + $0xab0] sm:$0xff]
        %v805 = vld [vmem:[%s388 + $0xab8] sm:$0xff]
        %v806 = vld [vmem:[%s388 + $0xac0] sm:$0xff]
        %v807 = vld [vmem:[%s388 + $0xac8] sm:$0xff]
        %v808 = vld [vmem:[%s388 + $0xad0] sm:$0xff]
        %v809 = vld [vmem:[%s388 + $0xad8] sm:$0xff]
        %v810 = vld [vmem:[%s388 + $0xae0] sm:$0xff]
        %v811 = vld [vmem:[%s388 + $0xae8] sm:$0xff]
        %v812 = vld [vmem:[%s388 + $0xaf0] sm:$0xff]
        %v813 = vld [vmem:[%s388 + $0xaf8] sm:$0xff]
        %v814 = vld [vmem:[%s388 + $0xb00] sm:$0xff]
        %v815 = vld [vmem:[%s388 + $0xb08] sm:$0xff]
        %v816 = vld [vmem:[%s388 + $0xb10] sm:$0xff]
        %v817 = vld [vmem:[%s388 + $0xb18] sm:$0xff]
        %v818 = vld [vmem:[%s388 + $0xb20] sm:$0xff]
        %v819 = vld [vmem:[%s388 + $0xb28] sm:$0xff]
        %v820 = vld [vmem:[%s388 + $0xb30] sm:$0xff]
        %v821 = vld [vmem:[%s388 + $0xb38] sm:$0xff]
        %v822 = vld [vmem:[%s388 + $0xb40] sm:$0xff]
        %v823 = vld [vmem:[%s388 + $0xb48] sm:$0xff]
        %v824 = vld [vmem:[%s388 + $0xb50] sm:$0xff]
        %v825 = vld [vmem:[%s388 + $0xb58] sm:$0xff]
        %v826 = vld [vmem:[%s388 + $0xb60] sm:$0xff]
        %v827 = vld [vmem:[%s388 + $0xb68] sm:$0xff]
        %v828 = vld [vmem:[%s388 + $0xb70] sm:$0xff]
        %v829 = vld [vmem:[%s388 + $0xb78] sm:$0xff]
        %v830 = vld [vmem:[%s388 + $0xb80] sm:$0xff]
        %v831 = vld [vmem:[%s388 + $0xb88] sm:$0xff]
        %v832 = vld [vmem:[%s388 + $0xb90] sm:$0xff]
        %v833 = vld [vmem:[%s388 + $0xb98] sm:$0xff]
        %v834 = vld [vmem:[%s388 + $0xba0] sm:$0xff]
        %v835 = vld [vmem:[%s388 + $0xba8] sm:$0xff]
        %v836 = vld [vmem:[%s388 + $0xbb0] sm:$0xff]
        %v837 = vld [vmem:[%s388 + $0xbb8] sm:$0xff]
        %v838 = vld [vmem:[%s388 + $0xbc0] sm:$0xff]
        %v839 = vld [vmem:[%s388 + $0xbc8] sm:$0xff]
        %v840 = vld [vmem:[%s388 + $0xbd0] sm:$0xff]
        %v841 = vld [vmem:[%s388 + $0xbd8] sm:$0xff]
        %v842 = vld [vmem:[%s388 + $0xbe0] sm:$0xff]
        %v843 = vld [vmem:[%s388 + $0xbe8] sm:$0xff]
        %v844 = vld [vmem:[%s388 + $0xbf0] sm:$0xff]
        %v845 = vld [vmem:[%s388 + $0xbf8] sm:$0xff]
        %v846 = vpack.c.bf16 %v468, %v462
        %v847 = vpack.c.bf16 %v469, %v463
        %v848 = vpack.c.bf16 %v470, %v464
        %v849 = vpack.c.bf16 %v471, %v465
        %v850 = vpack.c.bf16 %v472, %v466
        %v851 = vpack.c.bf16 %v473, %v467
        %v852 = vpack.c.bf16 %v480, %v474
        %v853 = vpack.c.bf16 %v481, %v475
        %v854 = vpack.c.bf16 %v482, %v476
        %v855 = vpack.c.bf16 %v483, %v477
        %v856 = vpack.c.bf16 %v484, %v478
        %v857 = vpack.c.bf16 %v485, %v479
        %v858 = vpack.c.bf16 %v492, %v486
        %v859 = vpack.c.bf16 %v493, %v487
        %v860 = vpack.c.bf16 %v494, %v488
        %v861 = vpack.c.bf16 %v495, %v489
        %v862 = vpack.c.bf16 %v496, %v490
        %v863 = vpack.c.bf16 %v497, %v491
        %v864 = vpack.c.bf16 %v504, %v498
        %v865 = vpack.c.bf16 %v505, %v499
        %v866 = vpack.c.bf16 %v506, %v500
        %v867 = vpack.c.bf16 %v507, %v501
        %v868 = vpack.c.bf16 %v508, %v502
        %v869 = vpack.c.bf16 %v509, %v503
        %v870 = vpack.c.bf16 %v516, %v510
        %v871 = vpack.c.bf16 %v517, %v511
        %v872 = vpack.c.bf16 %v518, %v512
        %v873 = vpack.c.bf16 %v519, %v513
        %v874 = vpack.c.bf16 %v520, %v514
        %v875 = vpack.c.bf16 %v521, %v515
        %v876 = vpack.c.bf16 %v528, %v522
        %v877 = vpack.c.bf16 %v529, %v523
        %v878 = vpack.c.bf16 %v530, %v524
        %v879 = vpack.c.bf16 %v531, %v525
        %v880 = vpack.c.bf16 %v532, %v526
        %v881 = vpack.c.bf16 %v533, %v527
        %v882 = vpack.c.bf16 %v540, %v534
        %v883 = vpack.c.bf16 %v541, %v535
        %v884 = vpack.c.bf16 %v542, %v536
        %v885 = vpack.c.bf16 %v543, %v537
        %v886 = vpack.c.bf16 %v544, %v538
        %v887 = vpack.c.bf16 %v545, %v539
        %v888 = vpack.c.bf16 %v552, %v546
        %v889 = vpack.c.bf16 %v553, %v547
        %v890 = vpack.c.bf16 %v554, %v548
        %v891 = vpack.c.bf16 %v555, %v549
        %v892 = vpack.c.bf16 %v556, %v550
        %v893 = vpack.c.bf16 %v557, %v551
        %v894 = vpack.c.bf16 %v564, %v558
        %v895 = vpack.c.bf16 %v565, %v559
        %v896 = vpack.c.bf16 %v566, %v560
        %v897 = vpack.c.bf16 %v567, %v561
        %v898 = vpack.c.bf16 %v568, %v562
        %v899 = vpack.c.bf16 %v569, %v563
        %v900 = vpack.c.bf16 %v576, %v570
        %v901 = vpack.c.bf16 %v577, %v571
        %v902 = vpack.c.bf16 %v578, %v572
        %v903 = vpack.c.bf16 %v579, %v573
        %v904 = vpack.c.bf16 %v580, %v574
        %v905 = vpack.c.bf16 %v581, %v575
        %v906 = vpack.c.bf16 %v588, %v582
        %v907 = vpack.c.bf16 %v589, %v583
        %v908 = vpack.c.bf16 %v590, %v584
        %v909 = vpack.c.bf16 %v591, %v585
        %v910 = vpack.c.bf16 %v592, %v586
        %v911 = vpack.c.bf16 %v593, %v587
        %v912 = vpack.c.bf16 %v600, %v594
        %v913 = vpack.c.bf16 %v601, %v595
        %v914 = vpack.c.bf16 %v602, %v596
        %v915 = vpack.c.bf16 %v603, %v597
        %v916 = vpack.c.bf16 %v604, %v598
        %v917 = vpack.c.bf16 %v605, %v599
        %v918 = vpack.c.bf16 %v612, %v606
        %v919 = vpack.c.bf16 %v613, %v607
        %v920 = vpack.c.bf16 %v614, %v608
        %v921 = vpack.c.bf16 %v615, %v609
        %v922 = vpack.c.bf16 %v616, %v610
        %v923 = vpack.c.bf16 %v617, %v611
        %v924 = vpack.c.bf16 %v624, %v618
        %v925 = vpack.c.bf16 %v625, %v619
        %v926 = vpack.c.bf16 %v626, %v620
        %v927 = vpack.c.bf16 %v627, %v621
        %v928 = vpack.c.bf16 %v628, %v622
        %v929 = vpack.c.bf16 %v629, %v623
        %v930 = vpack.c.bf16 %v636, %v630
        %v931 = vpack.c.bf16 %v637, %v631
        %v932 = vpack.c.bf16 %v638, %v632
        %v933 = vpack.c.bf16 %v639, %v633
        %v934 = vpack.c.bf16 %v640, %v634
        %v935 = vpack.c.bf16 %v641, %v635
        %v936 = vpack.c.bf16 %v648, %v642
        %v937 = vpack.c.bf16 %v649, %v643
        %v938 = vpack.c.bf16 %v650, %v644
        %v939 = vpack.c.bf16 %v651, %v645
        %v940 = vpack.c.bf16 %v652, %v646
        %v941 = vpack.c.bf16 %v653, %v647
        %v942 = vpack.c.bf16 %v660, %v654
        %v943 = vpack.c.bf16 %v661, %v655
        %v944 = vpack.c.bf16 %v662, %v656
        %v945 = vpack.c.bf16 %v663, %v657
        %v946 = vpack.c.bf16 %v664, %v658
        %v947 = vpack.c.bf16 %v665, %v659
        %v948 = vpack.c.bf16 %v672, %v666
        %v949 = vpack.c.bf16 %v673, %v667
        %v950 = vpack.c.bf16 %v674, %v668
        %v951 = vpack.c.bf16 %v675, %v669
        %v952 = vpack.c.bf16 %v676, %v670
        %v953 = vpack.c.bf16 %v677, %v671
        %v954 = vpack.c.bf16 %v684, %v678
        %v955 = vpack.c.bf16 %v685, %v679
        %v956 = vpack.c.bf16 %v686, %v680
        %v957 = vpack.c.bf16 %v687, %v681
        %v958 = vpack.c.bf16 %v688, %v682
        %v959 = vpack.c.bf16 %v689, %v683
        %v960 = vpack.c.bf16 %v696, %v690
        %v961 = vpack.c.bf16 %v697, %v691
        %v962 = vpack.c.bf16 %v698, %v692
        %v963 = vpack.c.bf16 %v699, %v693
        %v964 = vpack.c.bf16 %v700, %v694
        %v965 = vpack.c.bf16 %v701, %v695
        %v966 = vpack.c.bf16 %v708, %v702
        %v967 = vpack.c.bf16 %v709, %v703
        %v968 = vpack.c.bf16 %v710, %v704
        %v969 = vpack.c.bf16 %v711, %v705
        %v970 = vpack.c.bf16 %v712, %v706
        %v971 = vpack.c.bf16 %v713, %v707
        %v972 = vpack.c.bf16 %v720, %v714
        %v973 = vpack.c.bf16 %v721, %v715
        %v974 = vpack.c.bf16 %v722, %v716
        %v975 = vpack.c.bf16 %v723, %v717
        %v976 = vpack.c.bf16 %v724, %v718
        %v977 = vpack.c.bf16 %v725, %v719
        %v978 = vpack.c.bf16 %v732, %v726
        %v979 = vpack.c.bf16 %v733, %v727
        %v980 = vpack.c.bf16 %v734, %v728
        %v981 = vpack.c.bf16 %v735, %v729
        %v982 = vpack.c.bf16 %v736, %v730
        %v983 = vpack.c.bf16 %v737, %v731
        %v984 = vpack.c.bf16 %v744, %v738
        %v985 = vpack.c.bf16 %v745, %v739
        %v986 = vpack.c.bf16 %v746, %v740
        %v987 = vpack.c.bf16 %v747, %v741
        %v988 = vpack.c.bf16 %v748, %v742
        %v989 = vpack.c.bf16 %v749, %v743
        %v990 = vpack.c.bf16 %v756, %v750
        %v991 = vpack.c.bf16 %v757, %v751
        %v992 = vpack.c.bf16 %v758, %v752
        %v993 = vpack.c.bf16 %v759, %v753
        %v994 = vpack.c.bf16 %v760, %v754
        %v995 = vpack.c.bf16 %v761, %v755
        %v996 = vpack.c.bf16 %v768, %v762
        %v997 = vpack.c.bf16 %v769, %v763
        %v998 = vpack.c.bf16 %v770, %v764
        %v999 = vpack.c.bf16 %v771, %v765
        %v1000 = vpack.c.bf16 %v772, %v766
        %v1001 = vpack.c.bf16 %v773, %v767
        %v1002 = vpack.c.bf16 %v780, %v774
        %v1003 = vpack.c.bf16 %v781, %v775
        %v1004 = vpack.c.bf16 %v782, %v776
        %v1005 = vpack.c.bf16 %v783, %v777
        %v1006 = vpack.c.bf16 %v784, %v778
        %v1007 = vpack.c.bf16 %v785, %v779
        %v1008 = vpack.c.bf16 %v792, %v786
        %v1009 = vpack.c.bf16 %v793, %v787
        %v1010 = vpack.c.bf16 %v794, %v788
        %v1011 = vpack.c.bf16 %v795, %v789
        %v1012 = vpack.c.bf16 %v796, %v790
        %v1013 = vpack.c.bf16 %v797, %v791
        %v1014 = vpack.c.bf16 %v804, %v798
        %v1015 = vpack.c.bf16 %v805, %v799
        %v1016 = vpack.c.bf16 %v806, %v800
        %v1017 = vpack.c.bf16 %v807, %v801
        %v1018 = vpack.c.bf16 %v808, %v802
        %v1019 = vpack.c.bf16 %v809, %v803
        %v1020 = vpack.c.bf16 %v816, %v810
        %v1021 = vpack.c.bf16 %v817, %v811
        %v1022 = vpack.c.bf16 %v818, %v812
        %v1023 = vpack.c.bf16 %v819, %v813
        %v1024 = vpack.c.bf16 %v820, %v814
        %v1025 = vpack.c.bf16 %v821, %v815
        %v1026 = vpack.c.bf16 %v828, %v822
        %v1027 = vpack.c.bf16 %v829, %v823
        %v1028 = vpack.c.bf16 %v830, %v824
        %v1029 = vpack.c.bf16 %v831, %v825
        %v1030 = vpack.c.bf16 %v832, %v826
        %v1031 = vpack.c.bf16 %v833, %v827
        %v1032 = vpack.c.bf16 %v840, %v834
        %v1033 = vpack.c.bf16 %v841, %v835
        %v1034 = vpack.c.bf16 %v842, %v836
        %v1035 = vpack.c.bf16 %v843, %v837
        %v1036 = vpack.c.bf16 %v844, %v838
        %v1037 = vpack.c.bf16 %v845, %v839
        %v1038 = vld [vmem:[#allocation5] sm:$0xff]
        %v1039 = vld [vmem:[#allocation5 + $0x8] sm:$0xff]
        %v1040 = vld [vmem:[#allocation5 + $0x10] sm:$0xff]
        %v1041 = vld [vmem:[#allocation5 + $0x18] sm:$0xff]
        %v1042 = vld [vmem:[#allocation5 + $0x20] sm:$0xff]
        %v1043 = vld [vmem:[#allocation5 + $0x28] sm:$0xff]
        %v1044 = vld [vmem:[#allocation5 + $0x30] sm:$0xff]
        %v1045 = vld [vmem:[#allocation5 + $0x38] sm:$0xff]
        %v1046 = vld [vmem:[#allocation5 + $0x40] sm:$0xff]
        %v1047 = vld [vmem:[#allocation5 + $0x48] sm:$0xff]
        %v1048 = vld [vmem:[#allocation5 + $0x50] sm:$0xff]
        %v1049 = vld [vmem:[#allocation5 + $0x58] sm:$0xff]
        %v1050 = vld [vmem:[#allocation5 + $0x60] sm:$0xff]
        %v1051 = vld [vmem:[#allocation5 + $0x68] sm:$0xff]
        %v1052 = vld [vmem:[#allocation5 + $0x70] sm:$0xff]
        %v1053 = vld [vmem:[#allocation5 + $0x78] sm:$0xff]
        %v1054 = vld [vmem:[#allocation5 + $0x80] sm:$0xff]
        %v1055 = vld [vmem:[#allocation5 + $0x88] sm:$0xff]
        %v1056 = vld [vmem:[#allocation5 + $0x90] sm:$0xff]
        %v1057 = vld [vmem:[#allocation5 + $0x98] sm:$0xff]
        %v1058 = vld [vmem:[#allocation5 + $0xa0] sm:$0xff]
        %v1059 = vld [vmem:[#allocation5 + $0xa8] sm:$0xff]
        %v1060 = vld [vmem:[#allocation5 + $0xb0] sm:$0xff]
        %v1061 = vld [vmem:[#allocation5 + $0xb8] sm:$0xff]
        %v1062 = vld [vmem:[#allocation5 + $0xc0] sm:$0xff]
        %v1063 = vld [vmem:[#allocation5 + $0xc8] sm:$0xff]
        %v1064 = vld [vmem:[#allocation5 + $0xd0] sm:$0xff]
        %v1065 = vld [vmem:[#allocation5 + $0xd8] sm:$0xff]
        %v1066 = vld [vmem:[#allocation5 + $0xe0] sm:$0xff]
        %v1067 = vld [vmem:[#allocation5 + $0xe8] sm:$0xff]
        %v1068 = vld [vmem:[#allocation5 + $0xf0] sm:$0xff]
        %v1069 = vld [vmem:[#allocation5 + $0xf8] sm:$0xff]
        %v1070 = vld [vmem:[#allocation5 + $0x100] sm:$0xff]
        %v1071 = vld [vmem:[#allocation5 + $0x108] sm:$0xff]
        %v1072 = vld [vmem:[#allocation5 + $0x110] sm:$0xff]
        %v1073 = vld [vmem:[#allocation5 + $0x118] sm:$0xff]
        %v1074 = vld [vmem:[#allocation5 + $0x120] sm:$0xff]
        %v1075 = vld [vmem:[#allocation5 + $0x128] sm:$0xff]
        %v1076 = vld [vmem:[#allocation5 + $0x130] sm:$0xff]
        %v1077 = vld [vmem:[#allocation5 + $0x138] sm:$0xff]
        %v1078 = vld [vmem:[#allocation5 + $0x140] sm:$0xff]
        %v1079 = vld [vmem:[#allocation5 + $0x148] sm:$0xff]
        %v1080 = vld [vmem:[#allocation5 + $0x150] sm:$0xff]
        %v1081 = vld [vmem:[#allocation5 + $0x158] sm:$0xff]
        %v1082 = vld [vmem:[#allocation5 + $0x160] sm:$0xff]
        %v1083 = vld [vmem:[#allocation5 + $0x168] sm:$0xff]
        %v1084 = vld [vmem:[#allocation5 + $0x170] sm:$0xff]
        %v1085 = vld [vmem:[#allocation5 + $0x178] sm:$0xff]
        %v1086 = vld [vmem:[#allocation5 + $0x180] sm:$0xff]
        %v1087 = vld [vmem:[#allocation5 + $0x188] sm:$0xff]
        %v1088 = vld [vmem:[#allocation5 + $0x190] sm:$0xff]
        %v1089 = vld [vmem:[#allocation5 + $0x198] sm:$0xff]
        %v1090 = vld [vmem:[#allocation5 + $0x1a0] sm:$0xff]
        %v1091 = vld [vmem:[#allocation5 + $0x1a8] sm:$0xff]
        %v1092 = vld [vmem:[#allocation5 + $0x1b0] sm:$0xff]
        %v1093 = vld [vmem:[#allocation5 + $0x1b8] sm:$0xff]
        %v1094 = vld [vmem:[#allocation5 + $0x1c0] sm:$0xff]
        %v1095 = vld [vmem:[#allocation5 + $0x1c8] sm:$0xff]
        %v1096 = vld [vmem:[#allocation5 + $0x1d0] sm:$0xff]
        %v1097 = vld [vmem:[#allocation5 + $0x1d8] sm:$0xff]
        %v1098 = vld [vmem:[#allocation5 + $0x1e0] sm:$0xff]
        %v1099 = vld [vmem:[#allocation5 + $0x1e8] sm:$0xff]
        %v1100 = vld [vmem:[#allocation5 + $0x1f0] sm:$0xff]
        %v1101 = vld [vmem:[#allocation5 + $0x1f8] sm:$0xff]
        %v1102 = vld [vmem:[#allocation5 + $0x200] sm:$0xff]
        %v1103 = vld [vmem:[#allocation5 + $0x208] sm:$0xff]
        %v1104 = vld [vmem:[#allocation5 + $0x210] sm:$0xff]
        %v1105 = vld [vmem:[#allocation5 + $0x218] sm:$0xff]
        %v1106 = vld [vmem:[#allocation5 + $0x220] sm:$0xff]
        %v1107 = vld [vmem:[#allocation5 + $0x228] sm:$0xff]
        %v1108 = vld [vmem:[#allocation5 + $0x230] sm:$0xff]
        %v1109 = vld [vmem:[#allocation5 + $0x238] sm:$0xff]
        %v1110 = vld [vmem:[#allocation5 + $0x240] sm:$0xff]
        %v1111 = vld [vmem:[#allocation5 + $0x248] sm:$0xff]
        %v1112 = vld [vmem:[#allocation5 + $0x250] sm:$0xff]
        %v1113 = vld [vmem:[#allocation5 + $0x258] sm:$0xff]
        %v1114 = vld [vmem:[#allocation5 + $0x260] sm:$0xff]
        %v1115 = vld [vmem:[#allocation5 + $0x268] sm:$0xff]
        %v1116 = vld [vmem:[#allocation5 + $0x270] sm:$0xff]
        %v1117 = vld [vmem:[#allocation5 + $0x278] sm:$0xff]
        %v1118 = vld [vmem:[#allocation5 + $0x280] sm:$0xff]
        %v1119 = vld [vmem:[#allocation5 + $0x288] sm:$0xff]
        %v1120 = vld [vmem:[#allocation5 + $0x290] sm:$0xff]
        %v1121 = vld [vmem:[#allocation5 + $0x298] sm:$0xff]
        %v1122 = vld [vmem:[#allocation5 + $0x2a0] sm:$0xff]
        %v1123 = vld [vmem:[#allocation5 + $0x2a8] sm:$0xff]
        %v1124 = vld [vmem:[#allocation5 + $0x2b0] sm:$0xff]
        %v1125 = vld [vmem:[#allocation5 + $0x2b8] sm:$0xff]
        %v1126 = vld [vmem:[#allocation5 + $0x2c0] sm:$0xff]
        %v1127 = vld [vmem:[#allocation5 + $0x2c8] sm:$0xff]
        %v1128 = vld [vmem:[#allocation5 + $0x2d0] sm:$0xff]
        %v1129 = vld [vmem:[#allocation5 + $0x2d8] sm:$0xff]
        %v1130 = vld [vmem:[#allocation5 + $0x2e0] sm:$0xff]
        %v1131 = vld [vmem:[#allocation5 + $0x2e8] sm:$0xff]
        %v1132 = vld [vmem:[#allocation5 + $0x2f0] sm:$0xff]
        %v1133 = vld [vmem:[#allocation5 + $0x2f8] sm:$0xff]
        %v1134 = vld [vmem:[#allocation5 + $0x300] sm:$0xff]
        %v1135 = vld [vmem:[#allocation5 + $0x308] sm:$0xff]
        %v1136 = vld [vmem:[#allocation5 + $0x310] sm:$0xff]
        %v1137 = vld [vmem:[#allocation5 + $0x318] sm:$0xff]
        %v1138 = vld [vmem:[#allocation5 + $0x320] sm:$0xff]
        %v1139 = vld [vmem:[#allocation5 + $0x328] sm:$0xff]
        %v1140 = vld [vmem:[#allocation5 + $0x330] sm:$0xff]
        %v1141 = vld [vmem:[#allocation5 + $0x338] sm:$0xff]
        %v1142 = vld [vmem:[#allocation5 + $0x340] sm:$0xff]
        %v1143 = vld [vmem:[#allocation5 + $0x348] sm:$0xff]
        %v1144 = vld [vmem:[#allocation5 + $0x350] sm:$0xff]
        %v1145 = vld [vmem:[#allocation5 + $0x358] sm:$0xff]
        %v1146 = vld [vmem:[#allocation5 + $0x360] sm:$0xff]
        %v1147 = vld [vmem:[#allocation5 + $0x368] sm:$0xff]
        %v1148 = vld [vmem:[#allocation5 + $0x370] sm:$0xff]
        %v1149 = vld [vmem:[#allocation5 + $0x378] sm:$0xff]
        %v1150 = vld [vmem:[#allocation5 + $0x380] sm:$0xff]
        %v1151 = vld [vmem:[#allocation5 + $0x388] sm:$0xff]
        %v1152 = vld [vmem:[#allocation5 + $0x390] sm:$0xff]
        %v1153 = vld [vmem:[#allocation5 + $0x398] sm:$0xff]
        %v1154 = vld [vmem:[#allocation5 + $0x3a0] sm:$0xff]
        %v1155 = vld [vmem:[#allocation5 + $0x3a8] sm:$0xff]
        %v1156 = vld [vmem:[#allocation5 + $0x3b0] sm:$0xff]
        %v1157 = vld [vmem:[#allocation5 + $0x3b8] sm:$0xff]
        %v1158 = vld [vmem:[#allocation5 + $0x3c0] sm:$0xff]
        %v1159 = vld [vmem:[#allocation5 + $0x3c8] sm:$0xff]
        %v1160 = vld [vmem:[#allocation5 + $0x3d0] sm:$0xff]
        %v1161 = vld [vmem:[#allocation5 + $0x3d8] sm:$0xff]
        %v1162 = vld [vmem:[#allocation5 + $0x3e0] sm:$0xff]
        %v1163 = vld [vmem:[#allocation5 + $0x3e8] sm:$0xff]
        %v1164 = vld [vmem:[#allocation5 + $0x3f0] sm:$0xff]
        %v1165 = vld [vmem:[#allocation5 + $0x3f8] sm:$0xff]
        %v1166 = vld [vmem:[#allocation5 + $0x400] sm:$0xff]
        %v1167 = vld [vmem:[#allocation5 + $0x408] sm:$0xff]
        %v1168 = vld [vmem:[#allocation5 + $0x410] sm:$0xff]
        %v1169 = vld [vmem:[#allocation5 + $0x418] sm:$0xff]
        %v1170 = vld [vmem:[#allocation5 + $0x420] sm:$0xff]
        %v1171 = vld [vmem:[#allocation5 + $0x428] sm:$0xff]
        %v1172 = vld [vmem:[#allocation5 + $0x430] sm:$0xff]
        %v1173 = vld [vmem:[#allocation5 + $0x438] sm:$0xff]
        %v1174 = vld [vmem:[#allocation5 + $0x440] sm:$0xff]
        %v1175 = vld [vmem:[#allocation5 + $0x448] sm:$0xff]
        %v1176 = vld [vmem:[#allocation5 + $0x450] sm:$0xff]
        %v1177 = vld [vmem:[#allocation5 + $0x458] sm:$0xff]
        %v1178 = vld [vmem:[#allocation5 + $0x460] sm:$0xff]
        %v1179 = vld [vmem:[#allocation5 + $0x468] sm:$0xff]
        %v1180 = vld [vmem:[#allocation5 + $0x470] sm:$0xff]
        %v1181 = vld [vmem:[#allocation5 + $0x478] sm:$0xff]
        %v1182 = vld [vmem:[#allocation5 + $0x480] sm:$0xff]
        %v1183 = vld [vmem:[#allocation5 + $0x488] sm:$0xff]
        %v1184 = vld [vmem:[#allocation5 + $0x490] sm:$0xff]
        %v1185 = vld [vmem:[#allocation5 + $0x498] sm:$0xff]
        %v1186 = vld [vmem:[#allocation5 + $0x4a0] sm:$0xff]
        %v1187 = vld [vmem:[#allocation5 + $0x4a8] sm:$0xff]
        %v1188 = vld [vmem:[#allocation5 + $0x4b0] sm:$0xff]
        %v1189 = vld [vmem:[#allocation5 + $0x4b8] sm:$0xff]
        %v1190 = vld [vmem:[#allocation5 + $0x4c0] sm:$0xff]
        %v1191 = vld [vmem:[#allocation5 + $0x4c8] sm:$0xff]
        %v1192 = vld [vmem:[#allocation5 + $0x4d0] sm:$0xff]
        %v1193 = vld [vmem:[#allocation5 + $0x4d8] sm:$0xff]
        %v1194 = vld [vmem:[#allocation5 + $0x4e0] sm:$0xff]
        %v1195 = vld [vmem:[#allocation5 + $0x4e8] sm:$0xff]
        %v1196 = vld [vmem:[#allocation5 + $0x4f0] sm:$0xff]
        %v1197 = vld [vmem:[#allocation5 + $0x4f8] sm:$0xff]
        %v1198 = vld [vmem:[#allocation5 + $0x500] sm:$0xff]
        %v1199 = vld [vmem:[#allocation5 + $0x508] sm:$0xff]
        %v1200 = vld [vmem:[#allocation5 + $0x510] sm:$0xff]
        %v1201 = vld [vmem:[#allocation5 + $0x518] sm:$0xff]
        %v1202 = vld [vmem:[#allocation5 + $0x520] sm:$0xff]
        %v1203 = vld [vmem:[#allocation5 + $0x528] sm:$0xff]
        %v1204 = vld [vmem:[#allocation5 + $0x530] sm:$0xff]
        %v1205 = vld [vmem:[#allocation5 + $0x538] sm:$0xff]
        %v1206 = vld [vmem:[#allocation5 + $0x540] sm:$0xff]
        %v1207 = vld [vmem:[#allocation5 + $0x548] sm:$0xff]
        %v1208 = vld [vmem:[#allocation5 + $0x550] sm:$0xff]
        %v1209 = vld [vmem:[#allocation5 + $0x558] sm:$0xff]
        %v1210 = vld [vmem:[#allocation5 + $0x560] sm:$0xff]
        %v1211 = vld [vmem:[#allocation5 + $0x568] sm:$0xff]
        %v1212 = vld [vmem:[#allocation5 + $0x570] sm:$0xff]
        %v1213 = vld [vmem:[#allocation5 + $0x578] sm:$0xff]
        %v1214 = vld [vmem:[#allocation5 + $0x580] sm:$0xff]
        %v1215 = vld [vmem:[#allocation5 + $0x588] sm:$0xff]
        %v1216 = vld [vmem:[#allocation5 + $0x590] sm:$0xff]
        %v1217 = vld [vmem:[#allocation5 + $0x598] sm:$0xff]
        %v1218 = vld [vmem:[#allocation5 + $0x5a0] sm:$0xff]
        %v1219 = vld [vmem:[#allocation5 + $0x5a8] sm:$0xff]
        %v1220 = vld [vmem:[#allocation5 + $0x5b0] sm:$0xff]
        %v1221 = vld [vmem:[#allocation5 + $0x5b8] sm:$0xff]
        %v1222 = vld [vmem:[#allocation5 + $0x5c0] sm:$0xff]
        %v1223 = vld [vmem:[#allocation5 + $0x5c8] sm:$0xff]
        %v1224 = vld [vmem:[#allocation5 + $0x5d0] sm:$0xff]
        %v1225 = vld [vmem:[#allocation5 + $0x5d8] sm:$0xff]
        %v1226 = vld [vmem:[#allocation5 + $0x5e0] sm:$0xff]
        %v1227 = vld [vmem:[#allocation5 + $0x5e8] sm:$0xff]
        %v1228 = vld [vmem:[#allocation5 + $0x5f0] sm:$0xff]
        %v1229 = vld [vmem:[#allocation5 + $0x5f8] sm:$0xff]
        %v1230 = vld [vmem:[#allocation7] sm:$0xf]
        %v1232 = vlaneseq
        %v1233 = vshrl.u32 %v1232, 7
        %v1234 = vsub.s32 0, %v1233
        %v1235 = vrot.slane %v1230, %v1234
        %v1236 = vlaneseq
        %v1237 = vshrl.u32 %v1236, 7
        %v1238 = vsub.s32 1, %v1237
        %v1239 = vrot.slane %v1230, %v1238
        %v1240 = vlaneseq
        %v1241 = vshrl.u32 %v1240, 7
        %v1242 = vsub.s32 2, %v1241
        %v1243 = vrot.slane %v1230, %v1242
        %v1244 = vlaneseq
        %v1245 = vshrl.u32 %v1244, 7
        %v1246 = vsub.s32 3, %v1245
        %v1247 = vrot.slane %v1230, %v1246
        %v1444 = vunpack.c.l.b16 %v1038
        %v1445 = vunpack.c.h.b16 %v1038
        %v1446 = vunpack.c.l.b16 %v1039
        %v1447 = vunpack.c.h.b16 %v1039
        %v1448 = vunpack.c.l.b16 %v1040
        %v1449 = vunpack.c.h.b16 %v1040
        %v1450 = vunpack.c.l.b16 %v1041
        %v1451 = vunpack.c.h.b16 %v1041
        %v1452 = vunpack.c.l.b16 %v1042
        %v1453 = vunpack.c.h.b16 %v1042
        %v1454 = vunpack.c.l.b16 %v1043
        %v1455 = vunpack.c.h.b16 %v1043
        %v1456 = vunpack.c.l.b16 %v1044
        %v1457 = vunpack.c.h.b16 %v1044
        %v1458 = vunpack.c.l.b16 %v1045
        %v1459 = vunpack.c.h.b16 %v1045
        %v1460 = vunpack.c.l.b16 %v1046
        %v1461 = vunpack.c.h.b16 %v1046
        %v1462 = vunpack.c.l.b16 %v1047
        %v1463 = vunpack.c.h.b16 %v1047
        %v1464 = vunpack.c.l.b16 %v1048
        %v1465 = vunpack.c.h.b16 %v1048
        %v1466 = vunpack.c.l.b16 %v1049
        %v1467 = vunpack.c.h.b16 %v1049
        %v1468 = vunpack.c.l.b16 %v1050
        %v1469 = vunpack.c.h.b16 %v1050
        %v1470 = vunpack.c.l.b16 %v1051
        %v1471 = vunpack.c.h.b16 %v1051
        %v1472 = vunpack.c.l.b16 %v1052
        %v1473 = vunpack.c.h.b16 %v1052
        %v1474 = vunpack.c.l.b16 %v1053
        %v1475 = vunpack.c.h.b16 %v1053
        %v1476 = vunpack.c.l.b16 %v1054
        %v1477 = vunpack.c.h.b16 %v1054
        %v1478 = vunpack.c.l.b16 %v1055
        %v1479 = vunpack.c.h.b16 %v1055
        %v1480 = vunpack.c.l.b16 %v1056
        %v1481 = vunpack.c.h.b16 %v1056
        %v1482 = vunpack.c.l.b16 %v1057
        %v1483 = vunpack.c.h.b16 %v1057
        %v1484 = vunpack.c.l.b16 %v1058
        %v1485 = vunpack.c.h.b16 %v1058
        %v1486 = vunpack.c.l.b16 %v1059
        %v1487 = vunpack.c.h.b16 %v1059
        %v1488 = vunpack.c.l.b16 %v1060
        %v1489 = vunpack.c.h.b16 %v1060
        %v1490 = vunpack.c.l.b16 %v1061
        %v1491 = vunpack.c.h.b16 %v1061
        %v1492 = vunpack.c.l.b16 %v1062
        %v1493 = vunpack.c.h.b16 %v1062
        %v1494 = vunpack.c.l.b16 %v1063
        %v1495 = vunpack.c.h.b16 %v1063
        %v1496 = vunpack.c.l.b16 %v1064
        %v1497 = vunpack.c.h.b16 %v1064
        %v1498 = vunpack.c.l.b16 %v1065
        %v1499 = vunpack.c.h.b16 %v1065
        %v1500 = vunpack.c.l.b16 %v1066
        %v1501 = vunpack.c.h.b16 %v1066
        %v1502 = vunpack.c.l.b16 %v1067
        %v1503 = vunpack.c.h.b16 %v1067
        %v1504 = vunpack.c.l.b16 %v1068
        %v1505 = vunpack.c.h.b16 %v1068
        %v1506 = vunpack.c.l.b16 %v1069
        %v1507 = vunpack.c.h.b16 %v1069
        %v1508 = vunpack.c.l.b16 %v1070
        %v1509 = vunpack.c.h.b16 %v1070
        %v1510 = vunpack.c.l.b16 %v1071
        %v1511 = vunpack.c.h.b16 %v1071
        %v1512 = vunpack.c.l.b16 %v1072
        %v1513 = vunpack.c.h.b16 %v1072
        %v1514 = vunpack.c.l.b16 %v1073
        %v1515 = vunpack.c.h.b16 %v1073
        %v1516 = vunpack.c.l.b16 %v1074
        %v1517 = vunpack.c.h.b16 %v1074
        %v1518 = vunpack.c.l.b16 %v1075
        %v1519 = vunpack.c.h.b16 %v1075
        %v1520 = vunpack.c.l.b16 %v1076
        %v1521 = vunpack.c.h.b16 %v1076
        %v1522 = vunpack.c.l.b16 %v1077
        %v1523 = vunpack.c.h.b16 %v1077
        %v1524 = vunpack.c.l.b16 %v1078
        %v1525 = vunpack.c.h.b16 %v1078
        %v1526 = vunpack.c.l.b16 %v1079
        %v1527 = vunpack.c.h.b16 %v1079
        %v1528 = vunpack.c.l.b16 %v1080
        %v1529 = vunpack.c.h.b16 %v1080
        %v1530 = vunpack.c.l.b16 %v1081
        %v1531 = vunpack.c.h.b16 %v1081
        %v1532 = vunpack.c.l.b16 %v1082
        %v1533 = vunpack.c.h.b16 %v1082
        %v1534 = vunpack.c.l.b16 %v1083
        %v1535 = vunpack.c.h.b16 %v1083
        %v1536 = vunpack.c.l.b16 %v1084
        %v1537 = vunpack.c.h.b16 %v1084
        %v1538 = vunpack.c.l.b16 %v1085
        %v1539 = vunpack.c.h.b16 %v1085
        %v1540 = vunpack.c.l.b16 %v1086
        %v1541 = vunpack.c.h.b16 %v1086
        %v1542 = vunpack.c.l.b16 %v1087
        %v1543 = vunpack.c.h.b16 %v1087
        %v1544 = vunpack.c.l.b16 %v1088
        %v1545 = vunpack.c.h.b16 %v1088
        %v1546 = vunpack.c.l.b16 %v1089
        %v1547 = vunpack.c.h.b16 %v1089
        %v1548 = vunpack.c.l.b16 %v1090
        %v1549 = vunpack.c.h.b16 %v1090
        %v1550 = vunpack.c.l.b16 %v1091
        %v1551 = vunpack.c.h.b16 %v1091
        %v1552 = vunpack.c.l.b16 %v1092
        %v1553 = vunpack.c.h.b16 %v1092
        %v1554 = vunpack.c.l.b16 %v1093
        %v1555 = vunpack.c.h.b16 %v1093
        %v1556 = vunpack.c.l.b16 %v1094
        %v1557 = vunpack.c.h.b16 %v1094
        %v1558 = vunpack.c.l.b16 %v1095
        %v1559 = vunpack.c.h.b16 %v1095
        %v1560 = vunpack.c.l.b16 %v1096
        %v1561 = vunpack.c.h.b16 %v1096
        %v1562 = vunpack.c.l.b16 %v1097
        %v1563 = vunpack.c.h.b16 %v1097
        %v1564 = vunpack.c.l.b16 %v1098
        %v1565 = vunpack.c.h.b16 %v1098
        %v1566 = vunpack.c.l.b16 %v1099
        %v1567 = vunpack.c.h.b16 %v1099
        %v1568 = vunpack.c.l.b16 %v1100
        %v1569 = vunpack.c.h.b16 %v1100
        %v1570 = vunpack.c.l.b16 %v1101
        %v1571 = vunpack.c.h.b16 %v1101
        %v1572 = vunpack.c.l.b16 %v1102
        %v1573 = vunpack.c.h.b16 %v1102
        %v1574 = vunpack.c.l.b16 %v1103
        %v1575 = vunpack.c.h.b16 %v1103
        %v1576 = vunpack.c.l.b16 %v1104
        %v1577 = vunpack.c.h.b16 %v1104
        %v1578 = vunpack.c.l.b16 %v1105
        %v1579 = vunpack.c.h.b16 %v1105
        %v1580 = vunpack.c.l.b16 %v1106
        %v1581 = vunpack.c.h.b16 %v1106
        %v1582 = vunpack.c.l.b16 %v1107
        %v1583 = vunpack.c.h.b16 %v1107
        %v1584 = vunpack.c.l.b16 %v1108
        %v1585 = vunpack.c.h.b16 %v1108
        %v1586 = vunpack.c.l.b16 %v1109
        %v1587 = vunpack.c.h.b16 %v1109
        %v1588 = vunpack.c.l.b16 %v1110
        %v1589 = vunpack.c.h.b16 %v1110
        %v1590 = vunpack.c.l.b16 %v1111
        %v1591 = vunpack.c.h.b16 %v1111
        %v1592 = vunpack.c.l.b16 %v1112
        %v1593 = vunpack.c.h.b16 %v1112
        %v1594 = vunpack.c.l.b16 %v1113
        %v1595 = vunpack.c.h.b16 %v1113
        %v1596 = vunpack.c.l.b16 %v1114
        %v1597 = vunpack.c.h.b16 %v1114
        %v1598 = vunpack.c.l.b16 %v1115
        %v1599 = vunpack.c.h.b16 %v1115
        %v1600 = vunpack.c.l.b16 %v1116
        %v1601 = vunpack.c.h.b16 %v1116
        %v1602 = vunpack.c.l.b16 %v1117
        %v1603 = vunpack.c.h.b16 %v1117
        %v1604 = vunpack.c.l.b16 %v1118
        %v1605 = vunpack.c.h.b16 %v1118
        %v1606 = vunpack.c.l.b16 %v1119
        %v1607 = vunpack.c.h.b16 %v1119
        %v1608 = vunpack.c.l.b16 %v1120
        %v1609 = vunpack.c.h.b16 %v1120
        %v1610 = vunpack.c.l.b16 %v1121
        %v1611 = vunpack.c.h.b16 %v1121
        %v1612 = vunpack.c.l.b16 %v1122
        %v1613 = vunpack.c.h.b16 %v1122
        %v1614 = vunpack.c.l.b16 %v1123
        %v1615 = vunpack.c.h.b16 %v1123
        %v1616 = vunpack.c.l.b16 %v1124
        %v1617 = vunpack.c.h.b16 %v1124
        %v1618 = vunpack.c.l.b16 %v1125
        %v1619 = vunpack.c.h.b16 %v1125
        %v1620 = vunpack.c.l.b16 %v1126
        %v1621 = vunpack.c.h.b16 %v1126
        %v1622 = vunpack.c.l.b16 %v1127
        %v1623 = vunpack.c.h.b16 %v1127
        %v1624 = vunpack.c.l.b16 %v1128
        %v1625 = vunpack.c.h.b16 %v1128
        %v1626 = vunpack.c.l.b16 %v1129
        %v1627 = vunpack.c.h.b16 %v1129
        %v1628 = vunpack.c.l.b16 %v1130
        %v1629 = vunpack.c.h.b16 %v1130
        %v1630 = vunpack.c.l.b16 %v1131
        %v1631 = vunpack.c.h.b16 %v1131
        %v1632 = vunpack.c.l.b16 %v1132
        %v1633 = vunpack.c.h.b16 %v1132
        %v1634 = vunpack.c.l.b16 %v1133
        %v1635 = vunpack.c.h.b16 %v1133
        %v1636 = vunpack.c.l.b16 %v1134
        %v1637 = vunpack.c.h.b16 %v1134
        %v1638 = vunpack.c.l.b16 %v1135
        %v1639 = vunpack.c.h.b16 %v1135
        %v1640 = vunpack.c.l.b16 %v1136
        %v1641 = vunpack.c.h.b16 %v1136
        %v1642 = vunpack.c.l.b16 %v1137
        %v1643 = vunpack.c.h.b16 %v1137
        %v1644 = vunpack.c.l.b16 %v1138
        %v1645 = vunpack.c.h.b16 %v1138
        %v1646 = vunpack.c.l.b16 %v1139
        %v1647 = vunpack.c.h.b16 %v1139
        %v1648 = vunpack.c.l.b16 %v1140
        %v1649 = vunpack.c.h.b16 %v1140
        %v1650 = vunpack.c.l.b16 %v1141
        %v1651 = vunpack.c.h.b16 %v1141
        %v1652 = vunpack.c.l.b16 %v1142
        %v1653 = vunpack.c.h.b16 %v1142
        %v1654 = vunpack.c.l.b16 %v1143
        %v1655 = vunpack.c.h.b16 %v1143
        %v1656 = vunpack.c.l.b16 %v1144
        %v1657 = vunpack.c.h.b16 %v1144
        %v1658 = vunpack.c.l.b16 %v1145
        %v1659 = vunpack.c.h.b16 %v1145
        %v1660 = vunpack.c.l.b16 %v1146
        %v1661 = vunpack.c.h.b16 %v1146
        %v1662 = vunpack.c.l.b16 %v1147
        %v1663 = vunpack.c.h.b16 %v1147
        %v1664 = vunpack.c.l.b16 %v1148
        %v1665 = vunpack.c.h.b16 %v1148
        %v1666 = vunpack.c.l.b16 %v1149
        %v1667 = vunpack.c.h.b16 %v1149
        %v1668 = vunpack.c.l.b16 %v1150
        %v1669 = vunpack.c.h.b16 %v1150
        %v1670 = vunpack.c.l.b16 %v1151
        %v1671 = vunpack.c.h.b16 %v1151
        %v1672 = vunpack.c.l.b16 %v1152
        %v1673 = vunpack.c.h.b16 %v1152
        %v1674 = vunpack.c.l.b16 %v1153
        %v1675 = vunpack.c.h.b16 %v1153
        %v1676 = vunpack.c.l.b16 %v1154
        %v1677 = vunpack.c.h.b16 %v1154
        %v1678 = vunpack.c.l.b16 %v1155
        %v1679 = vunpack.c.h.b16 %v1155
        %v1680 = vunpack.c.l.b16 %v1156
        %v1681 = vunpack.c.h.b16 %v1156
        %v1682 = vunpack.c.l.b16 %v1157
        %v1683 = vunpack.c.h.b16 %v1157
        %v1684 = vunpack.c.l.b16 %v1158
        %v1685 = vunpack.c.h.b16 %v1158
        %v1686 = vunpack.c.l.b16 %v1159
        %v1687 = vunpack.c.h.b16 %v1159
        %v1688 = vunpack.c.l.b16 %v1160
        %v1689 = vunpack.c.h.b16 %v1160
        %v1690 = vunpack.c.l.b16 %v1161
        %v1691 = vunpack.c.h.b16 %v1161
        %v1692 = vunpack.c.l.b16 %v1162
        %v1693 = vunpack.c.h.b16 %v1162
        %v1694 = vunpack.c.l.b16 %v1163
        %v1695 = vunpack.c.h.b16 %v1163
        %v1696 = vunpack.c.l.b16 %v1164
        %v1697 = vunpack.c.h.b16 %v1164
        %v1698 = vunpack.c.l.b16 %v1165
        %v1699 = vunpack.c.h.b16 %v1165
        %v1700 = vunpack.c.l.b16 %v1166
        %v1701 = vunpack.c.h.b16 %v1166
        %v1702 = vunpack.c.l.b16 %v1167
        %v1703 = vunpack.c.h.b16 %v1167
        %v1704 = vunpack.c.l.b16 %v1168
        %v1705 = vunpack.c.h.b16 %v1168
        %v1706 = vunpack.c.l.b16 %v1169
        %v1707 = vunpack.c.h.b16 %v1169
        %v1708 = vunpack.c.l.b16 %v1170
        %v1709 = vunpack.c.h.b16 %v1170
        %v1710 = vunpack.c.l.b16 %v1171
        %v1711 = vunpack.c.h.b16 %v1171
        %v1712 = vunpack.c.l.b16 %v1172
        %v1713 = vunpack.c.h.b16 %v1172
        %v1714 = vunpack.c.l.b16 %v1173
        %v1715 = vunpack.c.h.b16 %v1173
        %v1716 = vunpack.c.l.b16 %v1174
        %v1717 = vunpack.c.h.b16 %v1174
        %v1718 = vunpack.c.l.b16 %v1175
        %v1719 = vunpack.c.h.b16 %v1175
        %v1720 = vunpack.c.l.b16 %v1176
        %v1721 = vunpack.c.h.b16 %v1176
        %v1722 = vunpack.c.l.b16 %v1177
        %v1723 = vunpack.c.h.b16 %v1177
        %v1724 = vunpack.c.l.b16 %v1178
        %v1725 = vunpack.c.h.b16 %v1178
        %v1726 = vunpack.c.l.b16 %v1179
        %v1727 = vunpack.c.h.b16 %v1179
        %v1728 = vunpack.c.l.b16 %v1180
        %v1729 = vunpack.c.h.b16 %v1180
        %v1730 = vunpack.c.l.b16 %v1181
        %v1731 = vunpack.c.h.b16 %v1181
        %v1732 = vunpack.c.l.b16 %v1182
        %v1733 = vunpack.c.h.b16 %v1182
        %v1734 = vunpack.c.l.b16 %v1183
        %v1735 = vunpack.c.h.b16 %v1183
        %v1736 = vunpack.c.l.b16 %v1184
        %v1737 = vunpack.c.h.b16 %v1184
        %v1738 = vunpack.c.l.b16 %v1185
        %v1739 = vunpack.c.h.b16 %v1185
        %v1740 = vunpack.c.l.b16 %v1186
        %v1741 = vunpack.c.h.b16 %v1186
        %v1742 = vunpack.c.l.b16 %v1187
        %v1743 = vunpack.c.h.b16 %v1187
        %v1744 = vunpack.c.l.b16 %v1188
        %v1745 = vunpack.c.h.b16 %v1188
        %v1746 = vunpack.c.l.b16 %v1189
        %v1747 = vunpack.c.h.b16 %v1189
        %v1748 = vunpack.c.l.b16 %v1190
        %v1749 = vunpack.c.h.b16 %v1190
        %v1750 = vunpack.c.l.b16 %v1191
        %v1751 = vunpack.c.h.b16 %v1191
        %v1752 = vunpack.c.l.b16 %v1192
        %v1753 = vunpack.c.h.b16 %v1192
        %v1754 = vunpack.c.l.b16 %v1193
        %v1755 = vunpack.c.h.b16 %v1193
        %v1756 = vunpack.c.l.b16 %v1194
        %v1757 = vunpack.c.h.b16 %v1194
        %v1758 = vunpack.c.l.b16 %v1195
        %v1759 = vunpack.c.h.b16 %v1195
        %v1760 = vunpack.c.l.b16 %v1196
        %v1761 = vunpack.c.h.b16 %v1196
        %v1762 = vunpack.c.l.b16 %v1197
        %v1763 = vunpack.c.h.b16 %v1197
        %v1764 = vunpack.c.l.b16 %v1198
        %v1765 = vunpack.c.h.b16 %v1198
        %v1766 = vunpack.c.l.b16 %v1199
        %v1767 = vunpack.c.h.b16 %v1199
        %v1768 = vunpack.c.l.b16 %v1200
        %v1769 = vunpack.c.h.b16 %v1200
        %v1770 = vunpack.c.l.b16 %v1201
        %v1771 = vunpack.c.h.b16 %v1201
        %v1772 = vunpack.c.l.b16 %v1202
        %v1773 = vunpack.c.h.b16 %v1202
        %v1774 = vunpack.c.l.b16 %v1203
        %v1775 = vunpack.c.h.b16 %v1203
        %v1776 = vunpack.c.l.b16 %v1204
        %v1777 = vunpack.c.h.b16 %v1204
        %v1778 = vunpack.c.l.b16 %v1205
        %v1779 = vunpack.c.h.b16 %v1205
        %v1780 = vunpack.c.l.b16 %v1206
        %v1781 = vunpack.c.h.b16 %v1206
        %v1782 = vunpack.c.l.b16 %v1207
        %v1783 = vunpack.c.h.b16 %v1207
        %v1784 = vunpack.c.l.b16 %v1208
        %v1785 = vunpack.c.h.b16 %v1208
        %v1786 = vunpack.c.l.b16 %v1209
        %v1787 = vunpack.c.h.b16 %v1209
        %v1788 = vunpack.c.l.b16 %v1210
        %v1789 = vunpack.c.h.b16 %v1210
        %v1790 = vunpack.c.l.b16 %v1211
        %v1791 = vunpack.c.h.b16 %v1211
        %v1792 = vunpack.c.l.b16 %v1212
        %v1793 = vunpack.c.h.b16 %v1212
        %v1794 = vunpack.c.l.b16 %v1213
        %v1795 = vunpack.c.h.b16 %v1213
        %v1796 = vunpack.c.l.b16 %v1214
        %v1797 = vunpack.c.h.b16 %v1214
        %v1798 = vunpack.c.l.b16 %v1215
        %v1799 = vunpack.c.h.b16 %v1215
        %v1800 = vunpack.c.l.b16 %v1216
        %v1801 = vunpack.c.h.b16 %v1216
        %v1802 = vunpack.c.l.b16 %v1217
        %v1803 = vunpack.c.h.b16 %v1217
        %v1804 = vunpack.c.l.b16 %v1218
        %v1805 = vunpack.c.h.b16 %v1218
        %v1806 = vunpack.c.l.b16 %v1219
        %v1807 = vunpack.c.h.b16 %v1219
        %v1808 = vunpack.c.l.b16 %v1220
        %v1809 = vunpack.c.h.b16 %v1220
        %v1810 = vunpack.c.l.b16 %v1221
        %v1811 = vunpack.c.h.b16 %v1221
        %v1812 = vunpack.c.l.b16 %v1222
        %v1813 = vunpack.c.h.b16 %v1222
        %v1814 = vunpack.c.l.b16 %v1223
        %v1815 = vunpack.c.h.b16 %v1223
        %v1816 = vunpack.c.l.b16 %v1224
        %v1817 = vunpack.c.h.b16 %v1224
        %v1818 = vunpack.c.l.b16 %v1225
        %v1819 = vunpack.c.h.b16 %v1225
        %v1820 = vunpack.c.l.b16 %v1226
        %v1821 = vunpack.c.h.b16 %v1226
        %v1822 = vunpack.c.l.b16 %v1227
        %v1823 = vunpack.c.h.b16 %v1227
        %v1824 = vunpack.c.l.b16 %v1228
        %v1825 = vunpack.c.h.b16 %v1228
        %v1826 = vunpack.c.l.b16 %v1229
        %v1827 = vunpack.c.h.b16 %v1229
        %v1828 = vpack.c.b16 %v1448, %v1444
        %v1829 = vpack.c.b16 %v1449, %v1445
        %v1830 = vpack.c.b16 %v1450, %v1446
        %v1831 = vpack.c.b16 %v1451, %v1447
        %v1832 = vpack.c.b16 %v1456, %v1452
        %v1833 = vpack.c.b16 %v1457, %v1453
        %v1834 = vpack.c.b16 %v1458, %v1454
        %v1835 = vpack.c.b16 %v1459, %v1455
        %v1836 = vpack.c.b16 %v1464, %v1460
        %v1837 = vpack.c.b16 %v1465, %v1461
        %v1838 = vpack.c.b16 %v1466, %v1462
        %v1839 = vpack.c.b16 %v1467, %v1463
        %v1840 = vpack.c.b16 %v1472, %v1468
        %v1841 = vpack.c.b16 %v1473, %v1469
        %v1842 = vpack.c.b16 %v1474, %v1470
        %v1843 = vpack.c.b16 %v1475, %v1471
        %v1844 = vpack.c.b16 %v1480, %v1476
        %v1845 = vpack.c.b16 %v1481, %v1477
        %v1846 = vpack.c.b16 %v1482, %v1478
        %v1847 = vpack.c.b16 %v1483, %v1479
        %v1848 = vpack.c.b16 %v1488, %v1484
        %v1849 = vpack.c.b16 %v1489, %v1485
        %v1850 = vpack.c.b16 %v1490, %v1486
        %v1851 = vpack.c.b16 %v1491, %v1487
        %v1852 = vpack.c.b16 %v1496, %v1492
        %v1853 = vpack.c.b16 %v1497, %v1493
        %v1854 = vpack.c.b16 %v1498, %v1494
        %v1855 = vpack.c.b16 %v1499, %v1495
        %v1856 = vpack.c.b16 %v1504, %v1500
        %v1857 = vpack.c.b16 %v1505, %v1501
        %v1858 = vpack.c.b16 %v1506, %v1502
        %v1859 = vpack.c.b16 %v1507, %v1503
        %v1860 = vpack.c.b16 %v1512, %v1508
        %v1861 = vpack.c.b16 %v1513, %v1509
        %v1862 = vpack.c.b16 %v1514, %v1510
        %v1863 = vpack.c.b16 %v1515, %v1511
        %v1864 = vpack.c.b16 %v1520, %v1516
        %v1865 = vpack.c.b16 %v1521, %v1517
        %v1866 = vpack.c.b16 %v1522, %v1518
        %v1867 = vpack.c.b16 %v1523, %v1519
        %v1868 = vpack.c.b16 %v1528, %v1524
        %v1869 = vpack.c.b16 %v1529, %v1525
        %v1870 = vpack.c.b16 %v1530, %v1526
        %v1871 = vpack.c.b16 %v1531, %v1527
        %v1872 = vpack.c.b16 %v1536, %v1532
        %v1873 = vpack.c.b16 %v1537, %v1533
        %v1874 = vpack.c.b16 %v1538, %v1534
        %v1875 = vpack.c.b16 %v1539, %v1535
        %v1876 = vpack.c.b16 %v1544, %v1540
        %v1877 = vpack.c.b16 %v1545, %v1541
        %v1878 = vpack.c.b16 %v1546, %v1542
        %v1879 = vpack.c.b16 %v1547, %v1543
        %v1880 = vpack.c.b16 %v1552, %v1548
        %v1881 = vpack.c.b16 %v1553, %v1549
        %v1882 = vpack.c.b16 %v1554, %v1550
        %v1883 = vpack.c.b16 %v1555, %v1551
        %v1884 = vpack.c.b16 %v1560, %v1556
        %v1885 = vpack.c.b16 %v1561, %v1557
        %v1886 = vpack.c.b16 %v1562, %v1558
        %v1887 = vpack.c.b16 %v1563, %v1559
        %v1888 = vpack.c.b16 %v1568, %v1564
        %v1889 = vpack.c.b16 %v1569, %v1565
        %v1890 = vpack.c.b16 %v1570, %v1566
        %v1891 = vpack.c.b16 %v1571, %v1567
        %v1892 = vpack.c.b16 %v1576, %v1572
        %v1893 = vpack.c.b16 %v1577, %v1573
        %v1894 = vpack.c.b16 %v1578, %v1574
        %v1895 = vpack.c.b16 %v1579, %v1575
        %v1896 = vpack.c.b16 %v1584, %v1580
        %v1897 = vpack.c.b16 %v1585, %v1581
        %v1898 = vpack.c.b16 %v1586, %v1582
        %v1899 = vpack.c.b16 %v1587, %v1583
        %v1900 = vpack.c.b16 %v1592, %v1588
        %v1901 = vpack.c.b16 %v1593, %v1589
        %v1902 = vpack.c.b16 %v1594, %v1590
        %v1903 = vpack.c.b16 %v1595, %v1591
        %v1904 = vpack.c.b16 %v1600, %v1596
        %v1905 = vpack.c.b16 %v1601, %v1597
        %v1906 = vpack.c.b16 %v1602, %v1598
        %v1907 = vpack.c.b16 %v1603, %v1599
        %v1908 = vpack.c.b16 %v1608, %v1604
        %v1909 = vpack.c.b16 %v1609, %v1605
        %v1910 = vpack.c.b16 %v1610, %v1606
        %v1911 = vpack.c.b16 %v1611, %v1607
        %v1912 = vpack.c.b16 %v1616, %v1612
        %v1913 = vpack.c.b16 %v1617, %v1613
        %v1914 = vpack.c.b16 %v1618, %v1614
        %v1915 = vpack.c.b16 %v1619, %v1615
        %v1916 = vpack.c.b16 %v1624, %v1620
        %v1917 = vpack.c.b16 %v1625, %v1621
        %v1918 = vpack.c.b16 %v1626, %v1622
        %v1919 = vpack.c.b16 %v1627, %v1623
        %v1920 = vpack.c.b16 %v1632, %v1628
        %v1921 = vpack.c.b16 %v1633, %v1629
        %v1922 = vpack.c.b16 %v1634, %v1630
        %v1923 = vpack.c.b16 %v1635, %v1631
        %v1924 = vpack.c.b16 %v1640, %v1636
        %v1925 = vpack.c.b16 %v1641, %v1637
        %v1926 = vpack.c.b16 %v1642, %v1638
        %v1927 = vpack.c.b16 %v1643, %v1639
        %v1928 = vpack.c.b16 %v1648, %v1644
        %v1929 = vpack.c.b16 %v1649, %v1645
        %v1930 = vpack.c.b16 %v1650, %v1646
        %v1931 = vpack.c.b16 %v1651, %v1647
        %v1932 = vpack.c.b16 %v1656, %v1652
        %v1933 = vpack.c.b16 %v1657, %v1653
        %v1934 = vpack.c.b16 %v1658, %v1654
        %v1935 = vpack.c.b16 %v1659, %v1655
        %v1936 = vpack.c.b16 %v1664, %v1660
        %v1937 = vpack.c.b16 %v1665, %v1661
        %v1938 = vpack.c.b16 %v1666, %v1662
        %v1939 = vpack.c.b16 %v1667, %v1663
        %v1940 = vpack.c.b16 %v1672, %v1668
        %v1941 = vpack.c.b16 %v1673, %v1669
        %v1942 = vpack.c.b16 %v1674, %v1670
        %v1943 = vpack.c.b16 %v1675, %v1671
        %v1944 = vpack.c.b16 %v1680, %v1676
        %v1945 = vpack.c.b16 %v1681, %v1677
        %v1946 = vpack.c.b16 %v1682, %v1678
        %v1947 = vpack.c.b16 %v1683, %v1679
        %v1948 = vpack.c.b16 %v1688, %v1684
        %v1949 = vpack.c.b16 %v1689, %v1685
        %v1950 = vpack.c.b16 %v1690, %v1686
        %v1951 = vpack.c.b16 %v1691, %v1687
        %v1952 = vpack.c.b16 %v1696, %v1692
        %v1953 = vpack.c.b16 %v1697, %v1693
        %v1954 = vpack.c.b16 %v1698, %v1694
        %v1955 = vpack.c.b16 %v1699, %v1695
        %v1956 = vpack.c.b16 %v1704, %v1700
        %v1957 = vpack.c.b16 %v1705, %v1701
        %v1958 = vpack.c.b16 %v1706, %v1702
        %v1959 = vpack.c.b16 %v1707, %v1703
        %v1960 = vpack.c.b16 %v1712, %v1708
        %v1961 = vpack.c.b16 %v1713, %v1709
        %v1962 = vpack.c.b16 %v1714, %v1710
        %v1963 = vpack.c.b16 %v1715, %v1711
        %v1964 = vpack.c.b16 %v1720, %v1716
        %v1965 = vpack.c.b16 %v1721, %v1717
        %v1966 = vpack.c.b16 %v1722, %v1718
        %v1967 = vpack.c.b16 %v1723, %v1719
        %v1968 = vpack.c.b16 %v1728, %v1724
        %v1969 = vpack.c.b16 %v1729, %v1725
        %v1970 = vpack.c.b16 %v1730, %v1726
        %v1971 = vpack.c.b16 %v1731, %v1727
        %v1972 = vpack.c.b16 %v1736, %v1732
        %v1973 = vpack.c.b16 %v1737, %v1733
        %v1974 = vpack.c.b16 %v1738, %v1734
        %v1975 = vpack.c.b16 %v1739, %v1735
        %v1976 = vpack.c.b16 %v1744, %v1740
        %v1977 = vpack.c.b16 %v1745, %v1741
        %v1978 = vpack.c.b16 %v1746, %v1742
        %v1979 = vpack.c.b16 %v1747, %v1743
        %v1980 = vpack.c.b16 %v1752, %v1748
        %v1981 = vpack.c.b16 %v1753, %v1749
        %v1982 = vpack.c.b16 %v1754, %v1750
        %v1983 = vpack.c.b16 %v1755, %v1751
        %v1984 = vpack.c.b16 %v1760, %v1756
        %v1985 = vpack.c.b16 %v1761, %v1757
        %v1986 = vpack.c.b16 %v1762, %v1758
        %v1987 = vpack.c.b16 %v1763, %v1759
        %v1988 = vpack.c.b16 %v1768, %v1764
        %v1989 = vpack.c.b16 %v1769, %v1765
        %v1990 = vpack.c.b16 %v1770, %v1766
        %v1991 = vpack.c.b16 %v1771, %v1767
        %v1992 = vpack.c.b16 %v1776, %v1772
        %v1993 = vpack.c.b16 %v1777, %v1773
        %v1994 = vpack.c.b16 %v1778, %v1774
        %v1995 = vpack.c.b16 %v1779, %v1775
        %v1996 = vpack.c.b16 %v1784, %v1780
        %v1997 = vpack.c.b16 %v1785, %v1781
        %v1998 = vpack.c.b16 %v1786, %v1782
        %v1999 = vpack.c.b16 %v1787, %v1783
        %v2000 = vpack.c.b16 %v1792, %v1788
        %v2001 = vpack.c.b16 %v1793, %v1789
        %v2002 = vpack.c.b16 %v1794, %v1790
        %v2003 = vpack.c.b16 %v1795, %v1791
        %v2004 = vpack.c.b16 %v1800, %v1796
        %v2005 = vpack.c.b16 %v1801, %v1797
        %v2006 = vpack.c.b16 %v1802, %v1798
        %v2007 = vpack.c.b16 %v1803, %v1799
        %v2008 = vpack.c.b16 %v1808, %v1804
        %v2009 = vpack.c.b16 %v1809, %v1805
        %v2010 = vpack.c.b16 %v1810, %v1806
        %v2011 = vpack.c.b16 %v1811, %v1807
        %v2012 = vpack.c.b16 %v1816, %v1812
        %v2013 = vpack.c.b16 %v1817, %v1813
        %v2014 = vpack.c.b16 %v1818, %v1814
        %v2015 = vpack.c.b16 %v1819, %v1815
        %v2016 = vpack.c.b16 %v1824, %v1820
        %v2017 = vpack.c.b16 %v1825, %v1821
        %v2018 = vpack.c.b16 %v1826, %v1822
        %v2019 = vpack.c.b16 %v1827, %v1823
        %2212 = vmatprep.subr.bf16.mxu0 %v1857
        %2213 = vmatpush1.bf16.msra.mxu0 %v1856
        %2214 = vmatprep.subr.bf16.mxu0 %v1853
        %2215 = vmatpush1.bf16.msra.mxu0 %v1852
        %2216 = vmatprep.subr.bf16.mxu0 %v1849
        %2217 = vmatpush1.bf16.msra.mxu0 %v1848
        %2218 = vmatprep.subr.bf16.mxu0 %v1845
        %2219 = vmatpush1.bf16.msra.mxu0 %v1844
        %2220 = vmatprep.subr.bf16.mxu0 %v1841
        %2221 = vmatpush1.bf16.msra.mxu0 %v1840
        %2222 = vmatprep.subr.bf16.mxu0 %v1837
        %2223 = vmatpush1.bf16.msra.mxu0 %v1836
        %2224 = vmatprep.subr.bf16.mxu0 %v1833
        %2225 = vmatpush1.bf16.msra.mxu0 %v1832
        %2226 = vmatprep.subr.bf16.mxu0 %v1829
        %2227 = vmatpush1.bf16.msra.mxu0 %v1828
        %2228 = vmatprep.subr.bf16.mxu0 %v1889
        %2229 = vmatpush2.bf16.msra.mxu0 %v1888
        %2230 = vmatprep.subr.bf16.mxu0 %v1885
        %2231 = vmatpush2.bf16.msra.mxu0 %v1884
        %2232 = vmatprep.subr.bf16.mxu0 %v1881
        %2233 = vmatpush2.bf16.msra.mxu0 %v1880
        %2234 = vmatprep.subr.bf16.mxu0 %v1877
        %2235 = vmatpush2.bf16.msra.mxu0 %v1876
        %2236 = vmatprep.subr.bf16.mxu0 %v1873
        %2237 = vmatpush2.bf16.msra.mxu0 %v1872
        %2238 = vmatprep.subr.bf16.mxu0 %v1869
        %2239 = vmatpush2.bf16.msra.mxu0 %v1868
        %2240 = vmatprep.subr.bf16.mxu0 %v1865
        %2241 = vmatpush2.bf16.msra.mxu0 %v1864
        %2242 = vmatprep.subr.bf16.mxu0 %v1861
        %2243 = vmatpush2.bf16.msra.mxu0 %v1860
        %2244 = vmatprep.mubr.bf16.mxu0 %v847
        %2245 = vmatmul.mubr.bf16.gmra.mxu0 %v846
        %v2246 = vpop.f32.mrf.mxu0
        %v2247 = vadd.f32 %v1235, %v2246
        %v2248 = vpop.f32.mrf.mxu0
        %v2249 = vadd.f32 %v1239, %v2248
        %v2250 = vpop.f32.mrf.mxu0
        %v2251 = vadd.f32 %v1235, %v2250
        %v2252 = vpop.f32.mrf.mxu0
        %v2253 = vadd.f32 %v1239, %v2252
        %2254 = vmatprep.mubr.bf16.mxu0 %v853
        %2255 = vmatmul.mubr.bf16.gmra.mxu0 %v852
        %v2256 = vpop.f32.mrf.mxu0
        %v2257 = vadd.f32 %v1235, %v2256
        %v2258 = vpop.f32.mrf.mxu0
        %v2259 = vadd.f32 %v1239, %v2258
        %v2260 = vpop.f32.mrf.mxu0
        %v2261 = vadd.f32 %v1235, %v2260
        %v2262 = vpop.f32.mrf.mxu0
        %v2263 = vadd.f32 %v1239, %v2262
        %2264 = vmatprep.mubr.bf16.mxu0 %v859
        %2265 = vmatmul.mubr.bf16.gmra.mxu0 %v858
        %v2266 = vpop.f32.mrf.mxu0
        %v2267 = vadd.f32 %v1235, %v2266
        %v2268 = vpop.f32.mrf.mxu0
        %v2269 = vadd.f32 %v1239, %v2268
        %v2270 = vpop.f32.mrf.mxu0
        %v2271 = vadd.f32 %v1235, %v2270
        %v2272 = vpop.f32.mrf.mxu0
        %v2273 = vadd.f32 %v1239, %v2272
        %2274 = vmatprep.mubr.bf16.mxu0 %v865
        %2275 = vmatmul.mubr.bf16.gmra.mxu0 %v864
        %v2276 = vpop.f32.mrf.mxu0
        %v2277 = vadd.f32 %v1235, %v2276
        %v2278 = vpop.f32.mrf.mxu0
        %v2279 = vadd.f32 %v1239, %v2278
        %v2280 = vpop.f32.mrf.mxu0
        %v2281 = vadd.f32 %v1235, %v2280
        %v2282 = vpop.f32.mrf.mxu0
        %v2283 = vadd.f32 %v1239, %v2282
        %2284 = vmatprep.mubr.bf16.mxu0 %v871
        %2285 = vmatmul.mubr.bf16.gmra.mxu0 %v870
        %v2286 = vpop.f32.mrf.mxu0
        %v2287 = vadd.f32 %v1235, %v2286
        %v2288 = vpop.f32.mrf.mxu0
        %v2289 = vadd.f32 %v1239, %v2288
        %v2290 = vpop.f32.mrf.mxu0
        %v2291 = vadd.f32 %v1235, %v2290
        %v2292 = vpop.f32.mrf.mxu0
        %v2293 = vadd.f32 %v1239, %v2292
        %2294 = vmatprep.mubr.bf16.mxu0 %v877
        %2295 = vmatmul.mubr.bf16.gmra.mxu0 %v876
        %v2296 = vpop.f32.mrf.mxu0
        %v2297 = vadd.f32 %v1235, %v2296
        %v2298 = vpop.f32.mrf.mxu0
        %v2299 = vadd.f32 %v1239, %v2298
        %v2300 = vpop.f32.mrf.mxu0
        %v2301 = vadd.f32 %v1235, %v2300
        %v2302 = vpop.f32.mrf.mxu0
        %v2303 = vadd.f32 %v1239, %v2302
        %2304 = vmatprep.mubr.bf16.mxu0 %v883
        %2305 = vmatmul.mubr.bf16.gmra.mxu0 %v882
        %v2306 = vpop.f32.mrf.mxu0
        %v2307 = vadd.f32 %v1235, %v2306
        %v2308 = vpop.f32.mrf.mxu0
        %v2309 = vadd.f32 %v1239, %v2308
        %v2310 = vpop.f32.mrf.mxu0
        %v2311 = vadd.f32 %v1235, %v2310
        %v2312 = vpop.f32.mrf.mxu0
        %v2313 = vadd.f32 %v1239, %v2312
        %2314 = vmatprep.mubr.bf16.mxu0 %v889
        %2315 = vmatmul.mubr.bf16.gmra.mxu0 %v888
        %v2316 = vpop.f32.mrf.mxu0
        %v2317 = vadd.f32 %v1235, %v2316
        %v2318 = vpop.f32.mrf.mxu0
        %v2319 = vadd.f32 %v1239, %v2318
        %v2320 = vpop.f32.mrf.mxu0
        %v2321 = vadd.f32 %v1235, %v2320
        %v2322 = vpop.f32.mrf.mxu0
        %v2323 = vadd.f32 %v1239, %v2322
        %2324 = vmatprep.mubr.bf16.mxu0 %v895
        %2325 = vmatmul.mubr.bf16.gmra.mxu0 %v894
        %v2326 = vpop.f32.mrf.mxu0
        %v2327 = vadd.f32 %v1235, %v2326
        %v2328 = vpop.f32.mrf.mxu0
        %v2329 = vadd.f32 %v1239, %v2328
        %v2330 = vpop.f32.mrf.mxu0
        %v2331 = vadd.f32 %v1235, %v2330
        %v2332 = vpop.f32.mrf.mxu0
        %v2333 = vadd.f32 %v1239, %v2332
        %2334 = vmatprep.mubr.bf16.mxu0 %v901
        %2335 = vmatmul.mubr.bf16.gmra.mxu0 %v900
        %v2336 = vpop.f32.mrf.mxu0
        %v2337 = vadd.f32 %v1235, %v2336
        %v2338 = vpop.f32.mrf.mxu0
        %v2339 = vadd.f32 %v1239, %v2338
        %v2340 = vpop.f32.mrf.mxu0
        %v2341 = vadd.f32 %v1235, %v2340
        %v2342 = vpop.f32.mrf.mxu0
        %v2343 = vadd.f32 %v1239, %v2342
        %2344 = vmatprep.mubr.bf16.mxu0 %v907
        %2345 = vmatmul.mubr.bf16.gmra.mxu0 %v906
        %v2346 = vpop.f32.mrf.mxu0
        %v2347 = vadd.f32 %v1235, %v2346
        %v2348 = vpop.f32.mrf.mxu0
        %v2349 = vadd.f32 %v1239, %v2348
        %v2350 = vpop.f32.mrf.mxu0
        %v2351 = vadd.f32 %v1235, %v2350
        %v2352 = vpop.f32.mrf.mxu0
        %v2353 = vadd.f32 %v1239, %v2352
        %2354 = vmatprep.mubr.bf16.mxu0 %v913
        %2355 = vmatmul.mubr.bf16.gmra.mxu0 %v912
        %v2356 = vpop.f32.mrf.mxu0
        %v2357 = vadd.f32 %v1235, %v2356
        %v2358 = vpop.f32.mrf.mxu0
        %v2359 = vadd.f32 %v1239, %v2358
        %v2360 = vpop.f32.mrf.mxu0
        %v2361 = vadd.f32 %v1235, %v2360
        %v2362 = vpop.f32.mrf.mxu0
        %v2363 = vadd.f32 %v1239, %v2362
        %2364 = vmatprep.mubr.bf16.mxu0 %v919
        %2365 = vmatmul.mubr.bf16.gmra.mxu0 %v918
        %v2366 = vpop.f32.mrf.mxu0
        %v2367 = vadd.f32 %v1235, %v2366
        %v2368 = vpop.f32.mrf.mxu0
        %v2369 = vadd.f32 %v1239, %v2368
        %v2370 = vpop.f32.mrf.mxu0
        %v2371 = vadd.f32 %v1235, %v2370
        %v2372 = vpop.f32.mrf.mxu0
        %v2373 = vadd.f32 %v1239, %v2372
        %2374 = vmatprep.mubr.bf16.mxu0 %v925
        %2375 = vmatmul.mubr.bf16.gmra.mxu0 %v924
        %v2376 = vpop.f32.mrf.mxu0
        %v2377 = vadd.f32 %v1235, %v2376
        %v2378 = vpop.f32.mrf.mxu0
        %v2379 = vadd.f32 %v1239, %v2378
        %v2380 = vpop.f32.mrf.mxu0
        %v2381 = vadd.f32 %v1235, %v2380
        %v2382 = vpop.f32.mrf.mxu0
        %v2383 = vadd.f32 %v1239, %v2382
        %2384 = vmatprep.mubr.bf16.mxu0 %v931
        %2385 = vmatmul.mubr.bf16.gmra.mxu0 %v930
        %v2386 = vpop.f32.mrf.mxu0
        %v2387 = vadd.f32 %v1235, %v2386
        %v2388 = vpop.f32.mrf.mxu0
        %v2389 = vadd.f32 %v1239, %v2388
        %v2390 = vpop.f32.mrf.mxu0
        %v2391 = vadd.f32 %v1235, %v2390
        %v2392 = vpop.f32.mrf.mxu0
        %v2393 = vadd.f32 %v1239, %v2392
        %2394 = vmatprep.mubr.bf16.mxu0 %v937
        %2395 = vmatmul.mubr.bf16.gmra.mxu0 %v936
        %v2396 = vpop.f32.mrf.mxu0
        %v2397 = vadd.f32 %v1235, %v2396
        %v2398 = vpop.f32.mrf.mxu0
        %v2399 = vadd.f32 %v1239, %v2398
        %v2400 = vpop.f32.mrf.mxu0
        %v2401 = vadd.f32 %v1235, %v2400
        %v2402 = vpop.f32.mrf.mxu0
        %v2403 = vadd.f32 %v1239, %v2402
        %2404 = vmatprep.mubr.bf16.mxu0 %v943
        %2405 = vmatmul.mubr.bf16.gmra.mxu0 %v942
        %v2406 = vpop.f32.mrf.mxu0
        %v2407 = vadd.f32 %v1235, %v2406
        %v2408 = vpop.f32.mrf.mxu0
        %v2409 = vadd.f32 %v1239, %v2408
        %v2410 = vpop.f32.mrf.mxu0
        %v2411 = vadd.f32 %v1235, %v2410
        %v2412 = vpop.f32.mrf.mxu0
        %v2413 = vadd.f32 %v1239, %v2412
        %2414 = vmatprep.mubr.bf16.mxu0 %v949
        %2415 = vmatmul.mubr.bf16.gmra.mxu0 %v948
        %v2416 = vpop.f32.mrf.mxu0
        %v2417 = vadd.f32 %v1235, %v2416
        %v2418 = vpop.f32.mrf.mxu0
        %v2419 = vadd.f32 %v1239, %v2418
        %v2420 = vpop.f32.mrf.mxu0
        %v2421 = vadd.f32 %v1235, %v2420
        %v2422 = vpop.f32.mrf.mxu0
        %v2423 = vadd.f32 %v1239, %v2422
        %2424 = vmatprep.mubr.bf16.mxu0 %v955
        %2425 = vmatmul.mubr.bf16.gmra.mxu0 %v954
        %v2426 = vpop.f32.mrf.mxu0
        %v2427 = vadd.f32 %v1235, %v2426
        %v2428 = vpop.f32.mrf.mxu0
        %v2429 = vadd.f32 %v1239, %v2428
        %v2430 = vpop.f32.mrf.mxu0
        %v2431 = vadd.f32 %v1235, %v2430
        %v2432 = vpop.f32.mrf.mxu0
        %v2433 = vadd.f32 %v1239, %v2432
        %2434 = vmatprep.mubr.bf16.mxu0 %v961
        %2435 = vmatmul.mubr.bf16.gmra.mxu0 %v960
        %v2436 = vpop.f32.mrf.mxu0
        %v2437 = vadd.f32 %v1235, %v2436
        %v2438 = vpop.f32.mrf.mxu0
        %v2439 = vadd.f32 %v1239, %v2438
        %v2440 = vpop.f32.mrf.mxu0
        %v2441 = vadd.f32 %v1235, %v2440
        %v2442 = vpop.f32.mrf.mxu0
        %v2443 = vadd.f32 %v1239, %v2442
        %2444 = vmatprep.mubr.bf16.mxu0 %v967
        %2445 = vmatmul.mubr.bf16.gmra.mxu0 %v966
        %v2446 = vpop.f32.mrf.mxu0
        %v2447 = vadd.f32 %v1235, %v2446
        %v2448 = vpop.f32.mrf.mxu0
        %v2449 = vadd.f32 %v1239, %v2448
        %v2450 = vpop.f32.mrf.mxu0
        %v2451 = vadd.f32 %v1235, %v2450
        %v2452 = vpop.f32.mrf.mxu0
        %v2453 = vadd.f32 %v1239, %v2452
        %2454 = vmatprep.mubr.bf16.mxu0 %v973
        %2455 = vmatmul.mubr.bf16.gmra.mxu0 %v972
        %v2456 = vpop.f32.mrf.mxu0
        %v2457 = vadd.f32 %v1235, %v2456
        %v2458 = vpop.f32.mrf.mxu0
        %v2459 = vadd.f32 %v1239, %v2458
        %v2460 = vpop.f32.mrf.mxu0
        %v2461 = vadd.f32 %v1235, %v2460
        %v2462 = vpop.f32.mrf.mxu0
        %v2463 = vadd.f32 %v1239, %v2462
        %2464 = vmatprep.mubr.bf16.mxu0 %v979
        %2465 = vmatmul.mubr.bf16.gmra.mxu0 %v978
        %v2466 = vpop.f32.mrf.mxu0
        %v2467 = vadd.f32 %v1235, %v2466
        %v2468 = vpop.f32.mrf.mxu0
        %v2469 = vadd.f32 %v1239, %v2468
        %v2470 = vpop.f32.mrf.mxu0
        %v2471 = vadd.f32 %v1235, %v2470
        %v2472 = vpop.f32.mrf.mxu0
        %v2473 = vadd.f32 %v1239, %v2472
        %2474 = vmatprep.mubr.bf16.mxu0 %v985
        %2475 = vmatmul.mubr.bf16.gmra.mxu0 %v984
        %v2476 = vpop.f32.mrf.mxu0
        %v2477 = vadd.f32 %v1235, %v2476
        %v2478 = vpop.f32.mrf.mxu0
        %v2479 = vadd.f32 %v1239, %v2478
        %v2480 = vpop.f32.mrf.mxu0
        %v2481 = vadd.f32 %v1235, %v2480
        %v2482 = vpop.f32.mrf.mxu0
        %v2483 = vadd.f32 %v1239, %v2482
        %2484 = vmatprep.mubr.bf16.mxu0 %v991
        %2485 = vmatmul.mubr.bf16.gmra.mxu0 %v990
        %v2486 = vpop.f32.mrf.mxu0
        %v2487 = vadd.f32 %v1235, %v2486
        %v2488 = vpop.f32.mrf.mxu0
        %v2489 = vadd.f32 %v1239, %v2488
        %v2490 = vpop.f32.mrf.mxu0
        %v2491 = vadd.f32 %v1235, %v2490
        %v2492 = vpop.f32.mrf.mxu0
        %v2493 = vadd.f32 %v1239, %v2492
        %2494 = vmatprep.mubr.bf16.mxu0 %v997
        %2495 = vmatmul.mubr.bf16.gmra.mxu0 %v996
        %v2496 = vpop.f32.mrf.mxu0
        %v2497 = vadd.f32 %v1235, %v2496
        %v2498 = vpop.f32.mrf.mxu0
        %v2499 = vadd.f32 %v1239, %v2498
        %v2500 = vpop.f32.mrf.mxu0
        %v2501 = vadd.f32 %v1235, %v2500
        %v2502 = vpop.f32.mrf.mxu0
        %v2503 = vadd.f32 %v1239, %v2502
        %2504 = vmatprep.mubr.bf16.mxu0 %v1003
        %2505 = vmatmul.mubr.bf16.gmra.mxu0 %v1002
        %v2506 = vpop.f32.mrf.mxu0
        %v2507 = vadd.f32 %v1235, %v2506
        %v2508 = vpop.f32.mrf.mxu0
        %v2509 = vadd.f32 %v1239, %v2508
        %v2510 = vpop.f32.mrf.mxu0
        %v2511 = vadd.f32 %v1235, %v2510
        %v2512 = vpop.f32.mrf.mxu0
        %v2513 = vadd.f32 %v1239, %v2512
        %2514 = vmatprep.mubr.bf16.mxu0 %v1009
        %2515 = vmatmul.mubr.bf16.gmra.mxu0 %v1008
        %v2516 = vpop.f32.mrf.mxu0
        %v2517 = vadd.f32 %v1235, %v2516
        %v2518 = vpop.f32.mrf.mxu0
        %v2519 = vadd.f32 %v1239, %v2518
        %v2520 = vpop.f32.mrf.mxu0
        %v2521 = vadd.f32 %v1235, %v2520
        %v2522 = vpop.f32.mrf.mxu0
        %v2523 = vadd.f32 %v1239, %v2522
        %2524 = vmatprep.mubr.bf16.mxu0 %v1015
        %2525 = vmatmul.mubr.bf16.gmra.mxu0 %v1014
        %v2526 = vpop.f32.mrf.mxu0
        %v2527 = vadd.f32 %v1235, %v2526
        %v2528 = vpop.f32.mrf.mxu0
        %v2529 = vadd.f32 %v1239, %v2528
        %v2530 = vpop.f32.mrf.mxu0
        %v2531 = vadd.f32 %v1235, %v2530
        %v2532 = vpop.f32.mrf.mxu0
        %v2533 = vadd.f32 %v1239, %v2532
        %2534 = vmatprep.mubr.bf16.mxu0 %v1021
        %2535 = vmatmul.mubr.bf16.gmra.mxu0 %v1020
        %v2536 = vpop.f32.mrf.mxu0
        %v2537 = vadd.f32 %v1235, %v2536
        %v2538 = vpop.f32.mrf.mxu0
        %v2539 = vadd.f32 %v1239, %v2538
        %v2540 = vpop.f32.mrf.mxu0
        %v2541 = vadd.f32 %v1235, %v2540
        %v2542 = vpop.f32.mrf.mxu0
        %v2543 = vadd.f32 %v1239, %v2542
        %2544 = vmatprep.mubr.bf16.mxu0 %v1027
        %2545 = vmatmul.mubr.bf16.gmra.mxu0 %v1026
        %v2546 = vpop.f32.mrf.mxu0
        %v2547 = vadd.f32 %v1235, %v2546
        %v2548 = vpop.f32.mrf.mxu0
        %v2549 = vadd.f32 %v1239, %v2548
        %v2550 = vpop.f32.mrf.mxu0
        %v2551 = vadd.f32 %v1235, %v2550
        %v2552 = vpop.f32.mrf.mxu0
        %v2553 = vadd.f32 %v1239, %v2552
        %2554 = vmatprep.mubr.bf16.mxu0 %v1033
        %2555 = vmatmul.mubr.bf16.gmra.mxu0 %v1032
        %v2556 = vpop.f32.mrf.mxu0
        %v2557 = vadd.f32 %v1235, %v2556
        %v2558 = vpop.f32.mrf.mxu0
        %v2559 = vadd.f32 %v1239, %v2558
        %v2560 = vpop.f32.mrf.mxu0
        %v2561 = vadd.f32 %v1235, %v2560
        %v2562 = vpop.f32.mrf.mxu0
        %v2563 = vadd.f32 %v1239, %v2562
        %2564 = vdwg.mxu0
        %2565 = vmatprep.subr.bf16.mxu0 %v1921
        %2566 = vmatpush1.bf16.msra.mxu0 %v1920
        %2567 = vmatprep.subr.bf16.mxu0 %v1917
        %2568 = vmatpush1.bf16.msra.mxu0 %v1916
        %2569 = vmatprep.subr.bf16.mxu0 %v1913
        %2570 = vmatpush1.bf16.msra.mxu0 %v1912
        %2571 = vmatprep.subr.bf16.mxu0 %v1909
        %2572 = vmatpush1.bf16.msra.mxu0 %v1908
        %2573 = vmatprep.subr.bf16.mxu0 %v1905
        %2574 = vmatpush1.bf16.msra.mxu0 %v1904
        %2575 = vmatprep.subr.bf16.mxu0 %v1901
        %2576 = vmatpush1.bf16.msra.mxu0 %v1900
        %2577 = vmatprep.subr.bf16.mxu0 %v1897
        %2578 = vmatpush1.bf16.msra.mxu0 %v1896
        %2579 = vmatprep.subr.bf16.mxu0 %v1893
        %2580 = vmatpush1.bf16.msra.mxu0 %v1892
        %2581 = vmatprep.subr.bf16.mxu0 %v1953
        %2582 = vmatpush2.bf16.msra.mxu0 %v1952
        %2583 = vmatprep.subr.bf16.mxu0 %v1949
        %2584 = vmatpush2.bf16.msra.mxu0 %v1948
        %2585 = vmatprep.subr.bf16.mxu0 %v1945
        %2586 = vmatpush2.bf16.msra.mxu0 %v1944
        %2587 = vmatprep.subr.bf16.mxu0 %v1941
        %2588 = vmatpush2.bf16.msra.mxu0 %v1940
        %2589 = vmatprep.subr.bf16.mxu0 %v1937
        %2590 = vmatpush2.bf16.msra.mxu0 %v1936
        %2591 = vmatprep.subr.bf16.mxu0 %v1933
        %2592 = vmatpush2.bf16.msra.mxu0 %v1932
        %2593 = vmatprep.subr.bf16.mxu0 %v1929
        %2594 = vmatpush2.bf16.msra.mxu0 %v1928
        %2595 = vmatprep.subr.bf16.mxu0 %v1925
        %2596 = vmatpush2.bf16.msra.mxu0 %v1924
        %2597 = vmatprep.mubr.bf16.mxu0 %v849
        %2598 = vmatmul.mubr.bf16.gmra.mxu0 %v848
        %v2599 = vpop.f32.mrf.mxu0
        %v2600 = vadd.f32 %v2247, %v2599
        %v2601 = vpop.f32.mrf.mxu0
        %v2602 = vadd.f32 %v2249, %v2601
        %v2603 = vpop.f32.mrf.mxu0
        %v2604 = vadd.f32 %v2251, %v2603
        %v2605 = vpop.f32.mrf.mxu0
        %v2606 = vadd.f32 %v2253, %v2605
        %2607 = vmatprep.mubr.bf16.mxu0 %v855
        %2608 = vmatmul.mubr.bf16.gmra.mxu0 %v854
        %v2609 = vpop.f32.mrf.mxu0
        %v2610 = vadd.f32 %v2257, %v2609
        %v2611 = vpop.f32.mrf.mxu0
        %v2612 = vadd.f32 %v2259, %v2611
        %v2613 = vpop.f32.mrf.mxu0
        %v2614 = vadd.f32 %v2261, %v2613
        %v2615 = vpop.f32.mrf.mxu0
        %v2616 = vadd.f32 %v2263, %v2615
        %2617 = vmatprep.mubr.bf16.mxu0 %v861
        %2618 = vmatmul.mubr.bf16.gmra.mxu0 %v860
        %v2619 = vpop.f32.mrf.mxu0
        %v2620 = vadd.f32 %v2267, %v2619
        %v2621 = vpop.f32.mrf.mxu0
        %v2622 = vadd.f32 %v2269, %v2621
        %v2623 = vpop.f32.mrf.mxu0
        %v2624 = vadd.f32 %v2271, %v2623
        %v2625 = vpop.f32.mrf.mxu0
        %v2626 = vadd.f32 %v2273, %v2625
        %2627 = vmatprep.mubr.bf16.mxu0 %v867
        %2628 = vmatmul.mubr.bf16.gmra.mxu0 %v866
        %v2629 = vpop.f32.mrf.mxu0
        %v2630 = vadd.f32 %v2277, %v2629
        %v2631 = vpop.f32.mrf.mxu0
        %v2632 = vadd.f32 %v2279, %v2631
        %v2633 = vpop.f32.mrf.mxu0
        %v2634 = vadd.f32 %v2281, %v2633
        %v2635 = vpop.f32.mrf.mxu0
        %v2636 = vadd.f32 %v2283, %v2635
        %2637 = vmatprep.mubr.bf16.mxu0 %v873
        %2638 = vmatmul.mubr.bf16.gmra.mxu0 %v872
        %v2639 = vpop.f32.mrf.mxu0
        %v2640 = vadd.f32 %v2287, %v2639
        %v2641 = vpop.f32.mrf.mxu0
        %v2642 = vadd.f32 %v2289, %v2641
        %v2643 = vpop.f32.mrf.mxu0
        %v2644 = vadd.f32 %v2291, %v2643
        %v2645 = vpop.f32.mrf.mxu0
        %v2646 = vadd.f32 %v2293, %v2645
        %2647 = vmatprep.mubr.bf16.mxu0 %v879
        %2648 = vmatmul.mubr.bf16.gmra.mxu0 %v878
        %v2649 = vpop.f32.mrf.mxu0
        %v2650 = vadd.f32 %v2297, %v2649
        %v2651 = vpop.f32.mrf.mxu0
        %v2652 = vadd.f32 %v2299, %v2651
        %v2653 = vpop.f32.mrf.mxu0
        %v2654 = vadd.f32 %v2301, %v2653
        %v2655 = vpop.f32.mrf.mxu0
        %v2656 = vadd.f32 %v2303, %v2655
        %2657 = vmatprep.mubr.bf16.mxu0 %v885
        %2658 = vmatmul.mubr.bf16.gmra.mxu0 %v884
        %v2659 = vpop.f32.mrf.mxu0
        %v2660 = vadd.f32 %v2307, %v2659
        %v2661 = vpop.f32.mrf.mxu0
        %v2662 = vadd.f32 %v2309, %v2661
        %v2663 = vpop.f32.mrf.mxu0
        %v2664 = vadd.f32 %v2311, %v2663
        %v2665 = vpop.f32.mrf.mxu0
        %v2666 = vadd.f32 %v2313, %v2665
        %2667 = vmatprep.mubr.bf16.mxu0 %v891
        %2668 = vmatmul.mubr.bf16.gmra.mxu0 %v890
        %v2669 = vpop.f32.mrf.mxu0
        %v2670 = vadd.f32 %v2317, %v2669
        %v2671 = vpop.f32.mrf.mxu0
        %v2672 = vadd.f32 %v2319, %v2671
        %v2673 = vpop.f32.mrf.mxu0
        %v2674 = vadd.f32 %v2321, %v2673
        %v2675 = vpop.f32.mrf.mxu0
        %v2676 = vadd.f32 %v2323, %v2675
        %2677 = vmatprep.mubr.bf16.mxu0 %v897
        %2678 = vmatmul.mubr.bf16.gmra.mxu0 %v896
        %v2679 = vpop.f32.mrf.mxu0
        %v2680 = vadd.f32 %v2327, %v2679
        %v2681 = vpop.f32.mrf.mxu0
        %v2682 = vadd.f32 %v2329, %v2681
        %v2683 = vpop.f32.mrf.mxu0
        %v2684 = vadd.f32 %v2331, %v2683
        %v2685 = vpop.f32.mrf.mxu0
        %v2686 = vadd.f32 %v2333, %v2685
        %2687 = vmatprep.mubr.bf16.mxu0 %v903
        %2688 = vmatmul.mubr.bf16.gmra.mxu0 %v902
        %v2689 = vpop.f32.mrf.mxu0
        %v2690 = vadd.f32 %v2337, %v2689
        %v2691 = vpop.f32.mrf.mxu0
        %v2692 = vadd.f32 %v2339, %v2691
        %v2693 = vpop.f32.mrf.mxu0
        %v2694 = vadd.f32 %v2341, %v2693
        %v2695 = vpop.f32.mrf.mxu0
        %v2696 = vadd.f32 %v2343, %v2695
        %2697 = vmatprep.mubr.bf16.mxu0 %v909
        %2698 = vmatmul.mubr.bf16.gmra.mxu0 %v908
        %v2699 = vpop.f32.mrf.mxu0
        %v2700 = vadd.f32 %v2347, %v2699
        %v2701 = vpop.f32.mrf.mxu0
        %v2702 = vadd.f32 %v2349, %v2701
        %v2703 = vpop.f32.mrf.mxu0
        %v2704 = vadd.f32 %v2351, %v2703
        %v2705 = vpop.f32.mrf.mxu0
        %v2706 = vadd.f32 %v2353, %v2705
        %2707 = vmatprep.mubr.bf16.mxu0 %v915
        %2708 = vmatmul.mubr.bf16.gmra.mxu0 %v914
        %v2709 = vpop.f32.mrf.mxu0
        %v2710 = vadd.f32 %v2357, %v2709
        %v2711 = vpop.f32.mrf.mxu0
        %v2712 = vadd.f32 %v2359, %v2711
        %v2713 = vpop.f32.mrf.mxu0
        %v2714 = vadd.f32 %v2361, %v2713
        %v2715 = vpop.f32.mrf.mxu0
        %v2716 = vadd.f32 %v2363, %v2715
        %2717 = vmatprep.mubr.bf16.mxu0 %v921
        %2718 = vmatmul.mubr.bf16.gmra.mxu0 %v920
        %v2719 = vpop.f32.mrf.mxu0
        %v2720 = vadd.f32 %v2367, %v2719
        %v2721 = vpop.f32.mrf.mxu0
        %v2722 = vadd.f32 %v2369, %v2721
        %v2723 = vpop.f32.mrf.mxu0
        %v2724 = vadd.f32 %v2371, %v2723
        %v2725 = vpop.f32.mrf.mxu0
        %v2726 = vadd.f32 %v2373, %v2725
        %2727 = vmatprep.mubr.bf16.mxu0 %v927
        %2728 = vmatmul.mubr.bf16.gmra.mxu0 %v926
        %v2729 = vpop.f32.mrf.mxu0
        %v2730 = vadd.f32 %v2377, %v2729
        %v2731 = vpop.f32.mrf.mxu0
        %v2732 = vadd.f32 %v2379, %v2731
        %v2733 = vpop.f32.mrf.mxu0
        %v2734 = vadd.f32 %v2381, %v2733
        %v2735 = vpop.f32.mrf.mxu0
        %v2736 = vadd.f32 %v2383, %v2735
        %2737 = vmatprep.mubr.bf16.mxu0 %v933
        %2738 = vmatmul.mubr.bf16.gmra.mxu0 %v932
        %v2739 = vpop.f32.mrf.mxu0
        %v2740 = vadd.f32 %v2387, %v2739
        %v2741 = vpop.f32.mrf.mxu0
        %v2742 = vadd.f32 %v2389, %v2741
        %v2743 = vpop.f32.mrf.mxu0
        %v2744 = vadd.f32 %v2391, %v2743
        %v2745 = vpop.f32.mrf.mxu0
        %v2746 = vadd.f32 %v2393, %v2745
        %2747 = vmatprep.mubr.bf16.mxu0 %v939
        %2748 = vmatmul.mubr.bf16.gmra.mxu0 %v938
        %v2749 = vpop.f32.mrf.mxu0
        %v2750 = vadd.f32 %v2397, %v2749
        %v2751 = vpop.f32.mrf.mxu0
        %v2752 = vadd.f32 %v2399, %v2751
        %v2753 = vpop.f32.mrf.mxu0
        %v2754 = vadd.f32 %v2401, %v2753
        %v2755 = vpop.f32.mrf.mxu0
        %v2756 = vadd.f32 %v2403, %v2755
        %2757 = vmatprep.mubr.bf16.mxu0 %v945
        %2758 = vmatmul.mubr.bf16.gmra.mxu0 %v944
        %v2759 = vpop.f32.mrf.mxu0
        %v2760 = vadd.f32 %v2407, %v2759
        %v2761 = vpop.f32.mrf.mxu0
        %v2762 = vadd.f32 %v2409, %v2761
        %v2763 = vpop.f32.mrf.mxu0
        %v2764 = vadd.f32 %v2411, %v2763
        %v2765 = vpop.f32.mrf.mxu0
        %v2766 = vadd.f32 %v2413, %v2765
        %2767 = vmatprep.mubr.bf16.mxu0 %v951
        %2768 = vmatmul.mubr.bf16.gmra.mxu0 %v950
        %v2769 = vpop.f32.mrf.mxu0
        %v2770 = vadd.f32 %v2417, %v2769
        %v2771 = vpop.f32.mrf.mxu0
        %v2772 = vadd.f32 %v2419, %v2771
        %v2773 = vpop.f32.mrf.mxu0
        %v2774 = vadd.f32 %v2421, %v2773
        %v2775 = vpop.f32.mrf.mxu0
        %v2776 = vadd.f32 %v2423, %v2775
        %2777 = vmatprep.mubr.bf16.mxu0 %v957
        %2778 = vmatmul.mubr.bf16.gmra.mxu0 %v956
        %v2779 = vpop.f32.mrf.mxu0
        %v2780 = vadd.f32 %v2427, %v2779
        %v2781 = vpop.f32.mrf.mxu0
        %v2782 = vadd.f32 %v2429, %v2781
        %v2783 = vpop.f32.mrf.mxu0
        %v2784 = vadd.f32 %v2431, %v2783
        %v2785 = vpop.f32.mrf.mxu0
        %v2786 = vadd.f32 %v2433, %v2785
        %2787 = vmatprep.mubr.bf16.mxu0 %v963
        %2788 = vmatmul.mubr.bf16.gmra.mxu0 %v962
        %v2789 = vpop.f32.mrf.mxu0
        %v2790 = vadd.f32 %v2437, %v2789
        %v2791 = vpop.f32.mrf.mxu0
        %v2792 = vadd.f32 %v2439, %v2791
        %v2793 = vpop.f32.mrf.mxu0
        %v2794 = vadd.f32 %v2441, %v2793
        %v2795 = vpop.f32.mrf.mxu0
        %v2796 = vadd.f32 %v2443, %v2795
        %2797 = vmatprep.mubr.bf16.mxu0 %v969
        %2798 = vmatmul.mubr.bf16.gmra.mxu0 %v968
        %v2799 = vpop.f32.mrf.mxu0
        %v2800 = vadd.f32 %v2447, %v2799
        %v2801 = vpop.f32.mrf.mxu0
        %v2802 = vadd.f32 %v2449, %v2801
        %v2803 = vpop.f32.mrf.mxu0
        %v2804 = vadd.f32 %v2451, %v2803
        %v2805 = vpop.f32.mrf.mxu0
        %v2806 = vadd.f32 %v2453, %v2805
        %2807 = vmatprep.mubr.bf16.mxu0 %v975
        %2808 = vmatmul.mubr.bf16.gmra.mxu0 %v974
        %v2809 = vpop.f32.mrf.mxu0
        %v2810 = vadd.f32 %v2457, %v2809
        %v2811 = vpop.f32.mrf.mxu0
        %v2812 = vadd.f32 %v2459, %v2811
        %v2813 = vpop.f32.mrf.mxu0
        %v2814 = vadd.f32 %v2461, %v2813
        %v2815 = vpop.f32.mrf.mxu0
        %v2816 = vadd.f32 %v2463, %v2815
        %2817 = vmatprep.mubr.bf16.mxu0 %v981
        %2818 = vmatmul.mubr.bf16.gmra.mxu0 %v980
        %v2819 = vpop.f32.mrf.mxu0
        %v2820 = vadd.f32 %v2467, %v2819
        %v2821 = vpop.f32.mrf.mxu0
        %v2822 = vadd.f32 %v2469, %v2821
        %v2823 = vpop.f32.mrf.mxu0
        %v2824 = vadd.f32 %v2471, %v2823
        %v2825 = vpop.f32.mrf.mxu0
        %v2826 = vadd.f32 %v2473, %v2825
        %2827 = vmatprep.mubr.bf16.mxu0 %v987
        %2828 = vmatmul.mubr.bf16.gmra.mxu0 %v986
        %v2829 = vpop.f32.mrf.mxu0
        %v2830 = vadd.f32 %v2477, %v2829
        %v2831 = vpop.f32.mrf.mxu0
        %v2832 = vadd.f32 %v2479, %v2831
        %v2833 = vpop.f32.mrf.mxu0
        %v2834 = vadd.f32 %v2481, %v2833
        %v2835 = vpop.f32.mrf.mxu0
        %v2836 = vadd.f32 %v2483, %v2835
        %2837 = vmatprep.mubr.bf16.mxu0 %v993
        %2838 = vmatmul.mubr.bf16.gmra.mxu0 %v992
        %v2839 = vpop.f32.mrf.mxu0
        %v2840 = vadd.f32 %v2487, %v2839
        %v2841 = vpop.f32.mrf.mxu0
        %v2842 = vadd.f32 %v2489, %v2841
        %v2843 = vpop.f32.mrf.mxu0
        %v2844 = vadd.f32 %v2491, %v2843
        %v2845 = vpop.f32.mrf.mxu0
        %v2846 = vadd.f32 %v2493, %v2845
        %2847 = vmatprep.mubr.bf16.mxu0 %v999
        %2848 = vmatmul.mubr.bf16.gmra.mxu0 %v998
        %v2849 = vpop.f32.mrf.mxu0
        %v2850 = vadd.f32 %v2497, %v2849
        %v2851 = vpop.f32.mrf.mxu0
        %v2852 = vadd.f32 %v2499, %v2851
        %v2853 = vpop.f32.mrf.mxu0
        %v2854 = vadd.f32 %v2501, %v2853
        %v2855 = vpop.f32.mrf.mxu0
        %v2856 = vadd.f32 %v2503, %v2855
        %2857 = vmatprep.mubr.bf16.mxu0 %v1005
        %2858 = vmatmul.mubr.bf16.gmra.mxu0 %v1004
        %v2859 = vpop.f32.mrf.mxu0
        %v2860 = vadd.f32 %v2507, %v2859
        %v2861 = vpop.f32.mrf.mxu0
        %v2862 = vadd.f32 %v2509, %v2861
        %v2863 = vpop.f32.mrf.mxu0
        %v2864 = vadd.f32 %v2511, %v2863
        %v2865 = vpop.f32.mrf.mxu0
        %v2866 = vadd.f32 %v2513, %v2865
        %2867 = vmatprep.mubr.bf16.mxu0 %v1011
        %2868 = vmatmul.mubr.bf16.gmra.mxu0 %v1010
        %v2869 = vpop.f32.mrf.mxu0
        %v2870 = vadd.f32 %v2517, %v2869
        %v2871 = vpop.f32.mrf.mxu0
        %v2872 = vadd.f32 %v2519, %v2871
        %v2873 = vpop.f32.mrf.mxu0
        %v2874 = vadd.f32 %v2521, %v2873
        %v2875 = vpop.f32.mrf.mxu0
        %v2876 = vadd.f32 %v2523, %v2875
        %2877 = vmatprep.mubr.bf16.mxu0 %v1017
        %2878 = vmatmul.mubr.bf16.gmra.mxu0 %v1016
        %v2879 = vpop.f32.mrf.mxu0
        %v2880 = vadd.f32 %v2527, %v2879
        %v2881 = vpop.f32.mrf.mxu0
        %v2882 = vadd.f32 %v2529, %v2881
        %v2883 = vpop.f32.mrf.mxu0
        %v2884 = vadd.f32 %v2531, %v2883
        %v2885 = vpop.f32.mrf.mxu0
        %v2886 = vadd.f32 %v2533, %v2885
        %2887 = vmatprep.mubr.bf16.mxu0 %v1023
        %2888 = vmatmul.mubr.bf16.gmra.mxu0 %v1022
        %v2889 = vpop.f32.mrf.mxu0
        %v2890 = vadd.f32 %v2537, %v2889
        %v2891 = vpop.f32.mrf.mxu0
        %v2892 = vadd.f32 %v2539, %v2891
        %v2893 = vpop.f32.mrf.mxu0
        %v2894 = vadd.f32 %v2541, %v2893
        %v2895 = vpop.f32.mrf.mxu0
        %v2896 = vadd.f32 %v2543, %v2895
        %2897 = vmatprep.mubr.bf16.mxu0 %v1029
        %2898 = vmatmul.mubr.bf16.gmra.mxu0 %v1028
        %v2899 = vpop.f32.mrf.mxu0
        %v2900 = vadd.f32 %v2547, %v2899
        %v2901 = vpop.f32.mrf.mxu0
        %v2902 = vadd.f32 %v2549, %v2901
        %v2903 = vpop.f32.mrf.mxu0
        %v2904 = vadd.f32 %v2551, %v2903
        %v2905 = vpop.f32.mrf.mxu0
        %v2906 = vadd.f32 %v2553, %v2905
        %2907 = vmatprep.mubr.bf16.mxu0 %v1035
        %2908 = vmatmul.mubr.bf16.gmra.mxu0 %v1034
        %v2909 = vpop.f32.mrf.mxu0
        %v2910 = vadd.f32 %v2557, %v2909
        %v2911 = vpop.f32.mrf.mxu0
        %v2912 = vadd.f32 %v2559, %v2911
        %v2913 = vpop.f32.mrf.mxu0
        %v2914 = vadd.f32 %v2561, %v2913
        %v2915 = vpop.f32.mrf.mxu0
        %v2916 = vadd.f32 %v2563, %v2915
        %2917 = vdwg.mxu0
        %2918 = vmatprep.subr.bf16.mxu0 %v1985
        %2919 = vmatpush1.bf16.msra.mxu0 %v1984
        %2920 = vmatprep.subr.bf16.mxu0 %v1981
        %2921 = vmatpush1.bf16.msra.mxu0 %v1980
        %2922 = vmatprep.subr.bf16.mxu0 %v1977
        %2923 = vmatpush1.bf16.msra.mxu0 %v1976
        %2924 = vmatprep.subr.bf16.mxu0 %v1973
        %2925 = vmatpush1.bf16.msra.mxu0 %v1972
        %2926 = vmatprep.subr.bf16.mxu0 %v1969
        %2927 = vmatpush1.bf16.msra.mxu0 %v1968
        %2928 = vmatprep.subr.bf16.mxu0 %v1965
        %2929 = vmatpush1.bf16.msra.mxu0 %v1964
        %2930 = vmatprep.subr.bf16.mxu0 %v1961
        %2931 = vmatpush1.bf16.msra.mxu0 %v1960
        %2932 = vmatprep.subr.bf16.mxu0 %v1957
        %2933 = vmatpush1.bf16.msra.mxu0 %v1956
        %2934 = vmatprep.subr.bf16.mxu0 %v2017
        %2935 = vmatpush2.bf16.msra.mxu0 %v2016
        %2936 = vmatprep.subr.bf16.mxu0 %v2013
        %2937 = vmatpush2.bf16.msra.mxu0 %v2012
        %2938 = vmatprep.subr.bf16.mxu0 %v2009
        %2939 = vmatpush2.bf16.msra.mxu0 %v2008
        %2940 = vmatprep.subr.bf16.mxu0 %v2005
        %2941 = vmatpush2.bf16.msra.mxu0 %v2004
        %2942 = vmatprep.subr.bf16.mxu0 %v2001
        %2943 = vmatpush2.bf16.msra.mxu0 %v2000
        %2944 = vmatprep.subr.bf16.mxu0 %v1997
        %2945 = vmatpush2.bf16.msra.mxu0 %v1996
        %2946 = vmatprep.subr.bf16.mxu0 %v1993
        %2947 = vmatpush2.bf16.msra.mxu0 %v1992
        %2948 = vmatprep.subr.bf16.mxu0 %v1989
        %2949 = vmatpush2.bf16.msra.mxu0 %v1988
        %2950 = vmatprep.mubr.bf16.mxu0 %v851
        %2951 = vmatmul.mubr.bf16.gmra.mxu0 %v850
        %v2952 = vpop.f32.mrf.mxu0
        %v2953 = vadd.f32 %v2600, %v2952
        %v2954 = vpop.f32.mrf.mxu0
        %v2955 = vadd.f32 %v2602, %v2954
        %v2956 = vpop.f32.mrf.mxu0
        %v2957 = vadd.f32 %v2604, %v2956
        %v2958 = vpop.f32.mrf.mxu0
        %v2959 = vadd.f32 %v2606, %v2958
        %2960 = vmatprep.mubr.bf16.mxu0 %v857
        %2961 = vmatmul.mubr.bf16.gmra.mxu0 %v856
        %v2962 = vpop.f32.mrf.mxu0
        %v2963 = vadd.f32 %v2610, %v2962
        %v2964 = vpop.f32.mrf.mxu0
        %v2965 = vadd.f32 %v2612, %v2964
        %v2966 = vpop.f32.mrf.mxu0
        %v2967 = vadd.f32 %v2614, %v2966
        %v2968 = vpop.f32.mrf.mxu0
        %v2969 = vadd.f32 %v2616, %v2968
        %2970 = vmatprep.mubr.bf16.mxu0 %v863
        %2971 = vmatmul.mubr.bf16.gmra.mxu0 %v862
        %v2972 = vpop.f32.mrf.mxu0
        %v2973 = vadd.f32 %v2620, %v2972
        %v2974 = vpop.f32.mrf.mxu0
        %v2975 = vadd.f32 %v2622, %v2974
        %v2976 = vpop.f32.mrf.mxu0
        %v2977 = vadd.f32 %v2624, %v2976
        %v2978 = vpop.f32.mrf.mxu0
        %v2979 = vadd.f32 %v2626, %v2978
        %2980 = vmatprep.mubr.bf16.mxu0 %v869
        %2981 = vmatmul.mubr.bf16.gmra.mxu0 %v868
        %v2982 = vpop.f32.mrf.mxu0
        %v2983 = vadd.f32 %v2630, %v2982
        %v2984 = vpop.f32.mrf.mxu0
        %v2985 = vadd.f32 %v2632, %v2984
        %v2986 = vpop.f32.mrf.mxu0
        %v2987 = vadd.f32 %v2634, %v2986
        %v2988 = vpop.f32.mrf.mxu0
        %v2989 = vadd.f32 %v2636, %v2988
        %2990 = vmatprep.mubr.bf16.mxu0 %v875
        %2991 = vmatmul.mubr.bf16.gmra.mxu0 %v874
        %v2992 = vpop.f32.mrf.mxu0
        %v2993 = vadd.f32 %v2640, %v2992
        %v2994 = vpop.f32.mrf.mxu0
        %v2995 = vadd.f32 %v2642, %v2994
        %v2996 = vpop.f32.mrf.mxu0
        %v2997 = vadd.f32 %v2644, %v2996
        %v2998 = vpop.f32.mrf.mxu0
        %v2999 = vadd.f32 %v2646, %v2998
        %3000 = vmatprep.mubr.bf16.mxu0 %v881
        %3001 = vmatmul.mubr.bf16.gmra.mxu0 %v880
        %v3002 = vpop.f32.mrf.mxu0
        %v3003 = vadd.f32 %v2650, %v3002
        %v3004 = vpop.f32.mrf.mxu0
        %v3005 = vadd.f32 %v2652, %v3004
        %v3006 = vpop.f32.mrf.mxu0
        %v3007 = vadd.f32 %v2654, %v3006
        %v3008 = vpop.f32.mrf.mxu0
        %v3009 = vadd.f32 %v2656, %v3008
        %3010 = vmatprep.mubr.bf16.mxu0 %v887
        %3011 = vmatmul.mubr.bf16.gmra.mxu0 %v886
        %v3012 = vpop.f32.mrf.mxu0
        %v3013 = vadd.f32 %v2660, %v3012
        %v3014 = vpop.f32.mrf.mxu0
        %v3015 = vadd.f32 %v2662, %v3014
        %v3016 = vpop.f32.mrf.mxu0
        %v3017 = vadd.f32 %v2664, %v3016
        %v3018 = vpop.f32.mrf.mxu0
        %v3019 = vadd.f32 %v2666, %v3018
        %3020 = vmatprep.mubr.bf16.mxu0 %v893
        %3021 = vmatmul.mubr.bf16.gmra.mxu0 %v892
        %v3022 = vpop.f32.mrf.mxu0
        %v3023 = vadd.f32 %v2670, %v3022
        %v3024 = vpop.f32.mrf.mxu0
        %v3025 = vadd.f32 %v2672, %v3024
        %v3026 = vpop.f32.mrf.mxu0
        %v3027 = vadd.f32 %v2674, %v3026
        %v3028 = vpop.f32.mrf.mxu0
        %v3029 = vadd.f32 %v2676, %v3028
        %3030 = vmatprep.mubr.bf16.mxu0 %v899
        %3031 = vmatmul.mubr.bf16.gmra.mxu0 %v898
        %v3032 = vpop.f32.mrf.mxu0
        %v3033 = vadd.f32 %v2680, %v3032
        %v3034 = vpop.f32.mrf.mxu0
        %v3035 = vadd.f32 %v2682, %v3034
        %v3036 = vpop.f32.mrf.mxu0
        %v3037 = vadd.f32 %v2684, %v3036
        %v3038 = vpop.f32.mrf.mxu0
        %v3039 = vadd.f32 %v2686, %v3038
        %3040 = vmatprep.mubr.bf16.mxu0 %v905
        %3041 = vmatmul.mubr.bf16.gmra.mxu0 %v904
        %v3042 = vpop.f32.mrf.mxu0
        %v3043 = vadd.f32 %v2690, %v3042
        %v3044 = vpop.f32.mrf.mxu0
        %v3045 = vadd.f32 %v2692, %v3044
        %v3046 = vpop.f32.mrf.mxu0
        %v3047 = vadd.f32 %v2694, %v3046
        %v3048 = vpop.f32.mrf.mxu0
        %v3049 = vadd.f32 %v2696, %v3048
        %3050 = vmatprep.mubr.bf16.mxu0 %v911
        %3051 = vmatmul.mubr.bf16.gmra.mxu0 %v910
        %v3052 = vpop.f32.mrf.mxu0
        %v3053 = vadd.f32 %v2700, %v3052
        %v3054 = vpop.f32.mrf.mxu0
        %v3055 = vadd.f32 %v2702, %v3054
        %v3056 = vpop.f32.mrf.mxu0
        %v3057 = vadd.f32 %v2704, %v3056
        %v3058 = vpop.f32.mrf.mxu0
        %v3059 = vadd.f32 %v2706, %v3058
        %3060 = vmatprep.mubr.bf16.mxu0 %v917
        %3061 = vmatmul.mubr.bf16.gmra.mxu0 %v916
        %v3062 = vpop.f32.mrf.mxu0
        %v3063 = vadd.f32 %v2710, %v3062
        %v3064 = vpop.f32.mrf.mxu0
        %v3065 = vadd.f32 %v2712, %v3064
        %v3066 = vpop.f32.mrf.mxu0
        %v3067 = vadd.f32 %v2714, %v3066
        %v3068 = vpop.f32.mrf.mxu0
        %v3069 = vadd.f32 %v2716, %v3068
        %3070 = vmatprep.mubr.bf16.mxu0 %v923
        %3071 = vmatmul.mubr.bf16.gmra.mxu0 %v922
        %v3072 = vpop.f32.mrf.mxu0
        %v3073 = vadd.f32 %v2720, %v3072
        %v3074 = vpop.f32.mrf.mxu0
        %v3075 = vadd.f32 %v2722, %v3074
        %v3076 = vpop.f32.mrf.mxu0
        %v3077 = vadd.f32 %v2724, %v3076
        %v3078 = vpop.f32.mrf.mxu0
        %v3079 = vadd.f32 %v2726, %v3078
        %3080 = vmatprep.mubr.bf16.mxu0 %v929
        %3081 = vmatmul.mubr.bf16.gmra.mxu0 %v928
        %v3082 = vpop.f32.mrf.mxu0
        %v3083 = vadd.f32 %v2730, %v3082
        %v3084 = vpop.f32.mrf.mxu0
        %v3085 = vadd.f32 %v2732, %v3084
        %v3086 = vpop.f32.mrf.mxu0
        %v3087 = vadd.f32 %v2734, %v3086
        %v3088 = vpop.f32.mrf.mxu0
        %v3089 = vadd.f32 %v2736, %v3088
        %3090 = vmatprep.mubr.bf16.mxu0 %v935
        %3091 = vmatmul.mubr.bf16.gmra.mxu0 %v934
        %v3092 = vpop.f32.mrf.mxu0
        %v3093 = vadd.f32 %v2740, %v3092
        %v3094 = vpop.f32.mrf.mxu0
        %v3095 = vadd.f32 %v2742, %v3094
        %v3096 = vpop.f32.mrf.mxu0
        %v3097 = vadd.f32 %v2744, %v3096
        %v3098 = vpop.f32.mrf.mxu0
        %v3099 = vadd.f32 %v2746, %v3098
        %3100 = vmatprep.mubr.bf16.mxu0 %v941
        %3101 = vmatmul.mubr.bf16.gmra.mxu0 %v940
        %v3102 = vpop.f32.mrf.mxu0
        %v3103 = vadd.f32 %v2750, %v3102
        %v3104 = vpop.f32.mrf.mxu0
        %v3105 = vadd.f32 %v2752, %v3104
        %v3106 = vpop.f32.mrf.mxu0
        %v3107 = vadd.f32 %v2754, %v3106
        %v3108 = vpop.f32.mrf.mxu0
        %v3109 = vadd.f32 %v2756, %v3108
        %3110 = vmatprep.mubr.bf16.mxu0 %v947
        %3111 = vmatmul.mubr.bf16.gmra.mxu0 %v946
        %v3112 = vpop.f32.mrf.mxu0
        %v3113 = vadd.f32 %v2760, %v3112
        %v3114 = vpop.f32.mrf.mxu0
        %v3115 = vadd.f32 %v2762, %v3114
        %v3116 = vpop.f32.mrf.mxu0
        %v3117 = vadd.f32 %v2764, %v3116
        %v3118 = vpop.f32.mrf.mxu0
        %v3119 = vadd.f32 %v2766, %v3118
        %3120 = vmatprep.mubr.bf16.mxu0 %v953
        %3121 = vmatmul.mubr.bf16.gmra.mxu0 %v952
        %v3122 = vpop.f32.mrf.mxu0
        %v3123 = vadd.f32 %v2770, %v3122
        %v3124 = vpop.f32.mrf.mxu0
        %v3125 = vadd.f32 %v2772, %v3124
        %v3126 = vpop.f32.mrf.mxu0
        %v3127 = vadd.f32 %v2774, %v3126
        %v3128 = vpop.f32.mrf.mxu0
        %v3129 = vadd.f32 %v2776, %v3128
        %3130 = vmatprep.mubr.bf16.mxu0 %v959
        %3131 = vmatmul.mubr.bf16.gmra.mxu0 %v958
        %v3132 = vpop.f32.mrf.mxu0
        %v3133 = vadd.f32 %v2780, %v3132
        %v3134 = vpop.f32.mrf.mxu0
        %v3135 = vadd.f32 %v2782, %v3134
        %v3136 = vpop.f32.mrf.mxu0
        %v3137 = vadd.f32 %v2784, %v3136
        %v3138 = vpop.f32.mrf.mxu0
        %v3139 = vadd.f32 %v2786, %v3138
        %3140 = vmatprep.mubr.bf16.mxu0 %v965
        %3141 = vmatmul.mubr.bf16.gmra.mxu0 %v964
        %v3142 = vpop.f32.mrf.mxu0
        %v3143 = vadd.f32 %v2790, %v3142
        %v3144 = vpop.f32.mrf.mxu0
        %v3145 = vadd.f32 %v2792, %v3144
        %v3146 = vpop.f32.mrf.mxu0
        %v3147 = vadd.f32 %v2794, %v3146
        %v3148 = vpop.f32.mrf.mxu0
        %v3149 = vadd.f32 %v2796, %v3148
        %3150 = vmatprep.mubr.bf16.mxu0 %v971
        %3151 = vmatmul.mubr.bf16.gmra.mxu0 %v970
        %v3152 = vpop.f32.mrf.mxu0
        %v3153 = vadd.f32 %v2800, %v3152
        %v3154 = vpop.f32.mrf.mxu0
        %v3155 = vadd.f32 %v2802, %v3154
        %v3156 = vpop.f32.mrf.mxu0
        %v3157 = vadd.f32 %v2804, %v3156
        %v3158 = vpop.f32.mrf.mxu0
        %v3159 = vadd.f32 %v2806, %v3158
        %3160 = vmatprep.mubr.bf16.mxu0 %v977
        %3161 = vmatmul.mubr.bf16.gmra.mxu0 %v976
        %v3162 = vpop.f32.mrf.mxu0
        %v3163 = vadd.f32 %v2810, %v3162
        %v3164 = vpop.f32.mrf.mxu0
        %v3165 = vadd.f32 %v2812, %v3164
        %v3166 = vpop.f32.mrf.mxu0
        %v3167 = vadd.f32 %v2814, %v3166
        %v3168 = vpop.f32.mrf.mxu0
        %v3169 = vadd.f32 %v2816, %v3168
        %3170 = vmatprep.mubr.bf16.mxu0 %v983
        %3171 = vmatmul.mubr.bf16.gmra.mxu0 %v982
        %v3172 = vpop.f32.mrf.mxu0
        %v3173 = vadd.f32 %v2820, %v3172
        %v3174 = vpop.f32.mrf.mxu0
        %v3175 = vadd.f32 %v2822, %v3174
        %v3176 = vpop.f32.mrf.mxu0
        %v3177 = vadd.f32 %v2824, %v3176
        %v3178 = vpop.f32.mrf.mxu0
        %v3179 = vadd.f32 %v2826, %v3178
        %3180 = vmatprep.mubr.bf16.mxu0 %v989
        %3181 = vmatmul.mubr.bf16.gmra.mxu0 %v988
        %v3182 = vpop.f32.mrf.mxu0
        %v3183 = vadd.f32 %v2830, %v3182
        %v3184 = vpop.f32.mrf.mxu0
        %v3185 = vadd.f32 %v2832, %v3184
        %v3186 = vpop.f32.mrf.mxu0
        %v3187 = vadd.f32 %v2834, %v3186
        %v3188 = vpop.f32.mrf.mxu0
        %v3189 = vadd.f32 %v2836, %v3188
        %3190 = vmatprep.mubr.bf16.mxu0 %v995
        %3191 = vmatmul.mubr.bf16.gmra.mxu0 %v994
        %v3192 = vpop.f32.mrf.mxu0
        %v3193 = vadd.f32 %v2840, %v3192
        %v3194 = vpop.f32.mrf.mxu0
        %v3195 = vadd.f32 %v2842, %v3194
        %v3196 = vpop.f32.mrf.mxu0
        %v3197 = vadd.f32 %v2844, %v3196
        %v3198 = vpop.f32.mrf.mxu0
        %v3199 = vadd.f32 %v2846, %v3198
        %3200 = vmatprep.mubr.bf16.mxu0 %v1001
        %3201 = vmatmul.mubr.bf16.gmra.mxu0 %v1000
        %v3202 = vpop.f32.mrf.mxu0
        %v3203 = vadd.f32 %v2850, %v3202
        %v3204 = vpop.f32.mrf.mxu0
        %v3205 = vadd.f32 %v2852, %v3204
        %v3206 = vpop.f32.mrf.mxu0
        %v3207 = vadd.f32 %v2854, %v3206
        %v3208 = vpop.f32.mrf.mxu0
        %v3209 = vadd.f32 %v2856, %v3208
        %3210 = vmatprep.mubr.bf16.mxu0 %v1007
        %3211 = vmatmul.mubr.bf16.gmra.mxu0 %v1006
        %v3212 = vpop.f32.mrf.mxu0
        %v3213 = vadd.f32 %v2860, %v3212
        %v3214 = vpop.f32.mrf.mxu0
        %v3215 = vadd.f32 %v2862, %v3214
        %v3216 = vpop.f32.mrf.mxu0
        %v3217 = vadd.f32 %v2864, %v3216
        %v3218 = vpop.f32.mrf.mxu0
        %v3219 = vadd.f32 %v2866, %v3218
        %3220 = vmatprep.mubr.bf16.mxu0 %v1013
        %3221 = vmatmul.mubr.bf16.gmra.mxu0 %v1012
        %v3222 = vpop.f32.mrf.mxu0
        %v3223 = vadd.f32 %v2870, %v3222
        %v3224 = vpop.f32.mrf.mxu0
        %v3225 = vadd.f32 %v2872, %v3224
        %v3226 = vpop.f32.mrf.mxu0
        %v3227 = vadd.f32 %v2874, %v3226
        %v3228 = vpop.f32.mrf.mxu0
        %v3229 = vadd.f32 %v2876, %v3228
        %3230 = vmatprep.mubr.bf16.mxu0 %v1019
        %3231 = vmatmul.mubr.bf16.gmra.mxu0 %v1018
        %v3232 = vpop.f32.mrf.mxu0
        %v3233 = vadd.f32 %v2880, %v3232
        %v3234 = vpop.f32.mrf.mxu0
        %v3235 = vadd.f32 %v2882, %v3234
        %v3236 = vpop.f32.mrf.mxu0
        %v3237 = vadd.f32 %v2884, %v3236
        %v3238 = vpop.f32.mrf.mxu0
        %v3239 = vadd.f32 %v2886, %v3238
        %3240 = vmatprep.mubr.bf16.mxu0 %v1025
        %3241 = vmatmul.mubr.bf16.gmra.mxu0 %v1024
        %v3242 = vpop.f32.mrf.mxu0
        %v3243 = vadd.f32 %v2890, %v3242
        %v3244 = vpop.f32.mrf.mxu0
        %v3245 = vadd.f32 %v2892, %v3244
        %v3246 = vpop.f32.mrf.mxu0
        %v3247 = vadd.f32 %v2894, %v3246
        %v3248 = vpop.f32.mrf.mxu0
        %v3249 = vadd.f32 %v2896, %v3248
        %3250 = vmatprep.mubr.bf16.mxu0 %v1031
        %3251 = vmatmul.mubr.bf16.gmra.mxu0 %v1030
        %v3252 = vpop.f32.mrf.mxu0
        %v3253 = vadd.f32 %v2900, %v3252
        %v3254 = vpop.f32.mrf.mxu0
        %v3255 = vadd.f32 %v2902, %v3254
        %v3256 = vpop.f32.mrf.mxu0
        %v3257 = vadd.f32 %v2904, %v3256
        %v3258 = vpop.f32.mrf.mxu0
        %v3259 = vadd.f32 %v2906, %v3258
        %3260 = vmatprep.mubr.bf16.mxu0 %v1037
        %3261 = vmatmul.mubr.bf16.gmra.mxu0 %v1036
        %v3262 = vpop.f32.mrf.mxu0
        %v3263 = vadd.f32 %v2910, %v3262
        %v3264 = vpop.f32.mrf.mxu0
        %v3265 = vadd.f32 %v2912, %v3264
        %v3266 = vpop.f32.mrf.mxu0
        %v3267 = vadd.f32 %v2914, %v3266
        %v3268 = vpop.f32.mrf.mxu0
        %v3269 = vadd.f32 %v2916, %v3268
        %3270 = vdwg.mxu0
        %3271 = vmatprep.subr.bf16.mxu0 %v1859
        %3272 = vmatpush1.bf16.msra.mxu0 %v1858
        %3273 = vmatprep.subr.bf16.mxu0 %v1855
        %3274 = vmatpush1.bf16.msra.mxu0 %v1854
        %3275 = vmatprep.subr.bf16.mxu0 %v1851
        %3276 = vmatpush1.bf16.msra.mxu0 %v1850
        %3277 = vmatprep.subr.bf16.mxu0 %v1847
        %3278 = vmatpush1.bf16.msra.mxu0 %v1846
        %3279 = vmatprep.subr.bf16.mxu0 %v1843
        %3280 = vmatpush1.bf16.msra.mxu0 %v1842
        %3281 = vmatprep.subr.bf16.mxu0 %v1839
        %3282 = vmatpush1.bf16.msra.mxu0 %v1838
        %3283 = vmatprep.subr.bf16.mxu0 %v1835
        %3284 = vmatpush1.bf16.msra.mxu0 %v1834
        %3285 = vmatprep.subr.bf16.mxu0 %v1831
        %3286 = vmatpush1.bf16.msra.mxu0 %v1830
        %3287 = vmatprep.subr.bf16.mxu0 %v1891
        %3288 = vmatpush2.bf16.msra.mxu0 %v1890
        %3289 = vmatprep.subr.bf16.mxu0 %v1887
        %3290 = vmatpush2.bf16.msra.mxu0 %v1886
        %3291 = vmatprep.subr.bf16.mxu0 %v1883
        %3292 = vmatpush2.bf16.msra.mxu0 %v1882
        %3293 = vmatprep.subr.bf16.mxu0 %v1879
        %3294 = vmatpush2.bf16.msra.mxu0 %v1878
        %3295 = vmatprep.subr.bf16.mxu0 %v1875
        %3296 = vmatpush2.bf16.msra.mxu0 %v1874
        %3297 = vmatprep.subr.bf16.mxu0 %v1871
        %3298 = vmatpush2.bf16.msra.mxu0 %v1870
        %3299 = vmatprep.subr.bf16.mxu0 %v1867
        %3300 = vmatpush2.bf16.msra.mxu0 %v1866
        %3301 = vmatprep.subr.bf16.mxu0 %v1863
        %3302 = vmatpush2.bf16.msra.mxu0 %v1862
        %3303 = vmatprep.mubr.bf16.mxu0 %v847
        %3304 = vmatmul.mubr.bf16.gmra.mxu0 %v846
        %v3305 = vpop.f32.mrf.mxu0
        %v3306 = vadd.f32 %v1243, %v3305
        %v3307 = vpop.f32.mrf.mxu0
        %v3308 = vadd.f32 %v1247, %v3307
        %v3309 = vpop.f32.mrf.mxu0
        %v3310 = vadd.f32 %v1243, %v3309
        %v3311 = vpop.f32.mrf.mxu0
        %v3312 = vadd.f32 %v1247, %v3311
        %3313 = vmatprep.mubr.bf16.mxu0 %v853
        %3314 = vmatmul.mubr.bf16.gmra.mxu0 %v852
        %v3315 = vpop.f32.mrf.mxu0
        %v3316 = vadd.f32 %v1243, %v3315
        %v3317 = vpop.f32.mrf.mxu0
        %v3318 = vadd.f32 %v1247, %v3317
        %v3319 = vpop.f32.mrf.mxu0
        %v3320 = vadd.f32 %v1243, %v3319
        %v3321 = vpop.f32.mrf.mxu0
        %v3322 = vadd.f32 %v1247, %v3321
        %3323 = vmatprep.mubr.bf16.mxu0 %v859
        %3324 = vmatmul.mubr.bf16.gmra.mxu0 %v858
        %v3325 = vpop.f32.mrf.mxu0
        %v3326 = vadd.f32 %v1243, %v3325
        %v3327 = vpop.f32.mrf.mxu0
        %v3328 = vadd.f32 %v1247, %v3327
        %v3329 = vpop.f32.mrf.mxu0
        %v3330 = vadd.f32 %v1243, %v3329
        %v3331 = vpop.f32.mrf.mxu0
        %v3332 = vadd.f32 %v1247, %v3331
        %3333 = vmatprep.mubr.bf16.mxu0 %v865
        %3334 = vmatmul.mubr.bf16.gmra.mxu0 %v864
        %v3335 = vpop.f32.mrf.mxu0
        %v3336 = vadd.f32 %v1243, %v3335
        %v3337 = vpop.f32.mrf.mxu0
        %v3338 = vadd.f32 %v1247, %v3337
        %v3339 = vpop.f32.mrf.mxu0
        %v3340 = vadd.f32 %v1243, %v3339
        %v3341 = vpop.f32.mrf.mxu0
        %v3342 = vadd.f32 %v1247, %v3341
        %3343 = vmatprep.mubr.bf16.mxu0 %v871
        %3344 = vmatmul.mubr.bf16.gmra.mxu0 %v870
        %v3345 = vpop.f32.mrf.mxu0
        %v3346 = vadd.f32 %v1243, %v3345
        %v3347 = vpop.f32.mrf.mxu0
        %v3348 = vadd.f32 %v1247, %v3347
        %v3349 = vpop.f32.mrf.mxu0
        %v3350 = vadd.f32 %v1243, %v3349
        %v3351 = vpop.f32.mrf.mxu0
        %v3352 = vadd.f32 %v1247, %v3351
        %3353 = vmatprep.mubr.bf16.mxu0 %v877
        %3354 = vmatmul.mubr.bf16.gmra.mxu0 %v876
        %v3355 = vpop.f32.mrf.mxu0
        %v3356 = vadd.f32 %v1243, %v3355
        %v3357 = vpop.f32.mrf.mxu0
        %v3358 = vadd.f32 %v1247, %v3357
        %v3359 = vpop.f32.mrf.mxu0
        %v3360 = vadd.f32 %v1243, %v3359
        %v3361 = vpop.f32.mrf.mxu0
        %v3362 = vadd.f32 %v1247, %v3361
        %3363 = vmatprep.mubr.bf16.mxu0 %v883
        %3364 = vmatmul.mubr.bf16.gmra.mxu0 %v882
        %v3365 = vpop.f32.mrf.mxu0
        %v3366 = vadd.f32 %v1243, %v3365
        %v3367 = vpop.f32.mrf.mxu0
        %v3368 = vadd.f32 %v1247, %v3367
        %v3369 = vpop.f32.mrf.mxu0
        %v3370 = vadd.f32 %v1243, %v3369
        %v3371 = vpop.f32.mrf.mxu0
        %v3372 = vadd.f32 %v1247, %v3371
        %3373 = vmatprep.mubr.bf16.mxu0 %v889
        %3374 = vmatmul.mubr.bf16.gmra.mxu0 %v888
        %v3375 = vpop.f32.mrf.mxu0
        %v3376 = vadd.f32 %v1243, %v3375
        %v3377 = vpop.f32.mrf.mxu0
        %v3378 = vadd.f32 %v1247, %v3377
        %v3379 = vpop.f32.mrf.mxu0
        %v3380 = vadd.f32 %v1243, %v3379
        %v3381 = vpop.f32.mrf.mxu0
        %v3382 = vadd.f32 %v1247, %v3381
        %3383 = vmatprep.mubr.bf16.mxu0 %v895
        %3384 = vmatmul.mubr.bf16.gmra.mxu0 %v894
        %v3385 = vpop.f32.mrf.mxu0
        %v3386 = vadd.f32 %v1243, %v3385
        %v3387 = vpop.f32.mrf.mxu0
        %v3388 = vadd.f32 %v1247, %v3387
        %v3389 = vpop.f32.mrf.mxu0
        %v3390 = vadd.f32 %v1243, %v3389
        %v3391 = vpop.f32.mrf.mxu0
        %v3392 = vadd.f32 %v1247, %v3391
        %3393 = vmatprep.mubr.bf16.mxu0 %v901
        %3394 = vmatmul.mubr.bf16.gmra.mxu0 %v900
        %v3395 = vpop.f32.mrf.mxu0
        %v3396 = vadd.f32 %v1243, %v3395
        %v3397 = vpop.f32.mrf.mxu0
        %v3398 = vadd.f32 %v1247, %v3397
        %v3399 = vpop.f32.mrf.mxu0
        %v3400 = vadd.f32 %v1243, %v3399
        %v3401 = vpop.f32.mrf.mxu0
        %v3402 = vadd.f32 %v1247, %v3401
        %3403 = vmatprep.mubr.bf16.mxu0 %v907
        %3404 = vmatmul.mubr.bf16.gmra.mxu0 %v906
        %v3405 = vpop.f32.mrf.mxu0
        %v3406 = vadd.f32 %v1243, %v3405
        %v3407 = vpop.f32.mrf.mxu0
        %v3408 = vadd.f32 %v1247, %v3407
        %v3409 = vpop.f32.mrf.mxu0
        %v3410 = vadd.f32 %v1243, %v3409
        %v3411 = vpop.f32.mrf.mxu0
        %v3412 = vadd.f32 %v1247, %v3411
        %3413 = vmatprep.mubr.bf16.mxu0 %v913
        %3414 = vmatmul.mubr.bf16.gmra.mxu0 %v912
        %v3415 = vpop.f32.mrf.mxu0
        %v3416 = vadd.f32 %v1243, %v3415
        %v3417 = vpop.f32.mrf.mxu0
        %v3418 = vadd.f32 %v1247, %v3417
        %v3419 = vpop.f32.mrf.mxu0
        %v3420 = vadd.f32 %v1243, %v3419
        %v3421 = vpop.f32.mrf.mxu0
        %v3422 = vadd.f32 %v1247, %v3421
        %3423 = vmatprep.mubr.bf16.mxu0 %v919
        %3424 = vmatmul.mubr.bf16.gmra.mxu0 %v918
        %v3425 = vpop.f32.mrf.mxu0
        %v3426 = vadd.f32 %v1243, %v3425
        %v3427 = vpop.f32.mrf.mxu0
        %v3428 = vadd.f32 %v1247, %v3427
        %v3429 = vpop.f32.mrf.mxu0
        %v3430 = vadd.f32 %v1243, %v3429
        %v3431 = vpop.f32.mrf.mxu0
        %v3432 = vadd.f32 %v1247, %v3431
        %3433 = vmatprep.mubr.bf16.mxu0 %v925
        %3434 = vmatmul.mubr.bf16.gmra.mxu0 %v924
        %v3435 = vpop.f32.mrf.mxu0
        %v3436 = vadd.f32 %v1243, %v3435
        %v3437 = vpop.f32.mrf.mxu0
        %v3438 = vadd.f32 %v1247, %v3437
        %v3439 = vpop.f32.mrf.mxu0
        %v3440 = vadd.f32 %v1243, %v3439
        %v3441 = vpop.f32.mrf.mxu0
        %v3442 = vadd.f32 %v1247, %v3441
        %3443 = vmatprep.mubr.bf16.mxu0 %v931
        %3444 = vmatmul.mubr.bf16.gmra.mxu0 %v930
        %v3445 = vpop.f32.mrf.mxu0
        %v3446 = vadd.f32 %v1243, %v3445
        %v3447 = vpop.f32.mrf.mxu0
        %v3448 = vadd.f32 %v1247, %v3447
        %v3449 = vpop.f32.mrf.mxu0
        %v3450 = vadd.f32 %v1243, %v3449
        %v3451 = vpop.f32.mrf.mxu0
        %v3452 = vadd.f32 %v1247, %v3451
        %3453 = vmatprep.mubr.bf16.mxu0 %v937
        %3454 = vmatmul.mubr.bf16.gmra.mxu0 %v936
        %v3455 = vpop.f32.mrf.mxu0
        %v3456 = vadd.f32 %v1243, %v3455
        %v3457 = vpop.f32.mrf.mxu0
        %v3458 = vadd.f32 %v1247, %v3457
        %v3459 = vpop.f32.mrf.mxu0
        %v3460 = vadd.f32 %v1243, %v3459
        %v3461 = vpop.f32.mrf.mxu0
        %v3462 = vadd.f32 %v1247, %v3461
        %3463 = vmatprep.mubr.bf16.mxu0 %v943
        %3464 = vmatmul.mubr.bf16.gmra.mxu0 %v942
        %v3465 = vpop.f32.mrf.mxu0
        %v3466 = vadd.f32 %v1243, %v3465
        %v3467 = vpop.f32.mrf.mxu0
        %v3468 = vadd.f32 %v1247, %v3467
        %v3469 = vpop.f32.mrf.mxu0
        %v3470 = vadd.f32 %v1243, %v3469
        %v3471 = vpop.f32.mrf.mxu0
        %v3472 = vadd.f32 %v1247, %v3471
        %3473 = vmatprep.mubr.bf16.mxu0 %v949
        %3474 = vmatmul.mubr.bf16.gmra.mxu0 %v948
        %v3475 = vpop.f32.mrf.mxu0
        %v3476 = vadd.f32 %v1243, %v3475
        %v3477 = vpop.f32.mrf.mxu0
        %v3478 = vadd.f32 %v1247, %v3477
        %v3479 = vpop.f32.mrf.mxu0
        %v3480 = vadd.f32 %v1243, %v3479
        %v3481 = vpop.f32.mrf.mxu0
        %v3482 = vadd.f32 %v1247, %v3481
        %3483 = vmatprep.mubr.bf16.mxu0 %v955
        %3484 = vmatmul.mubr.bf16.gmra.mxu0 %v954
        %v3485 = vpop.f32.mrf.mxu0
        %v3486 = vadd.f32 %v1243, %v3485
        %v3487 = vpop.f32.mrf.mxu0
        %v3488 = vadd.f32 %v1247, %v3487
        %v3489 = vpop.f32.mrf.mxu0
        %v3490 = vadd.f32 %v1243, %v3489
        %v3491 = vpop.f32.mrf.mxu0
        %v3492 = vadd.f32 %v1247, %v3491
        %3493 = vmatprep.mubr.bf16.mxu0 %v961
        %3494 = vmatmul.mubr.bf16.gmra.mxu0 %v960
        %v3495 = vpop.f32.mrf.mxu0
        %v3496 = vadd.f32 %v1243, %v3495
        %v3497 = vpop.f32.mrf.mxu0
        %v3498 = vadd.f32 %v1247, %v3497
        %v3499 = vpop.f32.mrf.mxu0
        %v3500 = vadd.f32 %v1243, %v3499
        %v3501 = vpop.f32.mrf.mxu0
        %v3502 = vadd.f32 %v1247, %v3501
        %3503 = vmatprep.mubr.bf16.mxu0 %v967
        %3504 = vmatmul.mubr.bf16.gmra.mxu0 %v966
        %v3505 = vpop.f32.mrf.mxu0
        %v3506 = vadd.f32 %v1243, %v3505
        %v3507 = vpop.f32.mrf.mxu0
        %v3508 = vadd.f32 %v1247, %v3507
        %v3509 = vpop.f32.mrf.mxu0
        %v3510 = vadd.f32 %v1243, %v3509
        %v3511 = vpop.f32.mrf.mxu0
        %v3512 = vadd.f32 %v1247, %v3511
        %3513 = vmatprep.mubr.bf16.mxu0 %v973
        %3514 = vmatmul.mubr.bf16.gmra.mxu0 %v972
        %v3515 = vpop.f32.mrf.mxu0
        %v3516 = vadd.f32 %v1243, %v3515
        %v3517 = vpop.f32.mrf.mxu0
        %v3518 = vadd.f32 %v1247, %v3517
        %v3519 = vpop.f32.mrf.mxu0
        %v3520 = vadd.f32 %v1243, %v3519
        %v3521 = vpop.f32.mrf.mxu0
        %v3522 = vadd.f32 %v1247, %v3521
        %3523 = vmatprep.mubr.bf16.mxu0 %v979
        %3524 = vmatmul.mubr.bf16.gmra.mxu0 %v978
        %v3525 = vpop.f32.mrf.mxu0
        %v3526 = vadd.f32 %v1243, %v3525
        %v3527 = vpop.f32.mrf.mxu0
        %v3528 = vadd.f32 %v1247, %v3527
        %v3529 = vpop.f32.mrf.mxu0
        %v3530 = vadd.f32 %v1243, %v3529
        %v3531 = vpop.f32.mrf.mxu0
        %v3532 = vadd.f32 %v1247, %v3531
        %3533 = vmatprep.mubr.bf16.mxu0 %v985
        %3534 = vmatmul.mubr.bf16.gmra.mxu0 %v984
        %v3535 = vpop.f32.mrf.mxu0
        %v3536 = vadd.f32 %v1243, %v3535
        %v3537 = vpop.f32.mrf.mxu0
        %v3538 = vadd.f32 %v1247, %v3537
        %v3539 = vpop.f32.mrf.mxu0
        %v3540 = vadd.f32 %v1243, %v3539
        %v3541 = vpop.f32.mrf.mxu0
        %v3542 = vadd.f32 %v1247, %v3541
        %3543 = vmatprep.mubr.bf16.mxu0 %v991
        %3544 = vmatmul.mubr.bf16.gmra.mxu0 %v990
        %v3545 = vpop.f32.mrf.mxu0
        %v3546 = vadd.f32 %v1243, %v3545
        %v3547 = vpop.f32.mrf.mxu0
        %v3548 = vadd.f32 %v1247, %v3547
        %v3549 = vpop.f32.mrf.mxu0
        %v3550 = vadd.f32 %v1243, %v3549
        %v3551 = vpop.f32.mrf.mxu0
        %v3552 = vadd.f32 %v1247, %v3551
        %3553 = vmatprep.mubr.bf16.mxu0 %v997
        %3554 = vmatmul.mubr.bf16.gmra.mxu0 %v996
        %v3555 = vpop.f32.mrf.mxu0
        %v3556 = vadd.f32 %v1243, %v3555
        %v3557 = vpop.f32.mrf.mxu0
        %v3558 = vadd.f32 %v1247, %v3557
        %v3559 = vpop.f32.mrf.mxu0
        %v3560 = vadd.f32 %v1243, %v3559
        %v3561 = vpop.f32.mrf.mxu0
        %v3562 = vadd.f32 %v1247, %v3561
        %3563 = vmatprep.mubr.bf16.mxu0 %v1003
        %3564 = vmatmul.mubr.bf16.gmra.mxu0 %v1002
        %v3565 = vpop.f32.mrf.mxu0
        %v3566 = vadd.f32 %v1243, %v3565
        %v3567 = vpop.f32.mrf.mxu0
        %v3568 = vadd.f32 %v1247, %v3567
        %v3569 = vpop.f32.mrf.mxu0
        %v3570 = vadd.f32 %v1243, %v3569
        %v3571 = vpop.f32.mrf.mxu0
        %v3572 = vadd.f32 %v1247, %v3571
        %3573 = vmatprep.mubr.bf16.mxu0 %v1009
        %3574 = vmatmul.mubr.bf16.gmra.mxu0 %v1008
        %v3575 = vpop.f32.mrf.mxu0
        %v3576 = vadd.f32 %v1243, %v3575
        %v3577 = vpop.f32.mrf.mxu0
        %v3578 = vadd.f32 %v1247, %v3577
        %v3579 = vpop.f32.mrf.mxu0
        %v3580 = vadd.f32 %v1243, %v3579
        %v3581 = vpop.f32.mrf.mxu0
        %v3582 = vadd.f32 %v1247, %v3581
        %3583 = vmatprep.mubr.bf16.mxu0 %v1015
        %3584 = vmatmul.mubr.bf16.gmra.mxu0 %v1014
        %v3585 = vpop.f32.mrf.mxu0
        %v3586 = vadd.f32 %v1243, %v3585
        %v3587 = vpop.f32.mrf.mxu0
        %v3588 = vadd.f32 %v1247, %v3587
        %v3589 = vpop.f32.mrf.mxu0
        %v3590 = vadd.f32 %v1243, %v3589
        %v3591 = vpop.f32.mrf.mxu0
        %v3592 = vadd.f32 %v1247, %v3591
        %3593 = vmatprep.mubr.bf16.mxu0 %v1021
        %3594 = vmatmul.mubr.bf16.gmra.mxu0 %v1020
        %v3595 = vpop.f32.mrf.mxu0
        %v3596 = vadd.f32 %v1243, %v3595
        %v3597 = vpop.f32.mrf.mxu0
        %v3598 = vadd.f32 %v1247, %v3597
        %v3599 = vpop.f32.mrf.mxu0
        %v3600 = vadd.f32 %v1243, %v3599
        %v3601 = vpop.f32.mrf.mxu0
        %v3602 = vadd.f32 %v1247, %v3601
        %3603 = vmatprep.mubr.bf16.mxu0 %v1027
        %3604 = vmatmul.mubr.bf16.gmra.mxu0 %v1026
        %v3605 = vpop.f32.mrf.mxu0
        %v3606 = vadd.f32 %v1243, %v3605
        %v3607 = vpop.f32.mrf.mxu0
        %v3608 = vadd.f32 %v1247, %v3607
        %v3609 = vpop.f32.mrf.mxu0
        %v3610 = vadd.f32 %v1243, %v3609
        %v3611 = vpop.f32.mrf.mxu0
        %v3612 = vadd.f32 %v1247, %v3611
        %3613 = vmatprep.mubr.bf16.mxu0 %v1033
        %3614 = vmatmul.mubr.bf16.gmra.mxu0 %v1032
        %v3615 = vpop.f32.mrf.mxu0
        %v3616 = vadd.f32 %v1243, %v3615
        %v3617 = vpop.f32.mrf.mxu0
        %v3618 = vadd.f32 %v1247, %v3617
        %v3619 = vpop.f32.mrf.mxu0
        %v3620 = vadd.f32 %v1243, %v3619
        %v3621 = vpop.f32.mrf.mxu0
        %v3622 = vadd.f32 %v1247, %v3621
        %3623 = vdwg.mxu0
        %3624 = vmatprep.subr.bf16.mxu0 %v1923
        %3625 = vmatpush1.bf16.msra.mxu0 %v1922
        %3626 = vmatprep.subr.bf16.mxu0 %v1919
        %3627 = vmatpush1.bf16.msra.mxu0 %v1918
        %3628 = vmatprep.subr.bf16.mxu0 %v1915
        %3629 = vmatpush1.bf16.msra.mxu0 %v1914
        %3630 = vmatprep.subr.bf16.mxu0 %v1911
        %3631 = vmatpush1.bf16.msra.mxu0 %v1910
        %3632 = vmatprep.subr.bf16.mxu0 %v1907
        %3633 = vmatpush1.bf16.msra.mxu0 %v1906
        %3634 = vmatprep.subr.bf16.mxu0 %v1903
        %3635 = vmatpush1.bf16.msra.mxu0 %v1902
        %3636 = vmatprep.subr.bf16.mxu0 %v1899
        %3637 = vmatpush1.bf16.msra.mxu0 %v1898
        %3638 = vmatprep.subr.bf16.mxu0 %v1895
        %3639 = vmatpush1.bf16.msra.mxu0 %v1894
        %3640 = vmatprep.subr.bf16.mxu0 %v1955
        %3641 = vmatpush2.bf16.msra.mxu0 %v1954
        %3642 = vmatprep.subr.bf16.mxu0 %v1951
        %3643 = vmatpush2.bf16.msra.mxu0 %v1950
        %3644 = vmatprep.subr.bf16.mxu0 %v1947
        %3645 = vmatpush2.bf16.msra.mxu0 %v1946
        %3646 = vmatprep.subr.bf16.mxu0 %v1943
        %3647 = vmatpush2.bf16.msra.mxu0 %v1942
        %3648 = vmatprep.subr.bf16.mxu0 %v1939
        %3649 = vmatpush2.bf16.msra.mxu0 %v1938
        %3650 = vmatprep.subr.bf16.mxu0 %v1935
        %3651 = vmatpush2.bf16.msra.mxu0 %v1934
        %3652 = vmatprep.subr.bf16.mxu0 %v1931
        %3653 = vmatpush2.bf16.msra.mxu0 %v1930
        %3654 = vmatprep.subr.bf16.mxu0 %v1927
        %3655 = vmatpush2.bf16.msra.mxu0 %v1926
        %3656 = vmatprep.mubr.bf16.mxu0 %v849
        %3657 = vmatmul.mubr.bf16.gmra.mxu0 %v848
        %v3658 = vpop.f32.mrf.mxu0
        %v3659 = vadd.f32 %v3306, %v3658
        %v3660 = vpop.f32.mrf.mxu0
        %v3661 = vadd.f32 %v3308, %v3660
        %v3662 = vpop.f32.mrf.mxu0
        %v3663 = vadd.f32 %v3310, %v3662
        %v3664 = vpop.f32.mrf.mxu0
        %v3665 = vadd.f32 %v3312, %v3664
        %3666 = vmatprep.mubr.bf16.mxu0 %v855
        %3667 = vmatmul.mubr.bf16.gmra.mxu0 %v854
        %v3668 = vpop.f32.mrf.mxu0
        %v3669 = vadd.f32 %v3316, %v3668
        %v3670 = vpop.f32.mrf.mxu0
        %v3671 = vadd.f32 %v3318, %v3670
        %v3672 = vpop.f32.mrf.mxu0
        %v3673 = vadd.f32 %v3320, %v3672
        %v3674 = vpop.f32.mrf.mxu0
        %v3675 = vadd.f32 %v3322, %v3674
        %3676 = vmatprep.mubr.bf16.mxu0 %v861
        %3677 = vmatmul.mubr.bf16.gmra.mxu0 %v860
        %v3678 = vpop.f32.mrf.mxu0
        %v3679 = vadd.f32 %v3326, %v3678
        %v3680 = vpop.f32.mrf.mxu0
        %v3681 = vadd.f32 %v3328, %v3680
        %v3682 = vpop.f32.mrf.mxu0
        %v3683 = vadd.f32 %v3330, %v3682
        %v3684 = vpop.f32.mrf.mxu0
        %v3685 = vadd.f32 %v3332, %v3684
        %3686 = vmatprep.mubr.bf16.mxu0 %v867
        %3687 = vmatmul.mubr.bf16.gmra.mxu0 %v866
        %v3688 = vpop.f32.mrf.mxu0
        %v3689 = vadd.f32 %v3336, %v3688
        %v3690 = vpop.f32.mrf.mxu0
        %v3691 = vadd.f32 %v3338, %v3690
        %v3692 = vpop.f32.mrf.mxu0
        %v3693 = vadd.f32 %v3340, %v3692
        %v3694 = vpop.f32.mrf.mxu0
        %v3695 = vadd.f32 %v3342, %v3694
        %3696 = vmatprep.mubr.bf16.mxu0 %v873
        %3697 = vmatmul.mubr.bf16.gmra.mxu0 %v872
        %v3698 = vpop.f32.mrf.mxu0
        %v3699 = vadd.f32 %v3346, %v3698
        %v3700 = vpop.f32.mrf.mxu0
        %v3701 = vadd.f32 %v3348, %v3700
        %v3702 = vpop.f32.mrf.mxu0
        %v3703 = vadd.f32 %v3350, %v3702
        %v3704 = vpop.f32.mrf.mxu0
        %v3705 = vadd.f32 %v3352, %v3704
        %3706 = vmatprep.mubr.bf16.mxu0 %v879
        %3707 = vmatmul.mubr.bf16.gmra.mxu0 %v878
        %v3708 = vpop.f32.mrf.mxu0
        %v3709 = vadd.f32 %v3356, %v3708
        %v3710 = vpop.f32.mrf.mxu0
        %v3711 = vadd.f32 %v3358, %v3710
        %v3712 = vpop.f32.mrf.mxu0
        %v3713 = vadd.f32 %v3360, %v3712
        %v3714 = vpop.f32.mrf.mxu0
        %v3715 = vadd.f32 %v3362, %v3714
        %3716 = vmatprep.mubr.bf16.mxu0 %v885
        %3717 = vmatmul.mubr.bf16.gmra.mxu0 %v884
        %v3718 = vpop.f32.mrf.mxu0
        %v3719 = vadd.f32 %v3366, %v3718
        %v3720 = vpop.f32.mrf.mxu0
        %v3721 = vadd.f32 %v3368, %v3720
        %v3722 = vpop.f32.mrf.mxu0
        %v3723 = vadd.f32 %v3370, %v3722
        %v3724 = vpop.f32.mrf.mxu0
        %v3725 = vadd.f32 %v3372, %v3724
        %3726 = vmatprep.mubr.bf16.mxu0 %v891
        %3727 = vmatmul.mubr.bf16.gmra.mxu0 %v890
        %v3728 = vpop.f32.mrf.mxu0
        %v3729 = vadd.f32 %v3376, %v3728
        %v3730 = vpop.f32.mrf.mxu0
        %v3731 = vadd.f32 %v3378, %v3730
        %v3732 = vpop.f32.mrf.mxu0
        %v3733 = vadd.f32 %v3380, %v3732
        %v3734 = vpop.f32.mrf.mxu0
        %v3735 = vadd.f32 %v3382, %v3734
        %3736 = vmatprep.mubr.bf16.mxu0 %v897
        %3737 = vmatmul.mubr.bf16.gmra.mxu0 %v896
        %v3738 = vpop.f32.mrf.mxu0
        %v3739 = vadd.f32 %v3386, %v3738
        %v3740 = vpop.f32.mrf.mxu0
        %v3741 = vadd.f32 %v3388, %v3740
        %v3742 = vpop.f32.mrf.mxu0
        %v3743 = vadd.f32 %v3390, %v3742
        %v3744 = vpop.f32.mrf.mxu0
        %v3745 = vadd.f32 %v3392, %v3744
        %3746 = vmatprep.mubr.bf16.mxu0 %v903
        %3747 = vmatmul.mubr.bf16.gmra.mxu0 %v902
        %v3748 = vpop.f32.mrf.mxu0
        %v3749 = vadd.f32 %v3396, %v3748
        %v3750 = vpop.f32.mrf.mxu0
        %v3751 = vadd.f32 %v3398, %v3750
        %v3752 = vpop.f32.mrf.mxu0
        %v3753 = vadd.f32 %v3400, %v3752
        %v3754 = vpop.f32.mrf.mxu0
        %v3755 = vadd.f32 %v3402, %v3754
        %3756 = vmatprep.mubr.bf16.mxu0 %v909
        %3757 = vmatmul.mubr.bf16.gmra.mxu0 %v908
        %v3758 = vpop.f32.mrf.mxu0
        %v3759 = vadd.f32 %v3406, %v3758
        %v3760 = vpop.f32.mrf.mxu0
        %v3761 = vadd.f32 %v3408, %v3760
        %v3762 = vpop.f32.mrf.mxu0
        %v3763 = vadd.f32 %v3410, %v3762
        %v3764 = vpop.f32.mrf.mxu0
        %v3765 = vadd.f32 %v3412, %v3764
        %3766 = vmatprep.mubr.bf16.mxu0 %v915
        %3767 = vmatmul.mubr.bf16.gmra.mxu0 %v914
        %v3768 = vpop.f32.mrf.mxu0
        %v3769 = vadd.f32 %v3416, %v3768
        %v3770 = vpop.f32.mrf.mxu0
        %v3771 = vadd.f32 %v3418, %v3770
        %v3772 = vpop.f32.mrf.mxu0
        %v3773 = vadd.f32 %v3420, %v3772
        %v3774 = vpop.f32.mrf.mxu0
        %v3775 = vadd.f32 %v3422, %v3774
        %3776 = vmatprep.mubr.bf16.mxu0 %v921
        %3777 = vmatmul.mubr.bf16.gmra.mxu0 %v920
        %v3778 = vpop.f32.mrf.mxu0
        %v3779 = vadd.f32 %v3426, %v3778
        %v3780 = vpop.f32.mrf.mxu0
        %v3781 = vadd.f32 %v3428, %v3780
        %v3782 = vpop.f32.mrf.mxu0
        %v3783 = vadd.f32 %v3430, %v3782
        %v3784 = vpop.f32.mrf.mxu0
        %v3785 = vadd.f32 %v3432, %v3784
        %3786 = vmatprep.mubr.bf16.mxu0 %v927
        %3787 = vmatmul.mubr.bf16.gmra.mxu0 %v926
        %v3788 = vpop.f32.mrf.mxu0
        %v3789 = vadd.f32 %v3436, %v3788
        %v3790 = vpop.f32.mrf.mxu0
        %v3791 = vadd.f32 %v3438, %v3790
        %v3792 = vpop.f32.mrf.mxu0
        %v3793 = vadd.f32 %v3440, %v3792
        %v3794 = vpop.f32.mrf.mxu0
        %v3795 = vadd.f32 %v3442, %v3794
        %3796 = vmatprep.mubr.bf16.mxu0 %v933
        %3797 = vmatmul.mubr.bf16.gmra.mxu0 %v932
        %v3798 = vpop.f32.mrf.mxu0
        %v3799 = vadd.f32 %v3446, %v3798
        %v3800 = vpop.f32.mrf.mxu0
        %v3801 = vadd.f32 %v3448, %v3800
        %v3802 = vpop.f32.mrf.mxu0
        %v3803 = vadd.f32 %v3450, %v3802
        %v3804 = vpop.f32.mrf.mxu0
        %v3805 = vadd.f32 %v3452, %v3804
        %3806 = vmatprep.mubr.bf16.mxu0 %v939
        %3807 = vmatmul.mubr.bf16.gmra.mxu0 %v938
        %v3808 = vpop.f32.mrf.mxu0
        %v3809 = vadd.f32 %v3456, %v3808
        %v3810 = vpop.f32.mrf.mxu0
        %v3811 = vadd.f32 %v3458, %v3810
        %v3812 = vpop.f32.mrf.mxu0
        %v3813 = vadd.f32 %v3460, %v3812
        %v3814 = vpop.f32.mrf.mxu0
        %v3815 = vadd.f32 %v3462, %v3814
        %3816 = vmatprep.mubr.bf16.mxu0 %v945
        %3817 = vmatmul.mubr.bf16.gmra.mxu0 %v944
        %v3818 = vpop.f32.mrf.mxu0
        %v3819 = vadd.f32 %v3466, %v3818
        %v3820 = vpop.f32.mrf.mxu0
        %v3821 = vadd.f32 %v3468, %v3820
        %v3822 = vpop.f32.mrf.mxu0
        %v3823 = vadd.f32 %v3470, %v3822
        %v3824 = vpop.f32.mrf.mxu0
        %v3825 = vadd.f32 %v3472, %v3824
        %3826 = vmatprep.mubr.bf16.mxu0 %v951
        %3827 = vmatmul.mubr.bf16.gmra.mxu0 %v950
        %v3828 = vpop.f32.mrf.mxu0
        %v3829 = vadd.f32 %v3476, %v3828
        %v3830 = vpop.f32.mrf.mxu0
        %v3831 = vadd.f32 %v3478, %v3830
        %v3832 = vpop.f32.mrf.mxu0
        %v3833 = vadd.f32 %v3480, %v3832
        %v3834 = vpop.f32.mrf.mxu0
        %v3835 = vadd.f32 %v3482, %v3834
        %3836 = vmatprep.mubr.bf16.mxu0 %v957
        %3837 = vmatmul.mubr.bf16.gmra.mxu0 %v956
        %v3838 = vpop.f32.mrf.mxu0
        %v3839 = vadd.f32 %v3486, %v3838
        %v3840 = vpop.f32.mrf.mxu0
        %v3841 = vadd.f32 %v3488, %v3840
        %v3842 = vpop.f32.mrf.mxu0
        %v3843 = vadd.f32 %v3490, %v3842
        %v3844 = vpop.f32.mrf.mxu0
        %v3845 = vadd.f32 %v3492, %v3844
        %3846 = vmatprep.mubr.bf16.mxu0 %v963
        %3847 = vmatmul.mubr.bf16.gmra.mxu0 %v962
        %v3848 = vpop.f32.mrf.mxu0
        %v3849 = vadd.f32 %v3496, %v3848
        %v3850 = vpop.f32.mrf.mxu0
        %v3851 = vadd.f32 %v3498, %v3850
        %v3852 = vpop.f32.mrf.mxu0
        %v3853 = vadd.f32 %v3500, %v3852
        %v3854 = vpop.f32.mrf.mxu0
        %v3855 = vadd.f32 %v3502, %v3854
        %3856 = vmatprep.mubr.bf16.mxu0 %v969
        %3857 = vmatmul.mubr.bf16.gmra.mxu0 %v968
        %v3858 = vpop.f32.mrf.mxu0
        %v3859 = vadd.f32 %v3506, %v3858
        %v3860 = vpop.f32.mrf.mxu0
        %v3861 = vadd.f32 %v3508, %v3860
        %v3862 = vpop.f32.mrf.mxu0
        %v3863 = vadd.f32 %v3510, %v3862
        %v3864 = vpop.f32.mrf.mxu0
        %v3865 = vadd.f32 %v3512, %v3864
        %3866 = vmatprep.mubr.bf16.mxu0 %v975
        %3867 = vmatmul.mubr.bf16.gmra.mxu0 %v974
        %v3868 = vpop.f32.mrf.mxu0
        %v3869 = vadd.f32 %v3516, %v3868
        %v3870 = vpop.f32.mrf.mxu0
        %v3871 = vadd.f32 %v3518, %v3870
        %v3872 = vpop.f32.mrf.mxu0
        %v3873 = vadd.f32 %v3520, %v3872
        %v3874 = vpop.f32.mrf.mxu0
        %v3875 = vadd.f32 %v3522, %v3874
        %3876 = vmatprep.mubr.bf16.mxu0 %v981
        %3877 = vmatmul.mubr.bf16.gmra.mxu0 %v980
        %v3878 = vpop.f32.mrf.mxu0
        %v3879 = vadd.f32 %v3526, %v3878
        %v3880 = vpop.f32.mrf.mxu0
        %v3881 = vadd.f32 %v3528, %v3880
        %v3882 = vpop.f32.mrf.mxu0
        %v3883 = vadd.f32 %v3530, %v3882
        %v3884 = vpop.f32.mrf.mxu0
        %v3885 = vadd.f32 %v3532, %v3884
        %3886 = vmatprep.mubr.bf16.mxu0 %v987
        %3887 = vmatmul.mubr.bf16.gmra.mxu0 %v986
        %v3888 = vpop.f32.mrf.mxu0
        %v3889 = vadd.f32 %v3536, %v3888
        %v3890 = vpop.f32.mrf.mxu0
        %v3891 = vadd.f32 %v3538, %v3890
        %v3892 = vpop.f32.mrf.mxu0
        %v3893 = vadd.f32 %v3540, %v3892
        %v3894 = vpop.f32.mrf.mxu0
        %v3895 = vadd.f32 %v3542, %v3894
        %3896 = vmatprep.mubr.bf16.mxu0 %v993
        %3897 = vmatmul.mubr.bf16.gmra.mxu0 %v992
        %v3898 = vpop.f32.mrf.mxu0
        %v3899 = vadd.f32 %v3546, %v3898
        %v3900 = vpop.f32.mrf.mxu0
        %v3901 = vadd.f32 %v3548, %v3900
        %v3902 = vpop.f32.mrf.mxu0
        %v3903 = vadd.f32 %v3550, %v3902
        %v3904 = vpop.f32.mrf.mxu0
        %v3905 = vadd.f32 %v3552, %v3904
        %3906 = vmatprep.mubr.bf16.mxu0 %v999
        %3907 = vmatmul.mubr.bf16.gmra.mxu0 %v998
        %v3908 = vpop.f32.mrf.mxu0
        %v3909 = vadd.f32 %v3556, %v3908
        %v3910 = vpop.f32.mrf.mxu0
        %v3911 = vadd.f32 %v3558, %v3910
        %v3912 = vpop.f32.mrf.mxu0
        %v3913 = vadd.f32 %v3560, %v3912
        %v3914 = vpop.f32.mrf.mxu0
        %v3915 = vadd.f32 %v3562, %v3914
        %3916 = vmatprep.mubr.bf16.mxu0 %v1005
        %3917 = vmatmul.mubr.bf16.gmra.mxu0 %v1004
        %v3918 = vpop.f32.mrf.mxu0
        %v3919 = vadd.f32 %v3566, %v3918
        %v3920 = vpop.f32.mrf.mxu0
        %v3921 = vadd.f32 %v3568, %v3920
        %v3922 = vpop.f32.mrf.mxu0
        %v3923 = vadd.f32 %v3570, %v3922
        %v3924 = vpop.f32.mrf.mxu0
        %v3925 = vadd.f32 %v3572, %v3924
        %3926 = vmatprep.mubr.bf16.mxu0 %v1011
        %3927 = vmatmul.mubr.bf16.gmra.mxu0 %v1010
        %v3928 = vpop.f32.mrf.mxu0
        %v3929 = vadd.f32 %v3576, %v3928
        %v3930 = vpop.f32.mrf.mxu0
        %v3931 = vadd.f32 %v3578, %v3930
        %v3932 = vpop.f32.mrf.mxu0
        %v3933 = vadd.f32 %v3580, %v3932
        %v3934 = vpop.f32.mrf.mxu0
        %v3935 = vadd.f32 %v3582, %v3934
        %3936 = vmatprep.mubr.bf16.mxu0 %v1017
        %3937 = vmatmul.mubr.bf16.gmra.mxu0 %v1016
        %v3938 = vpop.f32.mrf.mxu0
        %v3939 = vadd.f32 %v3586, %v3938
        %v3940 = vpop.f32.mrf.mxu0
        %v3941 = vadd.f32 %v3588, %v3940
        %v3942 = vpop.f32.mrf.mxu0
        %v3943 = vadd.f32 %v3590, %v3942
        %v3944 = vpop.f32.mrf.mxu0
        %v3945 = vadd.f32 %v3592, %v3944
        %3946 = vmatprep.mubr.bf16.mxu0 %v1023
        %3947 = vmatmul.mubr.bf16.gmra.mxu0 %v1022
        %v3948 = vpop.f32.mrf.mxu0
        %v3949 = vadd.f32 %v3596, %v3948
        %v3950 = vpop.f32.mrf.mxu0
        %v3951 = vadd.f32 %v3598, %v3950
        %v3952 = vpop.f32.mrf.mxu0
        %v3953 = vadd.f32 %v3600, %v3952
        %v3954 = vpop.f32.mrf.mxu0
        %v3955 = vadd.f32 %v3602, %v3954
        %3956 = vmatprep.mubr.bf16.mxu0 %v1029
        %3957 = vmatmul.mubr.bf16.gmra.mxu0 %v1028
        %v3958 = vpop.f32.mrf.mxu0
        %v3959 = vadd.f32 %v3606, %v3958
        %v3960 = vpop.f32.mrf.mxu0
        %v3961 = vadd.f32 %v3608, %v3960
        %v3962 = vpop.f32.mrf.mxu0
        %v3963 = vadd.f32 %v3610, %v3962
        %v3964 = vpop.f32.mrf.mxu0
        %v3965 = vadd.f32 %v3612, %v3964
        %3966 = vmatprep.mubr.bf16.mxu0 %v1035
        %3967 = vmatmul.mubr.bf16.gmra.mxu0 %v1034
        %v3968 = vpop.f32.mrf.mxu0
        %v3969 = vadd.f32 %v3616, %v3968
        %v3970 = vpop.f32.mrf.mxu0
        %v3971 = vadd.f32 %v3618, %v3970
        %v3972 = vpop.f32.mrf.mxu0
        %v3973 = vadd.f32 %v3620, %v3972
        %v3974 = vpop.f32.mrf.mxu0
        %v3975 = vadd.f32 %v3622, %v3974
        %3976 = vdwg.mxu0
        %3977 = vmatprep.subr.bf16.mxu0 %v1987
        %3978 = vmatpush1.bf16.msra.mxu0 %v1986
        %3979 = vmatprep.subr.bf16.mxu0 %v1983
        %3980 = vmatpush1.bf16.msra.mxu0 %v1982
        %3981 = vmatprep.subr.bf16.mxu0 %v1979
        %3982 = vmatpush1.bf16.msra.mxu0 %v1978
        %3983 = vmatprep.subr.bf16.mxu0 %v1975
        %3984 = vmatpush1.bf16.msra.mxu0 %v1974
        %3985 = vmatprep.subr.bf16.mxu0 %v1971
        %3986 = vmatpush1.bf16.msra.mxu0 %v1970
        %3987 = vmatprep.subr.bf16.mxu0 %v1967
        %3988 = vmatpush1.bf16.msra.mxu0 %v1966
        %3989 = vmatprep.subr.bf16.mxu0 %v1963
        %3990 = vmatpush1.bf16.msra.mxu0 %v1962
        %3991 = vmatprep.subr.bf16.mxu0 %v1959
        %3992 = vmatpush1.bf16.msra.mxu0 %v1958
        %3993 = vmatprep.subr.bf16.mxu0 %v2019
        %3994 = vmatpush2.bf16.msra.mxu0 %v2018
        %3995 = vmatprep.subr.bf16.mxu0 %v2015
        %3996 = vmatpush2.bf16.msra.mxu0 %v2014
        %3997 = vmatprep.subr.bf16.mxu0 %v2011
        %3998 = vmatpush2.bf16.msra.mxu0 %v2010
        %3999 = vmatprep.subr.bf16.mxu0 %v2007
        %4000 = vmatpush2.bf16.msra.mxu0 %v2006
        %4001 = vmatprep.subr.bf16.mxu0 %v2003
        %4002 = vmatpush2.bf16.msra.mxu0 %v2002
        %4003 = vmatprep.subr.bf16.mxu0 %v1999
        %4004 = vmatpush2.bf16.msra.mxu0 %v1998
        %4005 = vmatprep.subr.bf16.mxu0 %v1995
        %4006 = vmatpush2.bf16.msra.mxu0 %v1994
        %4007 = vmatprep.subr.bf16.mxu0 %v1991
        %4008 = vmatpush2.bf16.msra.mxu0 %v1990
        %4009 = vmatprep.mubr.bf16.mxu0 %v851
        %4010 = vmatmul.mubr.bf16.gmra.mxu0 %v850
        %v4011 = vpop.f32.mrf.mxu0
        %v4012 = vadd.f32 %v3659, %v4011
        %v4013 = vpop.f32.mrf.mxu0
        %v4014 = vadd.f32 %v3661, %v4013
        %v4015 = vpop.f32.mrf.mxu0
        %v4016 = vadd.f32 %v3663, %v4015
        %v4017 = vpop.f32.mrf.mxu0
        %v4018 = vadd.f32 %v3665, %v4017
        %4019 = vmatprep.mubr.bf16.mxu0 %v857
        %4020 = vmatmul.mubr.bf16.gmra.mxu0 %v856
        %v4021 = vpop.f32.mrf.mxu0
        %v4022 = vadd.f32 %v3669, %v4021
        %v4023 = vpop.f32.mrf.mxu0
        %v4024 = vadd.f32 %v3671, %v4023
        %v4025 = vpop.f32.mrf.mxu0
        %v4026 = vadd.f32 %v3673, %v4025
        %v4027 = vpop.f32.mrf.mxu0
        %v4028 = vadd.f32 %v3675, %v4027
        %4029 = vmatprep.mubr.bf16.mxu0 %v863
        %4030 = vmatmul.mubr.bf16.gmra.mxu0 %v862
        %v4031 = vpop.f32.mrf.mxu0
        %v4032 = vadd.f32 %v3679, %v4031
        %v4033 = vpop.f32.mrf.mxu0
        %v4034 = vadd.f32 %v3681, %v4033
        %v4035 = vpop.f32.mrf.mxu0
        %v4036 = vadd.f32 %v3683, %v4035
        %v4037 = vpop.f32.mrf.mxu0
        %v4038 = vadd.f32 %v3685, %v4037
        %4039 = vmatprep.mubr.bf16.mxu0 %v869
        %4040 = vmatmul.mubr.bf16.gmra.mxu0 %v868
        %v4041 = vpop.f32.mrf.mxu0
        %v4042 = vadd.f32 %v3689, %v4041
        %v4043 = vpop.f32.mrf.mxu0
        %v4044 = vadd.f32 %v3691, %v4043
        %v4045 = vpop.f32.mrf.mxu0
        %v4046 = vadd.f32 %v3693, %v4045
        %v4047 = vpop.f32.mrf.mxu0
        %v4048 = vadd.f32 %v3695, %v4047
        %4049 = vmatprep.mubr.bf16.mxu0 %v875
        %4050 = vmatmul.mubr.bf16.gmra.mxu0 %v874
        %v4051 = vpop.f32.mrf.mxu0
        %v4052 = vadd.f32 %v3699, %v4051
        %v4053 = vpop.f32.mrf.mxu0
        %v4054 = vadd.f32 %v3701, %v4053
        %v4055 = vpop.f32.mrf.mxu0
        %v4056 = vadd.f32 %v3703, %v4055
        %v4057 = vpop.f32.mrf.mxu0
        %v4058 = vadd.f32 %v3705, %v4057
        %4059 = vmatprep.mubr.bf16.mxu0 %v881
        %4060 = vmatmul.mubr.bf16.gmra.mxu0 %v880
        %v4061 = vpop.f32.mrf.mxu0
        %v4062 = vadd.f32 %v3709, %v4061
        %v4063 = vpop.f32.mrf.mxu0
        %v4064 = vadd.f32 %v3711, %v4063
        %v4065 = vpop.f32.mrf.mxu0
        %v4066 = vadd.f32 %v3713, %v4065
        %v4067 = vpop.f32.mrf.mxu0
        %v4068 = vadd.f32 %v3715, %v4067
        %4069 = vmatprep.mubr.bf16.mxu0 %v887
        %4070 = vmatmul.mubr.bf16.gmra.mxu0 %v886
        %v4071 = vpop.f32.mrf.mxu0
        %v4072 = vadd.f32 %v3719, %v4071
        %v4073 = vpop.f32.mrf.mxu0
        %v4074 = vadd.f32 %v3721, %v4073
        %v4075 = vpop.f32.mrf.mxu0
        %v4076 = vadd.f32 %v3723, %v4075
        %v4077 = vpop.f32.mrf.mxu0
        %v4078 = vadd.f32 %v3725, %v4077
        %4079 = vmatprep.mubr.bf16.mxu0 %v893
        %4080 = vmatmul.mubr.bf16.gmra.mxu0 %v892
        %v4081 = vpop.f32.mrf.mxu0
        %v4082 = vadd.f32 %v3729, %v4081
        %v4083 = vpop.f32.mrf.mxu0
        %v4084 = vadd.f32 %v3731, %v4083
        %v4085 = vpop.f32.mrf.mxu0
        %v4086 = vadd.f32 %v3733, %v4085
        %v4087 = vpop.f32.mrf.mxu0
        %v4088 = vadd.f32 %v3735, %v4087
        %4089 = vmatprep.mubr.bf16.mxu0 %v899
        %4090 = vmatmul.mubr.bf16.gmra.mxu0 %v898
        %v4091 = vpop.f32.mrf.mxu0
        %v4092 = vadd.f32 %v3739, %v4091
        %v4093 = vpop.f32.mrf.mxu0
        %v4094 = vadd.f32 %v3741, %v4093
        %v4095 = vpop.f32.mrf.mxu0
        %v4096 = vadd.f32 %v3743, %v4095
        %v4097 = vpop.f32.mrf.mxu0
        %v4098 = vadd.f32 %v3745, %v4097
        %4099 = vmatprep.mubr.bf16.mxu0 %v905
        %4100 = vmatmul.mubr.bf16.gmra.mxu0 %v904
        %v4101 = vpop.f32.mrf.mxu0
        %v4102 = vadd.f32 %v3749, %v4101
        %v4103 = vpop.f32.mrf.mxu0
        %v4104 = vadd.f32 %v3751, %v4103
        %v4105 = vpop.f32.mrf.mxu0
        %v4106 = vadd.f32 %v3753, %v4105
        %v4107 = vpop.f32.mrf.mxu0
        %v4108 = vadd.f32 %v3755, %v4107
        %4109 = vmatprep.mubr.bf16.mxu0 %v911
        %4110 = vmatmul.mubr.bf16.gmra.mxu0 %v910
        %v4111 = vpop.f32.mrf.mxu0
        %v4112 = vadd.f32 %v3759, %v4111
        %v4113 = vpop.f32.mrf.mxu0
        %v4114 = vadd.f32 %v3761, %v4113
        %v4115 = vpop.f32.mrf.mxu0
        %v4116 = vadd.f32 %v3763, %v4115
        %v4117 = vpop.f32.mrf.mxu0
        %v4118 = vadd.f32 %v3765, %v4117
        %4119 = vmatprep.mubr.bf16.mxu0 %v917
        %4120 = vmatmul.mubr.bf16.gmra.mxu0 %v916
        %v4121 = vpop.f32.mrf.mxu0
        %v4122 = vadd.f32 %v3769, %v4121
        %v4123 = vpop.f32.mrf.mxu0
        %v4124 = vadd.f32 %v3771, %v4123
        %v4125 = vpop.f32.mrf.mxu0
        %v4126 = vadd.f32 %v3773, %v4125
        %v4127 = vpop.f32.mrf.mxu0
        %v4128 = vadd.f32 %v3775, %v4127
        %4129 = vmatprep.mubr.bf16.mxu0 %v923
        %4130 = vmatmul.mubr.bf16.gmra.mxu0 %v922
        %v4131 = vpop.f32.mrf.mxu0
        %v4132 = vadd.f32 %v3779, %v4131
        %v4133 = vpop.f32.mrf.mxu0
        %v4134 = vadd.f32 %v3781, %v4133
        %v4135 = vpop.f32.mrf.mxu0
        %v4136 = vadd.f32 %v3783, %v4135
        %v4137 = vpop.f32.mrf.mxu0
        %v4138 = vadd.f32 %v3785, %v4137
        %4139 = vmatprep.mubr.bf16.mxu0 %v929
        %4140 = vmatmul.mubr.bf16.gmra.mxu0 %v928
        %v4141 = vpop.f32.mrf.mxu0
        %v4142 = vadd.f32 %v3789, %v4141
        %v4143 = vpop.f32.mrf.mxu0
        %v4144 = vadd.f32 %v3791, %v4143
        %v4145 = vpop.f32.mrf.mxu0
        %v4146 = vadd.f32 %v3793, %v4145
        %v4147 = vpop.f32.mrf.mxu0
        %v4148 = vadd.f32 %v3795, %v4147
        %4149 = vmatprep.mubr.bf16.mxu0 %v935
        %4150 = vmatmul.mubr.bf16.gmra.mxu0 %v934
        %v4151 = vpop.f32.mrf.mxu0
        %v4152 = vadd.f32 %v3799, %v4151
        %v4153 = vpop.f32.mrf.mxu0
        %v4154 = vadd.f32 %v3801, %v4153
        %v4155 = vpop.f32.mrf.mxu0
        %v4156 = vadd.f32 %v3803, %v4155
        %v4157 = vpop.f32.mrf.mxu0
        %v4158 = vadd.f32 %v3805, %v4157
        %4159 = vmatprep.mubr.bf16.mxu0 %v941
        %4160 = vmatmul.mubr.bf16.gmra.mxu0 %v940
        %v4161 = vpop.f32.mrf.mxu0
        %v4162 = vadd.f32 %v3809, %v4161
        %v4163 = vpop.f32.mrf.mxu0
        %v4164 = vadd.f32 %v3811, %v4163
        %v4165 = vpop.f32.mrf.mxu0
        %v4166 = vadd.f32 %v3813, %v4165
        %v4167 = vpop.f32.mrf.mxu0
        %v4168 = vadd.f32 %v3815, %v4167
        %4169 = vmatprep.mubr.bf16.mxu0 %v947
        %4170 = vmatmul.mubr.bf16.gmra.mxu0 %v946
        %v4171 = vpop.f32.mrf.mxu0
        %v4172 = vadd.f32 %v3819, %v4171
        %v4173 = vpop.f32.mrf.mxu0
        %v4174 = vadd.f32 %v3821, %v4173
        %v4175 = vpop.f32.mrf.mxu0
        %v4176 = vadd.f32 %v3823, %v4175
        %v4177 = vpop.f32.mrf.mxu0
        %v4178 = vadd.f32 %v3825, %v4177
        %4179 = vmatprep.mubr.bf16.mxu0 %v953
        %4180 = vmatmul.mubr.bf16.gmra.mxu0 %v952
        %v4181 = vpop.f32.mrf.mxu0
        %v4182 = vadd.f32 %v3829, %v4181
        %v4183 = vpop.f32.mrf.mxu0
        %v4184 = vadd.f32 %v3831, %v4183
        %v4185 = vpop.f32.mrf.mxu0
        %v4186 = vadd.f32 %v3833, %v4185
        %v4187 = vpop.f32.mrf.mxu0
        %v4188 = vadd.f32 %v3835, %v4187
        %4189 = vmatprep.mubr.bf16.mxu0 %v959
        %4190 = vmatmul.mubr.bf16.gmra.mxu0 %v958
        %v4191 = vpop.f32.mrf.mxu0
        %v4192 = vadd.f32 %v3839, %v4191
        %v4193 = vpop.f32.mrf.mxu0
        %v4194 = vadd.f32 %v3841, %v4193
        %v4195 = vpop.f32.mrf.mxu0
        %v4196 = vadd.f32 %v3843, %v4195
        %v4197 = vpop.f32.mrf.mxu0
        %v4198 = vadd.f32 %v3845, %v4197
        %4199 = vmatprep.mubr.bf16.mxu0 %v965
        %4200 = vmatmul.mubr.bf16.gmra.mxu0 %v964
        %v4201 = vpop.f32.mrf.mxu0
        %v4202 = vadd.f32 %v3849, %v4201
        %v4203 = vpop.f32.mrf.mxu0
        %v4204 = vadd.f32 %v3851, %v4203
        %v4205 = vpop.f32.mrf.mxu0
        %v4206 = vadd.f32 %v3853, %v4205
        %v4207 = vpop.f32.mrf.mxu0
        %v4208 = vadd.f32 %v3855, %v4207
        %4209 = vmatprep.mubr.bf16.mxu0 %v971
        %4210 = vmatmul.mubr.bf16.gmra.mxu0 %v970
        %v4211 = vpop.f32.mrf.mxu0
        %v4212 = vadd.f32 %v3859, %v4211
        %v4213 = vpop.f32.mrf.mxu0
        %v4214 = vadd.f32 %v3861, %v4213
        %v4215 = vpop.f32.mrf.mxu0
        %v4216 = vadd.f32 %v3863, %v4215
        %v4217 = vpop.f32.mrf.mxu0
        %v4218 = vadd.f32 %v3865, %v4217
        %4219 = vmatprep.mubr.bf16.mxu0 %v977
        %4220 = vmatmul.mubr.bf16.gmra.mxu0 %v976
        %v4221 = vpop.f32.mrf.mxu0
        %v4222 = vadd.f32 %v3869, %v4221
        %v4223 = vpop.f32.mrf.mxu0
        %v4224 = vadd.f32 %v3871, %v4223
        %v4225 = vpop.f32.mrf.mxu0
        %v4226 = vadd.f32 %v3873, %v4225
        %v4227 = vpop.f32.mrf.mxu0
        %v4228 = vadd.f32 %v3875, %v4227
        %4229 = vmatprep.mubr.bf16.mxu0 %v983
        %4230 = vmatmul.mubr.bf16.gmra.mxu0 %v982
        %v4231 = vpop.f32.mrf.mxu0
        %v4232 = vadd.f32 %v3879, %v4231
        %v4233 = vpop.f32.mrf.mxu0
        %v4234 = vadd.f32 %v3881, %v4233
        %v4235 = vpop.f32.mrf.mxu0
        %v4236 = vadd.f32 %v3883, %v4235
        %v4237 = vpop.f32.mrf.mxu0
        %v4238 = vadd.f32 %v3885, %v4237
        %4239 = vmatprep.mubr.bf16.mxu0 %v989
        %4240 = vmatmul.mubr.bf16.gmra.mxu0 %v988
        %v4241 = vpop.f32.mrf.mxu0
        %v4242 = vadd.f32 %v3889, %v4241
        %v4243 = vpop.f32.mrf.mxu0
        %v4244 = vadd.f32 %v3891, %v4243
        %v4245 = vpop.f32.mrf.mxu0
        %v4246 = vadd.f32 %v3893, %v4245
        %v4247 = vpop.f32.mrf.mxu0
        %v4248 = vadd.f32 %v3895, %v4247
        %4249 = vmatprep.mubr.bf16.mxu0 %v995
        %4250 = vmatmul.mubr.bf16.gmra.mxu0 %v994
        %v4251 = vpop.f32.mrf.mxu0
        %v4252 = vadd.f32 %v3899, %v4251
        %v4253 = vpop.f32.mrf.mxu0
        %v4254 = vadd.f32 %v3901, %v4253
        %v4255 = vpop.f32.mrf.mxu0
        %v4256 = vadd.f32 %v3903, %v4255
        %v4257 = vpop.f32.mrf.mxu0
        %v4258 = vadd.f32 %v3905, %v4257
        %4259 = vmatprep.mubr.bf16.mxu0 %v1001
        %4260 = vmatmul.mubr.bf16.gmra.mxu0 %v1000
        %v4261 = vpop.f32.mrf.mxu0
        %v4262 = vadd.f32 %v3909, %v4261
        %v4263 = vpop.f32.mrf.mxu0
        %v4264 = vadd.f32 %v3911, %v4263
        %v4265 = vpop.f32.mrf.mxu0
        %v4266 = vadd.f32 %v3913, %v4265
        %v4267 = vpop.f32.mrf.mxu0
        %v4268 = vadd.f32 %v3915, %v4267
        %4269 = vmatprep.mubr.bf16.mxu0 %v1007
        %4270 = vmatmul.mubr.bf16.gmra.mxu0 %v1006
        %v4271 = vpop.f32.mrf.mxu0
        %v4272 = vadd.f32 %v3919, %v4271
        %v4273 = vpop.f32.mrf.mxu0
        %v4274 = vadd.f32 %v3921, %v4273
        %v4275 = vpop.f32.mrf.mxu0
        %v4276 = vadd.f32 %v3923, %v4275
        %v4277 = vpop.f32.mrf.mxu0
        %v4278 = vadd.f32 %v3925, %v4277
        %4279 = vmatprep.mubr.bf16.mxu0 %v1013
        %4280 = vmatmul.mubr.bf16.gmra.mxu0 %v1012
        %v4281 = vpop.f32.mrf.mxu0
        %v4282 = vadd.f32 %v3929, %v4281
        %v4283 = vpop.f32.mrf.mxu0
        %v4284 = vadd.f32 %v3931, %v4283
        %v4285 = vpop.f32.mrf.mxu0
        %v4286 = vadd.f32 %v3933, %v4285
        %v4287 = vpop.f32.mrf.mxu0
        %v4288 = vadd.f32 %v3935, %v4287
        %4289 = vmatprep.mubr.bf16.mxu0 %v1019
        %4290 = vmatmul.mubr.bf16.gmra.mxu0 %v1018
        %v4291 = vpop.f32.mrf.mxu0
        %v4292 = vadd.f32 %v3939, %v4291
        %v4293 = vpop.f32.mrf.mxu0
        %v4294 = vadd.f32 %v3941, %v4293
        %v4295 = vpop.f32.mrf.mxu0
        %v4296 = vadd.f32 %v3943, %v4295
        %v4297 = vpop.f32.mrf.mxu0
        %v4298 = vadd.f32 %v3945, %v4297
        %4299 = vmatprep.mubr.bf16.mxu0 %v1025
        %4300 = vmatmul.mubr.bf16.gmra.mxu0 %v1024
        %v4301 = vpop.f32.mrf.mxu0
        %v4302 = vadd.f32 %v3949, %v4301
        %v4303 = vpop.f32.mrf.mxu0
        %v4304 = vadd.f32 %v3951, %v4303
        %v4305 = vpop.f32.mrf.mxu0
        %v4306 = vadd.f32 %v3953, %v4305
        %v4307 = vpop.f32.mrf.mxu0
        %v4308 = vadd.f32 %v3955, %v4307
        %4309 = vmatprep.mubr.bf16.mxu0 %v1031
        %4310 = vmatmul.mubr.bf16.gmra.mxu0 %v1030
        %v4311 = vpop.f32.mrf.mxu0
        %v4312 = vadd.f32 %v3959, %v4311
        %v4313 = vpop.f32.mrf.mxu0
        %v4314 = vadd.f32 %v3961, %v4313
        %v4315 = vpop.f32.mrf.mxu0
        %v4316 = vadd.f32 %v3963, %v4315
        %v4317 = vpop.f32.mrf.mxu0
        %v4318 = vadd.f32 %v3965, %v4317
        %4319 = vmatprep.mubr.bf16.mxu0 %v1037
        %4320 = vmatmul.mubr.bf16.gmra.mxu0 %v1036
        %v4321 = vpop.f32.mrf.mxu0
        %v4322 = vadd.f32 %v3969, %v4321
        %v4323 = vpop.f32.mrf.mxu0
        %v4324 = vadd.f32 %v3971, %v4323
        %v4325 = vpop.f32.mrf.mxu0
        %v4326 = vadd.f32 %v3973, %v4325
        %v4327 = vpop.f32.mrf.mxu0
        %v4328 = vadd.f32 %v3975, %v4327
        %4329 = vdwg.mxu0
        %v4330 = vmax.f32 %v2953, 0.0
        %v4331 = vmax.f32 %v2955, 0.0
        %v4332 = vmax.f32 %v4012, 0.0
        %v4333 = vmax.f32 %v4014, 0.0
        %v4334 = vmax.f32 %v2957, 0.0
        %v4335 = vmax.f32 %v2959, 0.0
        %v4336 = vmax.f32 %v4016, 0.0
        %v4337 = vmax.f32 %v4018, 0.0
        %v4338 = vmax.f32 %v2963, 0.0
        %v4339 = vmax.f32 %v2965, 0.0
        %v4340 = vmax.f32 %v4022, 0.0
        %v4341 = vmax.f32 %v4024, 0.0
        %v4342 = vmax.f32 %v2967, 0.0
        %v4343 = vmax.f32 %v2969, 0.0
        %v4344 = vmax.f32 %v4026, 0.0
        %v4345 = vmax.f32 %v4028, 0.0
        %v4346 = vmax.f32 %v2973, 0.0
        %v4347 = vmax.f32 %v2975, 0.0
        %v4348 = vmax.f32 %v4032, 0.0
        %v4349 = vmax.f32 %v4034, 0.0
        %v4350 = vmax.f32 %v2977, 0.0
        %v4351 = vmax.f32 %v2979, 0.0
        %v4352 = vmax.f32 %v4036, 0.0
        %v4353 = vmax.f32 %v4038, 0.0
        %v4354 = vmax.f32 %v2983, 0.0
        %v4355 = vmax.f32 %v2985, 0.0
        %v4356 = vmax.f32 %v4042, 0.0
        %v4357 = vmax.f32 %v4044, 0.0
        %v4358 = vmax.f32 %v2987, 0.0
        %v4359 = vmax.f32 %v2989, 0.0
        %v4360 = vmax.f32 %v4046, 0.0
        %v4361 = vmax.f32 %v4048, 0.0
        %v4362 = vmax.f32 %v2993, 0.0
        %v4363 = vmax.f32 %v2995, 0.0
        %v4364 = vmax.f32 %v4052, 0.0
        %v4365 = vmax.f32 %v4054, 0.0
        %v4366 = vmax.f32 %v2997, 0.0
        %v4367 = vmax.f32 %v2999, 0.0
        %v4368 = vmax.f32 %v4056, 0.0
        %v4369 = vmax.f32 %v4058, 0.0
        %v4370 = vmax.f32 %v3003, 0.0
        %v4371 = vmax.f32 %v3005, 0.0
        %v4372 = vmax.f32 %v4062, 0.0
        %v4373 = vmax.f32 %v4064, 0.0
        %v4374 = vmax.f32 %v3007, 0.0
        %v4375 = vmax.f32 %v3009, 0.0
        %v4376 = vmax.f32 %v4066, 0.0
        %v4377 = vmax.f32 %v4068, 0.0
        %v4378 = vmax.f32 %v3013, 0.0
        %v4379 = vmax.f32 %v3015, 0.0
        %v4380 = vmax.f32 %v4072, 0.0
        %v4381 = vmax.f32 %v4074, 0.0
        %v4382 = vmax.f32 %v3017, 0.0
        %v4383 = vmax.f32 %v3019, 0.0
        %v4384 = vmax.f32 %v4076, 0.0
        %v4385 = vmax.f32 %v4078, 0.0
        %v4386 = vmax.f32 %v3023, 0.0
        %v4387 = vmax.f32 %v3025, 0.0
        %v4388 = vmax.f32 %v4082, 0.0
        %v4389 = vmax.f32 %v4084, 0.0
        %v4390 = vmax.f32 %v3027, 0.0
        %v4391 = vmax.f32 %v3029, 0.0
        %v4392 = vmax.f32 %v4086, 0.0
        %v4393 = vmax.f32 %v4088, 0.0
        %v4394 = vmax.f32 %v3033, 0.0
        %v4395 = vmax.f32 %v3035, 0.0
        %v4396 = vmax.f32 %v4092, 0.0
        %v4397 = vmax.f32 %v4094, 0.0
        %v4398 = vmax.f32 %v3037, 0.0
        %v4399 = vmax.f32 %v3039, 0.0
        %v4400 = vmax.f32 %v4096, 0.0
        %v4401 = vmax.f32 %v4098, 0.0
        %v4402 = vmax.f32 %v3043, 0.0
        %v4403 = vmax.f32 %v3045, 0.0
        %v4404 = vmax.f32 %v4102, 0.0
        %v4405 = vmax.f32 %v4104, 0.0
        %v4406 = vmax.f32 %v3047, 0.0
        %v4407 = vmax.f32 %v3049, 0.0
        %v4408 = vmax.f32 %v4106, 0.0
        %v4409 = vmax.f32 %v4108, 0.0
        %v4410 = vmax.f32 %v3053, 0.0
        %v4411 = vmax.f32 %v3055, 0.0
        %v4412 = vmax.f32 %v4112, 0.0
        %v4413 = vmax.f32 %v4114, 0.0
        %v4414 = vmax.f32 %v3057, 0.0
        %v4415 = vmax.f32 %v3059, 0.0
        %v4416 = vmax.f32 %v4116, 0.0
        %v4417 = vmax.f32 %v4118, 0.0
        %v4418 = vmax.f32 %v3063, 0.0
        %v4419 = vmax.f32 %v3065, 0.0
        %v4420 = vmax.f32 %v4122, 0.0
        %v4421 = vmax.f32 %v4124, 0.0
        %v4422 = vmax.f32 %v3067, 0.0
        %v4423 = vmax.f32 %v3069, 0.0
        %v4424 = vmax.f32 %v4126, 0.0
        %v4425 = vmax.f32 %v4128, 0.0
        %v4426 = vmax.f32 %v3073, 0.0
        %v4427 = vmax.f32 %v3075, 0.0
        %v4428 = vmax.f32 %v4132, 0.0
        %v4429 = vmax.f32 %v4134, 0.0
        %v4430 = vmax.f32 %v3077, 0.0
        %v4431 = vmax.f32 %v3079, 0.0
        %v4432 = vmax.f32 %v4136, 0.0
        %v4433 = vmax.f32 %v4138, 0.0
        %v4434 = vmax.f32 %v3083, 0.0
        %v4435 = vmax.f32 %v3085, 0.0
        %v4436 = vmax.f32 %v4142, 0.0
        %v4437 = vmax.f32 %v4144, 0.0
        %v4438 = vmax.f32 %v3087, 0.0
        %v4439 = vmax.f32 %v3089, 0.0
        %v4440 = vmax.f32 %v4146, 0.0
        %v4441 = vmax.f32 %v4148, 0.0
        %v4442 = vmax.f32 %v3093, 0.0
        %v4443 = vmax.f32 %v3095, 0.0
        %v4444 = vmax.f32 %v4152, 0.0
        %v4445 = vmax.f32 %v4154, 0.0
        %v4446 = vmax.f32 %v3097, 0.0
        %v4447 = vmax.f32 %v3099, 0.0
        %v4448 = vmax.f32 %v4156, 0.0
        %v4449 = vmax.f32 %v4158, 0.0
        %v4450 = vmax.f32 %v3103, 0.0
        %v4451 = vmax.f32 %v3105, 0.0
        %v4452 = vmax.f32 %v4162, 0.0
        %v4453 = vmax.f32 %v4164, 0.0
        %v4454 = vmax.f32 %v3107, 0.0
        %v4455 = vmax.f32 %v3109, 0.0
        %v4456 = vmax.f32 %v4166, 0.0
        %v4457 = vmax.f32 %v4168, 0.0
        %v4458 = vmax.f32 %v3113, 0.0
        %v4459 = vmax.f32 %v3115, 0.0
        %v4460 = vmax.f32 %v4172, 0.0
        %v4461 = vmax.f32 %v4174, 0.0
        %v4462 = vmax.f32 %v3117, 0.0
        %v4463 = vmax.f32 %v3119, 0.0
        %v4464 = vmax.f32 %v4176, 0.0
        %v4465 = vmax.f32 %v4178, 0.0
        %v4466 = vmax.f32 %v3123, 0.0
        %v4467 = vmax.f32 %v3125, 0.0
        %v4468 = vmax.f32 %v4182, 0.0
        %v4469 = vmax.f32 %v4184, 0.0
        %v4470 = vmax.f32 %v3127, 0.0
        %v4471 = vmax.f32 %v3129, 0.0
        %v4472 = vmax.f32 %v4186, 0.0
        %v4473 = vmax.f32 %v4188, 0.0
        %v4474 = vmax.f32 %v3133, 0.0
        %v4475 = vmax.f32 %v3135, 0.0
        %v4476 = vmax.f32 %v4192, 0.0
        %v4477 = vmax.f32 %v4194, 0.0
        %v4478 = vmax.f32 %v3137, 0.0
        %v4479 = vmax.f32 %v3139, 0.0
        %v4480 = vmax.f32 %v4196, 0.0
        %v4481 = vmax.f32 %v4198, 0.0
        %v4482 = vmax.f32 %v3143, 0.0
        %v4483 = vmax.f32 %v3145, 0.0
        %v4484 = vmax.f32 %v4202, 0.0
        %v4485 = vmax.f32 %v4204, 0.0
        %v4486 = vmax.f32 %v3147, 0.0
        %v4487 = vmax.f32 %v3149, 0.0
        %v4488 = vmax.f32 %v4206, 0.0
        %v4489 = vmax.f32 %v4208, 0.0
        %v4490 = vmax.f32 %v3153, 0.0
        %v4491 = vmax.f32 %v3155, 0.0
        %v4492 = vmax.f32 %v4212, 0.0
        %v4493 = vmax.f32 %v4214, 0.0
        %v4494 = vmax.f32 %v3157, 0.0
        %v4495 = vmax.f32 %v3159, 0.0
        %v4496 = vmax.f32 %v4216, 0.0
        %v4497 = vmax.f32 %v4218, 0.0
        %v4498 = vmax.f32 %v3163, 0.0
        %v4499 = vmax.f32 %v3165, 0.0
        %v4500 = vmax.f32 %v4222, 0.0
        %v4501 = vmax.f32 %v4224, 0.0
        %v4502 = vmax.f32 %v3167, 0.0
        %v4503 = vmax.f32 %v3169, 0.0
        %v4504 = vmax.f32 %v4226, 0.0
        %v4505 = vmax.f32 %v4228, 0.0
        %v4506 = vmax.f32 %v3173, 0.0
        %v4507 = vmax.f32 %v3175, 0.0
        %v4508 = vmax.f32 %v4232, 0.0
        %v4509 = vmax.f32 %v4234, 0.0
        %v4510 = vmax.f32 %v3177, 0.0
        %v4511 = vmax.f32 %v3179, 0.0
        %v4512 = vmax.f32 %v4236, 0.0
        %v4513 = vmax.f32 %v4238, 0.0
        %v4514 = vmax.f32 %v3183, 0.0
        %v4515 = vmax.f32 %v3185, 0.0
        %v4516 = vmax.f32 %v4242, 0.0
        %v4517 = vmax.f32 %v4244, 0.0
        %v4518 = vmax.f32 %v3187, 0.0
        %v4519 = vmax.f32 %v3189, 0.0
        %v4520 = vmax.f32 %v4246, 0.0
        %v4521 = vmax.f32 %v4248, 0.0
        %v4522 = vmax.f32 %v3193, 0.0
        %v4523 = vmax.f32 %v3195, 0.0
        %v4524 = vmax.f32 %v4252, 0.0
        %v4525 = vmax.f32 %v4254, 0.0
        %v4526 = vmax.f32 %v3197, 0.0
        %v4527 = vmax.f32 %v3199, 0.0
        %v4528 = vmax.f32 %v4256, 0.0
        %v4529 = vmax.f32 %v4258, 0.0
        %v4530 = vmax.f32 %v3203, 0.0
        %v4531 = vmax.f32 %v3205, 0.0
        %v4532 = vmax.f32 %v4262, 0.0
        %v4533 = vmax.f32 %v4264, 0.0
        %v4534 = vmax.f32 %v3207, 0.0
        %v4535 = vmax.f32 %v3209, 0.0
        %v4536 = vmax.f32 %v4266, 0.0
        %v4537 = vmax.f32 %v4268, 0.0
        %v4538 = vmax.f32 %v3213, 0.0
        %v4539 = vmax.f32 %v3215, 0.0
        %v4540 = vmax.f32 %v4272, 0.0
        %v4541 = vmax.f32 %v4274, 0.0
        %v4542 = vmax.f32 %v3217, 0.0
        %v4543 = vmax.f32 %v3219, 0.0
        %v4544 = vmax.f32 %v4276, 0.0
        %v4545 = vmax.f32 %v4278, 0.0
        %v4546 = vmax.f32 %v3223, 0.0
        %v4547 = vmax.f32 %v3225, 0.0
        %v4548 = vmax.f32 %v4282, 0.0
        %v4549 = vmax.f32 %v4284, 0.0
        %v4550 = vmax.f32 %v3227, 0.0
        %v4551 = vmax.f32 %v3229, 0.0
        %v4552 = vmax.f32 %v4286, 0.0
        %v4553 = vmax.f32 %v4288, 0.0
        %v4554 = vmax.f32 %v3233, 0.0
        %v4555 = vmax.f32 %v3235, 0.0
        %v4556 = vmax.f32 %v4292, 0.0
        %v4557 = vmax.f32 %v4294, 0.0
        %v4558 = vmax.f32 %v3237, 0.0
        %v4559 = vmax.f32 %v3239, 0.0
        %v4560 = vmax.f32 %v4296, 0.0
        %v4561 = vmax.f32 %v4298, 0.0
        %v4562 = vmax.f32 %v3243, 0.0
        %v4563 = vmax.f32 %v3245, 0.0
        %v4564 = vmax.f32 %v4302, 0.0
        %v4565 = vmax.f32 %v4304, 0.0
        %v4566 = vmax.f32 %v3247, 0.0
        %v4567 = vmax.f32 %v3249, 0.0
        %v4568 = vmax.f32 %v4306, 0.0
        %v4569 = vmax.f32 %v4308, 0.0
        %v4570 = vmax.f32 %v3253, 0.0
        %v4571 = vmax.f32 %v3255, 0.0
        %v4572 = vmax.f32 %v4312, 0.0
        %v4573 = vmax.f32 %v4314, 0.0
        %v4574 = vmax.f32 %v3257, 0.0
        %v4575 = vmax.f32 %v3259, 0.0
        %v4576 = vmax.f32 %v4316, 0.0
        %v4577 = vmax.f32 %v4318, 0.0
        %v4578 = vmax.f32 %v3263, 0.0
        %v4579 = vmax.f32 %v3265, 0.0
        %v4580 = vmax.f32 %v4322, 0.0
        %v4581 = vmax.f32 %v4324, 0.0
        %v4582 = vmax.f32 %v3267, 0.0
        %v4583 = vmax.f32 %v3269, 0.0
        %v4584 = vmax.f32 %v4326, 0.0
        %v4585 = vmax.f32 %v4328, 0.0
        %v4586 = vpack.c.bf16 %v4334, %v4330
        %v4587 = vpack.c.bf16 %v4335, %v4331
        %v4588 = vpack.c.bf16 %v4336, %v4332
        %v4589 = vpack.c.bf16 %v4337, %v4333
        %v4590 = vpack.c.bf16 %v4342, %v4338
        %v4591 = vpack.c.bf16 %v4343, %v4339
        %v4592 = vpack.c.bf16 %v4344, %v4340
        %v4593 = vpack.c.bf16 %v4345, %v4341
        %v4594 = vpack.c.bf16 %v4350, %v4346
        %v4595 = vpack.c.bf16 %v4351, %v4347
        %v4596 = vpack.c.bf16 %v4352, %v4348
        %v4597 = vpack.c.bf16 %v4353, %v4349
        %v4598 = vpack.c.bf16 %v4358, %v4354
        %v4599 = vpack.c.bf16 %v4359, %v4355
        %v4600 = vpack.c.bf16 %v4360, %v4356
        %v4601 = vpack.c.bf16 %v4361, %v4357
        %v4602 = vpack.c.bf16 %v4366, %v4362
        %v4603 = vpack.c.bf16 %v4367, %v4363
        %v4604 = vpack.c.bf16 %v4368, %v4364
        %v4605 = vpack.c.bf16 %v4369, %v4365
        %v4606 = vpack.c.bf16 %v4374, %v4370
        %v4607 = vpack.c.bf16 %v4375, %v4371
        %v4608 = vpack.c.bf16 %v4376, %v4372
        %v4609 = vpack.c.bf16 %v4377, %v4373
        %v4610 = vpack.c.bf16 %v4382, %v4378
        %v4611 = vpack.c.bf16 %v4383, %v4379
        %v4612 = vpack.c.bf16 %v4384, %v4380
        %v4613 = vpack.c.bf16 %v4385, %v4381
        %v4614 = vpack.c.bf16 %v4390, %v4386
        %v4615 = vpack.c.bf16 %v4391, %v4387
        %v4616 = vpack.c.bf16 %v4392, %v4388
        %v4617 = vpack.c.bf16 %v4393, %v4389
        %v4618 = vpack.c.bf16 %v4398, %v4394
        %v4619 = vpack.c.bf16 %v4399, %v4395
        %v4620 = vpack.c.bf16 %v4400, %v4396
        %v4621 = vpack.c.bf16 %v4401, %v4397
        %v4622 = vpack.c.bf16 %v4406, %v4402
        %v4623 = vpack.c.bf16 %v4407, %v4403
        %v4624 = vpack.c.bf16 %v4408, %v4404
        %v4625 = vpack.c.bf16 %v4409, %v4405
        %v4626 = vpack.c.bf16 %v4414, %v4410
        %v4627 = vpack.c.bf16 %v4415, %v4411
        %v4628 = vpack.c.bf16 %v4416, %v4412
        %v4629 = vpack.c.bf16 %v4417, %v4413
        %v4630 = vpack.c.bf16 %v4422, %v4418
        %v4631 = vpack.c.bf16 %v4423, %v4419
        %v4632 = vpack.c.bf16 %v4424, %v4420
        %v4633 = vpack.c.bf16 %v4425, %v4421
        %v4634 = vpack.c.bf16 %v4430, %v4426
        %v4635 = vpack.c.bf16 %v4431, %v4427
        %v4636 = vpack.c.bf16 %v4432, %v4428
        %v4637 = vpack.c.bf16 %v4433, %v4429
        %v4638 = vpack.c.bf16 %v4438, %v4434
        %v4639 = vpack.c.bf16 %v4439, %v4435
        %v4640 = vpack.c.bf16 %v4440, %v4436
        %v4641 = vpack.c.bf16 %v4441, %v4437
        %v4642 = vpack.c.bf16 %v4446, %v4442
        %v4643 = vpack.c.bf16 %v4447, %v4443
        %v4644 = vpack.c.bf16 %v4448, %v4444
        %v4645 = vpack.c.bf16 %v4449, %v4445
        %v4646 = vpack.c.bf16 %v4454, %v4450
        %v4647 = vpack.c.bf16 %v4455, %v4451
        %v4648 = vpack.c.bf16 %v4456, %v4452
        %v4649 = vpack.c.bf16 %v4457, %v4453
        %v4650 = vpack.c.bf16 %v4462, %v4458
        %v4651 = vpack.c.bf16 %v4463, %v4459
        %v4652 = vpack.c.bf16 %v4464, %v4460
        %v4653 = vpack.c.bf16 %v4465, %v4461
        %v4654 = vpack.c.bf16 %v4470, %v4466
        %v4655 = vpack.c.bf16 %v4471, %v4467
        %v4656 = vpack.c.bf16 %v4472, %v4468
        %v4657 = vpack.c.bf16 %v4473, %v4469
        %v4658 = vpack.c.bf16 %v4478, %v4474
        %v4659 = vpack.c.bf16 %v4479, %v4475
        %v4660 = vpack.c.bf16 %v4480, %v4476
        %v4661 = vpack.c.bf16 %v4481, %v4477
        %v4662 = vpack.c.bf16 %v4486, %v4482
        %v4663 = vpack.c.bf16 %v4487, %v4483
        %v4664 = vpack.c.bf16 %v4488, %v4484
        %v4665 = vpack.c.bf16 %v4489, %v4485
        %v4666 = vpack.c.bf16 %v4494, %v4490
        %v4667 = vpack.c.bf16 %v4495, %v4491
        %v4668 = vpack.c.bf16 %v4496, %v4492
        %v4669 = vpack.c.bf16 %v4497, %v4493
        %v4670 = vpack.c.bf16 %v4502, %v4498
        %v4671 = vpack.c.bf16 %v4503, %v4499
        %v4672 = vpack.c.bf16 %v4504, %v4500
        %v4673 = vpack.c.bf16 %v4505, %v4501
        %v4674 = vpack.c.bf16 %v4510, %v4506
        %v4675 = vpack.c.bf16 %v4511, %v4507
        %v4676 = vpack.c.bf16 %v4512, %v4508
        %v4677 = vpack.c.bf16 %v4513, %v4509
        %v4678 = vpack.c.bf16 %v4518, %v4514
        %v4679 = vpack.c.bf16 %v4519, %v4515
        %v4680 = vpack.c.bf16 %v4520, %v4516
        %v4681 = vpack.c.bf16 %v4521, %v4517
        %v4682 = vpack.c.bf16 %v4526, %v4522
        %v4683 = vpack.c.bf16 %v4527, %v4523
        %v4684 = vpack.c.bf16 %v4528, %v4524
        %v4685 = vpack.c.bf16 %v4529, %v4525
        %v4686 = vpack.c.bf16 %v4534, %v4530
        %v4687 = vpack.c.bf16 %v4535, %v4531
        %v4688 = vpack.c.bf16 %v4536, %v4532
        %v4689 = vpack.c.bf16 %v4537, %v4533
        %v4690 = vpack.c.bf16 %v4542, %v4538
        %v4691 = vpack.c.bf16 %v4543, %v4539
        %v4692 = vpack.c.bf16 %v4544, %v4540
        %v4693 = vpack.c.bf16 %v4545, %v4541
        %v4694 = vpack.c.bf16 %v4550, %v4546
        %v4695 = vpack.c.bf16 %v4551, %v4547
        %v4696 = vpack.c.bf16 %v4552, %v4548
        %v4697 = vpack.c.bf16 %v4553, %v4549
        %v4698 = vpack.c.bf16 %v4558, %v4554
        %v4699 = vpack.c.bf16 %v4559, %v4555
        %v4700 = vpack.c.bf16 %v4560, %v4556
        %v4701 = vpack.c.bf16 %v4561, %v4557
        %v4702 = vpack.c.bf16 %v4566, %v4562
        %v4703 = vpack.c.bf16 %v4567, %v4563
        %v4704 = vpack.c.bf16 %v4568, %v4564
        %v4705 = vpack.c.bf16 %v4569, %v4565
        %v4706 = vpack.c.bf16 %v4574, %v4570
        %v4707 = vpack.c.bf16 %v4575, %v4571
        %v4708 = vpack.c.bf16 %v4576, %v4572
        %v4709 = vpack.c.bf16 %v4577, %v4573
        %v4710 = vpack.c.bf16 %v4582, %v4578
        %v4711 = vpack.c.bf16 %v4583, %v4579
        %v4712 = vpack.c.bf16 %v4584, %v4580
        %v4713 = vpack.c.bf16 %v4585, %v4581
        %v4714 = vld [vmem:[#allocation8] sm:$0xff]
        %v4715 = vld [vmem:[#allocation8 + $0x8] sm:$0xff]
        %v4716 = vld [vmem:[#allocation8 + $0x10] sm:$0xff]
        %v4717 = vld [vmem:[#allocation8 + $0x18] sm:$0xff]
        %v4718 = vld [vmem:[#allocation8 + $0x20] sm:$0xff]
        %v4719 = vld [vmem:[#allocation8 + $0x28] sm:$0xff]
        %v4720 = vld [vmem:[#allocation8 + $0x30] sm:$0xff]
        %v4721 = vld [vmem:[#allocation8 + $0x38] sm:$0xff]
        %v4722 = vld [vmem:[#allocation8 + $0x40] sm:$0xff]
        %v4723 = vld [vmem:[#allocation8 + $0x48] sm:$0xff]
        %v4724 = vld [vmem:[#allocation8 + $0x50] sm:$0xff]
        %v4725 = vld [vmem:[#allocation8 + $0x58] sm:$0xff]
        %v4726 = vld [vmem:[#allocation8 + $0x60] sm:$0xff]
        %v4727 = vld [vmem:[#allocation8 + $0x68] sm:$0xff]
        %v4728 = vld [vmem:[#allocation8 + $0x70] sm:$0xff]
        %v4729 = vld [vmem:[#allocation8 + $0x78] sm:$0xff]
        %v4730 = vld [vmem:[#allocation8 + $0x80] sm:$0xff]
        %v4731 = vld [vmem:[#allocation8 + $0x88] sm:$0xff]
        %v4732 = vld [vmem:[#allocation8 + $0x90] sm:$0xff]
        %v4733 = vld [vmem:[#allocation8 + $0x98] sm:$0xff]
        %v4734 = vld [vmem:[#allocation8 + $0xa0] sm:$0xff]
        %v4735 = vld [vmem:[#allocation8 + $0xa8] sm:$0xff]
        %v4736 = vld [vmem:[#allocation8 + $0xb0] sm:$0xff]
        %v4737 = vld [vmem:[#allocation8 + $0xb8] sm:$0xff]
        %v4738 = vld [vmem:[#allocation8 + $0xc0] sm:$0xff]
        %v4739 = vld [vmem:[#allocation8 + $0xc8] sm:$0xff]
        %v4740 = vld [vmem:[#allocation8 + $0xd0] sm:$0xff]
        %v4741 = vld [vmem:[#allocation8 + $0xd8] sm:$0xff]
        %v4742 = vld [vmem:[#allocation8 + $0xe0] sm:$0xff]
        %v4743 = vld [vmem:[#allocation8 + $0xe8] sm:$0xff]
        %v4744 = vld [vmem:[#allocation8 + $0xf0] sm:$0xff]
        %v4745 = vld [vmem:[#allocation8 + $0xf8] sm:$0xff]
        %v4746 = vld [vmem:[#allocation8 + $0x100] sm:$0xff]
        %v4747 = vld [vmem:[#allocation8 + $0x108] sm:$0xff]
        %v4748 = vld [vmem:[#allocation8 + $0x110] sm:$0xff]
        %v4749 = vld [vmem:[#allocation8 + $0x118] sm:$0xff]
        %v4750 = vld [vmem:[#allocation8 + $0x120] sm:$0xff]
        %v4751 = vld [vmem:[#allocation8 + $0x128] sm:$0xff]
        %v4752 = vld [vmem:[#allocation8 + $0x130] sm:$0xff]
        %v4753 = vld [vmem:[#allocation8 + $0x138] sm:$0xff]
        %v4754 = vld [vmem:[#allocation8 + $0x140] sm:$0xff]
        %v4755 = vld [vmem:[#allocation8 + $0x148] sm:$0xff]
        %v4756 = vld [vmem:[#allocation8 + $0x150] sm:$0xff]
        %v4757 = vld [vmem:[#allocation8 + $0x158] sm:$0xff]
        %v4758 = vld [vmem:[#allocation8 + $0x160] sm:$0xff]
        %v4759 = vld [vmem:[#allocation8 + $0x168] sm:$0xff]
        %v4760 = vld [vmem:[#allocation8 + $0x170] sm:$0xff]
        %v4761 = vld [vmem:[#allocation8 + $0x178] sm:$0xff]
        %v4762 = vld [vmem:[#allocation8 + $0x180] sm:$0xff]
        %v4763 = vld [vmem:[#allocation8 + $0x188] sm:$0xff]
        %v4764 = vld [vmem:[#allocation8 + $0x190] sm:$0xff]
        %v4765 = vld [vmem:[#allocation8 + $0x198] sm:$0xff]
        %v4766 = vld [vmem:[#allocation8 + $0x1a0] sm:$0xff]
        %v4767 = vld [vmem:[#allocation8 + $0x1a8] sm:$0xff]
        %v4768 = vld [vmem:[#allocation8 + $0x1b0] sm:$0xff]
        %v4769 = vld [vmem:[#allocation8 + $0x1b8] sm:$0xff]
        %v4770 = vld [vmem:[#allocation8 + $0x1c0] sm:$0xff]
        %v4771 = vld [vmem:[#allocation8 + $0x1c8] sm:$0xff]
        %v4772 = vld [vmem:[#allocation8 + $0x1d0] sm:$0xff]
        %v4773 = vld [vmem:[#allocation8 + $0x1d8] sm:$0xff]
        %v4774 = vld [vmem:[#allocation8 + $0x1e0] sm:$0xff]
        %v4775 = vld [vmem:[#allocation8 + $0x1e8] sm:$0xff]
        %v4776 = vld [vmem:[#allocation8 + $0x1f0] sm:$0xff]
        %v4777 = vld [vmem:[#allocation8 + $0x1f8] sm:$0xff]
        %v4778 = vld [vmem:[#allocation10] sm:$0x3]
        %v4780 = vlaneseq
        %v4781 = vshrl.u32 %v4780, 7
        %v4782 = vsub.s32 0, %v4781
        %v4783 = vrot.slane %v4778, %v4782
        %v4784 = vlaneseq
        %v4785 = vshrl.u32 %v4784, 7
        %v4786 = vsub.s32 1, %v4785
        %v4787 = vrot.slane %v4778, %v4786
        %v4854 = vunpack.c.l.b16 %v4714
        %v4855 = vunpack.c.h.b16 %v4714
        %v4856 = vunpack.c.l.b16 %v4715
        %v4857 = vunpack.c.h.b16 %v4715
        %v4858 = vunpack.c.l.b16 %v4716
        %v4859 = vunpack.c.h.b16 %v4716
        %v4860 = vunpack.c.l.b16 %v4717
        %v4861 = vunpack.c.h.b16 %v4717
        %v4862 = vunpack.c.l.b16 %v4718
        %v4863 = vunpack.c.h.b16 %v4718
        %v4864 = vunpack.c.l.b16 %v4719
        %v4865 = vunpack.c.h.b16 %v4719
        %v4866 = vunpack.c.l.b16 %v4720
        %v4867 = vunpack.c.h.b16 %v4720
        %v4868 = vunpack.c.l.b16 %v4721
        %v4869 = vunpack.c.h.b16 %v4721
        %v4870 = vunpack.c.l.b16 %v4722
        %v4871 = vunpack.c.h.b16 %v4722
        %v4872 = vunpack.c.l.b16 %v4723
        %v4873 = vunpack.c.h.b16 %v4723
        %v4874 = vunpack.c.l.b16 %v4724
        %v4875 = vunpack.c.h.b16 %v4724
        %v4876 = vunpack.c.l.b16 %v4725
        %v4877 = vunpack.c.h.b16 %v4725
        %v4878 = vunpack.c.l.b16 %v4726
        %v4879 = vunpack.c.h.b16 %v4726
        %v4880 = vunpack.c.l.b16 %v4727
        %v4881 = vunpack.c.h.b16 %v4727
        %v4882 = vunpack.c.l.b16 %v4728
        %v4883 = vunpack.c.h.b16 %v4728
        %v4884 = vunpack.c.l.b16 %v4729
        %v4885 = vunpack.c.h.b16 %v4729
        %v4886 = vunpack.c.l.b16 %v4730
        %v4887 = vunpack.c.h.b16 %v4730
        %v4888 = vunpack.c.l.b16 %v4731
        %v4889 = vunpack.c.h.b16 %v4731
        %v4890 = vunpack.c.l.b16 %v4732
        %v4891 = vunpack.c.h.b16 %v4732
        %v4892 = vunpack.c.l.b16 %v4733
        %v4893 = vunpack.c.h.b16 %v4733
        %v4894 = vunpack.c.l.b16 %v4734
        %v4895 = vunpack.c.h.b16 %v4734
        %v4896 = vunpack.c.l.b16 %v4735
        %v4897 = vunpack.c.h.b16 %v4735
        %v4898 = vunpack.c.l.b16 %v4736
        %v4899 = vunpack.c.h.b16 %v4736
        %v4900 = vunpack.c.l.b16 %v4737
        %v4901 = vunpack.c.h.b16 %v4737
        %v4902 = vunpack.c.l.b16 %v4738
        %v4903 = vunpack.c.h.b16 %v4738
        %v4904 = vunpack.c.l.b16 %v4739
        %v4905 = vunpack.c.h.b16 %v4739
        %v4906 = vunpack.c.l.b16 %v4740
        %v4907 = vunpack.c.h.b16 %v4740
        %v4908 = vunpack.c.l.b16 %v4741
        %v4909 = vunpack.c.h.b16 %v4741
        %v4910 = vunpack.c.l.b16 %v4742
        %v4911 = vunpack.c.h.b16 %v4742
        %v4912 = vunpack.c.l.b16 %v4743
        %v4913 = vunpack.c.h.b16 %v4743
        %v4914 = vunpack.c.l.b16 %v4744
        %v4915 = vunpack.c.h.b16 %v4744
        %v4916 = vunpack.c.l.b16 %v4745
        %v4917 = vunpack.c.h.b16 %v4745
        %v4918 = vunpack.c.l.b16 %v4746
        %v4919 = vunpack.c.h.b16 %v4746
        %v4920 = vunpack.c.l.b16 %v4747
        %v4921 = vunpack.c.h.b16 %v4747
        %v4922 = vunpack.c.l.b16 %v4748
        %v4923 = vunpack.c.h.b16 %v4748
        %v4924 = vunpack.c.l.b16 %v4749
        %v4925 = vunpack.c.h.b16 %v4749
        %v4926 = vunpack.c.l.b16 %v4750
        %v4927 = vunpack.c.h.b16 %v4750
        %v4928 = vunpack.c.l.b16 %v4751
        %v4929 = vunpack.c.h.b16 %v4751
        %v4930 = vunpack.c.l.b16 %v4752
        %v4931 = vunpack.c.h.b16 %v4752
        %v4932 = vunpack.c.l.b16 %v4753
        %v4933 = vunpack.c.h.b16 %v4753
        %v4934 = vunpack.c.l.b16 %v4754
        %v4935 = vunpack.c.h.b16 %v4754
        %v4936 = vunpack.c.l.b16 %v4755
        %v4937 = vunpack.c.h.b16 %v4755
        %v4938 = vunpack.c.l.b16 %v4756
        %v4939 = vunpack.c.h.b16 %v4756
        %v4940 = vunpack.c.l.b16 %v4757
        %v4941 = vunpack.c.h.b16 %v4757
        %v4942 = vunpack.c.l.b16 %v4758
        %v4943 = vunpack.c.h.b16 %v4758
        %v4944 = vunpack.c.l.b16 %v4759
        %v4945 = vunpack.c.h.b16 %v4759
        %v4946 = vunpack.c.l.b16 %v4760
        %v4947 = vunpack.c.h.b16 %v4760
        %v4948 = vunpack.c.l.b16 %v4761
        %v4949 = vunpack.c.h.b16 %v4761
        %v4950 = vunpack.c.l.b16 %v4762
        %v4951 = vunpack.c.h.b16 %v4762
        %v4952 = vunpack.c.l.b16 %v4763
        %v4953 = vunpack.c.h.b16 %v4763
        %v4954 = vunpack.c.l.b16 %v4764
        %v4955 = vunpack.c.h.b16 %v4764
        %v4956 = vunpack.c.l.b16 %v4765
        %v4957 = vunpack.c.h.b16 %v4765
        %v4958 = vunpack.c.l.b16 %v4766
        %v4959 = vunpack.c.h.b16 %v4766
        %v4960 = vunpack.c.l.b16 %v4767
        %v4961 = vunpack.c.h.b16 %v4767
        %v4962 = vunpack.c.l.b16 %v4768
        %v4963 = vunpack.c.h.b16 %v4768
        %v4964 = vunpack.c.l.b16 %v4769
        %v4965 = vunpack.c.h.b16 %v4769
        %v4966 = vunpack.c.l.b16 %v4770
        %v4967 = vunpack.c.h.b16 %v4770
        %v4968 = vunpack.c.l.b16 %v4771
        %v4969 = vunpack.c.h.b16 %v4771
        %v4970 = vunpack.c.l.b16 %v4772
        %v4971 = vunpack.c.h.b16 %v4772
        %v4972 = vunpack.c.l.b16 %v4773
        %v4973 = vunpack.c.h.b16 %v4773
        %v4974 = vunpack.c.l.b16 %v4774
        %v4975 = vunpack.c.h.b16 %v4774
        %v4976 = vunpack.c.l.b16 %v4775
        %v4977 = vunpack.c.h.b16 %v4775
        %v4978 = vunpack.c.l.b16 %v4776
        %v4979 = vunpack.c.h.b16 %v4776
        %v4980 = vunpack.c.l.b16 %v4777
        %v4981 = vunpack.c.h.b16 %v4777
        %v4982 = vpack.c.b16 %v4856, %v4854
        %v4983 = vpack.c.b16 %v4857, %v4855
        %v4984 = vpack.c.b16 %v4860, %v4858
        %v4985 = vpack.c.b16 %v4861, %v4859
        %v4986 = vpack.c.b16 %v4864, %v4862
        %v4987 = vpack.c.b16 %v4865, %v4863
        %v4988 = vpack.c.b16 %v4868, %v4866
        %v4989 = vpack.c.b16 %v4869, %v4867
        %v4990 = vpack.c.b16 %v4872, %v4870
        %v4991 = vpack.c.b16 %v4873, %v4871
        %v4992 = vpack.c.b16 %v4876, %v4874
        %v4993 = vpack.c.b16 %v4877, %v4875
        %v4994 = vpack.c.b16 %v4880, %v4878
        %v4995 = vpack.c.b16 %v4881, %v4879
        %v4996 = vpack.c.b16 %v4884, %v4882
        %v4997 = vpack.c.b16 %v4885, %v4883
        %v4998 = vpack.c.b16 %v4888, %v4886
        %v4999 = vpack.c.b16 %v4889, %v4887
        %v5000 = vpack.c.b16 %v4892, %v4890
        %v5001 = vpack.c.b16 %v4893, %v4891
        %v5002 = vpack.c.b16 %v4896, %v4894
        %v5003 = vpack.c.b16 %v4897, %v4895
        %v5004 = vpack.c.b16 %v4900, %v4898
        %v5005 = vpack.c.b16 %v4901, %v4899
        %v5006 = vpack.c.b16 %v4904, %v4902
        %v5007 = vpack.c.b16 %v4905, %v4903
        %v5008 = vpack.c.b16 %v4908, %v4906
        %v5009 = vpack.c.b16 %v4909, %v4907
        %v5010 = vpack.c.b16 %v4912, %v4910
        %v5011 = vpack.c.b16 %v4913, %v4911
        %v5012 = vpack.c.b16 %v4916, %v4914
        %v5013 = vpack.c.b16 %v4917, %v4915
        %v5014 = vpack.c.b16 %v4920, %v4918
        %v5015 = vpack.c.b16 %v4921, %v4919
        %v5016 = vpack.c.b16 %v4924, %v4922
        %v5017 = vpack.c.b16 %v4925, %v4923
        %v5018 = vpack.c.b16 %v4928, %v4926
        %v5019 = vpack.c.b16 %v4929, %v4927
        %v5020 = vpack.c.b16 %v4932, %v4930
        %v5021 = vpack.c.b16 %v4933, %v4931
        %v5022 = vpack.c.b16 %v4936, %v4934
        %v5023 = vpack.c.b16 %v4937, %v4935
        %v5024 = vpack.c.b16 %v4940, %v4938
        %v5025 = vpack.c.b16 %v4941, %v4939
        %v5026 = vpack.c.b16 %v4944, %v4942
        %v5027 = vpack.c.b16 %v4945, %v4943
        %v5028 = vpack.c.b16 %v4948, %v4946
        %v5029 = vpack.c.b16 %v4949, %v4947
        %v5030 = vpack.c.b16 %v4952, %v4950
        %v5031 = vpack.c.b16 %v4953, %v4951
        %v5032 = vpack.c.b16 %v4956, %v4954
        %v5033 = vpack.c.b16 %v4957, %v4955
        %v5034 = vpack.c.b16 %v4960, %v4958
        %v5035 = vpack.c.b16 %v4961, %v4959
        %v5036 = vpack.c.b16 %v4964, %v4962
        %v5037 = vpack.c.b16 %v4965, %v4963
        %v5038 = vpack.c.b16 %v4968, %v4966
        %v5039 = vpack.c.b16 %v4969, %v4967
        %v5040 = vpack.c.b16 %v4972, %v4970
        %v5041 = vpack.c.b16 %v4973, %v4971
        %v5042 = vpack.c.b16 %v4976, %v4974
        %v5043 = vpack.c.b16 %v4977, %v4975
        %v5044 = vpack.c.b16 %v4980, %v4978
        %v5045 = vpack.c.b16 %v4981, %v4979
        %5110 = vmatprep.subr.bf16.mxu0 %v4997
        %5111 = vmatpush1.bf16.msra.mxu0 %v4996
        %5112 = vmatprep.subr.bf16.mxu0 %v4995
        %5113 = vmatpush1.bf16.msra.mxu0 %v4994
        %5114 = vmatprep.subr.bf16.mxu0 %v4993
        %5115 = vmatpush1.bf16.msra.mxu0 %v4992
        %5116 = vmatprep.subr.bf16.mxu0 %v4991
        %5117 = vmatpush1.bf16.msra.mxu0 %v4990
        %5118 = vmatprep.subr.bf16.mxu0 %v4989
        %5119 = vmatpush1.bf16.msra.mxu0 %v4988
        %5120 = vmatprep.subr.bf16.mxu0 %v4987
        %5121 = vmatpush1.bf16.msra.mxu0 %v4986
        %5122 = vmatprep.subr.bf16.mxu0 %v4985
        %5123 = vmatpush1.bf16.msra.mxu0 %v4984
        %5124 = vmatprep.subr.bf16.mxu0 %v4983
        %5125 = vmatpush1.bf16.msra.mxu0 %v4982
        %5126 = vmatprep.subr.bf16.mxu0 %v5013
        %5127 = vmatpush2.bf16.msra.mxu0 %v5012
        %5128 = vmatprep.subr.bf16.mxu0 %v5011
        %5129 = vmatpush2.bf16.msra.mxu0 %v5010
        %5130 = vmatprep.subr.bf16.mxu0 %v5009
        %5131 = vmatpush2.bf16.msra.mxu0 %v5008
        %5132 = vmatprep.subr.bf16.mxu0 %v5007
        %5133 = vmatpush2.bf16.msra.mxu0 %v5006
        %5134 = vmatprep.subr.bf16.mxu0 %v5005
        %5135 = vmatpush2.bf16.msra.mxu0 %v5004
        %5136 = vmatprep.subr.bf16.mxu0 %v5003
        %5137 = vmatpush2.bf16.msra.mxu0 %v5002
        %5138 = vmatprep.subr.bf16.mxu0 %v5001
        %5139 = vmatpush2.bf16.msra.mxu0 %v5000
        %5140 = vmatprep.subr.bf16.mxu0 %v4999
        %5141 = vmatpush2.bf16.msra.mxu0 %v4998
        %5142 = vmatprep.mubr.bf16.mxu0 %v4587
        %5143 = vmatmul.mubr.bf16.gmra.mxu0 %v4586
        %v5144 = vpop.f32.mrf.mxu0
        %v5145 = vadd.f32 %v4783, %v5144
        %v5146 = vpop.f32.mrf.mxu0
        %v5147 = vadd.f32 %v4787, %v5146
        %v5148 = vpop.f32.mrf.mxu0
        %v5149 = vadd.f32 %v4783, %v5148
        %v5150 = vpop.f32.mrf.mxu0
        %v5151 = vadd.f32 %v4787, %v5150
        %5152 = vmatprep.mubr.bf16.mxu0 %v4591
        %5153 = vmatmul.mubr.bf16.gmra.mxu0 %v4590
        %v5154 = vpop.f32.mrf.mxu0
        %v5155 = vadd.f32 %v4783, %v5154
        %v5156 = vpop.f32.mrf.mxu0
        %v5157 = vadd.f32 %v4787, %v5156
        %v5158 = vpop.f32.mrf.mxu0
        %v5159 = vadd.f32 %v4783, %v5158
        %v5160 = vpop.f32.mrf.mxu0
        %v5161 = vadd.f32 %v4787, %v5160
        %5162 = vmatprep.mubr.bf16.mxu0 %v4595
        %5163 = vmatmul.mubr.bf16.gmra.mxu0 %v4594
        %v5164 = vpop.f32.mrf.mxu0
        %v5165 = vadd.f32 %v4783, %v5164
        %v5166 = vpop.f32.mrf.mxu0
        %v5167 = vadd.f32 %v4787, %v5166
        %v5168 = vpop.f32.mrf.mxu0
        %v5169 = vadd.f32 %v4783, %v5168
        %v5170 = vpop.f32.mrf.mxu0
        %v5171 = vadd.f32 %v4787, %v5170
        %5172 = vmatprep.mubr.bf16.mxu0 %v4599
        %5173 = vmatmul.mubr.bf16.gmra.mxu0 %v4598
        %v5174 = vpop.f32.mrf.mxu0
        %v5175 = vadd.f32 %v4783, %v5174
        %v5176 = vpop.f32.mrf.mxu0
        %v5177 = vadd.f32 %v4787, %v5176
        %v5178 = vpop.f32.mrf.mxu0
        %v5179 = vadd.f32 %v4783, %v5178
        %v5180 = vpop.f32.mrf.mxu0
        %v5181 = vadd.f32 %v4787, %v5180
        %5182 = vmatprep.mubr.bf16.mxu0 %v4603
        %5183 = vmatmul.mubr.bf16.gmra.mxu0 %v4602
        %v5184 = vpop.f32.mrf.mxu0
        %v5185 = vadd.f32 %v4783, %v5184
        %v5186 = vpop.f32.mrf.mxu0
        %v5187 = vadd.f32 %v4787, %v5186
        %v5188 = vpop.f32.mrf.mxu0
        %v5189 = vadd.f32 %v4783, %v5188
        %v5190 = vpop.f32.mrf.mxu0
        %v5191 = vadd.f32 %v4787, %v5190
        %5192 = vmatprep.mubr.bf16.mxu0 %v4607
        %5193 = vmatmul.mubr.bf16.gmra.mxu0 %v4606
        %v5194 = vpop.f32.mrf.mxu0
        %v5195 = vadd.f32 %v4783, %v5194
        %v5196 = vpop.f32.mrf.mxu0
        %v5197 = vadd.f32 %v4787, %v5196
        %v5198 = vpop.f32.mrf.mxu0
        %v5199 = vadd.f32 %v4783, %v5198
        %v5200 = vpop.f32.mrf.mxu0
        %v5201 = vadd.f32 %v4787, %v5200
        %5202 = vmatprep.mubr.bf16.mxu0 %v4611
        %5203 = vmatmul.mubr.bf16.gmra.mxu0 %v4610
        %v5204 = vpop.f32.mrf.mxu0
        %v5205 = vadd.f32 %v4783, %v5204
        %v5206 = vpop.f32.mrf.mxu0
        %v5207 = vadd.f32 %v4787, %v5206
        %v5208 = vpop.f32.mrf.mxu0
        %v5209 = vadd.f32 %v4783, %v5208
        %v5210 = vpop.f32.mrf.mxu0
        %v5211 = vadd.f32 %v4787, %v5210
        %5212 = vmatprep.mubr.bf16.mxu0 %v4615
        %5213 = vmatmul.mubr.bf16.gmra.mxu0 %v4614
        %v5214 = vpop.f32.mrf.mxu0
        %v5215 = vadd.f32 %v4783, %v5214
        %v5216 = vpop.f32.mrf.mxu0
        %v5217 = vadd.f32 %v4787, %v5216
        %v5218 = vpop.f32.mrf.mxu0
        %v5219 = vadd.f32 %v4783, %v5218
        %v5220 = vpop.f32.mrf.mxu0
        %v5221 = vadd.f32 %v4787, %v5220
        %5222 = vmatprep.mubr.bf16.mxu0 %v4619
        %5223 = vmatmul.mubr.bf16.gmra.mxu0 %v4618
        %v5224 = vpop.f32.mrf.mxu0
        %v5225 = vadd.f32 %v4783, %v5224
        %v5226 = vpop.f32.mrf.mxu0
        %v5227 = vadd.f32 %v4787, %v5226
        %v5228 = vpop.f32.mrf.mxu0
        %v5229 = vadd.f32 %v4783, %v5228
        %v5230 = vpop.f32.mrf.mxu0
        %v5231 = vadd.f32 %v4787, %v5230
        %5232 = vmatprep.mubr.bf16.mxu0 %v4623
        %5233 = vmatmul.mubr.bf16.gmra.mxu0 %v4622
        %v5234 = vpop.f32.mrf.mxu0
        %v5235 = vadd.f32 %v4783, %v5234
        %v5236 = vpop.f32.mrf.mxu0
        %v5237 = vadd.f32 %v4787, %v5236
        %v5238 = vpop.f32.mrf.mxu0
        %v5239 = vadd.f32 %v4783, %v5238
        %v5240 = vpop.f32.mrf.mxu0
        %v5241 = vadd.f32 %v4787, %v5240
        %5242 = vmatprep.mubr.bf16.mxu0 %v4627
        %5243 = vmatmul.mubr.bf16.gmra.mxu0 %v4626
        %v5244 = vpop.f32.mrf.mxu0
        %v5245 = vadd.f32 %v4783, %v5244
        %v5246 = vpop.f32.mrf.mxu0
        %v5247 = vadd.f32 %v4787, %v5246
        %v5248 = vpop.f32.mrf.mxu0
        %v5249 = vadd.f32 %v4783, %v5248
        %v5250 = vpop.f32.mrf.mxu0
        %v5251 = vadd.f32 %v4787, %v5250
        %5252 = vmatprep.mubr.bf16.mxu0 %v4631
        %5253 = vmatmul.mubr.bf16.gmra.mxu0 %v4630
        %v5254 = vpop.f32.mrf.mxu0
        %v5255 = vadd.f32 %v4783, %v5254
        %v5256 = vpop.f32.mrf.mxu0
        %v5257 = vadd.f32 %v4787, %v5256
        %v5258 = vpop.f32.mrf.mxu0
        %v5259 = vadd.f32 %v4783, %v5258
        %v5260 = vpop.f32.mrf.mxu0
        %v5261 = vadd.f32 %v4787, %v5260
        %5262 = vmatprep.mubr.bf16.mxu0 %v4635
        %5263 = vmatmul.mubr.bf16.gmra.mxu0 %v4634
        %v5264 = vpop.f32.mrf.mxu0
        %v5265 = vadd.f32 %v4783, %v5264
        %v5266 = vpop.f32.mrf.mxu0
        %v5267 = vadd.f32 %v4787, %v5266
        %v5268 = vpop.f32.mrf.mxu0
        %v5269 = vadd.f32 %v4783, %v5268
        %v5270 = vpop.f32.mrf.mxu0
        %v5271 = vadd.f32 %v4787, %v5270
        %5272 = vmatprep.mubr.bf16.mxu0 %v4639
        %5273 = vmatmul.mubr.bf16.gmra.mxu0 %v4638
        %v5274 = vpop.f32.mrf.mxu0
        %v5275 = vadd.f32 %v4783, %v5274
        %v5276 = vpop.f32.mrf.mxu0
        %v5277 = vadd.f32 %v4787, %v5276
        %v5278 = vpop.f32.mrf.mxu0
        %v5279 = vadd.f32 %v4783, %v5278
        %v5280 = vpop.f32.mrf.mxu0
        %v5281 = vadd.f32 %v4787, %v5280
        %5282 = vmatprep.mubr.bf16.mxu0 %v4643
        %5283 = vmatmul.mubr.bf16.gmra.mxu0 %v4642
        %v5284 = vpop.f32.mrf.mxu0
        %v5285 = vadd.f32 %v4783, %v5284
        %v5286 = vpop.f32.mrf.mxu0
        %v5287 = vadd.f32 %v4787, %v5286
        %v5288 = vpop.f32.mrf.mxu0
        %v5289 = vadd.f32 %v4783, %v5288
        %v5290 = vpop.f32.mrf.mxu0
        %v5291 = vadd.f32 %v4787, %v5290
        %5292 = vmatprep.mubr.bf16.mxu0 %v4647
        %5293 = vmatmul.mubr.bf16.gmra.mxu0 %v4646
        %v5294 = vpop.f32.mrf.mxu0
        %v5295 = vadd.f32 %v4783, %v5294
        %v5296 = vpop.f32.mrf.mxu0
        %v5297 = vadd.f32 %v4787, %v5296
        %v5298 = vpop.f32.mrf.mxu0
        %v5299 = vadd.f32 %v4783, %v5298
        %v5300 = vpop.f32.mrf.mxu0
        %v5301 = vadd.f32 %v4787, %v5300
        %5302 = vmatprep.mubr.bf16.mxu0 %v4651
        %5303 = vmatmul.mubr.bf16.gmra.mxu0 %v4650
        %v5304 = vpop.f32.mrf.mxu0
        %v5305 = vadd.f32 %v4783, %v5304
        %v5306 = vpop.f32.mrf.mxu0
        %v5307 = vadd.f32 %v4787, %v5306
        %v5308 = vpop.f32.mrf.mxu0
        %v5309 = vadd.f32 %v4783, %v5308
        %v5310 = vpop.f32.mrf.mxu0
        %v5311 = vadd.f32 %v4787, %v5310
        %5312 = vmatprep.mubr.bf16.mxu0 %v4655
        %5313 = vmatmul.mubr.bf16.gmra.mxu0 %v4654
        %v5314 = vpop.f32.mrf.mxu0
        %v5315 = vadd.f32 %v4783, %v5314
        %v5316 = vpop.f32.mrf.mxu0
        %v5317 = vadd.f32 %v4787, %v5316
        %v5318 = vpop.f32.mrf.mxu0
        %v5319 = vadd.f32 %v4783, %v5318
        %v5320 = vpop.f32.mrf.mxu0
        %v5321 = vadd.f32 %v4787, %v5320
        %5322 = vmatprep.mubr.bf16.mxu0 %v4659
        %5323 = vmatmul.mubr.bf16.gmra.mxu0 %v4658
        %v5324 = vpop.f32.mrf.mxu0
        %v5325 = vadd.f32 %v4783, %v5324
        %v5326 = vpop.f32.mrf.mxu0
        %v5327 = vadd.f32 %v4787, %v5326
        %v5328 = vpop.f32.mrf.mxu0
        %v5329 = vadd.f32 %v4783, %v5328
        %v5330 = vpop.f32.mrf.mxu0
        %v5331 = vadd.f32 %v4787, %v5330
        %5332 = vmatprep.mubr.bf16.mxu0 %v4663
        %5333 = vmatmul.mubr.bf16.gmra.mxu0 %v4662
        %v5334 = vpop.f32.mrf.mxu0
        %v5335 = vadd.f32 %v4783, %v5334
        %v5336 = vpop.f32.mrf.mxu0
        %v5337 = vadd.f32 %v4787, %v5336
        %v5338 = vpop.f32.mrf.mxu0
        %v5339 = vadd.f32 %v4783, %v5338
        %v5340 = vpop.f32.mrf.mxu0
        %v5341 = vadd.f32 %v4787, %v5340
        %5342 = vmatprep.mubr.bf16.mxu0 %v4667
        %5343 = vmatmul.mubr.bf16.gmra.mxu0 %v4666
        %v5344 = vpop.f32.mrf.mxu0
        %v5345 = vadd.f32 %v4783, %v5344
        %v5346 = vpop.f32.mrf.mxu0
        %v5347 = vadd.f32 %v4787, %v5346
        %v5348 = vpop.f32.mrf.mxu0
        %v5349 = vadd.f32 %v4783, %v5348
        %v5350 = vpop.f32.mrf.mxu0
        %v5351 = vadd.f32 %v4787, %v5350
        %5352 = vmatprep.mubr.bf16.mxu0 %v4671
        %5353 = vmatmul.mubr.bf16.gmra.mxu0 %v4670
        %v5354 = vpop.f32.mrf.mxu0
        %v5355 = vadd.f32 %v4783, %v5354
        %v5356 = vpop.f32.mrf.mxu0
        %v5357 = vadd.f32 %v4787, %v5356
        %v5358 = vpop.f32.mrf.mxu0
        %v5359 = vadd.f32 %v4783, %v5358
        %v5360 = vpop.f32.mrf.mxu0
        %v5361 = vadd.f32 %v4787, %v5360
        %5362 = vmatprep.mubr.bf16.mxu0 %v4675
        %5363 = vmatmul.mubr.bf16.gmra.mxu0 %v4674
        %v5364 = vpop.f32.mrf.mxu0
        %v5365 = vadd.f32 %v4783, %v5364
        %v5366 = vpop.f32.mrf.mxu0
        %v5367 = vadd.f32 %v4787, %v5366
        %v5368 = vpop.f32.mrf.mxu0
        %v5369 = vadd.f32 %v4783, %v5368
        %v5370 = vpop.f32.mrf.mxu0
        %v5371 = vadd.f32 %v4787, %v5370
        %5372 = vmatprep.mubr.bf16.mxu0 %v4679
        %5373 = vmatmul.mubr.bf16.gmra.mxu0 %v4678
        %v5374 = vpop.f32.mrf.mxu0
        %v5375 = vadd.f32 %v4783, %v5374
        %v5376 = vpop.f32.mrf.mxu0
        %v5377 = vadd.f32 %v4787, %v5376
        %v5378 = vpop.f32.mrf.mxu0
        %v5379 = vadd.f32 %v4783, %v5378
        %v5380 = vpop.f32.mrf.mxu0
        %v5381 = vadd.f32 %v4787, %v5380
        %5382 = vmatprep.mubr.bf16.mxu0 %v4683
        %5383 = vmatmul.mubr.bf16.gmra.mxu0 %v4682
        %v5384 = vpop.f32.mrf.mxu0
        %v5385 = vadd.f32 %v4783, %v5384
        %v5386 = vpop.f32.mrf.mxu0
        %v5387 = vadd.f32 %v4787, %v5386
        %v5388 = vpop.f32.mrf.mxu0
        %v5389 = vadd.f32 %v4783, %v5388
        %v5390 = vpop.f32.mrf.mxu0
        %v5391 = vadd.f32 %v4787, %v5390
        %5392 = vmatprep.mubr.bf16.mxu0 %v4687
        %5393 = vmatmul.mubr.bf16.gmra.mxu0 %v4686
        %v5394 = vpop.f32.mrf.mxu0
        %v5395 = vadd.f32 %v4783, %v5394
        %v5396 = vpop.f32.mrf.mxu0
        %v5397 = vadd.f32 %v4787, %v5396
        %v5398 = vpop.f32.mrf.mxu0
        %v5399 = vadd.f32 %v4783, %v5398
        %v5400 = vpop.f32.mrf.mxu0
        %v5401 = vadd.f32 %v4787, %v5400
        %5402 = vmatprep.mubr.bf16.mxu0 %v4691
        %5403 = vmatmul.mubr.bf16.gmra.mxu0 %v4690
        %v5404 = vpop.f32.mrf.mxu0
        %v5405 = vadd.f32 %v4783, %v5404
        %v5406 = vpop.f32.mrf.mxu0
        %v5407 = vadd.f32 %v4787, %v5406
        %v5408 = vpop.f32.mrf.mxu0
        %v5409 = vadd.f32 %v4783, %v5408
        %v5410 = vpop.f32.mrf.mxu0
        %v5411 = vadd.f32 %v4787, %v5410
        %5412 = vmatprep.mubr.bf16.mxu0 %v4695
        %5413 = vmatmul.mubr.bf16.gmra.mxu0 %v4694
        %v5414 = vpop.f32.mrf.mxu0
        %v5415 = vadd.f32 %v4783, %v5414
        %v5416 = vpop.f32.mrf.mxu0
        %v5417 = vadd.f32 %v4787, %v5416
        %v5418 = vpop.f32.mrf.mxu0
        %v5419 = vadd.f32 %v4783, %v5418
        %v5420 = vpop.f32.mrf.mxu0
        %v5421 = vadd.f32 %v4787, %v5420
        %5422 = vmatprep.mubr.bf16.mxu0 %v4699
        %5423 = vmatmul.mubr.bf16.gmra.mxu0 %v4698
        %v5424 = vpop.f32.mrf.mxu0
        %v5425 = vadd.f32 %v4783, %v5424
        %v5426 = vpop.f32.mrf.mxu0
        %v5427 = vadd.f32 %v4787, %v5426
        %v5428 = vpop.f32.mrf.mxu0
        %v5429 = vadd.f32 %v4783, %v5428
        %v5430 = vpop.f32.mrf.mxu0
        %v5431 = vadd.f32 %v4787, %v5430
        %5432 = vmatprep.mubr.bf16.mxu0 %v4703
        %5433 = vmatmul.mubr.bf16.gmra.mxu0 %v4702
        %v5434 = vpop.f32.mrf.mxu0
        %v5435 = vadd.f32 %v4783, %v5434
        %v5436 = vpop.f32.mrf.mxu0
        %v5437 = vadd.f32 %v4787, %v5436
        %v5438 = vpop.f32.mrf.mxu0
        %v5439 = vadd.f32 %v4783, %v5438
        %v5440 = vpop.f32.mrf.mxu0
        %v5441 = vadd.f32 %v4787, %v5440
        %5442 = vmatprep.mubr.bf16.mxu0 %v4707
        %5443 = vmatmul.mubr.bf16.gmra.mxu0 %v4706
        %v5444 = vpop.f32.mrf.mxu0
        %v5445 = vadd.f32 %v4783, %v5444
        %v5446 = vpop.f32.mrf.mxu0
        %v5447 = vadd.f32 %v4787, %v5446
        %v5448 = vpop.f32.mrf.mxu0
        %v5449 = vadd.f32 %v4783, %v5448
        %v5450 = vpop.f32.mrf.mxu0
        %v5451 = vadd.f32 %v4787, %v5450
        %5452 = vmatprep.mubr.bf16.mxu0 %v4711
        %5453 = vmatmul.mubr.bf16.gmra.mxu0 %v4710
        %v5454 = vpop.f32.mrf.mxu0
        %v5455 = vadd.f32 %v4783, %v5454
        %v5456 = vpop.f32.mrf.mxu0
        %v5457 = vadd.f32 %v4787, %v5456
        %v5458 = vpop.f32.mrf.mxu0
        %v5459 = vadd.f32 %v4783, %v5458
        %v5460 = vpop.f32.mrf.mxu0
        %v5461 = vadd.f32 %v4787, %v5460
        %5462 = vdwg.mxu0
        %5463 = vmatprep.subr.bf16.mxu0 %v5029
        %5464 = vmatpush1.bf16.msra.mxu0 %v5028
        %5465 = vmatprep.subr.bf16.mxu0 %v5027
        %5466 = vmatpush1.bf16.msra.mxu0 %v5026
        %5467 = vmatprep.subr.bf16.mxu0 %v5025
        %5468 = vmatpush1.bf16.msra.mxu0 %v5024
        %5469 = vmatprep.subr.bf16.mxu0 %v5023
        %5470 = vmatpush1.bf16.msra.mxu0 %v5022
        %5471 = vmatprep.subr.bf16.mxu0 %v5021
        %5472 = vmatpush1.bf16.msra.mxu0 %v5020
        %5473 = vmatprep.subr.bf16.mxu0 %v5019
        %5474 = vmatpush1.bf16.msra.mxu0 %v5018
        %5475 = vmatprep.subr.bf16.mxu0 %v5017
        %5476 = vmatpush1.bf16.msra.mxu0 %v5016
        %5477 = vmatprep.subr.bf16.mxu0 %v5015
        %5478 = vmatpush1.bf16.msra.mxu0 %v5014
        %5479 = vmatprep.subr.bf16.mxu0 %v5045
        %5480 = vmatpush2.bf16.msra.mxu0 %v5044
        %5481 = vmatprep.subr.bf16.mxu0 %v5043
        %5482 = vmatpush2.bf16.msra.mxu0 %v5042
        %5483 = vmatprep.subr.bf16.mxu0 %v5041
        %5484 = vmatpush2.bf16.msra.mxu0 %v5040
        %5485 = vmatprep.subr.bf16.mxu0 %v5039
        %5486 = vmatpush2.bf16.msra.mxu0 %v5038
        %5487 = vmatprep.subr.bf16.mxu0 %v5037
        %5488 = vmatpush2.bf16.msra.mxu0 %v5036
        %5489 = vmatprep.subr.bf16.mxu0 %v5035
        %5490 = vmatpush2.bf16.msra.mxu0 %v5034
        %5491 = vmatprep.subr.bf16.mxu0 %v5033
        %5492 = vmatpush2.bf16.msra.mxu0 %v5032
        %5493 = vmatprep.subr.bf16.mxu0 %v5031
        %5494 = vmatpush2.bf16.msra.mxu0 %v5030
        %5495 = vmatprep.mubr.bf16.mxu0 %v4589
        %5496 = vmatmul.mubr.bf16.gmra.mxu0 %v4588
        %v5497 = vpop.f32.mrf.mxu0
        %v5498 = vadd.f32 %v5145, %v5497
        %v5499 = vpop.f32.mrf.mxu0
        %v5500 = vadd.f32 %v5147, %v5499
        %v5501 = vpop.f32.mrf.mxu0
        %v5502 = vadd.f32 %v5149, %v5501
        %v5503 = vpop.f32.mrf.mxu0
        %v5504 = vadd.f32 %v5151, %v5503
        %5505 = vmatprep.mubr.bf16.mxu0 %v4593
        %5506 = vmatmul.mubr.bf16.gmra.mxu0 %v4592
        %v5507 = vpop.f32.mrf.mxu0
        %v5508 = vadd.f32 %v5155, %v5507
        %v5509 = vpop.f32.mrf.mxu0
        %v5510 = vadd.f32 %v5157, %v5509
        %v5511 = vpop.f32.mrf.mxu0
        %v5512 = vadd.f32 %v5159, %v5511
        %v5513 = vpop.f32.mrf.mxu0
        %v5514 = vadd.f32 %v5161, %v5513
        %5515 = vmatprep.mubr.bf16.mxu0 %v4597
        %5516 = vmatmul.mubr.bf16.gmra.mxu0 %v4596
        %v5517 = vpop.f32.mrf.mxu0
        %v5518 = vadd.f32 %v5165, %v5517
        %v5519 = vpop.f32.mrf.mxu0
        %v5520 = vadd.f32 %v5167, %v5519
        %v5521 = vpop.f32.mrf.mxu0
        %v5522 = vadd.f32 %v5169, %v5521
        %v5523 = vpop.f32.mrf.mxu0
        %v5524 = vadd.f32 %v5171, %v5523
        %5525 = vmatprep.mubr.bf16.mxu0 %v4601
        %5526 = vmatmul.mubr.bf16.gmra.mxu0 %v4600
        %v5527 = vpop.f32.mrf.mxu0
        %v5528 = vadd.f32 %v5175, %v5527
        %v5529 = vpop.f32.mrf.mxu0
        %v5530 = vadd.f32 %v5177, %v5529
        %v5531 = vpop.f32.mrf.mxu0
        %v5532 = vadd.f32 %v5179, %v5531
        %v5533 = vpop.f32.mrf.mxu0
        %v5534 = vadd.f32 %v5181, %v5533
        %5535 = vmatprep.mubr.bf16.mxu0 %v4605
        %5536 = vmatmul.mubr.bf16.gmra.mxu0 %v4604
        %v5537 = vpop.f32.mrf.mxu0
        %v5538 = vadd.f32 %v5185, %v5537
        %v5539 = vpop.f32.mrf.mxu0
        %v5540 = vadd.f32 %v5187, %v5539
        %v5541 = vpop.f32.mrf.mxu0
        %v5542 = vadd.f32 %v5189, %v5541
        %v5543 = vpop.f32.mrf.mxu0
        %v5544 = vadd.f32 %v5191, %v5543
        %5545 = vmatprep.mubr.bf16.mxu0 %v4609
        %5546 = vmatmul.mubr.bf16.gmra.mxu0 %v4608
        %v5547 = vpop.f32.mrf.mxu0
        %v5548 = vadd.f32 %v5195, %v5547
        %v5549 = vpop.f32.mrf.mxu0
        %v5550 = vadd.f32 %v5197, %v5549
        %v5551 = vpop.f32.mrf.mxu0
        %v5552 = vadd.f32 %v5199, %v5551
        %v5553 = vpop.f32.mrf.mxu0
        %v5554 = vadd.f32 %v5201, %v5553
        %5555 = vmatprep.mubr.bf16.mxu0 %v4613
        %5556 = vmatmul.mubr.bf16.gmra.mxu0 %v4612
        %v5557 = vpop.f32.mrf.mxu0
        %v5558 = vadd.f32 %v5205, %v5557
        %v5559 = vpop.f32.mrf.mxu0
        %v5560 = vadd.f32 %v5207, %v5559
        %v5561 = vpop.f32.mrf.mxu0
        %v5562 = vadd.f32 %v5209, %v5561
        %v5563 = vpop.f32.mrf.mxu0
        %v5564 = vadd.f32 %v5211, %v5563
        %5565 = vmatprep.mubr.bf16.mxu0 %v4617
        %5566 = vmatmul.mubr.bf16.gmra.mxu0 %v4616
        %v5567 = vpop.f32.mrf.mxu0
        %v5568 = vadd.f32 %v5215, %v5567
        %v5569 = vpop.f32.mrf.mxu0
        %v5570 = vadd.f32 %v5217, %v5569
        %v5571 = vpop.f32.mrf.mxu0
        %v5572 = vadd.f32 %v5219, %v5571
        %v5573 = vpop.f32.mrf.mxu0
        %v5574 = vadd.f32 %v5221, %v5573
        %5575 = vmatprep.mubr.bf16.mxu0 %v4621
        %5576 = vmatmul.mubr.bf16.gmra.mxu0 %v4620
        %v5577 = vpop.f32.mrf.mxu0
        %v5578 = vadd.f32 %v5225, %v5577
        %v5579 = vpop.f32.mrf.mxu0
        %v5580 = vadd.f32 %v5227, %v5579
        %v5581 = vpop.f32.mrf.mxu0
        %v5582 = vadd.f32 %v5229, %v5581
        %v5583 = vpop.f32.mrf.mxu0
        %v5584 = vadd.f32 %v5231, %v5583
        %5585 = vmatprep.mubr.bf16.mxu0 %v4625
        %5586 = vmatmul.mubr.bf16.gmra.mxu0 %v4624
        %v5587 = vpop.f32.mrf.mxu0
        %v5588 = vadd.f32 %v5235, %v5587
        %v5589 = vpop.f32.mrf.mxu0
        %v5590 = vadd.f32 %v5237, %v5589
        %v5591 = vpop.f32.mrf.mxu0
        %v5592 = vadd.f32 %v5239, %v5591
        %v5593 = vpop.f32.mrf.mxu0
        %v5594 = vadd.f32 %v5241, %v5593
        %5595 = vmatprep.mubr.bf16.mxu0 %v4629
        %5596 = vmatmul.mubr.bf16.gmra.mxu0 %v4628
        %v5597 = vpop.f32.mrf.mxu0
        %v5598 = vadd.f32 %v5245, %v5597
        %v5599 = vpop.f32.mrf.mxu0
        %v5600 = vadd.f32 %v5247, %v5599
        %v5601 = vpop.f32.mrf.mxu0
        %v5602 = vadd.f32 %v5249, %v5601
        %v5603 = vpop.f32.mrf.mxu0
        %v5604 = vadd.f32 %v5251, %v5603
        %5605 = vmatprep.mubr.bf16.mxu0 %v4633
        %5606 = vmatmul.mubr.bf16.gmra.mxu0 %v4632
        %v5607 = vpop.f32.mrf.mxu0
        %v5608 = vadd.f32 %v5255, %v5607
        %v5609 = vpop.f32.mrf.mxu0
        %v5610 = vadd.f32 %v5257, %v5609
        %v5611 = vpop.f32.mrf.mxu0
        %v5612 = vadd.f32 %v5259, %v5611
        %v5613 = vpop.f32.mrf.mxu0
        %v5614 = vadd.f32 %v5261, %v5613
        %5615 = vmatprep.mubr.bf16.mxu0 %v4637
        %5616 = vmatmul.mubr.bf16.gmra.mxu0 %v4636
        %v5617 = vpop.f32.mrf.mxu0
        %v5618 = vadd.f32 %v5265, %v5617
        %v5619 = vpop.f32.mrf.mxu0
        %v5620 = vadd.f32 %v5267, %v5619
        %v5621 = vpop.f32.mrf.mxu0
        %v5622 = vadd.f32 %v5269, %v5621
        %v5623 = vpop.f32.mrf.mxu0
        %v5624 = vadd.f32 %v5271, %v5623
        %5625 = vmatprep.mubr.bf16.mxu0 %v4641
        %5626 = vmatmul.mubr.bf16.gmra.mxu0 %v4640
        %v5627 = vpop.f32.mrf.mxu0
        %v5628 = vadd.f32 %v5275, %v5627
        %v5629 = vpop.f32.mrf.mxu0
        %v5630 = vadd.f32 %v5277, %v5629
        %v5631 = vpop.f32.mrf.mxu0
        %v5632 = vadd.f32 %v5279, %v5631
        %v5633 = vpop.f32.mrf.mxu0
        %v5634 = vadd.f32 %v5281, %v5633
        %5635 = vmatprep.mubr.bf16.mxu0 %v4645
        %5636 = vmatmul.mubr.bf16.gmra.mxu0 %v4644
        %v5637 = vpop.f32.mrf.mxu0
        %v5638 = vadd.f32 %v5285, %v5637
        %v5639 = vpop.f32.mrf.mxu0
        %v5640 = vadd.f32 %v5287, %v5639
        %v5641 = vpop.f32.mrf.mxu0
        %v5642 = vadd.f32 %v5289, %v5641
        %v5643 = vpop.f32.mrf.mxu0
        %v5644 = vadd.f32 %v5291, %v5643
        %5645 = vmatprep.mubr.bf16.mxu0 %v4649
        %5646 = vmatmul.mubr.bf16.gmra.mxu0 %v4648
        %v5647 = vpop.f32.mrf.mxu0
        %v5648 = vadd.f32 %v5295, %v5647
        %v5649 = vpop.f32.mrf.mxu0
        %v5650 = vadd.f32 %v5297, %v5649
        %v5651 = vpop.f32.mrf.mxu0
        %v5652 = vadd.f32 %v5299, %v5651
        %v5653 = vpop.f32.mrf.mxu0
        %v5654 = vadd.f32 %v5301, %v5653
        %5655 = vmatprep.mubr.bf16.mxu0 %v4653
        %5656 = vmatmul.mubr.bf16.gmra.mxu0 %v4652
        %v5657 = vpop.f32.mrf.mxu0
        %v5658 = vadd.f32 %v5305, %v5657
        %v5659 = vpop.f32.mrf.mxu0
        %v5660 = vadd.f32 %v5307, %v5659
        %v5661 = vpop.f32.mrf.mxu0
        %v5662 = vadd.f32 %v5309, %v5661
        %v5663 = vpop.f32.mrf.mxu0
        %v5664 = vadd.f32 %v5311, %v5663
        %5665 = vmatprep.mubr.bf16.mxu0 %v4657
        %5666 = vmatmul.mubr.bf16.gmra.mxu0 %v4656
        %v5667 = vpop.f32.mrf.mxu0
        %v5668 = vadd.f32 %v5315, %v5667
        %v5669 = vpop.f32.mrf.mxu0
        %v5670 = vadd.f32 %v5317, %v5669
        %v5671 = vpop.f32.mrf.mxu0
        %v5672 = vadd.f32 %v5319, %v5671
        %v5673 = vpop.f32.mrf.mxu0
        %v5674 = vadd.f32 %v5321, %v5673
        %5675 = vmatprep.mubr.bf16.mxu0 %v4661
        %5676 = vmatmul.mubr.bf16.gmra.mxu0 %v4660
        %v5677 = vpop.f32.mrf.mxu0
        %v5678 = vadd.f32 %v5325, %v5677
        %v5679 = vpop.f32.mrf.mxu0
        %v5680 = vadd.f32 %v5327, %v5679
        %v5681 = vpop.f32.mrf.mxu0
        %v5682 = vadd.f32 %v5329, %v5681
        %v5683 = vpop.f32.mrf.mxu0
        %v5684 = vadd.f32 %v5331, %v5683
        %5685 = vmatprep.mubr.bf16.mxu0 %v4665
        %5686 = vmatmul.mubr.bf16.gmra.mxu0 %v4664
        %v5687 = vpop.f32.mrf.mxu0
        %v5688 = vadd.f32 %v5335, %v5687
        %v5689 = vpop.f32.mrf.mxu0
        %v5690 = vadd.f32 %v5337, %v5689
        %v5691 = vpop.f32.mrf.mxu0
        %v5692 = vadd.f32 %v5339, %v5691
        %v5693 = vpop.f32.mrf.mxu0
        %v5694 = vadd.f32 %v5341, %v5693
        %5695 = vmatprep.mubr.bf16.mxu0 %v4669
        %5696 = vmatmul.mubr.bf16.gmra.mxu0 %v4668
        %v5697 = vpop.f32.mrf.mxu0
        %v5698 = vadd.f32 %v5345, %v5697
        %v5699 = vpop.f32.mrf.mxu0
        %v5700 = vadd.f32 %v5347, %v5699
        %v5701 = vpop.f32.mrf.mxu0
        %v5702 = vadd.f32 %v5349, %v5701
        %v5703 = vpop.f32.mrf.mxu0
        %v5704 = vadd.f32 %v5351, %v5703
        %5705 = vmatprep.mubr.bf16.mxu0 %v4673
        %5706 = vmatmul.mubr.bf16.gmra.mxu0 %v4672
        %v5707 = vpop.f32.mrf.mxu0
        %v5708 = vadd.f32 %v5355, %v5707
        %v5709 = vpop.f32.mrf.mxu0
        %v5710 = vadd.f32 %v5357, %v5709
        %v5711 = vpop.f32.mrf.mxu0
        %v5712 = vadd.f32 %v5359, %v5711
        %v5713 = vpop.f32.mrf.mxu0
        %v5714 = vadd.f32 %v5361, %v5713
        %5715 = vmatprep.mubr.bf16.mxu0 %v4677
        %5716 = vmatmul.mubr.bf16.gmra.mxu0 %v4676
        %v5717 = vpop.f32.mrf.mxu0
        %v5718 = vadd.f32 %v5365, %v5717
        %v5719 = vpop.f32.mrf.mxu0
        %v5720 = vadd.f32 %v5367, %v5719
        %v5721 = vpop.f32.mrf.mxu0
        %v5722 = vadd.f32 %v5369, %v5721
        %v5723 = vpop.f32.mrf.mxu0
        %v5724 = vadd.f32 %v5371, %v5723
        %5725 = vmatprep.mubr.bf16.mxu0 %v4681
        %5726 = vmatmul.mubr.bf16.gmra.mxu0 %v4680
        %v5727 = vpop.f32.mrf.mxu0
        %v5728 = vadd.f32 %v5375, %v5727
        %v5729 = vpop.f32.mrf.mxu0
        %v5730 = vadd.f32 %v5377, %v5729
        %v5731 = vpop.f32.mrf.mxu0
        %v5732 = vadd.f32 %v5379, %v5731
        %v5733 = vpop.f32.mrf.mxu0
        %v5734 = vadd.f32 %v5381, %v5733
        %5735 = vmatprep.mubr.bf16.mxu0 %v4685
        %5736 = vmatmul.mubr.bf16.gmra.mxu0 %v4684
        %v5737 = vpop.f32.mrf.mxu0
        %v5738 = vadd.f32 %v5385, %v5737
        %v5739 = vpop.f32.mrf.mxu0
        %v5740 = vadd.f32 %v5387, %v5739
        %v5741 = vpop.f32.mrf.mxu0
        %v5742 = vadd.f32 %v5389, %v5741
        %v5743 = vpop.f32.mrf.mxu0
        %v5744 = vadd.f32 %v5391, %v5743
        %5745 = vmatprep.mubr.bf16.mxu0 %v4689
        %5746 = vmatmul.mubr.bf16.gmra.mxu0 %v4688
        %v5747 = vpop.f32.mrf.mxu0
        %v5748 = vadd.f32 %v5395, %v5747
        %v5749 = vpop.f32.mrf.mxu0
        %v5750 = vadd.f32 %v5397, %v5749
        %v5751 = vpop.f32.mrf.mxu0
        %v5752 = vadd.f32 %v5399, %v5751
        %v5753 = vpop.f32.mrf.mxu0
        %v5754 = vadd.f32 %v5401, %v5753
        %5755 = vmatprep.mubr.bf16.mxu0 %v4693
        %5756 = vmatmul.mubr.bf16.gmra.mxu0 %v4692
        %v5757 = vpop.f32.mrf.mxu0
        %v5758 = vadd.f32 %v5405, %v5757
        %v5759 = vpop.f32.mrf.mxu0
        %v5760 = vadd.f32 %v5407, %v5759
        %v5761 = vpop.f32.mrf.mxu0
        %v5762 = vadd.f32 %v5409, %v5761
        %v5763 = vpop.f32.mrf.mxu0
        %v5764 = vadd.f32 %v5411, %v5763
        %5765 = vmatprep.mubr.bf16.mxu0 %v4697
        %5766 = vmatmul.mubr.bf16.gmra.mxu0 %v4696
        %v5767 = vpop.f32.mrf.mxu0
        %v5768 = vadd.f32 %v5415, %v5767
        %v5769 = vpop.f32.mrf.mxu0
        %v5770 = vadd.f32 %v5417, %v5769
        %v5771 = vpop.f32.mrf.mxu0
        %v5772 = vadd.f32 %v5419, %v5771
        %v5773 = vpop.f32.mrf.mxu0
        %v5774 = vadd.f32 %v5421, %v5773
        %5775 = vmatprep.mubr.bf16.mxu0 %v4701
        %5776 = vmatmul.mubr.bf16.gmra.mxu0 %v4700
        %v5777 = vpop.f32.mrf.mxu0
        %v5778 = vadd.f32 %v5425, %v5777
        %v5779 = vpop.f32.mrf.mxu0
        %v5780 = vadd.f32 %v5427, %v5779
        %v5781 = vpop.f32.mrf.mxu0
        %v5782 = vadd.f32 %v5429, %v5781
        %v5783 = vpop.f32.mrf.mxu0
        %v5784 = vadd.f32 %v5431, %v5783
        %5785 = vmatprep.mubr.bf16.mxu0 %v4705
        %5786 = vmatmul.mubr.bf16.gmra.mxu0 %v4704
        %v5787 = vpop.f32.mrf.mxu0
        %v5788 = vadd.f32 %v5435, %v5787
        %v5789 = vpop.f32.mrf.mxu0
        %v5790 = vadd.f32 %v5437, %v5789
        %v5791 = vpop.f32.mrf.mxu0
        %v5792 = vadd.f32 %v5439, %v5791
        %v5793 = vpop.f32.mrf.mxu0
        %v5794 = vadd.f32 %v5441, %v5793
        %5795 = vmatprep.mubr.bf16.mxu0 %v4709
        %5796 = vmatmul.mubr.bf16.gmra.mxu0 %v4708
        %v5797 = vpop.f32.mrf.mxu0
        %v5798 = vadd.f32 %v5445, %v5797
        %v5799 = vpop.f32.mrf.mxu0
        %v5800 = vadd.f32 %v5447, %v5799
        %v5801 = vpop.f32.mrf.mxu0
        %v5802 = vadd.f32 %v5449, %v5801
        %v5803 = vpop.f32.mrf.mxu0
        %v5804 = vadd.f32 %v5451, %v5803
        %5805 = vmatprep.mubr.bf16.mxu0 %v4713
        %5806 = vmatmul.mubr.bf16.gmra.mxu0 %v4712
        %v5807 = vpop.f32.mrf.mxu0
        %v5808 = vadd.f32 %v5455, %v5807
        %v5809 = vpop.f32.mrf.mxu0
        %v5810 = vadd.f32 %v5457, %v5809
        %v5811 = vpop.f32.mrf.mxu0
        %v5812 = vadd.f32 %v5459, %v5811
        %v5813 = vpop.f32.mrf.mxu0
        %v5814 = vadd.f32 %v5461, %v5813
        %5815 = vdwg.mxu0
        %v5816 = vmax.f32 %v5498, 0.0
        %v5817 = vmax.f32 %v5500, 0.0
        %v5818 = vmax.f32 %v5502, 0.0
        %v5819 = vmax.f32 %v5504, 0.0
        %v5820 = vmax.f32 %v5508, 0.0
        %v5821 = vmax.f32 %v5510, 0.0
        %v5822 = vmax.f32 %v5512, 0.0
        %v5823 = vmax.f32 %v5514, 0.0
        %v5824 = vmax.f32 %v5518, 0.0
        %v5825 = vmax.f32 %v5520, 0.0
        %v5826 = vmax.f32 %v5522, 0.0
        %v5827 = vmax.f32 %v5524, 0.0
        %v5828 = vmax.f32 %v5528, 0.0
        %v5829 = vmax.f32 %v5530, 0.0
        %v5830 = vmax.f32 %v5532, 0.0
        %v5831 = vmax.f32 %v5534, 0.0
        %v5832 = vmax.f32 %v5538, 0.0
        %v5833 = vmax.f32 %v5540, 0.0
        %v5834 = vmax.f32 %v5542, 0.0
        %v5835 = vmax.f32 %v5544, 0.0
        %v5836 = vmax.f32 %v5548, 0.0
        %v5837 = vmax.f32 %v5550, 0.0
        %v5838 = vmax.f32 %v5552, 0.0
        %v5839 = vmax.f32 %v5554, 0.0
        %v5840 = vmax.f32 %v5558, 0.0
        %v5841 = vmax.f32 %v5560, 0.0
        %v5842 = vmax.f32 %v5562, 0.0
        %v5843 = vmax.f32 %v5564, 0.0
        %v5844 = vmax.f32 %v5568, 0.0
        %v5845 = vmax.f32 %v5570, 0.0
        %v5846 = vmax.f32 %v5572, 0.0
        %v5847 = vmax.f32 %v5574, 0.0
        %v5848 = vmax.f32 %v5578, 0.0
        %v5849 = vmax.f32 %v5580, 0.0
        %v5850 = vmax.f32 %v5582, 0.0
        %v5851 = vmax.f32 %v5584, 0.0
        %v5852 = vmax.f32 %v5588, 0.0
        %v5853 = vmax.f32 %v5590, 0.0
        %v5854 = vmax.f32 %v5592, 0.0
        %v5855 = vmax.f32 %v5594, 0.0
        %v5856 = vmax.f32 %v5598, 0.0
        %v5857 = vmax.f32 %v5600, 0.0
        %v5858 = vmax.f32 %v5602, 0.0
        %v5859 = vmax.f32 %v5604, 0.0
        %v5860 = vmax.f32 %v5608, 0.0
        %v5861 = vmax.f32 %v5610, 0.0
        %v5862 = vmax.f32 %v5612, 0.0
        %v5863 = vmax.f32 %v5614, 0.0
        %v5864 = vmax.f32 %v5618, 0.0
        %v5865 = vmax.f32 %v5620, 0.0
        %v5866 = vmax.f32 %v5622, 0.0
        %v5867 = vmax.f32 %v5624, 0.0
        %v5868 = vmax.f32 %v5628, 0.0
        %v5869 = vmax.f32 %v5630, 0.0
        %v5870 = vmax.f32 %v5632, 0.0
        %v5871 = vmax.f32 %v5634, 0.0
        %v5872 = vmax.f32 %v5638, 0.0
        %v5873 = vmax.f32 %v5640, 0.0
        %v5874 = vmax.f32 %v5642, 0.0
        %v5875 = vmax.f32 %v5644, 0.0
        %v5876 = vmax.f32 %v5648, 0.0
        %v5877 = vmax.f32 %v5650, 0.0
        %v5878 = vmax.f32 %v5652, 0.0
        %v5879 = vmax.f32 %v5654, 0.0
        %v5880 = vmax.f32 %v5658, 0.0
        %v5881 = vmax.f32 %v5660, 0.0
        %v5882 = vmax.f32 %v5662, 0.0
        %v5883 = vmax.f32 %v5664, 0.0
        %v5884 = vmax.f32 %v5668, 0.0
        %v5885 = vmax.f32 %v5670, 0.0
        %v5886 = vmax.f32 %v5672, 0.0
        %v5887 = vmax.f32 %v5674, 0.0
        %v5888 = vmax.f32 %v5678, 0.0
        %v5889 = vmax.f32 %v5680, 0.0
        %v5890 = vmax.f32 %v5682, 0.0
        %v5891 = vmax.f32 %v5684, 0.0
        %v5892 = vmax.f32 %v5688, 0.0
        %v5893 = vmax.f32 %v5690, 0.0
        %v5894 = vmax.f32 %v5692, 0.0
        %v5895 = vmax.f32 %v5694, 0.0
        %v5896 = vmax.f32 %v5698, 0.0
        %v5897 = vmax.f32 %v5700, 0.0
        %v5898 = vmax.f32 %v5702, 0.0
        %v5899 = vmax.f32 %v5704, 0.0
        %v5900 = vmax.f32 %v5708, 0.0
        %v5901 = vmax.f32 %v5710, 0.0
        %v5902 = vmax.f32 %v5712, 0.0
        %v5903 = vmax.f32 %v5714, 0.0
        %v5904 = vmax.f32 %v5718, 0.0
        %v5905 = vmax.f32 %v5720, 0.0
        %v5906 = vmax.f32 %v5722, 0.0
        %v5907 = vmax.f32 %v5724, 0.0
        %v5908 = vmax.f32 %v5728, 0.0
        %v5909 = vmax.f32 %v5730, 0.0
        %v5910 = vmax.f32 %v5732, 0.0
        %v5911 = vmax.f32 %v5734, 0.0
        %v5912 = vmax.f32 %v5738, 0.0
        %v5913 = vmax.f32 %v5740, 0.0
        %v5914 = vmax.f32 %v5742, 0.0
        %v5915 = vmax.f32 %v5744, 0.0
        %v5916 = vmax.f32 %v5748, 0.0
        %v5917 = vmax.f32 %v5750, 0.0
        %v5918 = vmax.f32 %v5752, 0.0
        %v5919 = vmax.f32 %v5754, 0.0
        %v5920 = vmax.f32 %v5758, 0.0
        %v5921 = vmax.f32 %v5760, 0.0
        %v5922 = vmax.f32 %v5762, 0.0
        %v5923 = vmax.f32 %v5764, 0.0
        %v5924 = vmax.f32 %v5768, 0.0
        %v5925 = vmax.f32 %v5770, 0.0
        %v5926 = vmax.f32 %v5772, 0.0
        %v5927 = vmax.f32 %v5774, 0.0
        %v5928 = vmax.f32 %v5778, 0.0
        %v5929 = vmax.f32 %v5780, 0.0
        %v5930 = vmax.f32 %v5782, 0.0
        %v5931 = vmax.f32 %v5784, 0.0
        %v5932 = vmax.f32 %v5788, 0.0
        %v5933 = vmax.f32 %v5790, 0.0
        %v5934 = vmax.f32 %v5792, 0.0
        %v5935 = vmax.f32 %v5794, 0.0
        %v5936 = vmax.f32 %v5798, 0.0
        %v5937 = vmax.f32 %v5800, 0.0
        %v5938 = vmax.f32 %v5802, 0.0
        %v5939 = vmax.f32 %v5804, 0.0
        %v5940 = vmax.f32 %v5808, 0.0
        %v5941 = vmax.f32 %v5810, 0.0
        %v5942 = vmax.f32 %v5812, 0.0
        %v5943 = vmax.f32 %v5814, 0.0
        %v5944 = vpack.c.bf16 %v5818, %v5816
        %v5945 = vpack.c.bf16 %v5819, %v5817
        %v5946 = vpack.c.bf16 %v5822, %v5820
        %v5947 = vpack.c.bf16 %v5823, %v5821
        %v5948 = vpack.c.bf16 %v5826, %v5824
        %v5949 = vpack.c.bf16 %v5827, %v5825
        %v5950 = vpack.c.bf16 %v5830, %v5828
        %v5951 = vpack.c.bf16 %v5831, %v5829
        %v5952 = vpack.c.bf16 %v5834, %v5832
        %v5953 = vpack.c.bf16 %v5835, %v5833
        %v5954 = vpack.c.bf16 %v5838, %v5836
        %v5955 = vpack.c.bf16 %v5839, %v5837
        %v5956 = vpack.c.bf16 %v5842, %v5840
        %v5957 = vpack.c.bf16 %v5843, %v5841
        %v5958 = vpack.c.bf16 %v5846, %v5844
        %v5959 = vpack.c.bf16 %v5847, %v5845
        %v5960 = vpack.c.bf16 %v5850, %v5848
        %v5961 = vpack.c.bf16 %v5851, %v5849
        %v5962 = vpack.c.bf16 %v5854, %v5852
        %v5963 = vpack.c.bf16 %v5855, %v5853
        %v5964 = vpack.c.bf16 %v5858, %v5856
        %v5965 = vpack.c.bf16 %v5859, %v5857
        %v5966 = vpack.c.bf16 %v5862, %v5860
        %v5967 = vpack.c.bf16 %v5863, %v5861
        %v5968 = vpack.c.bf16 %v5866, %v5864
        %v5969 = vpack.c.bf16 %v5867, %v5865
        %v5970 = vpack.c.bf16 %v5870, %v5868
        %v5971 = vpack.c.bf16 %v5871, %v5869
        %v5972 = vpack.c.bf16 %v5874, %v5872
        %v5973 = vpack.c.bf16 %v5875, %v5873
        %v5974 = vpack.c.bf16 %v5878, %v5876
        %v5975 = vpack.c.bf16 %v5879, %v5877
        %v5976 = vpack.c.bf16 %v5882, %v5880
        %v5977 = vpack.c.bf16 %v5883, %v5881
        %v5978 = vpack.c.bf16 %v5886, %v5884
        %v5979 = vpack.c.bf16 %v5887, %v5885
        %v5980 = vpack.c.bf16 %v5890, %v5888
        %v5981 = vpack.c.bf16 %v5891, %v5889
        %v5982 = vpack.c.bf16 %v5894, %v5892
        %v5983 = vpack.c.bf16 %v5895, %v5893
        %v5984 = vpack.c.bf16 %v5898, %v5896
        %v5985 = vpack.c.bf16 %v5899, %v5897
        %v5986 = vpack.c.bf16 %v5902, %v5900
        %v5987 = vpack.c.bf16 %v5903, %v5901
        %v5988 = vpack.c.bf16 %v5906, %v5904
        %v5989 = vpack.c.bf16 %v5907, %v5905
        %v5990 = vpack.c.bf16 %v5910, %v5908
        %v5991 = vpack.c.bf16 %v5911, %v5909
        %v5992 = vpack.c.bf16 %v5914, %v5912
        %v5993 = vpack.c.bf16 %v5915, %v5913
        %v5994 = vpack.c.bf16 %v5918, %v5916
        %v5995 = vpack.c.bf16 %v5919, %v5917
        %v5996 = vpack.c.bf16 %v5922, %v5920
        %v5997 = vpack.c.bf16 %v5923, %v5921
        %v5998 = vpack.c.bf16 %v5926, %v5924
        %v5999 = vpack.c.bf16 %v5927, %v5925
        %v6000 = vpack.c.bf16 %v5930, %v5928
        %v6001 = vpack.c.bf16 %v5931, %v5929
        %v6002 = vpack.c.bf16 %v5934, %v5932
        %v6003 = vpack.c.bf16 %v5935, %v5933
        %v6004 = vpack.c.bf16 %v5938, %v5936
        %v6005 = vpack.c.bf16 %v5939, %v5937
        %v6006 = vpack.c.bf16 %v5942, %v5940
        %v6007 = vpack.c.bf16 %v5943, %v5941
        %v6008 = vld [vmem:[#allocation11] sm:$0xf]
        %v6009 = vld [vmem:[#allocation11 + $0x4] sm:$0xf]
        %v6010 = vld [vmem:[#allocation11 + $0x8] sm:$0xf]
        %v6011 = vld [vmem:[#allocation11 + $0xc] sm:$0xf]
        %v6012 = vld [vmem:[#allocation11 + $0x10] sm:$0xf]
        %v6013 = vld [vmem:[#allocation11 + $0x14] sm:$0xf]
        %v6014 = vld [vmem:[#allocation11 + $0x18] sm:$0xf]
        %v6015 = vld [vmem:[#allocation11 + $0x1c] sm:$0xf]
        %v6016 = vld [vmem:[#allocation11 + $0x20] sm:$0xf]
        %v6017 = vld [vmem:[#allocation11 + $0x24] sm:$0xf]
        %v6018 = vld [vmem:[#allocation11 + $0x28] sm:$0xf]
        %v6019 = vld [vmem:[#allocation11 + $0x2c] sm:$0xf]
        %v6020 = vld [vmem:[#allocation11 + $0x30] sm:$0xf]
        %v6021 = vld [vmem:[#allocation11 + $0x34] sm:$0xf]
        %v6022 = vld [vmem:[#allocation11 + $0x38] sm:$0xf]
        %v6023 = vld [vmem:[#allocation11 + $0x3c] sm:$0xf]
        %v6024 = vld [vmem:[#allocation11 + $0x40] sm:$0xf]
        %v6025 = vld [vmem:[#allocation11 + $0x44] sm:$0xf]
        %v6026 = vld [vmem:[#allocation11 + $0x48] sm:$0xf]
        %v6027 = vld [vmem:[#allocation11 + $0x4c] sm:$0xf]
        %v6028 = vld [vmem:[#allocation11 + $0x50] sm:$0xf]
        %v6029 = vld [vmem:[#allocation11 + $0x54] sm:$0xf]
        %v6030 = vld [vmem:[#allocation11 + $0x58] sm:$0xf]
        %v6031 = vld [vmem:[#allocation11 + $0x5c] sm:$0xf]
        %v6032 = vld [vmem:[#allocation11 + $0x60] sm:$0xf]
        %v6033 = vld [vmem:[#allocation11 + $0x64] sm:$0xf]
        %v6034 = vld [vmem:[#allocation11 + $0x68] sm:$0xf]
        %v6035 = vld [vmem:[#allocation11 + $0x6c] sm:$0xf]
        %v6036 = vld [vmem:[#allocation11 + $0x70] sm:$0xf]
        %v6037 = vld [vmem:[#allocation11 + $0x74] sm:$0xf]
        %v6038 = vld [vmem:[#allocation11 + $0x78] sm:$0xf]
        %v6039 = vld [vmem:[#allocation11 + $0x7c] sm:$0xf]
        %v6040 = vld [vmem:[#allocation13] sm:$0x1]
        %v6042 = vlaneseq
        %v6043 = vshrl.u32 %v6042, 7
        %v6044 = vsub.s32 0, %v6043
        %v6045 = vrot.slane %v6040, %v6044
        %v6079 = vunpack.c.l.b16 %v6008
        %v6080 = vunpack.c.l.b16 %v6009
        %v6081 = vunpack.c.l.b16 %v6010
        %v6082 = vunpack.c.l.b16 %v6011
        %v6083 = vunpack.c.l.b16 %v6012
        %v6084 = vunpack.c.l.b16 %v6013
        %v6085 = vunpack.c.l.b16 %v6014
        %v6086 = vunpack.c.l.b16 %v6015
        %v6087 = vunpack.c.l.b16 %v6016
        %v6088 = vunpack.c.l.b16 %v6017
        %v6089 = vunpack.c.l.b16 %v6018
        %v6090 = vunpack.c.l.b16 %v6019
        %v6091 = vunpack.c.l.b16 %v6020
        %v6092 = vunpack.c.l.b16 %v6021
        %v6093 = vunpack.c.l.b16 %v6022
        %v6094 = vunpack.c.l.b16 %v6023
        %v6095 = vunpack.c.l.b16 %v6024
        %v6096 = vunpack.c.l.b16 %v6025
        %v6097 = vunpack.c.l.b16 %v6026
        %v6098 = vunpack.c.l.b16 %v6027
        %v6099 = vunpack.c.l.b16 %v6028
        %v6100 = vunpack.c.l.b16 %v6029
        %v6101 = vunpack.c.l.b16 %v6030
        %v6102 = vunpack.c.l.b16 %v6031
        %v6103 = vunpack.c.l.b16 %v6032
        %v6104 = vunpack.c.l.b16 %v6033
        %v6105 = vunpack.c.l.b16 %v6034
        %v6106 = vunpack.c.l.b16 %v6035
        %v6107 = vunpack.c.l.b16 %v6036
        %v6108 = vunpack.c.l.b16 %v6037
        %v6109 = vunpack.c.l.b16 %v6038
        %v6110 = vunpack.c.l.b16 %v6039
        %v6111 = vpack.c.b16 %v6080, %v6079
        %v6112 = vpack.c.b16 %v6082, %v6081
        %v6113 = vpack.c.b16 %v6084, %v6083
        %v6114 = vpack.c.b16 %v6086, %v6085
        %v6115 = vpack.c.b16 %v6088, %v6087
        %v6116 = vpack.c.b16 %v6090, %v6089
        %v6117 = vpack.c.b16 %v6092, %v6091
        %v6118 = vpack.c.b16 %v6094, %v6093
        %v6119 = vpack.c.b16 %v6096, %v6095
        %v6120 = vpack.c.b16 %v6098, %v6097
        %v6121 = vpack.c.b16 %v6100, %v6099
        %v6122 = vpack.c.b16 %v6102, %v6101
        %v6123 = vpack.c.b16 %v6104, %v6103
        %v6124 = vpack.c.b16 %v6106, %v6105
        %v6125 = vpack.c.b16 %v6108, %v6107
        %v6126 = vpack.c.b16 %v6110, %v6109
        %6143 = vmatprep.subr.bf16.mxu0 0
        %6144 = vmatpush1.bf16.msra.mxu0 %v6118
        %6145 = vmatprep.subr.bf16.mxu0 0
        %6146 = vmatpush1.bf16.msra.mxu0 %v6117
        %6147 = vmatprep.subr.bf16.mxu0 0
        %6148 = vmatpush1.bf16.msra.mxu0 %v6116
        %6149 = vmatprep.subr.bf16.mxu0 0
        %6150 = vmatpush1.bf16.msra.mxu0 %v6115
        %6151 = vmatprep.subr.bf16.mxu0 0
        %6152 = vmatpush1.bf16.msra.mxu0 %v6114
        %6153 = vmatprep.subr.bf16.mxu0 0
        %6154 = vmatpush1.bf16.msra.mxu0 %v6113
        %6155 = vmatprep.subr.bf16.mxu0 0
        %6156 = vmatpush1.bf16.msra.mxu0 %v6112
        %6157 = vmatprep.subr.bf16.mxu0 0
        %6158 = vmatpush1.bf16.msra.mxu0 %v6111
        %6159 = vmatprep.subr.bf16.mxu0 0
        %6160 = vmatpush2.bf16.msra.mxu0 %v6126
        %6161 = vmatprep.subr.bf16.mxu0 0
        %6162 = vmatpush2.bf16.msra.mxu0 %v6125
        %6163 = vmatprep.subr.bf16.mxu0 0
        %6164 = vmatpush2.bf16.msra.mxu0 %v6124
        %6165 = vmatprep.subr.bf16.mxu0 0
        %6166 = vmatpush2.bf16.msra.mxu0 %v6123
        %6167 = vmatprep.subr.bf16.mxu0 0
        %6168 = vmatpush2.bf16.msra.mxu0 %v6122
        %6169 = vmatprep.subr.bf16.mxu0 0
        %6170 = vmatpush2.bf16.msra.mxu0 %v6121
        %6171 = vmatprep.subr.bf16.mxu0 0
        %6172 = vmatpush2.bf16.msra.mxu0 %v6120
        %6173 = vmatprep.subr.bf16.mxu0 0
        %6174 = vmatpush2.bf16.msra.mxu0 %v6119
        %6175 = vmatprep.mubr.bf16.mxu0 %v5945
        %6176 = vmatmul.mubr.bf16.gmra.mxu0 %v5944
        %v6177 = vpop.f32.mrf.mxu0
        %v6178 = vadd.f32 %v6045, %v6177
        %v6179 = vpop.f32.mrf.mxu0
        %v6180 = vpop.f32.mrf.mxu0
        %v6181 = vadd.f32 %v6045, %v6180
        %v6182 = vpop.f32.mrf.mxu0
        %6183 = vmatprep.mubr.bf16.mxu0 %v5947
        %6184 = vmatmul.mubr.bf16.gmra.mxu0 %v5946
        %v6185 = vpop.f32.mrf.mxu0
        %v6186 = vadd.f32 %v6045, %v6185
        %v6187 = vpop.f32.mrf.mxu0
        %v6188 = vpop.f32.mrf.mxu0
        %v6189 = vadd.f32 %v6045, %v6188
        %v6190 = vpop.f32.mrf.mxu0
        %6191 = vmatprep.mubr.bf16.mxu0 %v5949
        %6192 = vmatmul.mubr.bf16.gmra.mxu0 %v5948
        %v6193 = vpop.f32.mrf.mxu0
        %v6194 = vadd.f32 %v6045, %v6193
        %v6195 = vpop.f32.mrf.mxu0
        %v6196 = vpop.f32.mrf.mxu0
        %v6197 = vadd.f32 %v6045, %v6196
        %v6198 = vpop.f32.mrf.mxu0
        %6199 = vmatprep.mubr.bf16.mxu0 %v5951
        %6200 = vmatmul.mubr.bf16.gmra.mxu0 %v5950
        %v6201 = vpop.f32.mrf.mxu0
        %v6202 = vadd.f32 %v6045, %v6201
        %v6203 = vpop.f32.mrf.mxu0
        %v6204 = vpop.f32.mrf.mxu0
        %v6205 = vadd.f32 %v6045, %v6204
        %v6206 = vpop.f32.mrf.mxu0
        %6207 = vmatprep.mubr.bf16.mxu0 %v5953
        %6208 = vmatmul.mubr.bf16.gmra.mxu0 %v5952
        %v6209 = vpop.f32.mrf.mxu0
        %v6210 = vadd.f32 %v6045, %v6209
        %v6211 = vpop.f32.mrf.mxu0
        %v6212 = vpop.f32.mrf.mxu0
        %v6213 = vadd.f32 %v6045, %v6212
        %v6214 = vpop.f32.mrf.mxu0
        %6215 = vmatprep.mubr.bf16.mxu0 %v5955
        %6216 = vmatmul.mubr.bf16.gmra.mxu0 %v5954
        %v6217 = vpop.f32.mrf.mxu0
        %v6218 = vadd.f32 %v6045, %v6217
        %v6219 = vpop.f32.mrf.mxu0
        %v6220 = vpop.f32.mrf.mxu0
        %v6221 = vadd.f32 %v6045, %v6220
        %v6222 = vpop.f32.mrf.mxu0
        %6223 = vmatprep.mubr.bf16.mxu0 %v5957
        %6224 = vmatmul.mubr.bf16.gmra.mxu0 %v5956
        %v6225 = vpop.f32.mrf.mxu0
        %v6226 = vadd.f32 %v6045, %v6225
        %v6227 = vpop.f32.mrf.mxu0
        %v6228 = vpop.f32.mrf.mxu0
        %v6229 = vadd.f32 %v6045, %v6228
        %v6230 = vpop.f32.mrf.mxu0
        %6231 = vmatprep.mubr.bf16.mxu0 %v5959
        %6232 = vmatmul.mubr.bf16.gmra.mxu0 %v5958
        %v6233 = vpop.f32.mrf.mxu0
        %v6234 = vadd.f32 %v6045, %v6233
        %v6235 = vpop.f32.mrf.mxu0
        %v6236 = vpop.f32.mrf.mxu0
        %v6237 = vadd.f32 %v6045, %v6236
        %v6238 = vpop.f32.mrf.mxu0
        %6239 = vmatprep.mubr.bf16.mxu0 %v5961
        %6240 = vmatmul.mubr.bf16.gmra.mxu0 %v5960
        %v6241 = vpop.f32.mrf.mxu0
        %v6242 = vadd.f32 %v6045, %v6241
        %v6243 = vpop.f32.mrf.mxu0
        %v6244 = vpop.f32.mrf.mxu0
        %v6245 = vadd.f32 %v6045, %v6244
        %v6246 = vpop.f32.mrf.mxu0
        %6247 = vmatprep.mubr.bf16.mxu0 %v5963
        %6248 = vmatmul.mubr.bf16.gmra.mxu0 %v5962
        %v6249 = vpop.f32.mrf.mxu0
        %v6250 = vadd.f32 %v6045, %v6249
        %v6251 = vpop.f32.mrf.mxu0
        %v6252 = vpop.f32.mrf.mxu0
        %v6253 = vadd.f32 %v6045, %v6252
        %v6254 = vpop.f32.mrf.mxu0
        %6255 = vmatprep.mubr.bf16.mxu0 %v5965
        %6256 = vmatmul.mubr.bf16.gmra.mxu0 %v5964
        %v6257 = vpop.f32.mrf.mxu0
        %v6258 = vadd.f32 %v6045, %v6257
        %v6259 = vpop.f32.mrf.mxu0
        %v6260 = vpop.f32.mrf.mxu0
        %v6261 = vadd.f32 %v6045, %v6260
        %v6262 = vpop.f32.mrf.mxu0
        %6263 = vmatprep.mubr.bf16.mxu0 %v5967
        %6264 = vmatmul.mubr.bf16.gmra.mxu0 %v5966
        %v6265 = vpop.f32.mrf.mxu0
        %v6266 = vadd.f32 %v6045, %v6265
        %v6267 = vpop.f32.mrf.mxu0
        %v6268 = vpop.f32.mrf.mxu0
        %v6269 = vadd.f32 %v6045, %v6268
        %v6270 = vpop.f32.mrf.mxu0
        %6271 = vmatprep.mubr.bf16.mxu0 %v5969
        %6272 = vmatmul.mubr.bf16.gmra.mxu0 %v5968
        %v6273 = vpop.f32.mrf.mxu0
        %v6274 = vadd.f32 %v6045, %v6273
        %v6275 = vpop.f32.mrf.mxu0
        %v6276 = vpop.f32.mrf.mxu0
        %v6277 = vadd.f32 %v6045, %v6276
        %v6278 = vpop.f32.mrf.mxu0
        %6279 = vmatprep.mubr.bf16.mxu0 %v5971
        %6280 = vmatmul.mubr.bf16.gmra.mxu0 %v5970
        %v6281 = vpop.f32.mrf.mxu0
        %v6282 = vadd.f32 %v6045, %v6281
        %v6283 = vpop.f32.mrf.mxu0
        %v6284 = vpop.f32.mrf.mxu0
        %v6285 = vadd.f32 %v6045, %v6284
        %v6286 = vpop.f32.mrf.mxu0
        %6287 = vmatprep.mubr.bf16.mxu0 %v5973
        %6288 = vmatmul.mubr.bf16.gmra.mxu0 %v5972
        %v6289 = vpop.f32.mrf.mxu0
        %v6290 = vadd.f32 %v6045, %v6289
        %v6291 = vpop.f32.mrf.mxu0
        %v6292 = vpop.f32.mrf.mxu0
        %v6293 = vadd.f32 %v6045, %v6292
        %v6294 = vpop.f32.mrf.mxu0
        %6295 = vmatprep.mubr.bf16.mxu0 %v5975
        %6296 = vmatmul.mubr.bf16.gmra.mxu0 %v5974
        %v6297 = vpop.f32.mrf.mxu0
        %v6298 = vadd.f32 %v6045, %v6297
        %v6299 = vpop.f32.mrf.mxu0
        %v6300 = vpop.f32.mrf.mxu0
        %v6301 = vadd.f32 %v6045, %v6300
        %v6302 = vpop.f32.mrf.mxu0
        %6303 = vmatprep.mubr.bf16.mxu0 %v5977
        %6304 = vmatmul.mubr.bf16.gmra.mxu0 %v5976
        %v6305 = vpop.f32.mrf.mxu0
        %v6306 = vadd.f32 %v6045, %v6305
        %v6307 = vpop.f32.mrf.mxu0
        %v6308 = vpop.f32.mrf.mxu0
        %v6309 = vadd.f32 %v6045, %v6308
        %v6310 = vpop.f32.mrf.mxu0
        %6311 = vmatprep.mubr.bf16.mxu0 %v5979
        %6312 = vmatmul.mubr.bf16.gmra.mxu0 %v5978
        %v6313 = vpop.f32.mrf.mxu0
        %v6314 = vadd.f32 %v6045, %v6313
        %v6315 = vpop.f32.mrf.mxu0
        %v6316 = vpop.f32.mrf.mxu0
        %v6317 = vadd.f32 %v6045, %v6316
        %v6318 = vpop.f32.mrf.mxu0
        %6319 = vmatprep.mubr.bf16.mxu0 %v5981
        %6320 = vmatmul.mubr.bf16.gmra.mxu0 %v5980
        %v6321 = vpop.f32.mrf.mxu0
        %v6322 = vadd.f32 %v6045, %v6321
        %v6323 = vpop.f32.mrf.mxu0
        %v6324 = vpop.f32.mrf.mxu0
        %v6325 = vadd.f32 %v6045, %v6324
        %v6326 = vpop.f32.mrf.mxu0
        %6327 = vmatprep.mubr.bf16.mxu0 %v5983
        %6328 = vmatmul.mubr.bf16.gmra.mxu0 %v5982
        %v6329 = vpop.f32.mrf.mxu0
        %v6330 = vadd.f32 %v6045, %v6329
        %v6331 = vpop.f32.mrf.mxu0
        %v6332 = vpop.f32.mrf.mxu0
        %v6333 = vadd.f32 %v6045, %v6332
        %v6334 = vpop.f32.mrf.mxu0
        %6335 = vmatprep.mubr.bf16.mxu0 %v5985
        %6336 = vmatmul.mubr.bf16.gmra.mxu0 %v5984
        %v6337 = vpop.f32.mrf.mxu0
        %v6338 = vadd.f32 %v6045, %v6337
        %v6339 = vpop.f32.mrf.mxu0
        %v6340 = vpop.f32.mrf.mxu0
        %v6341 = vadd.f32 %v6045, %v6340
        %v6342 = vpop.f32.mrf.mxu0
        %6343 = vmatprep.mubr.bf16.mxu0 %v5987
        %6344 = vmatmul.mubr.bf16.gmra.mxu0 %v5986
        %v6345 = vpop.f32.mrf.mxu0
        %v6346 = vadd.f32 %v6045, %v6345
        %v6347 = vpop.f32.mrf.mxu0
        %v6348 = vpop.f32.mrf.mxu0
        %v6349 = vadd.f32 %v6045, %v6348
        %v6350 = vpop.f32.mrf.mxu0
        %6351 = vmatprep.mubr.bf16.mxu0 %v5989
        %6352 = vmatmul.mubr.bf16.gmra.mxu0 %v5988
        %v6353 = vpop.f32.mrf.mxu0
        %v6354 = vadd.f32 %v6045, %v6353
        %v6355 = vpop.f32.mrf.mxu0
        %v6356 = vpop.f32.mrf.mxu0
        %v6357 = vadd.f32 %v6045, %v6356
        %v6358 = vpop.f32.mrf.mxu0
        %6359 = vmatprep.mubr.bf16.mxu0 %v5991
        %6360 = vmatmul.mubr.bf16.gmra.mxu0 %v5990
        %v6361 = vpop.f32.mrf.mxu0
        %v6362 = vadd.f32 %v6045, %v6361
        %v6363 = vpop.f32.mrf.mxu0
        %v6364 = vpop.f32.mrf.mxu0
        %v6365 = vadd.f32 %v6045, %v6364
        %v6366 = vpop.f32.mrf.mxu0
        %6367 = vmatprep.mubr.bf16.mxu0 %v5993
        %6368 = vmatmul.mubr.bf16.gmra.mxu0 %v5992
        %v6369 = vpop.f32.mrf.mxu0
        %v6370 = vadd.f32 %v6045, %v6369
        %v6371 = vpop.f32.mrf.mxu0
        %v6372 = vpop.f32.mrf.mxu0
        %v6373 = vadd.f32 %v6045, %v6372
        %v6374 = vpop.f32.mrf.mxu0
        %6375 = vmatprep.mubr.bf16.mxu0 %v5995
        %6376 = vmatmul.mubr.bf16.gmra.mxu0 %v5994
        %v6377 = vpop.f32.mrf.mxu0
        %v6378 = vadd.f32 %v6045, %v6377
        %v6379 = vpop.f32.mrf.mxu0
        %v6380 = vpop.f32.mrf.mxu0
        %v6381 = vadd.f32 %v6045, %v6380
        %v6382 = vpop.f32.mrf.mxu0
        %6383 = vmatprep.mubr.bf16.mxu0 %v5997
        %6384 = vmatmul.mubr.bf16.gmra.mxu0 %v5996
        %v6385 = vpop.f32.mrf.mxu0
        %v6386 = vadd.f32 %v6045, %v6385
        %v6387 = vpop.f32.mrf.mxu0
        %v6388 = vpop.f32.mrf.mxu0
        %v6389 = vadd.f32 %v6045, %v6388
        %v6390 = vpop.f32.mrf.mxu0
        %6391 = vmatprep.mubr.bf16.mxu0 %v5999
        %6392 = vmatmul.mubr.bf16.gmra.mxu0 %v5998
        %v6393 = vpop.f32.mrf.mxu0
        %v6394 = vadd.f32 %v6045, %v6393
        %v6395 = vpop.f32.mrf.mxu0
        %v6396 = vpop.f32.mrf.mxu0
        %v6397 = vadd.f32 %v6045, %v6396
        %v6398 = vpop.f32.mrf.mxu0
        %6399 = vmatprep.mubr.bf16.mxu0 %v6001
        %6400 = vmatmul.mubr.bf16.gmra.mxu0 %v6000
        %v6401 = vpop.f32.mrf.mxu0
        %v6402 = vadd.f32 %v6045, %v6401
        %v6403 = vpop.f32.mrf.mxu0
        %v6404 = vpop.f32.mrf.mxu0
        %v6405 = vadd.f32 %v6045, %v6404
        %v6406 = vpop.f32.mrf.mxu0
        %6407 = vmatprep.mubr.bf16.mxu0 %v6003
        %6408 = vmatmul.mubr.bf16.gmra.mxu0 %v6002
        %v6409 = vpop.f32.mrf.mxu0
        %v6410 = vadd.f32 %v6045, %v6409
        %v6411 = vpop.f32.mrf.mxu0
        %v6412 = vpop.f32.mrf.mxu0
        %v6413 = vadd.f32 %v6045, %v6412
        %v6414 = vpop.f32.mrf.mxu0
        %6415 = vmatprep.mubr.bf16.mxu0 %v6005
        %6416 = vmatmul.mubr.bf16.gmra.mxu0 %v6004
        %v6417 = vpop.f32.mrf.mxu0
        %v6418 = vadd.f32 %v6045, %v6417
        %v6419 = vpop.f32.mrf.mxu0
        %v6420 = vpop.f32.mrf.mxu0
        %v6421 = vadd.f32 %v6045, %v6420
        %v6422 = vpop.f32.mrf.mxu0
        %6423 = vmatprep.mubr.bf16.mxu0 %v6007
        %6424 = vmatmul.mubr.bf16.gmra.mxu0 %v6006
        %v6425 = vpop.f32.mrf.mxu0
        %v6426 = vadd.f32 %v6045, %v6425
        %v6427 = vpop.f32.mrf.mxu0
        %v6428 = vpop.f32.mrf.mxu0
        %v6429 = vadd.f32 %v6045, %v6428
        %v6430 = vpop.f32.mrf.mxu0
        %6431 = vdwg.mxu0
        %v6432 = vmax.f32 %v6178, 0.0
        %v6433 = vmax.f32 %v6181, 0.0
        %v6434 = vmax.f32 %v6186, 0.0
        %v6435 = vmax.f32 %v6189, 0.0
        %v6436 = vmax.f32 %v6194, 0.0
        %v6437 = vmax.f32 %v6197, 0.0
        %v6438 = vmax.f32 %v6202, 0.0
        %v6439 = vmax.f32 %v6205, 0.0
        %v6440 = vmax.f32 %v6210, 0.0
        %v6441 = vmax.f32 %v6213, 0.0
        %v6442 = vmax.f32 %v6218, 0.0
        %v6443 = vmax.f32 %v6221, 0.0
        %v6444 = vmax.f32 %v6226, 0.0
        %v6445 = vmax.f32 %v6229, 0.0
        %v6446 = vmax.f32 %v6234, 0.0
        %v6447 = vmax.f32 %v6237, 0.0
        %v6448 = vmax.f32 %v6242, 0.0
        %v6449 = vmax.f32 %v6245, 0.0
        %v6450 = vmax.f32 %v6250, 0.0
        %v6451 = vmax.f32 %v6253, 0.0
        %v6452 = vmax.f32 %v6258, 0.0
        %v6453 = vmax.f32 %v6261, 0.0
        %v6454 = vmax.f32 %v6266, 0.0
        %v6455 = vmax.f32 %v6269, 0.0
        %v6456 = vmax.f32 %v6274, 0.0
        %v6457 = vmax.f32 %v6277, 0.0
        %v6458 = vmax.f32 %v6282, 0.0
        %v6459 = vmax.f32 %v6285, 0.0
        %v6460 = vmax.f32 %v6290, 0.0
        %v6461 = vmax.f32 %v6293, 0.0
        %v6462 = vmax.f32 %v6298, 0.0
        %v6463 = vmax.f32 %v6301, 0.0
        %v6464 = vmax.f32 %v6306, 0.0
        %v6465 = vmax.f32 %v6309, 0.0
        %v6466 = vmax.f32 %v6314, 0.0
        %v6467 = vmax.f32 %v6317, 0.0
        %v6468 = vmax.f32 %v6322, 0.0
        %v6469 = vmax.f32 %v6325, 0.0
        %v6470 = vmax.f32 %v6330, 0.0
        %v6471 = vmax.f32 %v6333, 0.0
        %v6472 = vmax.f32 %v6338, 0.0
        %v6473 = vmax.f32 %v6341, 0.0
        %v6474 = vmax.f32 %v6346, 0.0
        %v6475 = vmax.f32 %v6349, 0.0
        %v6476 = vmax.f32 %v6354, 0.0
        %v6477 = vmax.f32 %v6357, 0.0
        %v6478 = vmax.f32 %v6362, 0.0
        %v6479 = vmax.f32 %v6365, 0.0
        %v6480 = vmax.f32 %v6370, 0.0
        %v6481 = vmax.f32 %v6373, 0.0
        %v6482 = vmax.f32 %v6378, 0.0
        %v6483 = vmax.f32 %v6381, 0.0
        %v6484 = vmax.f32 %v6386, 0.0
        %v6485 = vmax.f32 %v6389, 0.0
        %v6486 = vmax.f32 %v6394, 0.0
        %v6487 = vmax.f32 %v6397, 0.0
        %v6488 = vmax.f32 %v6402, 0.0
        %v6489 = vmax.f32 %v6405, 0.0
        %v6490 = vmax.f32 %v6410, 0.0
        %v6491 = vmax.f32 %v6413, 0.0
        %v6492 = vmax.f32 %v6418, 0.0
        %v6493 = vmax.f32 %v6421, 0.0
        %v6494 = vmax.f32 %v6426, 0.0
        %v6495 = vmax.f32 %v6429, 0.0
        %v6496 = vld [vmem:[#allocation14] sm:$0x1]
        %v6498 = vlaneseq
        %v6499 = vshrl.u32 %v6498, 7
        %v6500 = vsub.s32 0, %v6499
        %v6501 = vrot.slane %v6496, %v6500
        %v6503 = vmul.f32 %v6432, %v6501
        %v6504 = vmul.f32 %v6433, %v6501
        %v6505 = vmul.f32 %v6434, %v6501
        %v6506 = vmul.f32 %v6435, %v6501
        %v6507 = vmul.f32 %v6436, %v6501
        %v6508 = vmul.f32 %v6437, %v6501
        %v6509 = vmul.f32 %v6438, %v6501
        %v6510 = vmul.f32 %v6439, %v6501
        %v6511 = vmul.f32 %v6440, %v6501
        %v6512 = vmul.f32 %v6441, %v6501
        %v6513 = vmul.f32 %v6442, %v6501
        %v6514 = vmul.f32 %v6443, %v6501
        %v6515 = vmul.f32 %v6444, %v6501
        %v6516 = vmul.f32 %v6445, %v6501
        %v6517 = vmul.f32 %v6446, %v6501
        %v6518 = vmul.f32 %v6447, %v6501
        %v6519 = vmul.f32 %v6448, %v6501
        %v6520 = vmul.f32 %v6449, %v6501
        %v6521 = vmul.f32 %v6450, %v6501
        %v6522 = vmul.f32 %v6451, %v6501
        %v6523 = vmul.f32 %v6452, %v6501
        %v6524 = vmul.f32 %v6453, %v6501
        %v6525 = vmul.f32 %v6454, %v6501
        %v6526 = vmul.f32 %v6455, %v6501
        %v6527 = vmul.f32 %v6456, %v6501
        %v6528 = vmul.f32 %v6457, %v6501
        %v6529 = vmul.f32 %v6458, %v6501
        %v6530 = vmul.f32 %v6459, %v6501
        %v6531 = vmul.f32 %v6460, %v6501
        %v6532 = vmul.f32 %v6461, %v6501
        %v6533 = vmul.f32 %v6462, %v6501
        %v6534 = vmul.f32 %v6463, %v6501
        %v6535 = vmul.f32 %v6464, %v6501
        %v6536 = vmul.f32 %v6465, %v6501
        %v6537 = vmul.f32 %v6466, %v6501
        %v6538 = vmul.f32 %v6467, %v6501
        %v6539 = vmul.f32 %v6468, %v6501
        %v6540 = vmul.f32 %v6469, %v6501
        %v6541 = vmul.f32 %v6470, %v6501
        %v6542 = vmul.f32 %v6471, %v6501
        %v6543 = vmul.f32 %v6472, %v6501
        %v6544 = vmul.f32 %v6473, %v6501
        %v6545 = vmul.f32 %v6474, %v6501
        %v6546 = vmul.f32 %v6475, %v6501
        %v6547 = vmul.f32 %v6476, %v6501
        %v6548 = vmul.f32 %v6477, %v6501
        %v6549 = vmul.f32 %v6478, %v6501
        %v6550 = vmul.f32 %v6479, %v6501
        %v6551 = vmul.f32 %v6480, %v6501
        %v6552 = vmul.f32 %v6481, %v6501
        %v6553 = vmul.f32 %v6482, %v6501
        %v6554 = vmul.f32 %v6483, %v6501
        %v6555 = vmul.f32 %v6484, %v6501
        %v6556 = vmul.f32 %v6485, %v6501
        %v6557 = vmul.f32 %v6486, %v6501
        %v6558 = vmul.f32 %v6487, %v6501
        %v6559 = vmul.f32 %v6488, %v6501
        %v6560 = vmul.f32 %v6489, %v6501
        %v6561 = vmul.f32 %v6490, %v6501
        %v6562 = vmul.f32 %v6491, %v6501
        %v6563 = vmul.f32 %v6492, %v6501
        %v6564 = vmul.f32 %v6493, %v6501
        %v6565 = vmul.f32 %v6494, %v6501
        %v6566 = vmul.f32 %v6495, %v6501
        %6567 = vadd.xlane.f32.xlu0 %v6503
        %v6568 = vpop.xlane.xlu0 %6567
        %6569 = vadd.xlane.f32.xlu0 %v6504
        %v6570 = vpop.xlane.xlu0 %6569
        %6571 = vadd.xlane.f32.xlu0 %v6505
        %v6572 = vpop.xlane.xlu0 %6571
        %6573 = vadd.xlane.f32.xlu0 %v6506
        %v6574 = vpop.xlane.xlu0 %6573
        %6575 = vadd.xlane.f32.xlu0 %v6507
        %v6576 = vpop.xlane.xlu0 %6575
        %6577 = vadd.xlane.f32.xlu0 %v6508
        %v6578 = vpop.xlane.xlu0 %6577
        %6579 = vadd.xlane.f32.xlu0 %v6509
        %v6580 = vpop.xlane.xlu0 %6579
        %6581 = vadd.xlane.f32.xlu0 %v6510
        %v6582 = vpop.xlane.xlu0 %6581
        %6583 = vadd.xlane.f32.xlu0 %v6511
        %v6584 = vpop.xlane.xlu0 %6583
        %6585 = vadd.xlane.f32.xlu0 %v6512
        %v6586 = vpop.xlane.xlu0 %6585
        %6587 = vadd.xlane.f32.xlu0 %v6513
        %v6588 = vpop.xlane.xlu0 %6587
        %6589 = vadd.xlane.f32.xlu0 %v6514
        %v6590 = vpop.xlane.xlu0 %6589
        %6591 = vadd.xlane.f32.xlu0 %v6515
        %v6592 = vpop.xlane.xlu0 %6591
        %6593 = vadd.xlane.f32.xlu0 %v6516
        %v6594 = vpop.xlane.xlu0 %6593
        %6595 = vadd.xlane.f32.xlu0 %v6517
        %v6596 = vpop.xlane.xlu0 %6595
        %6597 = vadd.xlane.f32.xlu0 %v6518
        %v6598 = vpop.xlane.xlu0 %6597
        %6599 = vadd.xlane.f32.xlu0 %v6519
        %v6600 = vpop.xlane.xlu0 %6599
        %6601 = vadd.xlane.f32.xlu0 %v6520
        %v6602 = vpop.xlane.xlu0 %6601
        %6603 = vadd.xlane.f32.xlu0 %v6521
        %v6604 = vpop.xlane.xlu0 %6603
        %6605 = vadd.xlane.f32.xlu0 %v6522
        %v6606 = vpop.xlane.xlu0 %6605
        %6607 = vadd.xlane.f32.xlu0 %v6523
        %v6608 = vpop.xlane.xlu0 %6607
        %6609 = vadd.xlane.f32.xlu0 %v6524
        %v6610 = vpop.xlane.xlu0 %6609
        %6611 = vadd.xlane.f32.xlu0 %v6525
        %v6612 = vpop.xlane.xlu0 %6611
        %6613 = vadd.xlane.f32.xlu0 %v6526
        %v6614 = vpop.xlane.xlu0 %6613
        %6615 = vadd.xlane.f32.xlu0 %v6527
        %v6616 = vpop.xlane.xlu0 %6615
        %6617 = vadd.xlane.f32.xlu0 %v6528
        %v6618 = vpop.xlane.xlu0 %6617
        %6619 = vadd.xlane.f32.xlu0 %v6529
        %v6620 = vpop.xlane.xlu0 %6619
        %6621 = vadd.xlane.f32.xlu0 %v6530
        %v6622 = vpop.xlane.xlu0 %6621
        %6623 = vadd.xlane.f32.xlu0 %v6531
        %v6624 = vpop.xlane.xlu0 %6623
        %6625 = vadd.xlane.f32.xlu0 %v6532
        %v6626 = vpop.xlane.xlu0 %6625
        %6627 = vadd.xlane.f32.xlu0 %v6533
        %v6628 = vpop.xlane.xlu0 %6627
        %6629 = vadd.xlane.f32.xlu0 %v6534
        %v6630 = vpop.xlane.xlu0 %6629
        %6631 = vadd.xlane.f32.xlu0 %v6535
        %v6632 = vpop.xlane.xlu0 %6631
        %6633 = vadd.xlane.f32.xlu0 %v6536
        %v6634 = vpop.xlane.xlu0 %6633
        %6635 = vadd.xlane.f32.xlu0 %v6537
        %v6636 = vpop.xlane.xlu0 %6635
        %6637 = vadd.xlane.f32.xlu0 %v6538
        %v6638 = vpop.xlane.xlu0 %6637
        %6639 = vadd.xlane.f32.xlu0 %v6539
        %v6640 = vpop.xlane.xlu0 %6639
        %6641 = vadd.xlane.f32.xlu0 %v6540
        %v6642 = vpop.xlane.xlu0 %6641
        %6643 = vadd.xlane.f32.xlu0 %v6541
        %v6644 = vpop.xlane.xlu0 %6643
        %6645 = vadd.xlane.f32.xlu0 %v6542
        %v6646 = vpop.xlane.xlu0 %6645
        %6647 = vadd.xlane.f32.xlu0 %v6543
        %v6648 = vpop.xlane.xlu0 %6647
        %6649 = vadd.xlane.f32.xlu0 %v6544
        %v6650 = vpop.xlane.xlu0 %6649
        %6651 = vadd.xlane.f32.xlu0 %v6545
        %v6652 = vpop.xlane.xlu0 %6651
        %6653 = vadd.xlane.f32.xlu0 %v6546
        %v6654 = vpop.xlane.xlu0 %6653
        %6655 = vadd.xlane.f32.xlu0 %v6547
        %v6656 = vpop.xlane.xlu0 %6655
        %6657 = vadd.xlane.f32.xlu0 %v6548
        %v6658 = vpop.xlane.xlu0 %6657
        %6659 = vadd.xlane.f32.xlu0 %v6549
        %v6660 = vpop.xlane.xlu0 %6659
        %6661 = vadd.xlane.f32.xlu0 %v6550
        %v6662 = vpop.xlane.xlu0 %6661
        %6663 = vadd.xlane.f32.xlu0 %v6551
        %v6664 = vpop.xlane.xlu0 %6663
        %6665 = vadd.xlane.f32.xlu0 %v6552
        %v6666 = vpop.xlane.xlu0 %6665
        %6667 = vadd.xlane.f32.xlu0 %v6553
        %v6668 = vpop.xlane.xlu0 %6667
        %6669 = vadd.xlane.f32.xlu0 %v6554
        %v6670 = vpop.xlane.xlu0 %6669
        %6671 = vadd.xlane.f32.xlu0 %v6555
        %v6672 = vpop.xlane.xlu0 %6671
        %6673 = vadd.xlane.f32.xlu0 %v6556
        %v6674 = vpop.xlane.xlu0 %6673
        %6675 = vadd.xlane.f32.xlu0 %v6557
        %v6676 = vpop.xlane.xlu0 %6675
        %6677 = vadd.xlane.f32.xlu0 %v6558
        %v6678 = vpop.xlane.xlu0 %6677
        %6679 = vadd.xlane.f32.xlu0 %v6559
        %v6680 = vpop.xlane.xlu0 %6679
        %6681 = vadd.xlane.f32.xlu0 %v6560
        %v6682 = vpop.xlane.xlu0 %6681
        %6683 = vadd.xlane.f32.xlu0 %v6561
        %v6684 = vpop.xlane.xlu0 %6683
        %6685 = vadd.xlane.f32.xlu0 %v6562
        %v6686 = vpop.xlane.xlu0 %6685
        %6687 = vadd.xlane.f32.xlu0 %v6563
        %v6688 = vpop.xlane.xlu0 %6687
        %6689 = vadd.xlane.f32.xlu0 %v6564
        %v6690 = vpop.xlane.xlu0 %6689
        %6691 = vadd.xlane.f32.xlu0 %v6565
        %v6692 = vpop.xlane.xlu0 %6691
        %6693 = vadd.xlane.f32.xlu0 %v6566
        %v6694 = vpop.xlane.xlu0 %6693
        %s6695 = sld [smem:[#allocation2]]
        %v6696 = vstv %s6695
        %v6697 = vadd.f32 %v6568, %v6696
        %v6698 = vadd.f32 %v6570, %v6696
        %v6699 = vadd.f32 %v6572, %v6696
        %v6700 = vadd.f32 %v6574, %v6696
        %v6701 = vadd.f32 %v6576, %v6696
        %v6702 = vadd.f32 %v6578, %v6696
        %v6703 = vadd.f32 %v6580, %v6696
        %v6704 = vadd.f32 %v6582, %v6696
        %v6705 = vadd.f32 %v6584, %v6696
        %v6706 = vadd.f32 %v6586, %v6696
        %v6707 = vadd.f32 %v6588, %v6696
        %v6708 = vadd.f32 %v6590, %v6696
        %v6709 = vadd.f32 %v6592, %v6696
        %v6710 = vadd.f32 %v6594, %v6696
        %v6711 = vadd.f32 %v6596, %v6696
        %v6712 = vadd.f32 %v6598, %v6696
        %v6713 = vadd.f32 %v6600, %v6696
        %v6714 = vadd.f32 %v6602, %v6696
        %v6715 = vadd.f32 %v6604, %v6696
        %v6716 = vadd.f32 %v6606, %v6696
        %v6717 = vadd.f32 %v6608, %v6696
        %v6718 = vadd.f32 %v6610, %v6696
        %v6719 = vadd.f32 %v6612, %v6696
        %v6720 = vadd.f32 %v6614, %v6696
        %v6721 = vadd.f32 %v6616, %v6696
        %v6722 = vadd.f32 %v6618, %v6696
        %v6723 = vadd.f32 %v6620, %v6696
        %v6724 = vadd.f32 %v6622, %v6696
        %v6725 = vadd.f32 %v6624, %v6696
        %v6726 = vadd.f32 %v6626, %v6696
        %v6727 = vadd.f32 %v6628, %v6696
        %v6728 = vadd.f32 %v6630, %v6696
        %v6729 = vadd.f32 %v6632, %v6696
        %v6730 = vadd.f32 %v6634, %v6696
        %v6731 = vadd.f32 %v6636, %v6696
        %v6732 = vadd.f32 %v6638, %v6696
        %v6733 = vadd.f32 %v6640, %v6696
        %v6734 = vadd.f32 %v6642, %v6696
        %v6735 = vadd.f32 %v6644, %v6696
        %v6736 = vadd.f32 %v6646, %v6696
        %v6737 = vadd.f32 %v6648, %v6696
        %v6738 = vadd.f32 %v6650, %v6696
        %v6739 = vadd.f32 %v6652, %v6696
        %v6740 = vadd.f32 %v6654, %v6696
        %v6741 = vadd.f32 %v6656, %v6696
        %v6742 = vadd.f32 %v6658, %v6696
        %v6743 = vadd.f32 %v6660, %v6696
        %v6744 = vadd.f32 %v6662, %v6696
        %v6745 = vadd.f32 %v6664, %v6696
        %v6746 = vadd.f32 %v6666, %v6696
        %v6747 = vadd.f32 %v6668, %v6696
        %v6748 = vadd.f32 %v6670, %v6696
        %v6749 = vadd.f32 %v6672, %v6696
        %v6750 = vadd.f32 %v6674, %v6696
        %v6751 = vadd.f32 %v6676, %v6696
        %v6752 = vadd.f32 %v6678, %v6696
        %v6753 = vadd.f32 %v6680, %v6696
        %v6754 = vadd.f32 %v6682, %v6696
        %v6755 = vadd.f32 %v6684, %v6696
        %v6756 = vadd.f32 %v6686, %v6696
        %v6757 = vadd.f32 %v6688, %v6696
        %v6758 = vadd.f32 %v6690, %v6696
        %v6759 = vadd.f32 %v6692, %v6696
        %v6760 = vadd.f32 %v6694, %v6696
        %vm6761 = vcmask 7168
        %6762 = vst.msk [vmem:[%s449] sm:$0xff] %vm6761, %v6697
        %6763 = vst.msk [vmem:[%s449 + $0x8] sm:$0xff] %vm6761, %v6698
        %6764 = vst.msk [vmem:[%s449 + $0x10] sm:$0xff] %vm6761, %v6699
        %6765 = vst.msk [vmem:[%s449 + $0x18] sm:$0xff] %vm6761, %v6700
        %6766 = vst.msk [vmem:[%s449 + $0x20] sm:$0xff] %vm6761, %v6701
        %6767 = vst.msk [vmem:[%s449 + $0x28] sm:$0xff] %vm6761, %v6702
        %6768 = vst.msk [vmem:[%s449 + $0x30] sm:$0xff] %vm6761, %v6703
        %6769 = vst.msk [vmem:[%s449 + $0x38] sm:$0xff] %vm6761, %v6704
        %6770 = vst.msk [vmem:[%s449 + $0x40] sm:$0xff] %vm6761, %v6705
        %6771 = vst.msk [vmem:[%s449 + $0x48] sm:$0xff] %vm6761, %v6706
        %6772 = vst.msk [vmem:[%s449 + $0x50] sm:$0xff] %vm6761, %v6707
        %6773 = vst.msk [vmem:[%s449 + $0x58] sm:$0xff] %vm6761, %v6708
        %6774 = vst.msk [vmem:[%s449 + $0x60] sm:$0xff] %vm6761, %v6709
        %6775 = vst.msk [vmem:[%s449 + $0x68] sm:$0xff] %vm6761, %v6710
        %6776 = vst.msk [vmem:[%s449 + $0x70] sm:$0xff] %vm6761, %v6711
        %6777 = vst.msk [vmem:[%s449 + $0x78] sm:$0xff] %vm6761, %v6712
        %6778 = vst.msk [vmem:[%s449 + $0x80] sm:$0xff] %vm6761, %v6713
        %6779 = vst.msk [vmem:[%s449 + $0x88] sm:$0xff] %vm6761, %v6714
        %6780 = vst.msk [vmem:[%s449 + $0x90] sm:$0xff] %vm6761, %v6715
        %6781 = vst.msk [vmem:[%s449 + $0x98] sm:$0xff] %vm6761, %v6716
        %6782 = vst.msk [vmem:[%s449 + $0xa0] sm:$0xff] %vm6761, %v6717
        %6783 = vst.msk [vmem:[%s449 + $0xa8] sm:$0xff] %vm6761, %v6718
        %6784 = vst.msk [vmem:[%s449 + $0xb0] sm:$0xff] %vm6761, %v6719
        %6785 = vst.msk [vmem:[%s449 + $0xb8] sm:$0xff] %vm6761, %v6720
        %6786 = vst.msk [vmem:[%s449 + $0xc0] sm:$0xff] %vm6761, %v6721
        %6787 = vst.msk [vmem:[%s449 + $0xc8] sm:$0xff] %vm6761, %v6722
        %6788 = vst.msk [vmem:[%s449 + $0xd0] sm:$0xff] %vm6761, %v6723
        %6789 = vst.msk [vmem:[%s449 + $0xd8] sm:$0xff] %vm6761, %v6724
        %6790 = vst.msk [vmem:[%s449 + $0xe0] sm:$0xff] %vm6761, %v6725
        %6791 = vst.msk [vmem:[%s449 + $0xe8] sm:$0xff] %vm6761, %v6726
        %6792 = vst.msk [vmem:[%s449 + $0xf0] sm:$0xff] %vm6761, %v6727
        %6793 = vst.msk [vmem:[%s449 + $0xf8] sm:$0xff] %vm6761, %v6728
        %6794 = vst.msk [vmem:[%s449 + $0x100] sm:$0xff] %vm6761, %v6729
        %6795 = vst.msk [vmem:[%s449 + $0x108] sm:$0xff] %vm6761, %v6730
        %6796 = vst.msk [vmem:[%s449 + $0x110] sm:$0xff] %vm6761, %v6731
        %6797 = vst.msk [vmem:[%s449 + $0x118] sm:$0xff] %vm6761, %v6732
        %6798 = vst.msk [vmem:[%s449 + $0x120] sm:$0xff] %vm6761, %v6733
        %6799 = vst.msk [vmem:[%s449 + $0x128] sm:$0xff] %vm6761, %v6734
        %6800 = vst.msk [vmem:[%s449 + $0x130] sm:$0xff] %vm6761, %v6735
        %6801 = vst.msk [vmem:[%s449 + $0x138] sm:$0xff] %vm6761, %v6736
        %6802 = vst.msk [vmem:[%s449 + $0x140] sm:$0xff] %vm6761, %v6737
        %6803 = vst.msk [vmem:[%s449 + $0x148] sm:$0xff] %vm6761, %v6738
        %6804 = vst.msk [vmem:[%s449 + $0x150] sm:$0xff] %vm6761, %v6739
        %6805 = vst.msk [vmem:[%s449 + $0x158] sm:$0xff] %vm6761, %v6740
        %6806 = vst.msk [vmem:[%s449 + $0x160] sm:$0xff] %vm6761, %v6741
        %6807 = vst.msk [vmem:[%s449 + $0x168] sm:$0xff] %vm6761, %v6742
        %6808 = vst.msk [vmem:[%s449 + $0x170] sm:$0xff] %vm6761, %v6743
        %6809 = vst.msk [vmem:[%s449 + $0x178] sm:$0xff] %vm6761, %v6744
        %6810 = vst.msk [vmem:[%s449 + $0x180] sm:$0xff] %vm6761, %v6745
        %6811 = vst.msk [vmem:[%s449 + $0x188] sm:$0xff] %vm6761, %v6746
        %6812 = vst.msk [vmem:[%s449 + $0x190] sm:$0xff] %vm6761, %v6747
        %6813 = vst.msk [vmem:[%s449 + $0x198] sm:$0xff] %vm6761, %v6748
        %6814 = vst.msk [vmem:[%s449 + $0x1a0] sm:$0xff] %vm6761, %v6749
        %6815 = vst.msk [vmem:[%s449 + $0x1a8] sm:$0xff] %vm6761, %v6750
        %6816 = vst.msk [vmem:[%s449 + $0x1b0] sm:$0xff] %vm6761, %v6751
        %6817 = vst.msk [vmem:[%s449 + $0x1b8] sm:$0xff] %vm6761, %v6752
        %6818 = vst.msk [vmem:[%s449 + $0x1c0] sm:$0xff] %vm6761, %v6753
        %6819 = vst.msk [vmem:[%s449 + $0x1c8] sm:$0xff] %vm6761, %v6754
        %6820 = vst.msk [vmem:[%s449 + $0x1d0] sm:$0xff] %vm6761, %v6755
        %6821 = vst.msk [vmem:[%s449 + $0x1d8] sm:$0xff] %vm6761, %v6756
        %6822 = vst.msk [vmem:[%s449 + $0x1e0] sm:$0xff] %vm6761, %v6757
        %6823 = vst.msk [vmem:[%s449 + $0x1e8] sm:$0xff] %vm6761, %v6758
        %6824 = vst.msk [vmem:[%s449 + $0x1f0] sm:$0xff] %vm6761, %v6759
        %6825 = vst.msk [vmem:[%s449 + $0x1f8] sm:$0xff] %vm6761, %v6760
        %s6826 = sand.u32 %s230, 1
        %s6827 = sand.u32 %s230, 1
        %s6828 = smul.addr %s6827, 512
        %s6829 = scalar_lea.vmem [#allocation16], %s6828
        // Predicated region
        $region89: #{tpu_custom_call.1} parent=55 // pred_check
          %p6830 = pneg %p240
        $region90: #{tpu_custom_call.1} parent=55 // pred_check_branch
          %6832 = sbr.rel (%p6830) target = $region92
        $region91: #{tpu_custom_call.1} parent=55 // pred_region
          %s6833 = smul.u32 64, %s28
          %s6834 = ssub.s32 125, %s6833
          %p6835 = scmp.lt.s32.totalorder %s6834, 64
          %s6836 = scalar_select %p6835, %s6834, 64
          %s6837 = smul.u32 128, %s6836
          %p6838 = scmp.ne.s32.totalorder 0, %s6837
          %s6839 = smul.addr %s6833, 8
          %s6840 = scalar_lea.vmem %s9, %s6839
          // Predicated region
          $region93: #{tpu_custom_call.1} parent=91 // pred_check
            %p6841 = pneg %p6838
          $region94: #{tpu_custom_call.1} parent=91 // pred_check_branch
            %6843 = sbr.rel (%p6841) target = $region96
          $region95: #{tpu_custom_call.1} parent=91 // pred_region
            // Predicated region
            $region97: #{tpu_custom_call.1} parent=95 // pred_check
              _
            $region98: #{tpu_custom_call.1} parent=95 // pred_check_branch
              %6845 = sbr.rel (0) target = $region100
            $region99: #{tpu_custom_call.1} parent=95 // pred_region
              // Predicated region
              $region119: #{tpu_custom_call.1} parent=99 // pred_check
                _
              $region120: #{tpu_custom_call.1} parent=99 // pred_check_branch
                %7021 = sbr.rel (0) target = $region122
              $region121: #{tpu_custom_call.1} parent=99 // pred_region
                %s7022 = sshrl.u32 %s6836, 6
                // While loop
                $region123: #{tpu_custom_call.1} parent=121 // loop_pre_header
                  _
                $region124: #{tpu_custom_call.1} parent=121 // loop_header
                  %s7024 = sphi 0, %s7026
                  %p7025 = scmp.ge.s32.totalorder %s7024, %s7022
                  %s7029 = sphi 0, %s7162
                  %s7030 = sphi %s6829, %s7165
                  %s7031 = sphi %s6840, %s7166
                $region125: #{tpu_custom_call.1} parent=121 // loop_header_branch
                  %7028 = sbr.rel (%p7025) target = $region129
                $region126: #{tpu_custom_call.1} parent=121 // loop_body
                  %v7032 = vld [vmem:[%s7030] sm:$0xff]
                  %7033 = vst [vmem:[%s7031] sm:$0xff] %v7032
                  %v7034 = vld [vmem:[%s7030 + $0x8] sm:$0xff]
                  %7035 = vst [vmem:[%s7031 + $0x8] sm:$0xff] %v7034
                  %v7036 = vld [vmem:[%s7030 + $0x10] sm:$0xff]
                  %7037 = vst [vmem:[%s7031 + $0x10] sm:$0xff] %v7036
                  %v7038 = vld [vmem:[%s7030 + $0x18] sm:$0xff]
                  %7039 = vst [vmem:[%s7031 + $0x18] sm:$0xff] %v7038
                  %v7040 = vld [vmem:[%s7030 + $0x20] sm:$0xff]
                  %7041 = vst [vmem:[%s7031 + $0x20] sm:$0xff] %v7040
                  %v7042 = vld [vmem:[%s7030 + $0x28] sm:$0xff]
                  %7043 = vst [vmem:[%s7031 + $0x28] sm:$0xff] %v7042
                  %v7044 = vld [vmem:[%s7030 + $0x30] sm:$0xff]
                  %7045 = vst [vmem:[%s7031 + $0x30] sm:$0xff] %v7044
                  %v7046 = vld [vmem:[%s7030 + $0x38] sm:$0xff]
                  %7047 = vst [vmem:[%s7031 + $0x38] sm:$0xff] %v7046
                  %v7048 = vld [vmem:[%s7030 + $0x40] sm:$0xff]
                  %7049 = vst [vmem:[%s7031 + $0x40] sm:$0xff] %v7048
                  %v7050 = vld [vmem:[%s7030 + $0x48] sm:$0xff]
                  %7051 = vst [vmem:[%s7031 + $0x48] sm:$0xff] %v7050
                  %v7052 = vld [vmem:[%s7030 + $0x50] sm:$0xff]
                  %7053 = vst [vmem:[%s7031 + $0x50] sm:$0xff] %v7052
                  %v7054 = vld [vmem:[%s7030 + $0x58] sm:$0xff]
                  %7055 = vst [vmem:[%s7031 + $0x58] sm:$0xff] %v7054
                  %v7056 = vld [vmem:[%s7030 + $0x60] sm:$0xff]
                  %7057 = vst [vmem:[%s7031 + $0x60] sm:$0xff] %v7056
                  %v7058 = vld [vmem:[%s7030 + $0x68] sm:$0xff]
                  %7059 = vst [vmem:[%s7031 + $0x68] sm:$0xff] %v7058
                  %v7060 = vld [vmem:[%s7030 + $0x70] sm:$0xff]
                  %7061 = vst [vmem:[%s7031 + $0x70] sm:$0xff] %v7060
                  %v7062 = vld [vmem:[%s7030 + $0x78] sm:$0xff]
                  %7063 = vst [vmem:[%s7031 + $0x78] sm:$0xff] %v7062
                  %v7064 = vld [vmem:[%s7030 + $0x80] sm:$0xff]
                  %7065 = vst [vmem:[%s7031 + $0x80] sm:$0xff] %v7064
                  %v7066 = vld [vmem:[%s7030 + $0x88] sm:$0xff]
                  %7067 = vst [vmem:[%s7031 + $0x88] sm:$0xff] %v7066
                  %v7068 = vld [vmem:[%s7030 + $0x90] sm:$0xff]
                  %7069 = vst [vmem:[%s7031 + $0x90] sm:$0xff] %v7068
                  %v7070 = vld [vmem:[%s7030 + $0x98] sm:$0xff]
                  %7071 = vst [vmem:[%s7031 + $0x98] sm:$0xff] %v7070
                  %v7072 = vld [vmem:[%s7030 + $0xa0] sm:$0xff]
                  %7073 = vst [vmem:[%s7031 + $0xa0] sm:$0xff] %v7072
                  %v7074 = vld [vmem:[%s7030 + $0xa8] sm:$0xff]
                  %7075 = vst [vmem:[%s7031 + $0xa8] sm:$0xff] %v7074
                  %v7076 = vld [vmem:[%s7030 + $0xb0] sm:$0xff]
                  %7077 = vst [vmem:[%s7031 + $0xb0] sm:$0xff] %v7076
                  %v7078 = vld [vmem:[%s7030 + $0xb8] sm:$0xff]
                  %7079 = vst [vmem:[%s7031 + $0xb8] sm:$0xff] %v7078
                  %v7080 = vld [vmem:[%s7030 + $0xc0] sm:$0xff]
                  %7081 = vst [vmem:[%s7031 + $0xc0] sm:$0xff] %v7080
                  %v7082 = vld [vmem:[%s7030 + $0xc8] sm:$0xff]
                  %7083 = vst [vmem:[%s7031 + $0xc8] sm:$0xff] %v7082
                  %v7084 = vld [vmem:[%s7030 + $0xd0] sm:$0xff]
                  %7085 = vst [vmem:[%s7031 + $0xd0] sm:$0xff] %v7084
                  %v7086 = vld [vmem:[%s7030 + $0xd8] sm:$0xff]
                  %7087 = vst [vmem:[%s7031 + $0xd8] sm:$0xff] %v7086
                  %v7088 = vld [vmem:[%s7030 + $0xe0] sm:$0xff]
                  %7089 = vst [vmem:[%s7031 + $0xe0] sm:$0xff] %v7088
                  %v7090 = vld [vmem:[%s7030 + $0xe8] sm:$0xff]
                  %7091 = vst [vmem:[%s7031 + $0xe8] sm:$0xff] %v7090
                  %v7092 = vld [vmem:[%s7030 + $0xf0] sm:$0xff]
                  %7093 = vst [vmem:[%s7031 + $0xf0] sm:$0xff] %v7092
                  %v7094 = vld [vmem:[%s7030 + $0xf8] sm:$0xff]
                  %7095 = vst [vmem:[%s7031 + $0xf8] sm:$0xff] %v7094
                  %v7096 = vld [vmem:[%s7030 + $0x100] sm:$0xff]
                  %7097 = vst [vmem:[%s7031 + $0x100] sm:$0xff] %v7096
                  %v7098 = vld [vmem:[%s7030 + $0x108] sm:$0xff]
                  %7099 = vst [vmem:[%s7031 + $0x108] sm:$0xff] %v7098
                  %v7100 = vld [vmem:[%s7030 + $0x110] sm:$0xff]
                  %7101 = vst [vmem:[%s7031 + $0x110] sm:$0xff] %v7100
                  %v7102 = vld [vmem:[%s7030 + $0x118] sm:$0xff]
                  %7103 = vst [vmem:[%s7031 + $0x118] sm:$0xff] %v7102
                  %v7104 = vld [vmem:[%s7030 + $0x120] sm:$0xff]
                  %7105 = vst [vmem:[%s7031 + $0x120] sm:$0xff] %v7104
                  %v7106 = vld [vmem:[%s7030 + $0x128] sm:$0xff]
                  %7107 = vst [vmem:[%s7031 + $0x128] sm:$0xff] %v7106
                  %v7108 = vld [vmem:[%s7030 + $0x130] sm:$0xff]
                  %7109 = vst [vmem:[%s7031 + $0x130] sm:$0xff] %v7108
                  %v7110 = vld [vmem:[%s7030 + $0x138] sm:$0xff]
                  %7111 = vst [vmem:[%s7031 + $0x138] sm:$0xff] %v7110
                  %v7112 = vld [vmem:[%s7030 + $0x140] sm:$0xff]
                  %7113 = vst [vmem:[%s7031 + $0x140] sm:$0xff] %v7112
                  %v7114 = vld [vmem:[%s7030 + $0x148] sm:$0xff]
                  %7115 = vst [vmem:[%s7031 + $0x148] sm:$0xff] %v7114
                  %v7116 = vld [vmem:[%s7030 + $0x150] sm:$0xff]
                  %7117 = vst [vmem:[%s7031 + $0x150] sm:$0xff] %v7116
                  %v7118 = vld [vmem:[%s7030 + $0x158] sm:$0xff]
                  %7119 = vst [vmem:[%s7031 + $0x158] sm:$0xff] %v7118
                  %v7120 = vld [vmem:[%s7030 + $0x160] sm:$0xff]
                  %7121 = vst [vmem:[%s7031 + $0x160] sm:$0xff] %v7120
                  %v7122 = vld [vmem:[%s7030 + $0x168] sm:$0xff]
                  %7123 = vst [vmem:[%s7031 + $0x168] sm:$0xff] %v7122
                  %v7124 = vld [vmem:[%s7030 + $0x170] sm:$0xff]
                  %7125 = vst [vmem:[%s7031 + $0x170] sm:$0xff] %v7124
                  %v7126 = vld [vmem:[%s7030 + $0x178] sm:$0xff]
                  %7127 = vst [vmem:[%s7031 + $0x178] sm:$0xff] %v7126
                  %v7128 = vld [vmem:[%s7030 + $0x180] sm:$0xff]
                  %7129 = vst [vmem:[%s7031 + $0x180] sm:$0xff] %v7128
                  %v7130 = vld [vmem:[%s7030 + $0x188] sm:$0xff]
                  %7131 = vst [vmem:[%s7031 + $0x188] sm:$0xff] %v7130
                  %v7132 = vld [vmem:[%s7030 + $0x190] sm:$0xff]
                  %7133 = vst [vmem:[%s7031 + $0x190] sm:$0xff] %v7132
                  %v7134 = vld [vmem:[%s7030 + $0x198] sm:$0xff]
                  %7135 = vst [vmem:[%s7031 + $0x198] sm:$0xff] %v7134
                  %v7136 = vld [vmem:[%s7030 + $0x1a0] sm:$0xff]
                  %7137 = vst [vmem:[%s7031 + $0x1a0] sm:$0xff] %v7136
                  %v7138 = vld [vmem:[%s7030 + $0x1a8] sm:$0xff]
                  %7139 = vst [vmem:[%s7031 + $0x1a8] sm:$0xff] %v7138
                  %v7140 = vld [vmem:[%s7030 + $0x1b0] sm:$0xff]
                  %7141 = vst [vmem:[%s7031 + $0x1b0] sm:$0xff] %v7140
                  %v7142 = vld [vmem:[%s7030 + $0x1b8] sm:$0xff]
                  %7143 = vst [vmem:[%s7031 + $0x1b8] sm:$0xff] %v7142
                  %v7144 = vld [vmem:[%s7030 + $0x1c0] sm:$0xff]
                  %7145 = vst [vmem:[%s7031 + $0x1c0] sm:$0xff] %v7144
                  %v7146 = vld [vmem:[%s7030 + $0x1c8] sm:$0xff]
                  %7147 = vst [vmem:[%s7031 + $0x1c8] sm:$0xff] %v7146
                  %v7148 = vld [vmem:[%s7030 + $0x1d0] sm:$0xff]
                  %7149 = vst [vmem:[%s7031 + $0x1d0] sm:$0xff] %v7148
                  %v7150 = vld [vmem:[%s7030 + $0x1d8] sm:$0xff]
                  %7151 = vst [vmem:[%s7031 + $0x1d8] sm:$0xff] %v7150
                  %v7152 = vld [vmem:[%s7030 + $0x1e0] sm:$0xff]
                  %7153 = vst [vmem:[%s7031 + $0x1e0] sm:$0xff] %v7152
                  %v7154 = vld [vmem:[%s7030 + $0x1e8] sm:$0xff]
                  %7155 = vst [vmem:[%s7031 + $0x1e8] sm:$0xff] %v7154
                  %v7156 = vld [vmem:[%s7030 + $0x1f0] sm:$0xff]
                  %7157 = vst [vmem:[%s7031 + $0x1f0] sm:$0xff] %v7156
                  %v7158 = vld [vmem:[%s7030 + $0x1f8] sm:$0xff]
                  %7159 = vst [vmem:[%s7031 + $0x1f8] sm:$0xff] %v7158
                  %s7160 = sadd.s32 1, %s7029
                  %p7161 = scmp.ge.s32.totalorder %s7160, %s7022
                  %s7162 = scalar_select %p7161, 0, %s7160
                  %s7163 = smul.u32 %s7162, 512
                  %s7164 = smul.u32 %s7162, 512
                  %s7165 = scalar_lea.vmem %s6829, %s7163 [#allocation16]
                  %s7166 = scalar_lea.vmem %s6840, %s7164
                $region127: #{tpu_custom_call.1} parent=121 // loop_footer
                  %s7026 = sadd.s32 %s7024, 1
                $region128: #{tpu_custom_call.1} parent=121 // loop_footer_branch
                  %7023 = sbr.rel target = $region124
                $region129: #{tpu_custom_call.1} parent=121 // loop_exit
                  _
                %s7167 = sshrl.u32 %s6836, 6
                %s7168 = sand.u32 %s6836, 63
                %s7169 = smul.u32 %s7167, 64
                %s7170 = smul.u32 8, %s7169
                %s7171 = scalar_lea.vmem %s6829, %s7170 [#allocation16]
                %s7172 = smul.u32 8, %s7169
                %s7173 = scalar_lea.vmem %s6840, %s7172
                // While loop
                $region130: #{tpu_custom_call.1} parent=121 // loop_pre_header
                  _
                $region131: #{tpu_custom_call.1} parent=121 // loop_header
                  %s7175 = sphi 0, %s7177
                  %p7176 = scmp.ge.s32.totalorder %s7175, %s7168
                  %s7180 = sphi 0, %s7187
                  %s7181 = sphi %s7171, %s7190
                  %s7182 = sphi %s7173, %s7191
                $region132: #{tpu_custom_call.1} parent=121 // loop_header_branch
                  %7179 = sbr.rel (%p7176) target = $region136
                $region133: #{tpu_custom_call.1} parent=121 // loop_body
                  %v7183 = vld [vmem:[%s7181] sm:$0xff]
                  %7184 = vst [vmem:[%s7182] sm:$0xff] %v7183
                  %s7185 = sadd.s32 1, %s7180
                  %p7186 = scmp.ge.s32.totalorder %s7185, %s7168
                  %s7187 = scalar_select %p7186, 0, %s7185
                  %s7188 = smul.u32 %s7187, 8
                  %s7189 = smul.u32 %s7187, 8
                  %s7190 = scalar_lea.vmem %s7171, %s7188 [#allocation16]
                  %s7191 = scalar_lea.vmem %s7173, %s7189
                $region134: #{tpu_custom_call.1} parent=121 // loop_footer
                  %s7177 = sadd.s32 %s7175, 1
                $region135: #{tpu_custom_call.1} parent=121 // loop_footer_branch
                  %7174 = sbr.rel target = $region131
                $region136: #{tpu_custom_call.1} parent=121 // loop_exit
                  _
              $region122: #{tpu_custom_call.1} parent=99 // pred_fallthru
                _
              // Predicated region
              $region137: #{tpu_custom_call.1} parent=99 // pred_check
                _
              $region138: #{tpu_custom_call.1} parent=99 // pred_check_branch
                %7193 = sbr.rel target = $region140
              $region139: #{tpu_custom_call.1} parent=99 // pred_region
                _
              $region140: #{tpu_custom_call.1} parent=99 // pred_fallthru
                _
            $region100: #{tpu_custom_call.1} parent=95 // pred_fallthru
              _
            // Predicated region
            $region101: #{tpu_custom_call.1} parent=95 // pred_check
              _
            $region102: #{tpu_custom_call.1} parent=95 // pred_check_branch
              %6847 = sbr.rel target = $region104
            $region103: #{tpu_custom_call.1} parent=95 // pred_region
              %s6849 = ssub.s32 256, 1
              %s6850 = sshrl.u32 %s6836, 6
              // While loop
              $region105: #{tpu_custom_call.1} parent=103 // loop_pre_header
                _
              $region106: #{tpu_custom_call.1} parent=103 // loop_header
                %s6852 = sphi 0, %s6854
                %p6853 = scmp.ge.s32.totalorder %s6852, %s6850
                %s6857 = sphi 0, %s6990
                %s6858 = sphi %s6829, %s6993
                %s6859 = sphi %s6840, %s6994
              $region107: #{tpu_custom_call.1} parent=103 // loop_header_branch
                %6856 = sbr.rel (%p6853) target = $region111
              $region108: #{tpu_custom_call.1} parent=103 // loop_body
                %v6860 = vld [vmem:[%s6858] sm:%s6849]
                %6861 = vst [vmem:[%s6859] sm:%s6849] %v6860
                %v6862 = vld [vmem:[%s6858 + $0x8] sm:%s6849]
                %6863 = vst [vmem:[%s6859 + $0x8] sm:%s6849] %v6862
                %v6864 = vld [vmem:[%s6858 + $0x10] sm:%s6849]
                %6865 = vst [vmem:[%s6859 + $0x10] sm:%s6849] %v6864
                %v6866 = vld [vmem:[%s6858 + $0x18] sm:%s6849]
                %6867 = vst [vmem:[%s6859 + $0x18] sm:%s6849] %v6866
                %v6868 = vld [vmem:[%s6858 + $0x20] sm:%s6849]
                %6869 = vst [vmem:[%s6859 + $0x20] sm:%s6849] %v6868
                %v6870 = vld [vmem:[%s6858 + $0x28] sm:%s6849]
                %6871 = vst [vmem:[%s6859 + $0x28] sm:%s6849] %v6870
                %v6872 = vld [vmem:[%s6858 + $0x30] sm:%s6849]
                %6873 = vst [vmem:[%s6859 + $0x30] sm:%s6849] %v6872
                %v6874 = vld [vmem:[%s6858 + $0x38] sm:%s6849]
                %6875 = vst [vmem:[%s6859 + $0x38] sm:%s6849] %v6874
                %v6876 = vld [vmem:[%s6858 + $0x40] sm:%s6849]
                %6877 = vst [vmem:[%s6859 + $0x40] sm:%s6849] %v6876
                %v6878 = vld [vmem:[%s6858 + $0x48] sm:%s6849]
                %6879 = vst [vmem:[%s6859 + $0x48] sm:%s6849] %v6878
                %v6880 = vld [vmem:[%s6858 + $0x50] sm:%s6849]
                %6881 = vst [vmem:[%s6859 + $0x50] sm:%s6849] %v6880
                %v6882 = vld [vmem:[%s6858 + $0x58] sm:%s6849]
                %6883 = vst [vmem:[%s6859 + $0x58] sm:%s6849] %v6882
                %v6884 = vld [vmem:[%s6858 + $0x60] sm:%s6849]
                %6885 = vst [vmem:[%s6859 + $0x60] sm:%s6849] %v6884
                %v6886 = vld [vmem:[%s6858 + $0x68] sm:%s6849]
                %6887 = vst [vmem:[%s6859 + $0x68] sm:%s6849] %v6886
                %v6888 = vld [vmem:[%s6858 + $0x70] sm:%s6849]
                %6889 = vst [vmem:[%s6859 + $0x70] sm:%s6849] %v6888
                %v6890 = vld [vmem:[%s6858 + $0x78] sm:%s6849]
                %6891 = vst [vmem:[%s6859 + $0x78] sm:%s6849] %v6890
                %v6892 = vld [vmem:[%s6858 + $0x80] sm:%s6849]
                %6893 = vst [vmem:[%s6859 + $0x80] sm:%s6849] %v6892
                %v6894 = vld [vmem:[%s6858 + $0x88] sm:%s6849]
                %6895 = vst [vmem:[%s6859 + $0x88] sm:%s6849] %v6894
                %v6896 = vld [vmem:[%s6858 + $0x90] sm:%s6849]
                %6897 = vst [vmem:[%s6859 + $0x90] sm:%s6849] %v6896
                %v6898 = vld [vmem:[%s6858 + $0x98] sm:%s6849]
                %6899 = vst [vmem:[%s6859 + $0x98] sm:%s6849] %v6898
                %v6900 = vld [vmem:[%s6858 + $0xa0] sm:%s6849]
                %6901 = vst [vmem:[%s6859 + $0xa0] sm:%s6849] %v6900
                %v6902 = vld [vmem:[%s6858 + $0xa8] sm:%s6849]
                %6903 = vst [vmem:[%s6859 + $0xa8] sm:%s6849] %v6902
                %v6904 = vld [vmem:[%s6858 + $0xb0] sm:%s6849]
                %6905 = vst [vmem:[%s6859 + $0xb0] sm:%s6849] %v6904
                %v6906 = vld [vmem:[%s6858 + $0xb8] sm:%s6849]
                %6907 = vst [vmem:[%s6859 + $0xb8] sm:%s6849] %v6906
                %v6908 = vld [vmem:[%s6858 + $0xc0] sm:%s6849]
                %6909 = vst [vmem:[%s6859 + $0xc0] sm:%s6849] %v6908
                %v6910 = vld [vmem:[%s6858 + $0xc8] sm:%s6849]
                %6911 = vst [vmem:[%s6859 + $0xc8] sm:%s6849] %v6910
                %v6912 = vld [vmem:[%s6858 + $0xd0] sm:%s6849]
                %6913 = vst [vmem:[%s6859 + $0xd0] sm:%s6849] %v6912
                %v6914 = vld [vmem:[%s6858 + $0xd8] sm:%s6849]
                %6915 = vst [vmem:[%s6859 + $0xd8] sm:%s6849] %v6914
                %v6916 = vld [vmem:[%s6858 + $0xe0] sm:%s6849]
                %6917 = vst [vmem:[%s6859 + $0xe0] sm:%s6849] %v6916
                %v6918 = vld [vmem:[%s6858 + $0xe8] sm:%s6849]
                %6919 = vst [vmem:[%s6859 + $0xe8] sm:%s6849] %v6918
                %v6920 = vld [vmem:[%s6858 + $0xf0] sm:%s6849]
                %6921 = vst [vmem:[%s6859 + $0xf0] sm:%s6849] %v6920
                %v6922 = vld [vmem:[%s6858 + $0xf8] sm:%s6849]
                %6923 = vst [vmem:[%s6859 + $0xf8] sm:%s6849] %v6922
                %v6924 = vld [vmem:[%s6858 + $0x100] sm:%s6849]
                %6925 = vst [vmem:[%s6859 + $0x100] sm:%s6849] %v6924
                %v6926 = vld [vmem:[%s6858 + $0x108] sm:%s6849]
                %6927 = vst [vmem:[%s6859 + $0x108] sm:%s6849] %v6926
                %v6928 = vld [vmem:[%s6858 + $0x110] sm:%s6849]
                %6929 = vst [vmem:[%s6859 + $0x110] sm:%s6849] %v6928
                %v6930 = vld [vmem:[%s6858 + $0x118] sm:%s6849]
                %6931 = vst [vmem:[%s6859 + $0x118] sm:%s6849] %v6930
                %v6932 = vld [vmem:[%s6858 + $0x120] sm:%s6849]
                %6933 = vst [vmem:[%s6859 + $0x120] sm:%s6849] %v6932
                %v6934 = vld [vmem:[%s6858 + $0x128] sm:%s6849]
                %6935 = vst [vmem:[%s6859 + $0x128] sm:%s6849] %v6934
                %v6936 = vld [vmem:[%s6858 + $0x130] sm:%s6849]
                %6937 = vst [vmem:[%s6859 + $0x130] sm:%s6849] %v6936
                %v6938 = vld [vmem:[%s6858 + $0x138] sm:%s6849]
                %6939 = vst [vmem:[%s6859 + $0x138] sm:%s6849] %v6938
                %v6940 = vld [vmem:[%s6858 + $0x140] sm:%s6849]
                %6941 = vst [vmem:[%s6859 + $0x140] sm:%s6849] %v6940
                %v6942 = vld [vmem:[%s6858 + $0x148] sm:%s6849]
                %6943 = vst [vmem:[%s6859 + $0x148] sm:%s6849] %v6942
                %v6944 = vld [vmem:[%s6858 + $0x150] sm:%s6849]
                %6945 = vst [vmem:[%s6859 + $0x150] sm:%s6849] %v6944
                %v6946 = vld [vmem:[%s6858 + $0x158] sm:%s6849]
                %6947 = vst [vmem:[%s6859 + $0x158] sm:%s6849] %v6946
                %v6948 = vld [vmem:[%s6858 + $0x160] sm:%s6849]
                %6949 = vst [vmem:[%s6859 + $0x160] sm:%s6849] %v6948
                %v6950 = vld [vmem:[%s6858 + $0x168] sm:%s6849]
                %6951 = vst [vmem:[%s6859 + $0x168] sm:%s6849] %v6950
                %v6952 = vld [vmem:[%s6858 + $0x170] sm:%s6849]
                %6953 = vst [vmem:[%s6859 + $0x170] sm:%s6849] %v6952
                %v6954 = vld [vmem:[%s6858 + $0x178] sm:%s6849]
                %6955 = vst [vmem:[%s6859 + $0x178] sm:%s6849] %v6954
                %v6956 = vld [vmem:[%s6858 + $0x180] sm:%s6849]
                %6957 = vst [vmem:[%s6859 + $0x180] sm:%s6849] %v6956
                %v6958 = vld [vmem:[%s6858 + $0x188] sm:%s6849]
                %6959 = vst [vmem:[%s6859 + $0x188] sm:%s6849] %v6958
                %v6960 = vld [vmem:[%s6858 + $0x190] sm:%s6849]
                %6961 = vst [vmem:[%s6859 + $0x190] sm:%s6849] %v6960
                %v6962 = vld [vmem:[%s6858 + $0x198] sm:%s6849]
                %6963 = vst [vmem:[%s6859 + $0x198] sm:%s6849] %v6962
                %v6964 = vld [vmem:[%s6858 + $0x1a0] sm:%s6849]
                %6965 = vst [vmem:[%s6859 + $0x1a0] sm:%s6849] %v6964
                %v6966 = vld [vmem:[%s6858 + $0x1a8] sm:%s6849]
                %6967 = vst [vmem:[%s6859 + $0x1a8] sm:%s6849] %v6966
                %v6968 = vld [vmem:[%s6858 + $0x1b0] sm:%s6849]
                %6969 = vst [vmem:[%s6859 + $0x1b0] sm:%s6849] %v6968
                %v6970 = vld [vmem:[%s6858 + $0x1b8] sm:%s6849]
                %6971 = vst [vmem:[%s6859 + $0x1b8] sm:%s6849] %v6970
                %v6972 = vld [vmem:[%s6858 + $0x1c0] sm:%s6849]
                %6973 = vst [vmem:[%s6859 + $0x1c0] sm:%s6849] %v6972
                %v6974 = vld [vmem:[%s6858 + $0x1c8] sm:%s6849]
                %6975 = vst [vmem:[%s6859 + $0x1c8] sm:%s6849] %v6974
                %v6976 = vld [vmem:[%s6858 + $0x1d0] sm:%s6849]
                %6977 = vst [vmem:[%s6859 + $0x1d0] sm:%s6849] %v6976
                %v6978 = vld [vmem:[%s6858 + $0x1d8] sm:%s6849]
                %6979 = vst [vmem:[%s6859 + $0x1d8] sm:%s6849] %v6978
                %v6980 = vld [vmem:[%s6858 + $0x1e0] sm:%s6849]
                %6981 = vst [vmem:[%s6859 + $0x1e0] sm:%s6849] %v6980
                %v6982 = vld [vmem:[%s6858 + $0x1e8] sm:%s6849]
                %6983 = vst [vmem:[%s6859 + $0x1e8] sm:%s6849] %v6982
                %v6984 = vld [vmem:[%s6858 + $0x1f0] sm:%s6849]
                %6985 = vst [vmem:[%s6859 + $0x1f0] sm:%s6849] %v6984
                %v6986 = vld [vmem:[%s6858 + $0x1f8] sm:%s6849]
                %6987 = vst [vmem:[%s6859 + $0x1f8] sm:%s6849] %v6986
                %s6988 = sadd.s32 1, %s6857
                %p6989 = scmp.ge.s32.totalorder %s6988, %s6850
                %s6990 = scalar_select %p6989, 0, %s6988
                %s6991 = smul.u32 %s6990, 512
                %s6992 = smul.u32 %s6990, 512
                %s6993 = scalar_lea.vmem %s6829, %s6991 [#allocation16]
                %s6994 = scalar_lea.vmem %s6840, %s6992
              $region109: #{tpu_custom_call.1} parent=103 // loop_footer
                %s6854 = sadd.s32 %s6852, 1
              $region110: #{tpu_custom_call.1} parent=103 // loop_footer_branch
                %6851 = sbr.rel target = $region106
              $region111: #{tpu_custom_call.1} parent=103 // loop_exit
                _
              %s6995 = sshrl.u32 %s6836, 6
              %s6996 = sand.u32 %s6836, 63
              %s6997 = smul.u32 %s6995, 64
              %s6998 = smul.u32 8, %s6997
              %s6999 = scalar_lea.vmem %s6829, %s6998 [#allocation16]
              %s7000 = smul.u32 8, %s6997
              %s7001 = scalar_lea.vmem %s6840, %s7000
              // While loop
              $region112: #{tpu_custom_call.1} parent=103 // loop_pre_header
                _
              $region113: #{tpu_custom_call.1} parent=103 // loop_header
                %s7003 = sphi 0, %s7005
                %p7004 = scmp.ge.s32.totalorder %s7003, %s6996
                %s7008 = sphi 0, %s7015
                %s7009 = sphi %s6999, %s7018
                %s7010 = sphi %s7001, %s7019
              $region114: #{tpu_custom_call.1} parent=103 // loop_header_branch
                %7007 = sbr.rel (%p7004) target = $region118
              $region115: #{tpu_custom_call.1} parent=103 // loop_body
                %v7011 = vld [vmem:[%s7009] sm:%s6849]
                %7012 = vst [vmem:[%s7010] sm:%s6849] %v7011
                %s7013 = sadd.s32 1, %s7008
                %p7014 = scmp.ge.s32.totalorder %s7013, %s6996
                %s7015 = scalar_select %p7014, 0, %s7013
                %s7016 = smul.u32 %s7015, 8
                %s7017 = smul.u32 %s7015, 8
                %s7018 = scalar_lea.vmem %s6999, %s7016 [#allocation16]
                %s7019 = scalar_lea.vmem %s7001, %s7017
              $region116: #{tpu_custom_call.1} parent=103 // loop_footer
                %s7005 = sadd.s32 %s7003, 1
              $region117: #{tpu_custom_call.1} parent=103 // loop_footer_branch
                %7002 = sbr.rel target = $region113
              $region118: #{tpu_custom_call.1} parent=103 // loop_exit
                _
            $region104: #{tpu_custom_call.1} parent=95 // pred_fallthru
              _
          $region96: #{tpu_custom_call.1} parent=91 // pred_fallthru
            _
          %7194 = vnop
        $region92: #{tpu_custom_call.1} parent=55 // pred_fallthru
          _
      $region56: #{tpu_custom_call.1} parent=5 // pred_fallthru
        _
      %p7195 = scmp.le.s32.totalorder 2, %s23
      // Predicated region
      $region141: #{tpu_custom_call.1} parent=5 // pred_check
        %p7196 = pneg %p7195
      $region142: #{tpu_custom_call.1} parent=5 // pred_check_branch
        %7198 = sbr.rel (%p7196) target = $region144
      $region143: #{tpu_custom_call.1} parent=5 // pred_region
        %s7199 = ssub.s32 %s23, 2
        // Predicated region
        $region145: #{tpu_custom_call.1} parent=143 // pred_check
          %p7200 = pneg %p246
        $region146: #{tpu_custom_call.1} parent=143 // pred_check_branch
          %7202 = sbr.rel (%p7200) target = $region148
        $region147: #{tpu_custom_call.1} parent=143 // pred_region
          %s7203 = sand.u32 %s231, 1
          %s7204 = sand.u32 %s231, 1
          %s7205 = smul.addr %s7204, 512
          %s7206 = scalar_lea.vmem [#allocation16], %s7205
        $region148: #{tpu_custom_call.1} parent=143 // pred_fallthru
          _
      $region144: #{tpu_custom_call.1} parent=5 // pred_fallthru
        _
    $region6: #{tpu_custom_call.1} parent=1 // loop_footer
      %s27 = sadd.s32 1, %s23
    $region7: #{tpu_custom_call.1} parent=1 // loop_footer_branch
      %22 = sbr.rel target = $region3
    $region8: #{tpu_custom_call.1} parent=1 // loop_exit
      _
    %7207 = vsyncpa [#allocation4], 1
    %s7208 = scalar_lea.sflag [#allocation4], 1
    %7209 = vsyncpa %s7208, 1
    %7210 = vsyncpa [#allocation6], 1
    %7211 = vsyncpa [#allocation9], 1
    %7212 = vsyncpa [#allocation12], 1
    %7213 = vsyncpa [#allocation15], 1

</llo_original>
